<compile_context>
chip_gen: v5e
topology: v5e:2x2
jax: 0.10.0
libtpu: 0.0.40
codegen_flags: <defaults>
</compile_context>

<pallas_src>
import functools

import jax
import jax.numpy as jnp
from jax.experimental import pallas as pl
from jax.experimental.pallas import tpu as pltpu

IMG_SIZE = 64
IN_FEATURES = 3 * IMG_SIZE * IMG_SIZE  # 12288
H1 = 512
H2 = 256
OUT = 1
NEG_SLOPE = 0.2


def _leaky_relu(x, negative_slope=NEG_SLOPE):
    return jnp.where(x > 0, x, negative_slope * x)


def discriminator_kernel(x_ref, w1q_ref, s1_ref, b1_ref, w2_ref, b2_ref,
                         w3t_ref, b3_ref, out_ref, acc_ref):
    """Grid axis 0 tiles the reduction (K) dim of the first Linear.

    W1 arrives as int8 K-tiles and is widened to bf16 on the VPU (the MXU
    only sees bf16 -> portable to v7x).  acc_ref accumulates x @ W1q in f32
    across K-tiles.  At the final K step the per-channel dequant scales, b1,
    and the tiny second/third Linear layers + LeakyReLUs are fused in.
    """
    k = pl.program_id(0)

    @pl.when(k == 0)
    def _():
        acc_ref[...] = jnp.zeros_like(acc_ref)

    x_tile = x_ref[...].astype(jnp.bfloat16)
    w1_tile = w1q_ref[...].astype(jnp.bfloat16)  # int8 values exact in bf16
    acc_ref[...] += jnp.dot(x_tile, w1_tile,
                            preferred_element_type=jnp.float32)

    @pl.when(k == pl.num_programs(0) - 1)
    def _():
        h1 = _leaky_relu(acc_ref[...] * s1_ref[...] + b1_ref[...])
        h2 = _leaky_relu(
            jnp.dot(h1.astype(jnp.bfloat16), w2_ref[...],
                    preferred_element_type=jnp.float32)
            + b2_ref[...])
        # Third Linear has N=1: VPU multiply + cross-lane reduce, not MXU.
        out = jnp.sum(h2 * w3t_ref[...], axis=-1, keepdims=True) + b3_ref[...]
        out_ref[...] = out.astype(out_ref.dtype)


@functools.partial(jax.jit, static_argnames=("tk",))
def discriminator_forward(img, prepared_params, *, tk=4096):
    """img: (B, 3, 64, 64) float32 NCHW.  prepared_params: output of
    prepare_params (weights already quantized/cast; no per-call converts).
    Returns validity (B, 1) float32."""
    w1q, s1, b1, w2, b2, w3t, b3 = prepared_params
    B = img.shape[0]
    x = img.reshape(B, -1)  # row-major flatten == torch .view; stays f32
    K = x.shape[1]
    assert K % tk == 0, "reduction dim must divide the K tile"

    grid = (K // tk,)

    # TODO(synk): on v7x, a second ("parallel") grid axis over H1 could shard
    # the W1 column stream across both TensorCores; single-TC here.
    out = pl.pallas_call(
        discriminator_kernel,
        out_shape=jax.ShapeDtypeStruct((B, OUT), jnp.float32),
        grid_spec=pltpu.PrefetchScalarGridSpec(
            num_scalar_prefetch=0,
            grid=grid,
            in_specs=[
                pl.BlockSpec((B, tk), lambda k: (0, k)),     # x K-tile (f32)
                pl.BlockSpec((tk, H1), lambda k: (k, 0)),    # W1 K-tile (int8)
                pl.BlockSpec((1, H1), lambda k: (0, 0)),     # W1 dequant scales
                pl.BlockSpec((1, H1), lambda k: (0, 0)),     # b1 (f32)
                pl.BlockSpec((H1, H2), lambda k: (0, 0)),    # W2 (bf16, resident)
                pl.BlockSpec((1, H2), lambda k: (0, 0)),     # b2 (f32)
                pl.BlockSpec((1, H2), lambda k: (0, 0)),     # W3^T (f32)
                pl.BlockSpec((1, OUT), lambda k: (0, 0)),    # b3 (f32)
            ],
            out_specs=pl.BlockSpec((B, OUT), lambda k: (0, 0)),
            scratch_shapes=[pltpu.VMEM((B, H1), jnp.float32)],  # layer-1 acc
        ),
        compiler_params=pltpu.CompilerParams(
            dimension_semantics=("arbitrary",)),
    )(x, w1q, s1, b1, w2, b2, w3t, b3)
    return out


def init_params(key):
    """Deterministic init mimicking torch.nn.Linear default:
    U(-1/sqrt(fan_in), 1/sqrt(fan_in)). Weights stored as (in, out), f32."""
    ks = jax.random.split(key, 6)

    def lin(kw, kb, fan_in, fan_out):
        bound = 1.0 / (fan_in ** 0.5)
        w = jax.random.uniform(kw, (fan_in, fan_out), jnp.float32,
                               minval=-bound, maxval=bound)
        b = jax.random.uniform(kb, (1, fan_out), jnp.float32,
                               minval=-bound, maxval=bound)
        return w, b

    w1, b1 = lin(ks[0], ks[1], IN_FEATURES, H1)
    w2, b2 = lin(ks[2], ks[3], H1, H2)
    w3, b3 = lin(ks[4], ks[5], H2, OUT)
    return (w1, b1, w2, b2, w3, b3)


def prepare_params(params):
    """One-time precision prep (call once, OUTSIDE the jitted hot path):
      * W1 -> int8, symmetric per-output-channel scales (absmax / 127),
      * W2 -> bf16,
      * W3 -> pre-transposed to (1, 256) for the VPU reduction epilogue.
    Biases/scales stay f32 and are applied in f32 in the kernel epilogue."""
    w1, b1, w2, b2, w3, b3 = params
    absmax = jnp.max(jnp.abs(w1), axis=0, keepdims=True)            # (1, H1)
    s1 = jnp.where(absmax > 0, absmax / 127.0, 1.0).astype(jnp.float32)
    w1q = jnp.clip(jnp.round(w1 / s1), -127.0, 127.0).astype(jnp.int8)
    return (w1q, s1, b1,
            w2.astype(jnp.bfloat16), b2,
            jnp.transpose(w3).astype(jnp.float32), b3)


def reference_forward_quant(img, prepared_params):
    """Pure-JAX reference applying exactly the kernel's numerics
    (int8 W1 + per-channel dequant, bf16 operands, f32 accumulation)."""
    w1q, s1, b1, w2, b2, w3t, b3 = prepared_params
    x = img.reshape(img.shape[0], -1).astype(jnp.bfloat16)
    acc = jnp.dot(x, w1q.astype(jnp.bfloat16),
                  preferred_element_type=jnp.float32)
    h1 = _leaky_relu(acc * s1 + b1)
    h2 = _leaky_relu(
        jnp.dot(h1.astype(jnp.bfloat16), w2,
                preferred_element_type=jnp.float32) + b2)
    return jnp.sum(h2 * w3t, axis=-1, keepdims=True) + b3


def reference_forward_f32(img, params):
    """Full-f32 pure-JAX reference (PyTorch-equivalent math)."""
    w1, b1, w2, b2, w3, b3 = params
    x = img.reshape(img.shape[0], -1)
    h1 = _leaky_relu(x @ w1 + b1)
    h2 = _leaky_relu(h1 @ w2 + b2)
    return h2 @ w3 + b3


if __name__ == "__main__":
    key = jax.random.PRNGKey(0)
    k_img, k_params = jax.random.split(key)

    B = 2
    img = jax.random.normal(k_img, (B, 3, IMG_SIZE, IMG_SIZE), jnp.float32)
    params = init_params(k_params)
    prepared = prepare_params(params)   # one-time; NOT inside the jitted path

    validity = discriminator_forward(img, prepared)
    validity = jax.block_until_ready(validity)
    assert validity.shape == (B, 1)

    # Exact-path reference (same int8/bf16 quantization, f32 accumulation).
    ref_q = reference_forward_quant(img, prepared)
    assert jnp.allclose(validity, ref_q, atol=2e-3, rtol=2e-3), (
        f"mismatch vs quantized-path reference: {validity} vs {ref_q}")

    # Full-f32 reference: looser tolerance (int8 W1 + bf16 streaming).
    ref_f32 = reference_forward_f32(img, params)
    assert jnp.allclose(validity, ref_f32, atol=5e-2, rtol=5e-2), (
        f"mismatch vs f32 reference: {validity} vs {ref_f32}")

    print("KERNEL_OK")
</pallas_src>

<mosaic_0001>
module attributes {stable_mosaic.version = 11 : i64} {
  func.func @discriminator_kernel(%arg0: i32, %arg1: memref<2x4096xf32, #tpu.memory_space<vmem>>, %arg2: memref<4096x512xi8, #tpu.memory_space<vmem>>, %arg3: memref<1x512xf32, #tpu.memory_space<vmem>>, %arg4: memref<1x512xf32, #tpu.memory_space<vmem>>, %arg5: memref<512x256xbf16, #tpu.memory_space<vmem>>, %arg6: memref<1x256xf32, #tpu.memory_space<vmem>>, %arg7: memref<1x256xf32, #tpu.memory_space<vmem>>, %arg8: memref<1x1xf32, #tpu.memory_space<vmem>>, %arg9: memref<2x1xf32, #tpu.memory_space<vmem>>, %arg10: memref<2x512xf32, #tpu.memory_space<vmem>>) attributes {dimension_semantics = [#tpu.dimension_semantics<arbitrary>], iteration_bounds = array<i64: 3>, scalar_prefetch = 0 : i64, scratch_operands = 1 : i64, tpu.core_type = #tpu.core_type<tc>, window_params = [{transform_indices = @transform_0, window_bounds = array<i64: 2, 4096>}, {transform_indices = @transform_1, window_bounds = array<i64: 4096, 512>}, {pipeline_mode = #tpu.pipeline_mode<synchronous>, transform_indices = @transform_2, window_bounds = array<i64: 1, 512>}, {pipeline_mode = #tpu.pipeline_mode<synchronous>, transform_indices = @transform_3, window_bounds = array<i64: 1, 512>}, {pipeline_mode = #tpu.pipeline_mode<synchronous>, transform_indices = @transform_4, window_bounds = array<i64: 512, 256>}, {pipeline_mode = #tpu.pipeline_mode<synchronous>, transform_indices = @transform_5, window_bounds = array<i64: 1, 256>}, {pipeline_mode = #tpu.pipeline_mode<synchronous>, transform_indices = @transform_6, window_bounds = array<i64: 1, 256>}, {pipeline_mode = #tpu.pipeline_mode<synchronous>, transform_indices = @transform_7, window_bounds = array<i64: 1, 1>}, {pipeline_mode = #tpu.pipeline_mode<synchronous>, transform_indices = @transform_8, window_bounds = array<i64: 2, 1>}]} {
    %c0_i32 = arith.constant 0 : i32
    %0 = arith.cmpi eq, %arg0, %c0_i32 : i32
    %1 = arith.extui %0 : i1 to i32
    %c0_i32_0 = arith.constant 0 : i32
    %2 = arith.cmpi ne, %1, %c0_i32_0 : i32
    scf.if %2 {
      %cst_9 = arith.constant 0.000000e+00 : f32
      %14 = vector.broadcast %cst_9 : f32 to vector<2x512xf32>
      %c0_10 = arith.constant 0 : index
      %c0_11 = arith.constant 0 : index
      %15 = vector.load %arg10[%c0_10, %c0_11] : memref<2x512xf32, #tpu.memory_space<vmem>>, vector<2x512xf32>
      tpu.vector_store %arg10[%c0_10, %c0_11], %14 {strides = array<i32>} : memref<2x512xf32, #tpu.memory_space<vmem>>, vector<2x512xf32>,
    } else {
    }
    %c0 = arith.constant 0 : index
    %c0_1 = arith.constant 0 : index
    %3 = vector.load %arg1[%c0, %c0_1] : memref<2x4096xf32, #tpu.memory_space<vmem>>, vector<2x4096xf32>
    %4 = arith.truncf %3 : vector<2x4096xf32> to vector<2x4096xbf16>
    %c0_2 = arith.constant 0 : index
    %c0_3 = arith.constant 0 : index
    %5 = vector.load %arg2[%c0_2, %c0_3] : memref<4096x512xi8, #tpu.memory_space<vmem>>, vector<4096x512xi8>
    %6 = arith.sitofp %5 : vector<4096x512xi8> to vector<4096x512xbf16>
    %c0_4 = arith.constant 0 : index
    %c0_5 = arith.constant 0 : index
    %7 = vector.load %arg10[%c0_4, %c0_5] : memref<2x512xf32, #tpu.memory_space<vmem>>, vector<2x512xf32>
    %cst = arith.constant dense<0.000000e+00> : vector<2x512xf32>
    %8 = tpu.matmul %4, %6, %cst {dimension_numbers = #tpu.dot_dimension_numbers<[1], [0], [0], [1], [0, 0, 1, 1], [], []>} : vector<2x4096xbf16>, vector<4096x512xbf16>, vector<2x512xf32> -> vector<2x512xf32>
    %9 = arith.addf %7, %8 : vector<2x512xf32>
    %c0_6 = arith.constant 0 : index
    %c0_7 = arith.constant 0 : index
    %10 = vector.load %arg10[%c0_6, %c0_7] : memref<2x512xf32, #tpu.memory_space<vmem>>, vector<2x512xf32>
    tpu.vector_store %arg10[%c0_6, %c0_7], %9 {strides = array<i32>} : memref<2x512xf32, #tpu.memory_space<vmem>>, vector<2x512xf32>,
    %c2_i32 = arith.constant 2 : i32
    %11 = arith.cmpi eq, %arg0, %c2_i32 : i32
    %12 = arith.extui %11 : i1 to i32
    %c0_i32_8 = arith.constant 0 : i32
    %13 = arith.cmpi ne, %12, %c0_i32_8 : i32
    scf.if %13 {
      %c0_9 = arith.constant 0 : index
      %c0_10 = arith.constant 0 : index
      %14 = vector.load %arg10[%c0_9, %c0_10] : memref<2x512xf32, #tpu.memory_space<vmem>>, vector<2x512xf32>
      %c0_11 = arith.constant 0 : index
      %c0_12 = arith.constant 0 : index
      %15 = vector.load %arg3[%c0_11, %c0_12] : memref<1x512xf32, #tpu.memory_space<vmem>>, vector<1x512xf32>
      %16 = vector.broadcast %15 : vector<1x512xf32> to vector<2x512xf32>
      %17 = arith.mulf %14, %16 : vector<2x512xf32>
      %c0_13 = arith.constant 0 : index
      %c0_14 = arith.constant 0 : index
      %18 = vector.load %arg4[%c0_13, %c0_14] : memref<1x512xf32, #tpu.memory_space<vmem>>, vector<1x512xf32>
      %19 = vector.broadcast %18 : vector<1x512xf32> to vector<2x512xf32>
      %20 = arith.addf %17, %19 : vector<2x512xf32>
      %cst_15 = arith.constant 0.000000e+00 : f32
      %21 = vector.broadcast %cst_15 : f32 to vector<2x512xf32>
      %22 = arith.cmpf ogt, %20, %21 : vector<2x512xf32>
      %cst_16 = arith.constant 2.000000e-01 : f32
      %23 = vector.broadcast %cst_16 : f32 to vector<2x512xf32>
      %24 = arith.mulf %23, %20 : vector<2x512xf32>
      %25 = arith.select %22, %20, %24 : vector<2x512xi1>, vector<2x512xf32>
      %26 = arith.truncf %25 : vector<2x512xf32> to vector<2x512xbf16>
      %c0_17 = arith.constant 0 : index
      %c0_18 = arith.constant 0 : index
      %27 = vector.load %arg5[%c0_17, %c0_18] : memref<512x256xbf16, #tpu.memory_space<vmem>>, vector<512x256xbf16>
      %cst_19 = arith.constant dense<0.000000e+00> : vector<2x256xf32>
      %28 = tpu.matmul %26, %27, %cst_19 {dimension_numbers = #tpu.dot_dimension_numbers<[1], [0], [0], [1], [0, 0, 1, 1], [], []>} : vector<2x512xbf16>, vector<512x256xbf16>, vector<2x256xf32> -> vector<2x256xf32>
      %c0_20 = arith.constant 0 : index
      %c0_21 = arith.constant 0 : index
      %29 = vector.load %arg6[%c0_20, %c0_21] : memref<1x256xf32, #tpu.memory_space<vmem>>, vector<1x256xf32>
      %30 = vector.broadcast %29 : vector<1x256xf32> to vector<2x256xf32>
      %31 = arith.addf %28, %30 : vector<2x256xf32>
      %cst_22 = arith.constant 0.000000e+00 : f32
      %32 = vector.broadcast %cst_22 : f32 to vector<2x256xf32>
      %33 = arith.cmpf ogt, %31, %32 : vector<2x256xf32>
      %cst_23 = arith.constant 2.000000e-01 : f32
      %34 = vector.broadcast %cst_23 : f32 to vector<2x256xf32>
      %35 = arith.mulf %34, %31 : vector<2x256xf32>
      %36 = arith.select %33, %31, %35 : vector<2x256xi1>, vector<2x256xf32>
      %c0_24 = arith.constant 0 : index
      %c0_25 = arith.constant 0 : index
      %37 = vector.load %arg7[%c0_24, %c0_25] : memref<1x256xf32, #tpu.memory_space<vmem>>, vector<1x256xf32>
      %38 = vector.broadcast %37 : vector<1x256xf32> to vector<2x256xf32>
      %39 = arith.mulf %36, %38 : vector<2x256xf32>
      %cst_26 = arith.constant dense<0.000000e+00> : vector<2xf32>
      %40 = vector.multi_reduction <add>, %39, %cst_26 [1] : vector<2x256xf32> to vector<2xf32>
      %41 = vector.shape_cast %40 : vector<2xf32> to vector<2x1xf32>
      %c0_27 = arith.constant 0 : index
      %c0_28 = arith.constant 0 : index
      %42 = vector.load %arg8[%c0_27, %c0_28] : memref<1x1xf32, #tpu.memory_space<vmem>>, vector<1x1xf32>
      %43 = vector.broadcast %42 : vector<1x1xf32> to vector<2x1xf32>
      %44 = arith.addf %41, %43 : vector<2x1xf32>
      %c0_29 = arith.constant 0 : index
      %c0_30 = arith.constant 0 : index
      %45 = vector.load %arg9[%c0_29, %c0_30] : memref<2x1xf32, #tpu.memory_space<vmem>>, vector<2x1xf32>
      tpu.vector_store %arg9[%c0_29, %c0_30], %44 {strides = array<i32>} : memref<2x1xf32, #tpu.memory_space<vmem>>, vector<2x1xf32>,
    } else {
    }
    return
  }
  func.func @transform_0(%arg0: i32) -> (i32, i32) {
    %c0_i32 = arith.constant 0 : i32
    %c0_i32_0 = arith.constant 0 : i32
    return %c0_i32, %arg0 : i32, i32
  }
  func.func @transform_1(%arg0: i32) -> (i32, i32) {
    %c0_i32 = arith.constant 0 : i32
    %c0_i32_0 = arith.constant 0 : i32
    return %arg0, %c0_i32 : i32, i32
  }
  func.func @transform_2(%arg0: i32) -> (i32, i32) {
    %c0_i32 = arith.constant 0 : i32
    %c0_i32_0 = arith.constant 0 : i32
    %c0_i32_1 = arith.constant 0 : i32
    return %c0_i32, %c0_i32_0 : i32, i32
  }
  func.func @transform_3(%arg0: i32) -> (i32, i32) {
    %c0_i32 = arith.constant 0 : i32
    %c0_i32_0 = arith.constant 0 : i32
    %c0_i32_1 = arith.constant 0 : i32
    return %c0_i32, %c0_i32_0 : i32, i32
  }
  func.func @transform_4(%arg0: i32) -> (i32, i32) {
    %c0_i32 = arith.constant 0 : i32
    %c0_i32_0 = arith.constant 0 : i32
    %c0_i32_1 = arith.constant 0 : i32
    return %c0_i32, %c0_i32_0 : i32, i32
  }
  func.func @transform_5(%arg0: i32) -> (i32, i32) {
    %c0_i32 = arith.constant 0 : i32
    %c0_i32_0 = arith.constant 0 : i32
    %c0_i32_1 = arith.constant 0 : i32
    return %c0_i32, %c0_i32_0 : i32, i32
  }
  func.func @transform_6(%arg0: i32) -> (i32, i32) {
    %c0_i32 = arith.constant 0 : i32
    %c0_i32_0 = arith.constant 0 : i32
    %c0_i32_1 = arith.constant 0 : i32
    return %c0_i32, %c0_i32_0 : i32, i32
  }
  func.func @transform_7(%arg0: i32) -> (i32, i32) {
    %c0_i32 = arith.constant 0 : i32
    %c0_i32_0 = arith.constant 0 : i32
    %c0_i32_1 = arith.constant 0 : i32
    return %c0_i32, %c0_i32_0 : i32, i32
  }
  func.func @transform_8(%arg0: i32) -> (i32, i32) {
    %c0_i32 = arith.constant 0 : i32
    %c0_i32_0 = arith.constant 0 : i32
    %c0_i32_1 = arith.constant 0 : i32
    return %c0_i32, %c0_i32_0 : i32, i32
  }
}

</mosaic_0001>

<llo_original>
// kernel: discriminator_forward.1
$region0: #{discriminator_forward.1}
  #allocation0 [shape = 'u32[]', space=smem, size = 0x4, offset = 0x4, fixed_abs, tag = 'smem constant byte address 0x4 - core index']
  #allocation1 [shape = 'u32[72,128]{1,0:T(1,128)}', space=vmem, size = 0x9000, scoped, tag = 'internal scratch']
  #allocation2 [shape = 'f32[2,512]{1,0:T(2,128)}', space=vmem, size = 0x1000, scoped, tag = 'scratch operand']
  #allocation3 [shape = 'f32[1,1]{1,0:T(1,128)S(1)}', space=vmem, size = 0x200, scoped, tag = 'scoped memory for discriminator_forward.1']
  %s0 = inlined_call_operand.vmem [shape: f32[2,12288], index: 0, kind: input, shape index: {}]
  %s1 = inlined_call_operand.hbm [shape: s8[12288,512], index: 1, kind: input, shape index: {}]
  %s2 = inlined_call_operand.hbm [shape: f32[1,512], index: 2, kind: input, shape index: {}]
  %s3 = inlined_call_operand.hbm [shape: f32[1,512], index: 3, kind: input, shape index: {}]
  %s4 = inlined_call_operand.hbm [shape: bf16[512,256], index: 4, kind: input, shape index: {}]
  %s5 = inlined_call_operand.hbm [shape: f32[1,256], index: 5, kind: input, shape index: {}]
  %s6 = inlined_call_operand.hbm [shape: f32[1,256], index: 6, kind: input, shape index: {}]
  %s7 = inlined_call_operand.<no memory space> [shape: f32[1,1], index: 7, kind: input, shape index: {}]
  %s8 = inlined_call_operand.vmem [shape: f32[2,1], index: 8, kind: output, shape index: {}]
  %s9 = sld [smem:[#allocation0]]
  $region97: #{discriminator_forward.1} parent=0
    _
  %s11 = ssub.s32 1, %s9
  %s12 = scalar_select 0, %s11, %s9
  %v13 = vstv %s7
  %14 = vst [vmem:[#allocation3] sm:$0x1] %v13
  $region1: #{discriminator_forward.1} parent=0
    #allocation4 [shape = 'u8[4194304]{0}', space=vmem, size = 0x400000, scoped, tag = 'input window, operand 1']
    #allocation5 [shape = 's32[2]{0}', space=sflag, size = 0x8, scoped, tag = 'scoped memory for discriminator_forward.1']
    #allocation6 [shape = 'u8[2048]{0}', space=vmem, size = 0x800, scoped, tag = 'input window, operand 2, single buffered']
    #allocation7 [shape = 's32[1]{0}', space=sflag, size = 0x4, scoped, tag = 'scoped memory for discriminator_forward.1']
    #allocation8 [shape = 'u8[2048]{0}', space=vmem, size = 0x800, scoped, tag = 'input window, operand 3, single buffered']
    #allocation9 [shape = 'u8[262144]{0}', space=vmem, size = 0x40000, scoped, tag = 'input window, operand 4, single buffered']
    #allocation10 [shape = 's32[1]{0}', space=sflag, size = 0x4, scoped, tag = 'scoped memory for discriminator_forward.1']
    #allocation11 [shape = 'u8[1024]{0}', space=vmem, size = 0x400, scoped, tag = 'input window, operand 5, single buffered']
    #allocation12 [shape = 'u8[1024]{0}', space=vmem, size = 0x400, scoped, tag = 'input window, operand 6, single buffered']
    #allocation13 [shape = 's32[1]{0}', space=sflag, size = 0x4, scoped, tag = 'scoped memory for discriminator_forward.1']
    %15 = vsyncpa [#allocation5], 0
    %s16 = scalar_lea.sflag [#allocation5], 1
    %17 = vsyncpa %s16, 0
    %18 = vsyncpa [#allocation7], 0
    %19 = vsyncpa [#allocation10], 0
    %20 = vsyncpa [#allocation13], 0
    loop: start=0, step=1, limit=5
    $region2: #{discriminator_forward.1} parent=1 // loop_pre_header
      _
    $region3: #{discriminator_forward.1} parent=1 // loop_header
      %s22 = sphi 0, %s26
      %p23 = scmp.ge.s32.totalorder %s22, 5
      %s32 = sphi 0, %s34
      %s35 = sphi 0, %s32
      %s36 = sphi 0, %s35
      %s52 = sphi 0, %s36
      %s58 = sphi 0, %s60
      %s61 = sphi 0, %s58
      %s62 = sphi 0, %s61
      %s78 = sphi 0, %s62
      %s82 = sphi 0, %s82
      %s84 = sphi 0, %s82
      %s85 = sphi 0, %s84
      %s99 = sphi 0, %s85
      %s103 = sphi 0, %s103
      %s105 = sphi 0, %s103
      %s106 = sphi 0, %s105
      %s120 = sphi 0, %s106
      %s124 = sphi 0, %s124
      %s126 = sphi 0, %s124
      %s127 = sphi 0, %s126
      %s141 = sphi 0, %s127
      %s145 = sphi 0, %s145
      %s147 = sphi 0, %s145
      %s148 = sphi 0, %s147
      %s162 = sphi 0, %s148
      %s166 = sphi 0, %s166
      %s168 = sphi 0, %s166
      %s169 = sphi 0, %s168
      %s183 = sphi 0, %s169
      %s187 = sphi 0, %s187
      %s189 = sphi 0, %s187
      %s190 = sphi 0, %s189
      %s204 = sphi 0, %s190
      %s208 = sphi 0, %s208
      %s210 = sphi 0, %s208
      %s211 = sphi 0, %s210
      %s225 = sphi 0, %s211
    $region4: #{discriminator_forward.1} parent=1 // loop_header_branch
      %25 = sbr.rel (%p23) target = $region8
    $region5: #{discriminator_forward.1} parent=1 // loop_body
      %s27 = ssub.s32 %s22, 1
      %s28 = ssub.s32 %s22, 2
      %s29 = sadd.s32 %s22, 1
      %s30 = ssub.s32 %s22, %s29
      %p31 = scmp.eq.s32.totalorder %s30, 0
      %s33 = sadd.s32 %s32, 1
      %s34 = scalar_select %p31, %s32, %s33
      %p37 = pneg %p31
      %p38 = scmp.eq.s32.totalorder %s22, 2
      %p39 = por %p37, %p38
      %p40 = scmp.ne.s32.totalorder %s32, %s35
      %p41 = scmp.eq.s32.totalorder %s22, 0
      %p42 = por %p40, %p41
      %p43 = scmp.ne.s32.totalorder %s32, %s35
      %p44 = scmp.eq.s32.totalorder %s27, 2
      %p45 = por %p43, %p44
      %p46 = scmp.ne.s32.totalorder %s35, %s36
      %p47 = scmp.eq.s32.totalorder %s27, 0
      %p48 = por %p46, %p47
      %p49 = scmp.ne.s32.totalorder %s35, %s36
      %p50 = scmp.eq.s32.totalorder %s28, 2
      %p51 = por %p49, %p50
      %p53 = scmp.ne.s32.totalorder %s36, %s52
      %p54 = scmp.eq.s32.totalorder %s28, 0
      %p55 = por %p53, %p54
      %s56 = ssub.s32 %s22, %s29
      %p57 = scmp.eq.s32.totalorder %s56, 0
      %s59 = sadd.s32 %s58, 1
      %s60 = scalar_select %p57, %s58, %s59
      %p63 = pneg %p57
      %p64 = scmp.eq.s32.totalorder %s22, 2
      %p65 = por %p63, %p64
      %p66 = scmp.ne.s32.totalorder %s58, %s61
      %p67 = scmp.eq.s32.totalorder %s22, 0
      %p68 = por %p66, %p67
      %p69 = scmp.ne.s32.totalorder %s58, %s61
      %p70 = scmp.eq.s32.totalorder %s27, 2
      %p71 = por %p69, %p70
      %p72 = scmp.ne.s32.totalorder %s61, %s62
      %p73 = scmp.eq.s32.totalorder %s27, 0
      %p74 = por %p72, %p73
      %p75 = scmp.ne.s32.totalorder %s61, %s62
      %p76 = scmp.eq.s32.totalorder %s28, 2
      %p77 = por %p75, %p76
      %p79 = scmp.ne.s32.totalorder %s62, %s78
      %p80 = scmp.eq.s32.totalorder %s28, 0
      %p81 = por %p79, %p80
      %s83 = sadd.s32 %s82, 1
      %p86 = scmp.eq.s32.totalorder %s22, 2
      %p87 = scmp.ne.s32.totalorder %s82, %s84
      %p88 = scmp.eq.s32.totalorder %s22, 0
      %p89 = por %p87, %p88
      %p90 = scmp.ne.s32.totalorder %s82, %s84
      %p91 = scmp.eq.s32.totalorder %s27, 2
      %p92 = por %p90, %p91
      %p93 = scmp.ne.s32.totalorder %s84, %s85
      %p94 = scmp.eq.s32.totalorder %s27, 0
      %p95 = por %p93, %p94
      %p96 = scmp.ne.s32.totalorder %s84, %s85
      %p97 = scmp.eq.s32.totalorder %s28, 2
      %p98 = por %p96, %p97
      %p100 = scmp.ne.s32.totalorder %s85, %s99
      %p101 = scmp.eq.s32.totalorder %s28, 0
      %p102 = por %p100, %p101
      %s104 = sadd.s32 %s103, 1
      %p107 = scmp.eq.s32.totalorder %s22, 2
      %p108 = scmp.ne.s32.totalorder %s103, %s105
      %p109 = scmp.eq.s32.totalorder %s22, 0
      %p110 = por %p108, %p109
      %p111 = scmp.ne.s32.totalorder %s103, %s105
      %p112 = scmp.eq.s32.totalorder %s27, 2
      %p113 = por %p111, %p112
      %p114 = scmp.ne.s32.totalorder %s105, %s106
      %p115 = scmp.eq.s32.totalorder %s27, 0
      %p116 = por %p114, %p115
      %p117 = scmp.ne.s32.totalorder %s105, %s106
      %p118 = scmp.eq.s32.totalorder %s28, 2
      %p119 = por %p117, %p118
      %p121 = scmp.ne.s32.totalorder %s106, %s120
      %p122 = scmp.eq.s32.totalorder %s28, 0
      %p123 = por %p121, %p122
      %s125 = sadd.s32 %s124, 1
      %p128 = scmp.eq.s32.totalorder %s22, 2
      %p129 = scmp.ne.s32.totalorder %s124, %s126
      %p130 = scmp.eq.s32.totalorder %s22, 0
      %p131 = por %p129, %p130
      %p132 = scmp.ne.s32.totalorder %s124, %s126
      %p133 = scmp.eq.s32.totalorder %s27, 2
      %p134 = por %p132, %p133
      %p135 = scmp.ne.s32.totalorder %s126, %s127
      %p136 = scmp.eq.s32.totalorder %s27, 0
      %p137 = por %p135, %p136
      %p138 = scmp.ne.s32.totalorder %s126, %s127
      %p139 = scmp.eq.s32.totalorder %s28, 2
      %p140 = por %p138, %p139
      %p142 = scmp.ne.s32.totalorder %s127, %s141
      %p143 = scmp.eq.s32.totalorder %s28, 0
      %p144 = por %p142, %p143
      %s146 = sadd.s32 %s145, 1
      %p149 = scmp.eq.s32.totalorder %s22, 2
      %p150 = scmp.ne.s32.totalorder %s145, %s147
      %p151 = scmp.eq.s32.totalorder %s22, 0
      %p152 = por %p150, %p151
      %p153 = scmp.ne.s32.totalorder %s145, %s147
      %p154 = scmp.eq.s32.totalorder %s27, 2
      %p155 = por %p153, %p154
      %p156 = scmp.ne.s32.totalorder %s147, %s148
      %p157 = scmp.eq.s32.totalorder %s27, 0
      %p158 = por %p156, %p157
      %p159 = scmp.ne.s32.totalorder %s147, %s148
      %p160 = scmp.eq.s32.totalorder %s28, 2
      %p161 = por %p159, %p160
      %p163 = scmp.ne.s32.totalorder %s148, %s162
      %p164 = scmp.eq.s32.totalorder %s28, 0
      %p165 = por %p163, %p164
      %s167 = sadd.s32 %s166, 1
      %p170 = scmp.eq.s32.totalorder %s22, 2
      %p171 = scmp.ne.s32.totalorder %s166, %s168
      %p172 = scmp.eq.s32.totalorder %s22, 0
      %p173 = por %p171, %p172
      %p174 = scmp.ne.s32.totalorder %s166, %s168
      %p175 = scmp.eq.s32.totalorder %s27, 2
      %p176 = por %p174, %p175
      %p177 = scmp.ne.s32.totalorder %s168, %s169
      %p178 = scmp.eq.s32.totalorder %s27, 0
      %p179 = por %p177, %p178
      %p180 = scmp.ne.s32.totalorder %s168, %s169
      %p181 = scmp.eq.s32.totalorder %s28, 2
      %p182 = por %p180, %p181
      %p184 = scmp.ne.s32.totalorder %s169, %s183
      %p185 = scmp.eq.s32.totalorder %s28, 0
      %p186 = por %p184, %p185
      %s188 = sadd.s32 %s187, 1
      %p191 = scmp.eq.s32.totalorder %s22, 2
      %p192 = scmp.ne.s32.totalorder %s187, %s189
      %p193 = scmp.eq.s32.totalorder %s22, 0
      %p194 = por %p192, %p193
      %p195 = scmp.ne.s32.totalorder %s187, %s189
      %p196 = scmp.eq.s32.totalorder %s27, 2
      %p197 = por %p195, %p196
      %p198 = scmp.ne.s32.totalorder %s189, %s190
      %p199 = scmp.eq.s32.totalorder %s27, 0
      %p200 = por %p198, %p199
      %p201 = scmp.ne.s32.totalorder %s189, %s190
      %p202 = scmp.eq.s32.totalorder %s28, 2
      %p203 = por %p201, %p202
      %p205 = scmp.ne.s32.totalorder %s190, %s204
      %p206 = scmp.eq.s32.totalorder %s28, 0
      %p207 = por %p205, %p206
      %s209 = sadd.s32 %s208, 1
      %p212 = scmp.eq.s32.totalorder %s22, 2
      %p213 = scmp.ne.s32.totalorder %s208, %s210
      %p214 = scmp.eq.s32.totalorder %s22, 0
      %p215 = por %p213, %p214
      %p216 = scmp.ne.s32.totalorder %s208, %s210
      %p217 = scmp.eq.s32.totalorder %s27, 2
      %p218 = por %p216, %p217
      %p219 = scmp.ne.s32.totalorder %s210, %s211
      %p220 = scmp.eq.s32.totalorder %s27, 0
      %p221 = por %p219, %p220
      %p222 = scmp.ne.s32.totalorder %s210, %s211
      %p223 = scmp.eq.s32.totalorder %s28, 2
      %p224 = por %p222, %p223
      %p226 = scmp.ne.s32.totalorder %s211, %s225
      %p227 = scmp.eq.s32.totalorder %s28, 0
      %p228 = por %p226, %p227
      %p229 = scmp.le.s32.totalorder 1, %s22
      %p230 = scmp.lt.s32.totalorder %s22, 4
      %p231 = pnand %p229, %p230
      %p232 = pneg %p231
      // Predicated region
      $region9: #{discriminator_forward.1} parent=5 // pred_check
        _
      $region10: #{discriminator_forward.1} parent=5 // pred_check_branch
        %234 = sbr.rel (%p231) target = $region12
      $region11: #{discriminator_forward.1} parent=5 // pred_region
        %s235 = ssub.s32 %s22, 1
        // Predicated region
        $region13: #{discriminator_forward.1} parent=11 // pred_check
          %p236 = pneg %p95
        $region14: #{discriminator_forward.1} parent=11 // pred_check_branch
          %238 = sbr.rel (%p236) target = $region16
        $region15: #{discriminator_forward.1} parent=11 // pred_region
          %240 = vsyncadd [#allocation7], 0
          %s242 = sshll.u32 %s2, 4
          %s243 = int_to_ptr.hbm [resolvable:$true] %s242
          %s244 = sshll.u32 [#allocation6], 4
          %s245 = int_to_ptr.vmem [resolvable:$true] %s244
          %247 = dma.hbm_to_vmem [thread:$0]  %s243, 64, %s245, [#allocation7]
        $region16: #{discriminator_forward.1} parent=11 // pred_fallthru
          _
        // Predicated region
        $region17: #{discriminator_forward.1} parent=11 // pred_check
          %p248 = pneg %p116
        $region18: #{discriminator_forward.1} parent=11 // pred_check_branch
          %250 = sbr.rel (%p248) target = $region20
        $region19: #{discriminator_forward.1} parent=11 // pred_region
          %252 = vsyncadd [#allocation7], 0
          %s254 = sshll.u32 %s3, 4
          %s255 = int_to_ptr.hbm [resolvable:$true] %s254
          %s256 = sshll.u32 [#allocation8], 4
          %s257 = int_to_ptr.vmem [resolvable:$true] %s256
          %259 = dma.hbm_to_vmem [thread:$0]  %s255, 64, %s257, [#allocation7]
        $region20: #{discriminator_forward.1} parent=11 // pred_fallthru
          _
        // Predicated region
        $region21: #{discriminator_forward.1} parent=11 // pred_check
          %p260 = pneg %p137
        $region22: #{discriminator_forward.1} parent=11 // pred_check_branch
          %262 = sbr.rel (%p260) target = $region24
        $region23: #{discriminator_forward.1} parent=11 // pred_region
          %264 = vsyncadd [#allocation10], 0
          %s265 = sshll.u32 %s4, 4
          %s266 = int_to_ptr.hbm [resolvable:$true] %s265
          %s267 = sshll.u32 [#allocation9], 4
          %s268 = int_to_ptr.vmem [resolvable:$true] %s267
          %273 = dma.hbm_to_vmem [thread:$0]  %s266, 8192, %s268, [#allocation10], 128, 128, 8
        $region24: #{discriminator_forward.1} parent=11 // pred_fallthru
          _
        // Predicated region
        $region25: #{discriminator_forward.1} parent=11 // pred_check
          %p274 = pneg %p158
        $region26: #{discriminator_forward.1} parent=11 // pred_check_branch
          %276 = sbr.rel (%p274) target = $region28
        $region27: #{discriminator_forward.1} parent=11 // pred_region
          %278 = vsyncadd [#allocation10], 0
          %s280 = sshll.u32 %s5, 4
          %s281 = int_to_ptr.hbm [resolvable:$true] %s280
          %s282 = sshll.u32 [#allocation11], 4
          %s283 = int_to_ptr.vmem [resolvable:$true] %s282
          %285 = dma.hbm_to_vmem [thread:$0]  %s281, 32, %s283, [#allocation10]
        $region28: #{discriminator_forward.1} parent=11 // pred_fallthru
          _
        // Predicated region
        $region29: #{discriminator_forward.1} parent=11 // pred_check
          %p286 = pneg %p179
        $region30: #{discriminator_forward.1} parent=11 // pred_check_branch
          %288 = sbr.rel (%p286) target = $region32
        $region31: #{discriminator_forward.1} parent=11 // pred_region
          %290 = vsyncadd [#allocation13], 0
          %s292 = sshll.u32 %s6, 4
          %s293 = int_to_ptr.hbm [resolvable:$true] %s292
          %s294 = sshll.u32 [#allocation12], 4
          %s295 = int_to_ptr.vmem [resolvable:$true] %s294
          %297 = dma.hbm_to_vmem [thread:$0]  %s293, 32, %s295, [#allocation13]
        $region32: #{discriminator_forward.1} parent=11 // pred_fallthru
          _
        // Predicated region
        $region33: #{discriminator_forward.1} parent=11 // pred_check
          %p298 = pneg %p200
        $region34: #{discriminator_forward.1} parent=11 // pred_check_branch
          %300 = sbr.rel (%p298) target = $region36
        $region35: #{discriminator_forward.1} parent=11 // pred_region
          _
        $region36: #{discriminator_forward.1} parent=11 // pred_fallthru
          _
      $region12: #{discriminator_forward.1} parent=5 // pred_fallthru
        _
      %p301 = scmp.lt.s32.totalorder %s22, 3
      // Predicated region
      $region37: #{discriminator_forward.1} parent=5 // pred_check
        %p302 = pneg %p301
      $region38: #{discriminator_forward.1} parent=5 // pred_check_branch
        %304 = sbr.rel (%p302) target = $region40
      $region39: #{discriminator_forward.1} parent=5 // pred_region
        // Predicated region
        $region41: #{discriminator_forward.1} parent=39 // pred_check
          %p305 = pneg %p42
        $region42: #{discriminator_forward.1} parent=39 // pred_check_branch
          %307 = sbr.rel (%p305) target = $region44
        $region43: #{discriminator_forward.1} parent=39 // pred_region
          %s308 = smul.u32 32, %s22
          %p309 = scmp.lt.s32.totalorder %s308, 95
          %s310 = scalar_select %p309, %s308, 95
          %s311 = smul.addr %s310, 2
          %s312 = scalar_lea.vmem %s0, %s311
          %s313 = smul.u32 32, %s22
        $region44: #{discriminator_forward.1} parent=39 // pred_fallthru
          _
        // Predicated region
        $region45: #{discriminator_forward.1} parent=39 // pred_check
          %p314 = pneg %p68
        $region46: #{discriminator_forward.1} parent=39 // pred_check_branch
          %316 = sbr.rel (%p314) target = $region48
        $region47: #{discriminator_forward.1} parent=39 // pred_region
          %s317 = sand.u32 %s58, 1
          %s318 = scalar_lea.sflag [#allocation5], %s317
          %s319 = sand.u32 %s58, 1
          %s320 = smul.addr %s319, 4096
          %s321 = scalar_lea.vmem [#allocation4], %s320
          %s322 = smul.u32 128, %s22
          %324 = vsyncadd %s318, 0
          %s325 = smul.addr %s322, 4
          %s326 = smul.addr %s325, 8
          %s327 = scalar_lea.hbm %s1, %s326
          %s328 = sshll.u32 %s327, 4
          %s329 = int_to_ptr.hbm [resolvable:$true] %s328
          %s330 = sshll.u32 %s321, 4
          %s331 = int_to_ptr.vmem [resolvable:$true] %s330
          %336 = dma.hbm_to_vmem [thread:$0]  %s329, 65536, %s331, %s318, 512, 512, 32
        $region48: #{discriminator_forward.1} parent=39 // pred_fallthru
          _
      $region40: #{discriminator_forward.1} parent=5 // pred_fallthru
        _
      %p337 = scmp.le.s32.totalorder 1, %s22
      %p338 = scmp.lt.s32.totalorder %s22, 4
      %p339 = pnand %p337, %p338
      %p340 = pneg %p339
      // Predicated region
      $region49: #{discriminator_forward.1} parent=5 // pred_check
        _
      $region50: #{discriminator_forward.1} parent=5 // pred_check_branch
        %342 = sbr.rel (%p339) target = $region52
      $region51: #{discriminator_forward.1} parent=5 // pred_region
        %s343 = ssub.s32 %s22, 1
        %s344 = sand.u32 %s61, 1
        %s345 = scalar_lea.sflag [#allocation5], %s344
        %s346 = sand.u32 %s61, 1
        %s347 = smul.addr %s346, 4096
        %s348 = scalar_lea.vmem [#allocation4], %s347
        // Predicated region
        $region53: #{discriminator_forward.1} parent=51 // pred_check
          %p349 = pneg %p74
        $region54: #{discriminator_forward.1} parent=51 // pred_check_branch
          %351 = sbr.rel (%p349) target = $region56
        $region55: #{discriminator_forward.1} parent=51 // pred_region
          %353 = dma.done %s345, 65536
        $region56: #{discriminator_forward.1} parent=51 // pred_fallthru
          _
        // Predicated region
        $region57: #{discriminator_forward.1} parent=51 // pred_check
          %p354 = pneg %p95
        $region58: #{discriminator_forward.1} parent=51 // pred_check_branch
          %356 = sbr.rel (%p354) target = $region60
        $region59: #{discriminator_forward.1} parent=51 // pred_region
          %358 = dma.done [#allocation7], 64
        $region60: #{discriminator_forward.1} parent=51 // pred_fallthru
          _
        // Predicated region
        $region61: #{discriminator_forward.1} parent=51 // pred_check
          %p359 = pneg %p116
        $region62: #{discriminator_forward.1} parent=51 // pred_check_branch
          %361 = sbr.rel (%p359) target = $region64
        $region63: #{discriminator_forward.1} parent=51 // pred_region
          %363 = dma.done [#allocation7], 64
        $region64: #{discriminator_forward.1} parent=51 // pred_fallthru
          _
        // Predicated region
        $region65: #{discriminator_forward.1} parent=51 // pred_check
          %p364 = pneg %p137
        $region66: #{discriminator_forward.1} parent=51 // pred_check_branch
          %366 = sbr.rel (%p364) target = $region68
        $region67: #{discriminator_forward.1} parent=51 // pred_region
          %368 = dma.done [#allocation10], 8192
        $region68: #{discriminator_forward.1} parent=51 // pred_fallthru
          _
        // Predicated region
        $region69: #{discriminator_forward.1} parent=51 // pred_check
          %p369 = pneg %p158
        $region70: #{discriminator_forward.1} parent=51 // pred_check_branch
          %371 = sbr.rel (%p369) target = $region72
        $region71: #{discriminator_forward.1} parent=51 // pred_region
          %373 = dma.done [#allocation10], 32
        $region72: #{discriminator_forward.1} parent=51 // pred_fallthru
          _
        // Predicated region
        $region73: #{discriminator_forward.1} parent=51 // pred_check
          %p374 = pneg %p179
        $region74: #{discriminator_forward.1} parent=51 // pred_check_branch
          %376 = sbr.rel (%p374) target = $region76
        $region75: #{discriminator_forward.1} parent=51 // pred_region
          %378 = dma.done [#allocation13], 32
        $region76: #{discriminator_forward.1} parent=51 // pred_fallthru
          _
        %s379 = smul.u32 32, %s27
        %p380 = scmp.lt.s32.totalorder %s379, 95
        %s381 = scalar_select %p380, %s379, 95
        %s382 = smul.addr %s381, 2
        %s383 = scalar_lea.vmem %s0, %s382
        %p384 = pneg %p48
        %p385 = pneg %p45
        %s386 = sand.u32 %s61, 1
        %s387 = scalar_lea.sflag [#allocation5], %s386
        %s388 = sand.u32 %s61, 1
        %s389 = smul.addr %s388, 4096
        %s390 = scalar_lea.vmem [#allocation4], %s389
        %p391 = pneg %p74
        %p392 = pneg %p71
        %p393 = pneg %p95
        %p394 = pneg %p92
        %p395 = pneg %p116
        %p396 = pneg %p113
        %p397 = pneg %p137
        %p398 = pneg %p134
        %p399 = pneg %p158
        %p400 = pneg %p155
        %p401 = pneg %p179
        %p402 = pneg %p176
        %p403 = pneg %p200
        %p404 = pneg %p197
        %p405 = pneg %p221
        %p406 = pneg %p218
        %s407 = smul.u32 32, %s27
        %p408 = scmp.lt.s32.totalorder %s407, 95
        %s409 = scalar_select %p408, %s407, 95
        %s410 = smul.addr %s409, 2
        %s411 = scalar_lea.vmem %s0, %s410
        %s412 = smul.u32 32, %s27
        %s413 = smul.u32 128, %s27
        %p414 = scmp.eq.s32.totalorder %s27, 0
        // Predicated region
        $region77: #{discriminator_forward.1} parent=51 // pred_check
          %p415 = pneg %p414
        $region78: #{discriminator_forward.1} parent=51 // pred_check_branch
          %417 = sbr.rel (%p415) target = $region80
        $region79: #{discriminator_forward.1} parent=51 // pred_region
          %418 = vst [vmem:[#allocation2] sm:$0xff] 0.0
        $region80: #{discriminator_forward.1} parent=51 // pred_fallthru
          _
        %v419 = vld [vmem:[%s411] sm:$0xff]
        %v420 = vld [vmem:[%s411 + $0x8] sm:$0xff]
        %v421 = vld [vmem:[%s411 + $0x10] sm:$0xff]
        %v422 = vld [vmem:[%s411 + $0x18] sm:$0xff]
        %v423 = vld [vmem:[%s411 + $0x20] sm:$0xff]
        %v424 = vld [vmem:[%s411 + $0x28] sm:$0xff]
        %v425 = vld [vmem:[%s411 + $0x30] sm:$0xff]
        %v426 = vld [vmem:[%s411 + $0x38] sm:$0xff]
        %435 = vst [vmem:[#allocation1] ss:$4 sm:$0xff] %v419
        %s436 = scalar_lea.vmem [#allocation1], 32
        %437 = vst [vmem:[%s436] ss:$4 sm:$0xff] %v420
        %v438 = vld.sshfl [vmem:[#allocation1] sm:$0xff pattern:$0x73625140]
        %v439 = vld.sshfl [vmem:[#allocation1 + $0x8] sm:$0xff pattern:$0x73625140]
        %v440 = vld.sshfl [vmem:[#allocation1 + $0x10] sm:$0xff pattern:$0x73625140]
        %v441 = vld.sshfl [vmem:[#allocation1 + $0x18] sm:$0xff pattern:$0x73625140]
        %v442 = vld.sshfl [vmem:[#allocation1 + $0x20] sm:$0xff pattern:$0x73625140]
        %v443 = vld.sshfl [vmem:[#allocation1 + $0x28] sm:$0xff pattern:$0x73625140]
        %v444 = vld.sshfl [vmem:[#allocation1 + $0x30] sm:$0xff pattern:$0x73625140]
        %v445 = vld.sshfl [vmem:[#allocation1 + $0x38] sm:$0xff pattern:$0x73625140]
        %446 = vst [vmem:[#allocation1] ss:$4 sm:$0xff] %v421
        %447 = vst [vmem:[%s436] ss:$4 sm:$0xff] %v422
        %v448 = vld.sshfl [vmem:[#allocation1] sm:$0xff pattern:$0x73625140]
        %v449 = vld.sshfl [vmem:[#allocation1 + $0x8] sm:$0xff pattern:$0x73625140]
        %v450 = vld.sshfl [vmem:[#allocation1 + $0x10] sm:$0xff pattern:$0x73625140]
        %v451 = vld.sshfl [vmem:[#allocation1 + $0x18] sm:$0xff pattern:$0x73625140]
        %v452 = vld.sshfl [vmem:[#allocation1 + $0x20] sm:$0xff pattern:$0x73625140]
        %v453 = vld.sshfl [vmem:[#allocation1 + $0x28] sm:$0xff pattern:$0x73625140]
        %v454 = vld.sshfl [vmem:[#allocation1 + $0x30] sm:$0xff pattern:$0x73625140]
        %v455 = vld.sshfl [vmem:[#allocation1 + $0x38] sm:$0xff pattern:$0x73625140]
        %456 = vst [vmem:[#allocation1] ss:$4 sm:$0xff] %v423
        %457 = vst [vmem:[%s436] ss:$4 sm:$0xff] %v424
        %v458 = vld.sshfl [vmem:[#allocation1] sm:$0xff pattern:$0x73625140]
        %v459 = vld.sshfl [vmem:[#allocation1 + $0x8] sm:$0xff pattern:$0x73625140]
        %v460 = vld.sshfl [vmem:[#allocation1 + $0x10] sm:$0xff pattern:$0x73625140]
        %v461 = vld.sshfl [vmem:[#allocation1 + $0x18] sm:$0xff pattern:$0x73625140]
        %v462 = vld.sshfl [vmem:[#allocation1 + $0x20] sm:$0xff pattern:$0x73625140]
        %v463 = vld.sshfl [vmem:[#allocation1 + $0x28] sm:$0xff pattern:$0x73625140]
        %v464 = vld.sshfl [vmem:[#allocation1 + $0x30] sm:$0xff pattern:$0x73625140]
        %v465 = vld.sshfl [vmem:[#allocation1 + $0x38] sm:$0xff pattern:$0x73625140]
        %466 = vst [vmem:[#allocation1] ss:$4 sm:$0xff] %v425
        %467 = vst [vmem:[%s436] ss:$4 sm:$0xff] %v426
        %v468 = vld.sshfl [vmem:[#allocation1] sm:$0xff pattern:$0x73625140]
        %v469 = vld.sshfl [vmem:[#allocation1 + $0x8] sm:$0xff pattern:$0x73625140]
        %v470 = vld.sshfl [vmem:[#allocation1 + $0x10] sm:$0xff pattern:$0x73625140]
        %v471 = vld.sshfl [vmem:[#allocation1 + $0x18] sm:$0xff pattern:$0x73625140]
        %v472 = vld.sshfl [vmem:[#allocation1 + $0x20] sm:$0xff pattern:$0x73625140]
        %v473 = vld.sshfl [vmem:[#allocation1 + $0x28] sm:$0xff pattern:$0x73625140]
        %v474 = vld.sshfl [vmem:[#allocation1 + $0x30] sm:$0xff pattern:$0x73625140]
        %v475 = vld.sshfl [vmem:[#allocation1 + $0x38] sm:$0xff pattern:$0x73625140]
        %v508 = vpack.c.bf16 %v438, %v438
        %v509 = vpack.c.bf16 %v439, %v439
        %v510 = vpack.c.bf16 %v440, %v440
        %v511 = vpack.c.bf16 %v441, %v441
        %v512 = vpack.c.bf16 %v442, %v442
        %v513 = vpack.c.bf16 %v443, %v443
        %v514 = vpack.c.bf16 %v444, %v444
        %v515 = vpack.c.bf16 %v445, %v445
        %v516 = vpack.c.bf16 %v448, %v448
        %v517 = vpack.c.bf16 %v449, %v449
        %v518 = vpack.c.bf16 %v450, %v450
        %v519 = vpack.c.bf16 %v451, %v451
        %v520 = vpack.c.bf16 %v452, %v452
        %v521 = vpack.c.bf16 %v453, %v453
        %v522 = vpack.c.bf16 %v454, %v454
        %v523 = vpack.c.bf16 %v455, %v455
        %v524 = vpack.c.bf16 %v458, %v458
        %v525 = vpack.c.bf16 %v459, %v459
        %v526 = vpack.c.bf16 %v460, %v460
        %v527 = vpack.c.bf16 %v461, %v461
        %v528 = vpack.c.bf16 %v462, %v462
        %v529 = vpack.c.bf16 %v463, %v463
        %v530 = vpack.c.bf16 %v464, %v464
        %v531 = vpack.c.bf16 %v465, %v465
        %v532 = vpack.c.bf16 %v468, %v468
        %v533 = vpack.c.bf16 %v469, %v469
        %v534 = vpack.c.bf16 %v470, %v470
        %v535 = vpack.c.bf16 %v471, %v471
        %v536 = vpack.c.bf16 %v472, %v472
        %v537 = vpack.c.bf16 %v473, %v473
        %v538 = vpack.c.bf16 %v474, %v474
        %v539 = vpack.c.bf16 %v475, %v475
        %v540 = vld [vmem:[%s348] sm:$0xff]
        %v541 = vld [vmem:[%s348 + $0x8] sm:$0xff]
        %v542 = vld [vmem:[%s348 + $0x10] sm:$0xff]
        %v543 = vld [vmem:[%s348 + $0x18] sm:$0xff]
        %v544 = vld [vmem:[%s348 + $0x20] sm:$0xff]
        %v545 = vld [vmem:[%s348 + $0x28] sm:$0xff]
        %v546 = vld [vmem:[%s348 + $0x30] sm:$0xff]
        %v547 = vld [vmem:[%s348 + $0x38] sm:$0xff]
        %v548 = vld [vmem:[%s348 + $0x40] sm:$0xff]
        %v549 = vld [vmem:[%s348 + $0x48] sm:$0xff]
        %v550 = vld [vmem:[%s348 + $0x50] sm:$0xff]
        %v551 = vld [vmem:[%s348 + $0x58] sm:$0xff]
        %v552 = vld [vmem:[%s348 + $0x60] sm:$0xff]
        %v553 = vld [vmem:[%s348 + $0x68] sm:$0xff]
        %v554 = vld [vmem:[%s348 + $0x70] sm:$0xff]
        %v555 = vld [vmem:[%s348 + $0x78] sm:$0xff]
        %v556 = vld [vmem:[%s348 + $0x80] sm:$0xff]
        %v557 = vld [vmem:[%s348 + $0x88] sm:$0xff]
        %v558 = vld [vmem:[%s348 + $0x90] sm:$0xff]
        %v559 = vld [vmem:[%s348 + $0x98] sm:$0xff]
        %v560 = vld [vmem:[%s348 + $0xa0] sm:$0xff]
        %v561 = vld [vmem:[%s348 + $0xa8] sm:$0xff]
        %v562 = vld [vmem:[%s348 + $0xb0] sm:$0xff]
        %v563 = vld [vmem:[%s348 + $0xb8] sm:$0xff]
        %v564 = vld [vmem:[%s348 + $0xc0] sm:$0xff]
        %v565 = vld [vmem:[%s348 + $0xc8] sm:$0xff]
        %v566 = vld [vmem:[%s348 + $0xd0] sm:$0xff]
        %v567 = vld [vmem:[%s348 + $0xd8] sm:$0xff]
        %v568 = vld [vmem:[%s348 + $0xe0] sm:$0xff]
        %v569 = vld [vmem:[%s348 + $0xe8] sm:$0xff]
        %v570 = vld [vmem:[%s348 + $0xf0] sm:$0xff]
        %v571 = vld [vmem:[%s348 + $0xf8] sm:$0xff]
        %v572 = vld [vmem:[%s348 + $0x100] sm:$0xff]
        %v573 = vld [vmem:[%s348 + $0x108] sm:$0xff]
        %v574 = vld [vmem:[%s348 + $0x110] sm:$0xff]
        %v575 = vld [vmem:[%s348 + $0x118] sm:$0xff]
        %v576 = vld [vmem:[%s348 + $0x120] sm:$0xff]
        %v577 = vld [vmem:[%s348 + $0x128] sm:$0xff]
        %v578 = vld [vmem:[%s348 + $0x130] sm:$0xff]
        %v579 = vld [vmem:[%s348 + $0x138] sm:$0xff]
        %v580 = vld [vmem:[%s348 + $0x140] sm:$0xff]
        %v581 = vld [vmem:[%s348 + $0x148] sm:$0xff]
        %v582 = vld [vmem:[%s348 + $0x150] sm:$0xff]
        %v583 = vld [vmem:[%s348 + $0x158] sm:$0xff]
        %v584 = vld [vmem:[%s348 + $0x160] sm:$0xff]
        %v585 = vld [vmem:[%s348 + $0x168] sm:$0xff]
        %v586 = vld [vmem:[%s348 + $0x170] sm:$0xff]
        %v587 = vld [vmem:[%s348 + $0x178] sm:$0xff]
        %v588 = vld [vmem:[%s348 + $0x180] sm:$0xff]
        %v589 = vld [vmem:[%s348 + $0x188] sm:$0xff]
        %v590 = vld [vmem:[%s348 + $0x190] sm:$0xff]
        %v591 = vld [vmem:[%s348 + $0x198] sm:$0xff]
        %v592 = vld [vmem:[%s348 + $0x1a0] sm:$0xff]
        %v593 = vld [vmem:[%s348 + $0x1a8] sm:$0xff]
        %v594 = vld [vmem:[%s348 + $0x1b0] sm:$0xff]
        %v595 = vld [vmem:[%s348 + $0x1b8] sm:$0xff]
        %v596 = vld [vmem:[%s348 + $0x1c0] sm:$0xff]
        %v597 = vld [vmem:[%s348 + $0x1c8] sm:$0xff]
        %v598 = vld [vmem:[%s348 + $0x1d0] sm:$0xff]
        %v599 = vld [vmem:[%s348 + $0x1d8] sm:$0xff]
        %v600 = vld [vmem:[%s348 + $0x1e0] sm:$0xff]
        %v601 = vld [vmem:[%s348 + $0x1e8] sm:$0xff]
        %v602 = vld [vmem:[%s348 + $0x1f0] sm:$0xff]
        %v603 = vld [vmem:[%s348 + $0x1f8] sm:$0xff]
        %v604 = vld [vmem:[%s348 + $0x200] sm:$0xff]
        %v605 = vld [vmem:[%s348 + $0x208] sm:$0xff]
        %v606 = vld [vmem:[%s348 + $0x210] sm:$0xff]
        %v607 = vld [vmem:[%s348 + $0x218] sm:$0xff]
        %v608 = vld [vmem:[%s348 + $0x220] sm:$0xff]
        %v609 = vld [vmem:[%s348 + $0x228] sm:$0xff]
        %v610 = vld [vmem:[%s348 + $0x230] sm:$0xff]
        %v611 = vld [vmem:[%s348 + $0x238] sm:$0xff]
        %v612 = vld [vmem:[%s348 + $0x240] sm:$0xff]
        %v613 = vld [vmem:[%s348 + $0x248] sm:$0xff]
        %v614 = vld [vmem:[%s348 + $0x250] sm:$0xff]
        %v615 = vld [vmem:[%s348 + $0x258] sm:$0xff]
        %v616 = vld [vmem:[%s348 + $0x260] sm:$0xff]
        %v617 = vld [vmem:[%s348 + $0x268] sm:$0xff]
        %v618 = vld [vmem:[%s348 + $0x270] sm:$0xff]
        %v619 = vld [vmem:[%s348 + $0x278] sm:$0xff]
        %v620 = vld [vmem:[%s348 + $0x280] sm:$0xff]
        %v621 = vld [vmem:[%s348 + $0x288] sm:$0xff]
        %v622 = vld [vmem:[%s348 + $0x290] sm:$0xff]
        %v623 = vld [vmem:[%s348 + $0x298] sm:$0xff]
        %v624 = vld [vmem:[%s348 + $0x2a0] sm:$0xff]
        %v625 = vld [vmem:[%s348 + $0x2a8] sm:$0xff]
        %v626 = vld [vmem:[%s348 + $0x2b0] sm:$0xff]
        %v627 = vld [vmem:[%s348 + $0x2b8] sm:$0xff]
        %v628 = vld [vmem:[%s348 + $0x2c0] sm:$0xff]
        %v629 = vld [vmem:[%s348 + $0x2c8] sm:$0xff]
        %v630 = vld [vmem:[%s348 + $0x2d0] sm:$0xff]
        %v631 = vld [vmem:[%s348 + $0x2d8] sm:$0xff]
        %v632 = vld [vmem:[%s348 + $0x2e0] sm:$0xff]
        %v633 = vld [vmem:[%s348 + $0x2e8] sm:$0xff]
        %v634 = vld [vmem:[%s348 + $0x2f0] sm:$0xff]
        %v635 = vld [vmem:[%s348 + $0x2f8] sm:$0xff]
        %v636 = vld [vmem:[%s348 + $0x300] sm:$0xff]
        %v637 = vld [vmem:[%s348 + $0x308] sm:$0xff]
        %v638 = vld [vmem:[%s348 + $0x310] sm:$0xff]
        %v639 = vld [vmem:[%s348 + $0x318] sm:$0xff]
        %v640 = vld [vmem:[%s348 + $0x320] sm:$0xff]
        %v641 = vld [vmem:[%s348 + $0x328] sm:$0xff]
        %v642 = vld [vmem:[%s348 + $0x330] sm:$0xff]
        %v643 = vld [vmem:[%s348 + $0x338] sm:$0xff]
        %v644 = vld [vmem:[%s348 + $0x340] sm:$0xff]
        %v645 = vld [vmem:[%s348 + $0x348] sm:$0xff]
        %v646 = vld [vmem:[%s348 + $0x350] sm:$0xff]
        %v647 = vld [vmem:[%s348 + $0x358] sm:$0xff]
        %v648 = vld [vmem:[%s348 + $0x360] sm:$0xff]
        %v649 = vld [vmem:[%s348 + $0x368] sm:$0xff]
        %v650 = vld [vmem:[%s348 + $0x370] sm:$0xff]
        %v651 = vld [vmem:[%s348 + $0x378] sm:$0xff]
        %v652 = vld [vmem:[%s348 + $0x380] sm:$0xff]
        %v653 = vld [vmem:[%s348 + $0x388] sm:$0xff]
        %v654 = vld [vmem:[%s348 + $0x390] sm:$0xff]
        %v655 = vld [vmem:[%s348 + $0x398] sm:$0xff]
        %v656 = vld [vmem:[%s348 + $0x3a0] sm:$0xff]
        %v657 = vld [vmem:[%s348 + $0x3a8] sm:$0xff]
        %v658 = vld [vmem:[%s348 + $0x3b0] sm:$0xff]
        %v659 = vld [vmem:[%s348 + $0x3b8] sm:$0xff]
        %v660 = vld [vmem:[%s348 + $0x3c0] sm:$0xff]
        %v661 = vld [vmem:[%s348 + $0x3c8] sm:$0xff]
        %v662 = vld [vmem:[%s348 + $0x3d0] sm:$0xff]
        %v663 = vld [vmem:[%s348 + $0x3d8] sm:$0xff]
        %v664 = vld [vmem:[%s348 + $0x3e0] sm:$0xff]
        %v665 = vld [vmem:[%s348 + $0x3e8] sm:$0xff]
        %v666 = vld [vmem:[%s348 + $0x3f0] sm:$0xff]
        %v667 = vld [vmem:[%s348 + $0x3f8] sm:$0xff]
        %v668 = vld [vmem:[%s348 + $0x400] sm:$0xff]
        %v669 = vld [vmem:[%s348 + $0x408] sm:$0xff]
        %v670 = vld [vmem:[%s348 + $0x410] sm:$0xff]
        %v671 = vld [vmem:[%s348 + $0x418] sm:$0xff]
        %v672 = vld [vmem:[%s348 + $0x420] sm:$0xff]
        %v673 = vld [vmem:[%s348 + $0x428] sm:$0xff]
        %v674 = vld [vmem:[%s348 + $0x430] sm:$0xff]
        %v675 = vld [vmem:[%s348 + $0x438] sm:$0xff]
        %v676 = vld [vmem:[%s348 + $0x440] sm:$0xff]
        %v677 = vld [vmem:[%s348 + $0x448] sm:$0xff]
        %v678 = vld [vmem:[%s348 + $0x450] sm:$0xff]
        %v679 = vld [vmem:[%s348 + $0x458] sm:$0xff]
        %v680 = vld [vmem:[%s348 + $0x460] sm:$0xff]
        %v681 = vld [vmem:[%s348 + $0x468] sm:$0xff]
        %v682 = vld [vmem:[%s348 + $0x470] sm:$0xff]
        %v683 = vld [vmem:[%s348 + $0x478] sm:$0xff]
        %v684 = vld [vmem:[%s348 + $0x480] sm:$0xff]
        %v685 = vld [vmem:[%s348 + $0x488] sm:$0xff]
        %v686 = vld [vmem:[%s348 + $0x490] sm:$0xff]
        %v687 = vld [vmem:[%s348 + $0x498] sm:$0xff]
        %v688 = vld [vmem:[%s348 + $0x4a0] sm:$0xff]
        %v689 = vld [vmem:[%s348 + $0x4a8] sm:$0xff]
        %v690 = vld [vmem:[%s348 + $0x4b0] sm:$0xff]
        %v691 = vld [vmem:[%s348 + $0x4b8] sm:$0xff]
        %v692 = vld [vmem:[%s348 + $0x4c0] sm:$0xff]
        %v693 = vld [vmem:[%s348 + $0x4c8] sm:$0xff]
        %v694 = vld [vmem:[%s348 + $0x4d0] sm:$0xff]
        %v695 = vld [vmem:[%s348 + $0x4d8] sm:$0xff]
        %v696 = vld [vmem:[%s348 + $0x4e0] sm:$0xff]
        %v697 = vld [vmem:[%s348 + $0x4e8] sm:$0xff]
        %v698 = vld [vmem:[%s348 + $0x4f0] sm:$0xff]
        %v699 = vld [vmem:[%s348 + $0x4f8] sm:$0xff]
        %v700 = vld [vmem:[%s348 + $0x500] sm:$0xff]
        %v701 = vld [vmem:[%s348 + $0x508] sm:$0xff]
        %v702 = vld [vmem:[%s348 + $0x510] sm:$0xff]
        %v703 = vld [vmem:[%s348 + $0x518] sm:$0xff]
        %v704 = vld [vmem:[%s348 + $0x520] sm:$0xff]
        %v705 = vld [vmem:[%s348 + $0x528] sm:$0xff]
        %v706 = vld [vmem:[%s348 + $0x530] sm:$0xff]
        %v707 = vld [vmem:[%s348 + $0x538] sm:$0xff]
        %v708 = vld [vmem:[%s348 + $0x540] sm:$0xff]
        %v709 = vld [vmem:[%s348 + $0x548] sm:$0xff]
        %v710 = vld [vmem:[%s348 + $0x550] sm:$0xff]
        %v711 = vld [vmem:[%s348 + $0x558] sm:$0xff]
        %v712 = vld [vmem:[%s348 + $0x560] sm:$0xff]
        %v713 = vld [vmem:[%s348 + $0x568] sm:$0xff]
        %v714 = vld [vmem:[%s348 + $0x570] sm:$0xff]
        %v715 = vld [vmem:[%s348 + $0x578] sm:$0xff]
        %v716 = vld [vmem:[%s348 + $0x580] sm:$0xff]
        %v717 = vld [vmem:[%s348 + $0x588] sm:$0xff]
        %v718 = vld [vmem:[%s348 + $0x590] sm:$0xff]
        %v719 = vld [vmem:[%s348 + $0x598] sm:$0xff]
        %v720 = vld [vmem:[%s348 + $0x5a0] sm:$0xff]
        %v721 = vld [vmem:[%s348 + $0x5a8] sm:$0xff]
        %v722 = vld [vmem:[%s348 + $0x5b0] sm:$0xff]
        %v723 = vld [vmem:[%s348 + $0x5b8] sm:$0xff]
        %v724 = vld [vmem:[%s348 + $0x5c0] sm:$0xff]
        %v725 = vld [vmem:[%s348 + $0x5c8] sm:$0xff]
        %v726 = vld [vmem:[%s348 + $0x5d0] sm:$0xff]
        %v727 = vld [vmem:[%s348 + $0x5d8] sm:$0xff]
        %v728 = vld [vmem:[%s348 + $0x5e0] sm:$0xff]
        %v729 = vld [vmem:[%s348 + $0x5e8] sm:$0xff]
        %v730 = vld [vmem:[%s348 + $0x5f0] sm:$0xff]
        %v731 = vld [vmem:[%s348 + $0x5f8] sm:$0xff]
        %v732 = vld [vmem:[%s348 + $0x600] sm:$0xff]
        %v733 = vld [vmem:[%s348 + $0x608] sm:$0xff]
        %v734 = vld [vmem:[%s348 + $0x610] sm:$0xff]
        %v735 = vld [vmem:[%s348 + $0x618] sm:$0xff]
        %v736 = vld [vmem:[%s348 + $0x620] sm:$0xff]
        %v737 = vld [vmem:[%s348 + $0x628] sm:$0xff]
        %v738 = vld [vmem:[%s348 + $0x630] sm:$0xff]
        %v739 = vld [vmem:[%s348 + $0x638] sm:$0xff]
        %v740 = vld [vmem:[%s348 + $0x640] sm:$0xff]
        %v741 = vld [vmem:[%s348 + $0x648] sm:$0xff]
        %v742 = vld [vmem:[%s348 + $0x650] sm:$0xff]
        %v743 = vld [vmem:[%s348 + $0x658] sm:$0xff]
        %v744 = vld [vmem:[%s348 + $0x660] sm:$0xff]
        %v745 = vld [vmem:[%s348 + $0x668] sm:$0xff]
        %v746 = vld [vmem:[%s348 + $0x670] sm:$0xff]
        %v747 = vld [vmem:[%s348 + $0x678] sm:$0xff]
        %v748 = vld [vmem:[%s348 + $0x680] sm:$0xff]
        %v749 = vld [vmem:[%s348 + $0x688] sm:$0xff]
        %v750 = vld [vmem:[%s348 + $0x690] sm:$0xff]
        %v751 = vld [vmem:[%s348 + $0x698] sm:$0xff]
        %v752 = vld [vmem:[%s348 + $0x6a0] sm:$0xff]
        %v753 = vld [vmem:[%s348 + $0x6a8] sm:$0xff]
        %v754 = vld [vmem:[%s348 + $0x6b0] sm:$0xff]
        %v755 = vld [vmem:[%s348 + $0x6b8] sm:$0xff]
        %v756 = vld [vmem:[%s348 + $0x6c0] sm:$0xff]
        %v757 = vld [vmem:[%s348 + $0x6c8] sm:$0xff]
        %v758 = vld [vmem:[%s348 + $0x6d0] sm:$0xff]
        %v759 = vld [vmem:[%s348 + $0x6d8] sm:$0xff]
        %v760 = vld [vmem:[%s348 + $0x6e0] sm:$0xff]
        %v761 = vld [vmem:[%s348 + $0x6e8] sm:$0xff]
        %v762 = vld [vmem:[%s348 + $0x6f0] sm:$0xff]
        %v763 = vld [vmem:[%s348 + $0x6f8] sm:$0xff]
        %v764 = vld [vmem:[%s348 + $0x700] sm:$0xff]
        %v765 = vld [vmem:[%s348 + $0x708] sm:$0xff]
        %v766 = vld [vmem:[%s348 + $0x710] sm:$0xff]
        %v767 = vld [vmem:[%s348 + $0x718] sm:$0xff]
        %v768 = vld [vmem:[%s348 + $0x720] sm:$0xff]
        %v769 = vld [vmem:[%s348 + $0x728] sm:$0xff]
        %v770 = vld [vmem:[%s348 + $0x730] sm:$0xff]
        %v771 = vld [vmem:[%s348 + $0x738] sm:$0xff]
        %v772 = vld [vmem:[%s348 + $0x740] sm:$0xff]
        %v773 = vld [vmem:[%s348 + $0x748] sm:$0xff]
        %v774 = vld [vmem:[%s348 + $0x750] sm:$0xff]
        %v775 = vld [vmem:[%s348 + $0x758] sm:$0xff]
        %v776 = vld [vmem:[%s348 + $0x760] sm:$0xff]
        %v777 = vld [vmem:[%s348 + $0x768] sm:$0xff]
        %v778 = vld [vmem:[%s348 + $0x770] sm:$0xff]
        %v779 = vld [vmem:[%s348 + $0x778] sm:$0xff]
        %v780 = vld [vmem:[%s348 + $0x780] sm:$0xff]
        %v781 = vld [vmem:[%s348 + $0x788] sm:$0xff]
        %v782 = vld [vmem:[%s348 + $0x790] sm:$0xff]
        %v783 = vld [vmem:[%s348 + $0x798] sm:$0xff]
        %v784 = vld [vmem:[%s348 + $0x7a0] sm:$0xff]
        %v785 = vld [vmem:[%s348 + $0x7a8] sm:$0xff]
        %v786 = vld [vmem:[%s348 + $0x7b0] sm:$0xff]
        %v787 = vld [vmem:[%s348 + $0x7b8] sm:$0xff]
        %v788 = vld [vmem:[%s348 + $0x7c0] sm:$0xff]
        %v789 = vld [vmem:[%s348 + $0x7c8] sm:$0xff]
        %v790 = vld [vmem:[%s348 + $0x7d0] sm:$0xff]
        %v791 = vld [vmem:[%s348 + $0x7d8] sm:$0xff]
        %v792 = vld [vmem:[%s348 + $0x7e0] sm:$0xff]
        %v793 = vld [vmem:[%s348 + $0x7e8] sm:$0xff]
        %v794 = vld [vmem:[%s348 + $0x7f0] sm:$0xff]
        %v795 = vld [vmem:[%s348 + $0x7f8] sm:$0xff]
        %v796 = vld [vmem:[%s348 + $0x800] sm:$0xff]
        %v797 = vld [vmem:[%s348 + $0x808] sm:$0xff]
        %v798 = vld [vmem:[%s348 + $0x810] sm:$0xff]
        %v799 = vld [vmem:[%s348 + $0x818] sm:$0xff]
        %v800 = vld [vmem:[%s348 + $0x820] sm:$0xff]
        %v801 = vld [vmem:[%s348 + $0x828] sm:$0xff]
        %v802 = vld [vmem:[%s348 + $0x830] sm:$0xff]
        %v803 = vld [vmem:[%s348 + $0x838] sm:$0xff]
        %v804 = vld [vmem:[%s348 + $0x840] sm:$0xff]
        %v805 = vld [vmem:[%s348 + $0x848] sm:$0xff]
        %v806 = vld [vmem:[%s348 + $0x850] sm:$0xff]
        %v807 = vld [vmem:[%s348 + $0x858] sm:$0xff]
        %v808 = vld [vmem:[%s348 + $0x860] sm:$0xff]
        %v809 = vld [vmem:[%s348 + $0x868] sm:$0xff]
        %v810 = vld [vmem:[%s348 + $0x870] sm:$0xff]
        %v811 = vld [vmem:[%s348 + $0x878] sm:$0xff]
        %v812 = vld [vmem:[%s348 + $0x880] sm:$0xff]
        %v813 = vld [vmem:[%s348 + $0x888] sm:$0xff]
        %v814 = vld [vmem:[%s348 + $0x890] sm:$0xff]
        %v815 = vld [vmem:[%s348 + $0x898] sm:$0xff]
        %v816 = vld [vmem:[%s348 + $0x8a0] sm:$0xff]
        %v817 = vld [vmem:[%s348 + $0x8a8] sm:$0xff]
        %v818 = vld [vmem:[%s348 + $0x8b0] sm:$0xff]
        %v819 = vld [vmem:[%s348 + $0x8b8] sm:$0xff]
        %v820 = vld [vmem:[%s348 + $0x8c0] sm:$0xff]
        %v821 = vld [vmem:[%s348 + $0x8c8] sm:$0xff]
        %v822 = vld [vmem:[%s348 + $0x8d0] sm:$0xff]
        %v823 = vld [vmem:[%s348 + $0x8d8] sm:$0xff]
        %v824 = vld [vmem:[%s348 + $0x8e0] sm:$0xff]
        %v825 = vld [vmem:[%s348 + $0x8e8] sm:$0xff]
        %v826 = vld [vmem:[%s348 + $0x8f0] sm:$0xff]
        %v827 = vld [vmem:[%s348 + $0x8f8] sm:$0xff]
        %v828 = vld [vmem:[%s348 + $0x900] sm:$0xff]
        %v829 = vld [vmem:[%s348 + $0x908] sm:$0xff]
        %v830 = vld [vmem:[%s348 + $0x910] sm:$0xff]
        %v831 = vld [vmem:[%s348 + $0x918] sm:$0xff]
        %v832 = vld [vmem:[%s348 + $0x920] sm:$0xff]
        %v833 = vld [vmem:[%s348 + $0x928] sm:$0xff]
        %v834 = vld [vmem:[%s348 + $0x930] sm:$0xff]
        %v835 = vld [vmem:[%s348 + $0x938] sm:$0xff]
        %v836 = vld [vmem:[%s348 + $0x940] sm:$0xff]
        %v837 = vld [vmem:[%s348 + $0x948] sm:$0xff]
        %v838 = vld [vmem:[%s348 + $0x950] sm:$0xff]
        %v839 = vld [vmem:[%s348 + $0x958] sm:$0xff]
        %v840 = vld [vmem:[%s348 + $0x960] sm:$0xff]
        %v841 = vld [vmem:[%s348 + $0x968] sm:$0xff]
        %v842 = vld [vmem:[%s348 + $0x970] sm:$0xff]
        %v843 = vld [vmem:[%s348 + $0x978] sm:$0xff]
        %v844 = vld [vmem:[%s348 + $0x980] sm:$0xff]
        %v845 = vld [vmem:[%s348 + $0x988] sm:$0xff]
        %v846 = vld [vmem:[%s348 + $0x990] sm:$0xff]
        %v847 = vld [vmem:[%s348 + $0x998] sm:$0xff]
        %v848 = vld [vmem:[%s348 + $0x9a0] sm:$0xff]
        %v849 = vld [vmem:[%s348 + $0x9a8] sm:$0xff]
        %v850 = vld [vmem:[%s348 + $0x9b0] sm:$0xff]
        %v851 = vld [vmem:[%s348 + $0x9b8] sm:$0xff]
        %v852 = vld [vmem:[%s348 + $0x9c0] sm:$0xff]
        %v853 = vld [vmem:[%s348 + $0x9c8] sm:$0xff]
        %v854 = vld [vmem:[%s348 + $0x9d0] sm:$0xff]
        %v855 = vld [vmem:[%s348 + $0x9d8] sm:$0xff]
        %v856 = vld [vmem:[%s348 + $0x9e0] sm:$0xff]
        %v857 = vld [vmem:[%s348 + $0x9e8] sm:$0xff]
        %v858 = vld [vmem:[%s348 + $0x9f0] sm:$0xff]
        %v859 = vld [vmem:[%s348 + $0x9f8] sm:$0xff]
        %v860 = vld [vmem:[%s348 + $0xa00] sm:$0xff]
        %v861 = vld [vmem:[%s348 + $0xa08] sm:$0xff]
        %v862 = vld [vmem:[%s348 + $0xa10] sm:$0xff]
        %v863 = vld [vmem:[%s348 + $0xa18] sm:$0xff]
        %v864 = vld [vmem:[%s348 + $0xa20] sm:$0xff]
        %v865 = vld [vmem:[%s348 + $0xa28] sm:$0xff]
        %v866 = vld [vmem:[%s348 + $0xa30] sm:$0xff]
        %v867 = vld [vmem:[%s348 + $0xa38] sm:$0xff]
        %v868 = vld [vmem:[%s348 + $0xa40] sm:$0xff]
        %v869 = vld [vmem:[%s348 + $0xa48] sm:$0xff]
        %v870 = vld [vmem:[%s348 + $0xa50] sm:$0xff]
        %v871 = vld [vmem:[%s348 + $0xa58] sm:$0xff]
        %v872 = vld [vmem:[%s348 + $0xa60] sm:$0xff]
        %v873 = vld [vmem:[%s348 + $0xa68] sm:$0xff]
        %v874 = vld [vmem:[%s348 + $0xa70] sm:$0xff]
        %v875 = vld [vmem:[%s348 + $0xa78] sm:$0xff]
        %v876 = vld [vmem:[%s348 + $0xa80] sm:$0xff]
        %v877 = vld [vmem:[%s348 + $0xa88] sm:$0xff]
        %v878 = vld [vmem:[%s348 + $0xa90] sm:$0xff]
        %v879 = vld [vmem:[%s348 + $0xa98] sm:$0xff]
        %v880 = vld [vmem:[%s348 + $0xaa0] sm:$0xff]
        %v881 = vld [vmem:[%s348 + $0xaa8] sm:$0xff]
        %v882 = vld [vmem:[%s348 + $0xab0] sm:$0xff]
        %v883 = vld [vmem:[%s348 + $0xab8] sm:$0xff]
        %v884 = vld [vmem:[%s348 + $0xac0] sm:$0xff]
        %v885 = vld [vmem:[%s348 + $0xac8] sm:$0xff]
        %v886 = vld [vmem:[%s348 + $0xad0] sm:$0xff]
        %v887 = vld [vmem:[%s348 + $0xad8] sm:$0xff]
        %v888 = vld [vmem:[%s348 + $0xae0] sm:$0xff]
        %v889 = vld [vmem:[%s348 + $0xae8] sm:$0xff]
        %v890 = vld [vmem:[%s348 + $0xaf0] sm:$0xff]
        %v891 = vld [vmem:[%s348 + $0xaf8] sm:$0xff]
        %v892 = vld [vmem:[%s348 + $0xb00] sm:$0xff]
        %v893 = vld [vmem:[%s348 + $0xb08] sm:$0xff]
        %v894 = vld [vmem:[%s348 + $0xb10] sm:$0xff]
        %v895 = vld [vmem:[%s348 + $0xb18] sm:$0xff]
        %v896 = vld [vmem:[%s348 + $0xb20] sm:$0xff]
        %v897 = vld [vmem:[%s348 + $0xb28] sm:$0xff]
        %v898 = vld [vmem:[%s348 + $0xb30] sm:$0xff]
        %v899 = vld [vmem:[%s348 + $0xb38] sm:$0xff]
        %v900 = vld [vmem:[%s348 + $0xb40] sm:$0xff]
        %v901 = vld [vmem:[%s348 + $0xb48] sm:$0xff]
        %v902 = vld [vmem:[%s348 + $0xb50] sm:$0xff]
        %v903 = vld [vmem:[%s348 + $0xb58] sm:$0xff]
        %v904 = vld [vmem:[%s348 + $0xb60] sm:$0xff]
        %v905 = vld [vmem:[%s348 + $0xb68] sm:$0xff]
        %v906 = vld [vmem:[%s348 + $0xb70] sm:$0xff]
        %v907 = vld [vmem:[%s348 + $0xb78] sm:$0xff]
        %v908 = vld [vmem:[%s348 + $0xb80] sm:$0xff]
        %v909 = vld [vmem:[%s348 + $0xb88] sm:$0xff]
        %v910 = vld [vmem:[%s348 + $0xb90] sm:$0xff]
        %v911 = vld [vmem:[%s348 + $0xb98] sm:$0xff]
        %v912 = vld [vmem:[%s348 + $0xba0] sm:$0xff]
        %v913 = vld [vmem:[%s348 + $0xba8] sm:$0xff]
        %v914 = vld [vmem:[%s348 + $0xbb0] sm:$0xff]
        %v915 = vld [vmem:[%s348 + $0xbb8] sm:$0xff]
        %v916 = vld [vmem:[%s348 + $0xbc0] sm:$0xff]
        %v917 = vld [vmem:[%s348 + $0xbc8] sm:$0xff]
        %v918 = vld [vmem:[%s348 + $0xbd0] sm:$0xff]
        %v919 = vld [vmem:[%s348 + $0xbd8] sm:$0xff]
        %v920 = vld [vmem:[%s348 + $0xbe0] sm:$0xff]
        %v921 = vld [vmem:[%s348 + $0xbe8] sm:$0xff]
        %v922 = vld [vmem:[%s348 + $0xbf0] sm:$0xff]
        %v923 = vld [vmem:[%s348 + $0xbf8] sm:$0xff]
        %v924 = vld [vmem:[%s348 + $0xc00] sm:$0xff]
        %v925 = vld [vmem:[%s348 + $0xc08] sm:$0xff]
        %v926 = vld [vmem:[%s348 + $0xc10] sm:$0xff]
        %v927 = vld [vmem:[%s348 + $0xc18] sm:$0xff]
        %v928 = vld [vmem:[%s348 + $0xc20] sm:$0xff]
        %v929 = vld [vmem:[%s348 + $0xc28] sm:$0xff]
        %v930 = vld [vmem:[%s348 + $0xc30] sm:$0xff]
        %v931 = vld [vmem:[%s348 + $0xc38] sm:$0xff]
        %v932 = vld [vmem:[%s348 + $0xc40] sm:$0xff]
        %v933 = vld [vmem:[%s348 + $0xc48] sm:$0xff]
        %v934 = vld [vmem:[%s348 + $0xc50] sm:$0xff]
        %v935 = vld [vmem:[%s348 + $0xc58] sm:$0xff]
        %v936 = vld [vmem:[%s348 + $0xc60] sm:$0xff]
        %v937 = vld [vmem:[%s348 + $0xc68] sm:$0xff]
        %v938 = vld [vmem:[%s348 + $0xc70] sm:$0xff]
        %v939 = vld [vmem:[%s348 + $0xc78] sm:$0xff]
        %v940 = vld [vmem:[%s348 + $0xc80] sm:$0xff]
        %v941 = vld [vmem:[%s348 + $0xc88] sm:$0xff]
        %v942 = vld [vmem:[%s348 + $0xc90] sm:$0xff]
        %v943 = vld [vmem:[%s348 + $0xc98] sm:$0xff]
        %v944 = vld [vmem:[%s348 + $0xca0] sm:$0xff]
        %v945 = vld [vmem:[%s348 + $0xca8] sm:$0xff]
        %v946 = vld [vmem:[%s348 + $0xcb0] sm:$0xff]
        %v947 = vld [vmem:[%s348 + $0xcb8] sm:$0xff]
        %v948 = vld [vmem:[%s348 + $0xcc0] sm:$0xff]
        %v949 = vld [vmem:[%s348 + $0xcc8] sm:$0xff]
        %v950 = vld [vmem:[%s348 + $0xcd0] sm:$0xff]
        %v951 = vld [vmem:[%s348 + $0xcd8] sm:$0xff]
        %v952 = vld [vmem:[%s348 + $0xce0] sm:$0xff]
        %v953 = vld [vmem:[%s348 + $0xce8] sm:$0xff]
        %v954 = vld [vmem:[%s348 + $0xcf0] sm:$0xff]
        %v955 = vld [vmem:[%s348 + $0xcf8] sm:$0xff]
        %v956 = vld [vmem:[%s348 + $0xd00] sm:$0xff]
        %v957 = vld [vmem:[%s348 + $0xd08] sm:$0xff]
        %v958 = vld [vmem:[%s348 + $0xd10] sm:$0xff]
        %v959 = vld [vmem:[%s348 + $0xd18] sm:$0xff]
        %v960 = vld [vmem:[%s348 + $0xd20] sm:$0xff]
        %v961 = vld [vmem:[%s348 + $0xd28] sm:$0xff]
        %v962 = vld [vmem:[%s348 + $0xd30] sm:$0xff]
        %v963 = vld [vmem:[%s348 + $0xd38] sm:$0xff]
        %v964 = vld [vmem:[%s348 + $0xd40] sm:$0xff]
        %v965 = vld [vmem:[%s348 + $0xd48] sm:$0xff]
        %v966 = vld [vmem:[%s348 + $0xd50] sm:$0xff]
        %v967 = vld [vmem:[%s348 + $0xd58] sm:$0xff]
        %v968 = vld [vmem:[%s348 + $0xd60] sm:$0xff]
        %v969 = vld [vmem:[%s348 + $0xd68] sm:$0xff]
        %v970 = vld [vmem:[%s348 + $0xd70] sm:$0xff]
        %v971 = vld [vmem:[%s348 + $0xd78] sm:$0xff]
        %v972 = vld [vmem:[%s348 + $0xd80] sm:$0xff]
        %v973 = vld [vmem:[%s348 + $0xd88] sm:$0xff]
        %v974 = vld [vmem:[%s348 + $0xd90] sm:$0xff]
        %v975 = vld [vmem:[%s348 + $0xd98] sm:$0xff]
        %v976 = vld [vmem:[%s348 + $0xda0] sm:$0xff]
        %v977 = vld [vmem:[%s348 + $0xda8] sm:$0xff]
        %v978 = vld [vmem:[%s348 + $0xdb0] sm:$0xff]
        %v979 = vld [vmem:[%s348 + $0xdb8] sm:$0xff]
        %v980 = vld [vmem:[%s348 + $0xdc0] sm:$0xff]
        %v981 = vld [vmem:[%s348 + $0xdc8] sm:$0xff]
        %v982 = vld [vmem:[%s348 + $0xdd0] sm:$0xff]
        %v983 = vld [vmem:[%s348 + $0xdd8] sm:$0xff]
        %v984 = vld [vmem:[%s348 + $0xde0] sm:$0xff]
        %v985 = vld [vmem:[%s348 + $0xde8] sm:$0xff]
        %v986 = vld [vmem:[%s348 + $0xdf0] sm:$0xff]
        %v987 = vld [vmem:[%s348 + $0xdf8] sm:$0xff]
        %v988 = vld [vmem:[%s348 + $0xe00] sm:$0xff]
        %v989 = vld [vmem:[%s348 + $0xe08] sm:$0xff]
        %v990 = vld [vmem:[%s348 + $0xe10] sm:$0xff]
        %v991 = vld [vmem:[%s348 + $0xe18] sm:$0xff]
        %v992 = vld [vmem:[%s348 + $0xe20] sm:$0xff]
        %v993 = vld [vmem:[%s348 + $0xe28] sm:$0xff]
        %v994 = vld [vmem:[%s348 + $0xe30] sm:$0xff]
        %v995 = vld [vmem:[%s348 + $0xe38] sm:$0xff]
        %v996 = vld [vmem:[%s348 + $0xe40] sm:$0xff]
        %v997 = vld [vmem:[%s348 + $0xe48] sm:$0xff]
        %v998 = vld [vmem:[%s348 + $0xe50] sm:$0xff]
        %v999 = vld [vmem:[%s348 + $0xe58] sm:$0xff]
        %v1000 = vld [vmem:[%s348 + $0xe60] sm:$0xff]
        %v1001 = vld [vmem:[%s348 + $0xe68] sm:$0xff]
        %v1002 = vld [vmem:[%s348 + $0xe70] sm:$0xff]
        %v1003 = vld [vmem:[%s348 + $0xe78] sm:$0xff]
        %v1004 = vld [vmem:[%s348 + $0xe80] sm:$0xff]
        %v1005 = vld [vmem:[%s348 + $0xe88] sm:$0xff]
        %v1006 = vld [vmem:[%s348 + $0xe90] sm:$0xff]
        %v1007 = vld [vmem:[%s348 + $0xe98] sm:$0xff]
        %v1008 = vld [vmem:[%s348 + $0xea0] sm:$0xff]
        %v1009 = vld [vmem:[%s348 + $0xea8] sm:$0xff]
        %v1010 = vld [vmem:[%s348 + $0xeb0] sm:$0xff]
        %v1011 = vld [vmem:[%s348 + $0xeb8] sm:$0xff]
        %v1012 = vld [vmem:[%s348 + $0xec0] sm:$0xff]
        %v1013 = vld [vmem:[%s348 + $0xec8] sm:$0xff]
        %v1014 = vld [vmem:[%s348 + $0xed0] sm:$0xff]
        %v1015 = vld [vmem:[%s348 + $0xed8] sm:$0xff]
        %v1016 = vld [vmem:[%s348 + $0xee0] sm:$0xff]
        %v1017 = vld [vmem:[%s348 + $0xee8] sm:$0xff]
        %v1018 = vld [vmem:[%s348 + $0xef0] sm:$0xff]
        %v1019 = vld [vmem:[%s348 + $0xef8] sm:$0xff]
        %v1020 = vld [vmem:[%s348 + $0xf00] sm:$0xff]
        %v1021 = vld [vmem:[%s348 + $0xf08] sm:$0xff]
        %v1022 = vld [vmem:[%s348 + $0xf10] sm:$0xff]
        %v1023 = vld [vmem:[%s348 + $0xf18] sm:$0xff]
        %v1024 = vld [vmem:[%s348 + $0xf20] sm:$0xff]
        %v1025 = vld [vmem:[%s348 + $0xf28] sm:$0xff]
        %v1026 = vld [vmem:[%s348 + $0xf30] sm:$0xff]
        %v1027 = vld [vmem:[%s348 + $0xf38] sm:$0xff]
        %v1028 = vld [vmem:[%s348 + $0xf40] sm:$0xff]
        %v1029 = vld [vmem:[%s348 + $0xf48] sm:$0xff]
        %v1030 = vld [vmem:[%s348 + $0xf50] sm:$0xff]
        %v1031 = vld [vmem:[%s348 + $0xf58] sm:$0xff]
        %v1032 = vld [vmem:[%s348 + $0xf60] sm:$0xff]
        %v1033 = vld [vmem:[%s348 + $0xf68] sm:$0xff]
        %v1034 = vld [vmem:[%s348 + $0xf70] sm:$0xff]
        %v1035 = vld [vmem:[%s348 + $0xf78] sm:$0xff]
        %v1036 = vld [vmem:[%s348 + $0xf80] sm:$0xff]
        %v1037 = vld [vmem:[%s348 + $0xf88] sm:$0xff]
        %v1038 = vld [vmem:[%s348 + $0xf90] sm:$0xff]
        %v1039 = vld [vmem:[%s348 + $0xf98] sm:$0xff]
        %v1040 = vld [vmem:[%s348 + $0xfa0] sm:$0xff]
        %v1041 = vld [vmem:[%s348 + $0xfa8] sm:$0xff]
        %v1042 = vld [vmem:[%s348 + $0xfb0] sm:$0xff]
        %v1043 = vld [vmem:[%s348 + $0xfb8] sm:$0xff]
        %v1044 = vld [vmem:[%s348 + $0xfc0] sm:$0xff]
        %v1045 = vld [vmem:[%s348 + $0xfc8] sm:$0xff]
        %v1046 = vld [vmem:[%s348 + $0xfd0] sm:$0xff]
        %v1047 = vld [vmem:[%s348 + $0xfd8] sm:$0xff]
        %v1048 = vld [vmem:[%s348 + $0xfe0] sm:$0xff]
        %v1049 = vld [vmem:[%s348 + $0xfe8] sm:$0xff]
        %v1050 = vld [vmem:[%s348 + $0xff0] sm:$0xff]
        %v1051 = vld [vmem:[%s348 + $0xff8] sm:$0xff]
        %v1052 = vunpack.c.0.s8 %v540
        %v1053 = vunpack.c.0.s8 %v541
        %v1054 = vunpack.c.0.s8 %v542
        %v1055 = vunpack.c.0.s8 %v543
        %v1056 = vunpack.c.1.s8 %v540
        %v1057 = vunpack.c.1.s8 %v541
        %v1058 = vunpack.c.1.s8 %v542
        %v1059 = vunpack.c.1.s8 %v543
        %v1060 = vunpack.c.2.s8 %v540
        %v1061 = vunpack.c.2.s8 %v541
        %v1062 = vunpack.c.2.s8 %v542
        %v1063 = vunpack.c.2.s8 %v543
        %v1064 = vunpack.c.3.s8 %v540
        %v1065 = vunpack.c.3.s8 %v541
        %v1066 = vunpack.c.3.s8 %v542
        %v1067 = vunpack.c.3.s8 %v543
        %v1068 = vunpack.c.0.s8 %v544
        %v1069 = vunpack.c.0.s8 %v545
        %v1070 = vunpack.c.0.s8 %v546
        %v1071 = vunpack.c.0.s8 %v547
        %v1072 = vunpack.c.1.s8 %v544
        %v1073 = vunpack.c.1.s8 %v545
        %v1074 = vunpack.c.1.s8 %v546
        %v1075 = vunpack.c.1.s8 %v547
        %v1076 = vunpack.c.2.s8 %v544
        %v1077 = vunpack.c.2.s8 %v545
        %v1078 = vunpack.c.2.s8 %v546
        %v1079 = vunpack.c.2.s8 %v547
        %v1080 = vunpack.c.3.s8 %v544
        %v1081 = vunpack.c.3.s8 %v545
        %v1082 = vunpack.c.3.s8 %v546
        %v1083 = vunpack.c.3.s8 %v547
        %v1084 = vunpack.c.0.s8 %v548
        %v1085 = vunpack.c.0.s8 %v549
        %v1086 = vunpack.c.0.s8 %v550
        %v1087 = vunpack.c.0.s8 %v551
        %v1088 = vunpack.c.1.s8 %v548
        %v1089 = vunpack.c.1.s8 %v549
        %v1090 = vunpack.c.1.s8 %v550
        %v1091 = vunpack.c.1.s8 %v551
        %v1092 = vunpack.c.2.s8 %v548
        %v1093 = vunpack.c.2.s8 %v549
        %v1094 = vunpack.c.2.s8 %v550
        %v1095 = vunpack.c.2.s8 %v551
        %v1096 = vunpack.c.3.s8 %v548
        %v1097 = vunpack.c.3.s8 %v549
        %v1098 = vunpack.c.3.s8 %v550
        %v1099 = vunpack.c.3.s8 %v551
        %v1100 = vunpack.c.0.s8 %v552
        %v1101 = vunpack.c.0.s8 %v553
        %v1102 = vunpack.c.0.s8 %v554
        %v1103 = vunpack.c.0.s8 %v555
        %v1104 = vunpack.c.1.s8 %v552
        %v1105 = vunpack.c.1.s8 %v553
        %v1106 = vunpack.c.1.s8 %v554
        %v1107 = vunpack.c.1.s8 %v555
        %v1108 = vunpack.c.2.s8 %v552
        %v1109 = vunpack.c.2.s8 %v553
        %v1110 = vunpack.c.2.s8 %v554
        %v1111 = vunpack.c.2.s8 %v555
        %v1112 = vunpack.c.3.s8 %v552
        %v1113 = vunpack.c.3.s8 %v553
        %v1114 = vunpack.c.3.s8 %v554
        %v1115 = vunpack.c.3.s8 %v555
        %v1116 = vunpack.c.0.s8 %v556
        %v1117 = vunpack.c.0.s8 %v557
        %v1118 = vunpack.c.0.s8 %v558
        %v1119 = vunpack.c.0.s8 %v559
        %v1120 = vunpack.c.1.s8 %v556
        %v1121 = vunpack.c.1.s8 %v557
        %v1122 = vunpack.c.1.s8 %v558
        %v1123 = vunpack.c.1.s8 %v559
        %v1124 = vunpack.c.2.s8 %v556
        %v1125 = vunpack.c.2.s8 %v557
        %v1126 = vunpack.c.2.s8 %v558
        %v1127 = vunpack.c.2.s8 %v559
        %v1128 = vunpack.c.3.s8 %v556
        %v1129 = vunpack.c.3.s8 %v557
        %v1130 = vunpack.c.3.s8 %v558
        %v1131 = vunpack.c.3.s8 %v559
        %v1132 = vunpack.c.0.s8 %v560
        %v1133 = vunpack.c.0.s8 %v561
        %v1134 = vunpack.c.0.s8 %v562
        %v1135 = vunpack.c.0.s8 %v563
        %v1136 = vunpack.c.1.s8 %v560
        %v1137 = vunpack.c.1.s8 %v561
        %v1138 = vunpack.c.1.s8 %v562
        %v1139 = vunpack.c.1.s8 %v563
        %v1140 = vunpack.c.2.s8 %v560
        %v1141 = vunpack.c.2.s8 %v561
        %v1142 = vunpack.c.2.s8 %v562
        %v1143 = vunpack.c.2.s8 %v563
        %v1144 = vunpack.c.3.s8 %v560
        %v1145 = vunpack.c.3.s8 %v561
        %v1146 = vunpack.c.3.s8 %v562
        %v1147 = vunpack.c.3.s8 %v563
        %v1148 = vunpack.c.0.s8 %v564
        %v1149 = vunpack.c.0.s8 %v565
        %v1150 = vunpack.c.0.s8 %v566
        %v1151 = vunpack.c.0.s8 %v567
        %v1152 = vunpack.c.1.s8 %v564
        %v1153 = vunpack.c.1.s8 %v565
        %v1154 = vunpack.c.1.s8 %v566
        %v1155 = vunpack.c.1.s8 %v567
        %v1156 = vunpack.c.2.s8 %v564
        %v1157 = vunpack.c.2.s8 %v565
        %v1158 = vunpack.c.2.s8 %v566
        %v1159 = vunpack.c.2.s8 %v567
        %v1160 = vunpack.c.3.s8 %v564
        %v1161 = vunpack.c.3.s8 %v565
        %v1162 = vunpack.c.3.s8 %v566
        %v1163 = vunpack.c.3.s8 %v567
        %v1164 = vunpack.c.0.s8 %v568
        %v1165 = vunpack.c.0.s8 %v569
        %v1166 = vunpack.c.0.s8 %v570
        %v1167 = vunpack.c.0.s8 %v571
        %v1168 = vunpack.c.1.s8 %v568
        %v1169 = vunpack.c.1.s8 %v569
        %v1170 = vunpack.c.1.s8 %v570
        %v1171 = vunpack.c.1.s8 %v571
        %v1172 = vunpack.c.2.s8 %v568
        %v1173 = vunpack.c.2.s8 %v569
        %v1174 = vunpack.c.2.s8 %v570
        %v1175 = vunpack.c.2.s8 %v571
        %v1176 = vunpack.c.3.s8 %v568
        %v1177 = vunpack.c.3.s8 %v569
        %v1178 = vunpack.c.3.s8 %v570
        %v1179 = vunpack.c.3.s8 %v571
        %v1180 = vunpack.c.0.s8 %v572
        %v1181 = vunpack.c.0.s8 %v573
        %v1182 = vunpack.c.0.s8 %v574
        %v1183 = vunpack.c.0.s8 %v575
        %v1184 = vunpack.c.1.s8 %v572
        %v1185 = vunpack.c.1.s8 %v573
        %v1186 = vunpack.c.1.s8 %v574
        %v1187 = vunpack.c.1.s8 %v575
        %v1188 = vunpack.c.2.s8 %v572
        %v1189 = vunpack.c.2.s8 %v573
        %v1190 = vunpack.c.2.s8 %v574
        %v1191 = vunpack.c.2.s8 %v575
        %v1192 = vunpack.c.3.s8 %v572
        %v1193 = vunpack.c.3.s8 %v573
        %v1194 = vunpack.c.3.s8 %v574
        %v1195 = vunpack.c.3.s8 %v575
        %v1196 = vunpack.c.0.s8 %v576
        %v1197 = vunpack.c.0.s8 %v577
        %v1198 = vunpack.c.0.s8 %v578
        %v1199 = vunpack.c.0.s8 %v579
        %v1200 = vunpack.c.1.s8 %v576
        %v1201 = vunpack.c.1.s8 %v577
        %v1202 = vunpack.c.1.s8 %v578
        %v1203 = vunpack.c.1.s8 %v579
        %v1204 = vunpack.c.2.s8 %v576
        %v1205 = vunpack.c.2.s8 %v577
        %v1206 = vunpack.c.2.s8 %v578
        %v1207 = vunpack.c.2.s8 %v579
        %v1208 = vunpack.c.3.s8 %v576
        %v1209 = vunpack.c.3.s8 %v577
        %v1210 = vunpack.c.3.s8 %v578
        %v1211 = vunpack.c.3.s8 %v579
        %v1212 = vunpack.c.0.s8 %v580
        %v1213 = vunpack.c.0.s8 %v581
        %v1214 = vunpack.c.0.s8 %v582
        %v1215 = vunpack.c.0.s8 %v583
        %v1216 = vunpack.c.1.s8 %v580
        %v1217 = vunpack.c.1.s8 %v581
        %v1218 = vunpack.c.1.s8 %v582
        %v1219 = vunpack.c.1.s8 %v583
        %v1220 = vunpack.c.2.s8 %v580
        %v1221 = vunpack.c.2.s8 %v581
        %v1222 = vunpack.c.2.s8 %v582
        %v1223 = vunpack.c.2.s8 %v583
        %v1224 = vunpack.c.3.s8 %v580
        %v1225 = vunpack.c.3.s8 %v581
        %v1226 = vunpack.c.3.s8 %v582
        %v1227 = vunpack.c.3.s8 %v583
        %v1228 = vunpack.c.0.s8 %v584
        %v1229 = vunpack.c.0.s8 %v585
        %v1230 = vunpack.c.0.s8 %v586
        %v1231 = vunpack.c.0.s8 %v587
        %v1232 = vunpack.c.1.s8 %v584
        %v1233 = vunpack.c.1.s8 %v585
        %v1234 = vunpack.c.1.s8 %v586
        %v1235 = vunpack.c.1.s8 %v587
        %v1236 = vunpack.c.2.s8 %v584
        %v1237 = vunpack.c.2.s8 %v585
        %v1238 = vunpack.c.2.s8 %v586
        %v1239 = vunpack.c.2.s8 %v587
        %v1240 = vunpack.c.3.s8 %v584
        %v1241 = vunpack.c.3.s8 %v585
        %v1242 = vunpack.c.3.s8 %v586
        %v1243 = vunpack.c.3.s8 %v587
        %v1244 = vunpack.c.0.s8 %v588
        %v1245 = vunpack.c.0.s8 %v589
        %v1246 = vunpack.c.0.s8 %v590
        %v1247 = vunpack.c.0.s8 %v591
        %v1248 = vunpack.c.1.s8 %v588
        %v1249 = vunpack.c.1.s8 %v589
        %v1250 = vunpack.c.1.s8 %v590
        %v1251 = vunpack.c.1.s8 %v591
        %v1252 = vunpack.c.2.s8 %v588
        %v1253 = vunpack.c.2.s8 %v589
        %v1254 = vunpack.c.2.s8 %v590
        %v1255 = vunpack.c.2.s8 %v591
        %v1256 = vunpack.c.3.s8 %v588
        %v1257 = vunpack.c.3.s8 %v589
        %v1258 = vunpack.c.3.s8 %v590
        %v1259 = vunpack.c.3.s8 %v591
        %v1260 = vunpack.c.0.s8 %v592
        %v1261 = vunpack.c.0.s8 %v593
        %v1262 = vunpack.c.0.s8 %v594
        %v1263 = vunpack.c.0.s8 %v595
        %v1264 = vunpack.c.1.s8 %v592
        %v1265 = vunpack.c.1.s8 %v593
        %v1266 = vunpack.c.1.s8 %v594
        %v1267 = vunpack.c.1.s8 %v595
        %v1268 = vunpack.c.2.s8 %v592
        %v1269 = vunpack.c.2.s8 %v593
        %v1270 = vunpack.c.2.s8 %v594
        %v1271 = vunpack.c.2.s8 %v595
        %v1272 = vunpack.c.3.s8 %v592
        %v1273 = vunpack.c.3.s8 %v593
        %v1274 = vunpack.c.3.s8 %v594
        %v1275 = vunpack.c.3.s8 %v595
        %v1276 = vunpack.c.0.s8 %v596
        %v1277 = vunpack.c.0.s8 %v597
        %v1278 = vunpack.c.0.s8 %v598
        %v1279 = vunpack.c.0.s8 %v599
        %v1280 = vunpack.c.1.s8 %v596
        %v1281 = vunpack.c.1.s8 %v597
        %v1282 = vunpack.c.1.s8 %v598
        %v1283 = vunpack.c.1.s8 %v599
        %v1284 = vunpack.c.2.s8 %v596
        %v1285 = vunpack.c.2.s8 %v597
        %v1286 = vunpack.c.2.s8 %v598
        %v1287 = vunpack.c.2.s8 %v599
        %v1288 = vunpack.c.3.s8 %v596
        %v1289 = vunpack.c.3.s8 %v597
        %v1290 = vunpack.c.3.s8 %v598
        %v1291 = vunpack.c.3.s8 %v599
        %v1292 = vunpack.c.0.s8 %v600
        %v1293 = vunpack.c.0.s8 %v601
        %v1294 = vunpack.c.0.s8 %v602
        %v1295 = vunpack.c.0.s8 %v603
        %v1296 = vunpack.c.1.s8 %v600
        %v1297 = vunpack.c.1.s8 %v601
        %v1298 = vunpack.c.1.s8 %v602
        %v1299 = vunpack.c.1.s8 %v603
        %v1300 = vunpack.c.2.s8 %v600
        %v1301 = vunpack.c.2.s8 %v601
        %v1302 = vunpack.c.2.s8 %v602
        %v1303 = vunpack.c.2.s8 %v603
        %v1304 = vunpack.c.3.s8 %v600
        %v1305 = vunpack.c.3.s8 %v601
        %v1306 = vunpack.c.3.s8 %v602
        %v1307 = vunpack.c.3.s8 %v603
        %v1308 = vunpack.c.0.s8 %v604
        %v1309 = vunpack.c.0.s8 %v605
        %v1310 = vunpack.c.0.s8 %v606
        %v1311 = vunpack.c.0.s8 %v607
        %v1312 = vunpack.c.1.s8 %v604
        %v1313 = vunpack.c.1.s8 %v605
        %v1314 = vunpack.c.1.s8 %v606
        %v1315 = vunpack.c.1.s8 %v607
        %v1316 = vunpack.c.2.s8 %v604
        %v1317 = vunpack.c.2.s8 %v605
        %v1318 = vunpack.c.2.s8 %v606
        %v1319 = vunpack.c.2.s8 %v607
        %v1320 = vunpack.c.3.s8 %v604
        %v1321 = vunpack.c.3.s8 %v605
        %v1322 = vunpack.c.3.s8 %v606
        %v1323 = vunpack.c.3.s8 %v607
        %v1324 = vunpack.c.0.s8 %v608
        %v1325 = vunpack.c.0.s8 %v609
        %v1326 = vunpack.c.0.s8 %v610
        %v1327 = vunpack.c.0.s8 %v611
        %v1328 = vunpack.c.1.s8 %v608
        %v1329 = vunpack.c.1.s8 %v609
        %v1330 = vunpack.c.1.s8 %v610
        %v1331 = vunpack.c.1.s8 %v611
        %v1332 = vunpack.c.2.s8 %v608
        %v1333 = vunpack.c.2.s8 %v609
        %v1334 = vunpack.c.2.s8 %v610
        %v1335 = vunpack.c.2.s8 %v611
        %v1336 = vunpack.c.3.s8 %v608
        %v1337 = vunpack.c.3.s8 %v609
        %v1338 = vunpack.c.3.s8 %v610
        %v1339 = vunpack.c.3.s8 %v611
        %v1340 = vunpack.c.0.s8 %v612
        %v1341 = vunpack.c.0.s8 %v613
        %v1342 = vunpack.c.0.s8 %v614
        %v1343 = vunpack.c.0.s8 %v615
        %v1344 = vunpack.c.1.s8 %v612
        %v1345 = vunpack.c.1.s8 %v613
        %v1346 = vunpack.c.1.s8 %v614
        %v1347 = vunpack.c.1.s8 %v615
        %v1348 = vunpack.c.2.s8 %v612
        %v1349 = vunpack.c.2.s8 %v613
        %v1350 = vunpack.c.2.s8 %v614
        %v1351 = vunpack.c.2.s8 %v615
        %v1352 = vunpack.c.3.s8 %v612
        %v1353 = vunpack.c.3.s8 %v613
        %v1354 = vunpack.c.3.s8 %v614
        %v1355 = vunpack.c.3.s8 %v615
        %v1356 = vunpack.c.0.s8 %v616
        %v1357 = vunpack.c.0.s8 %v617
        %v1358 = vunpack.c.0.s8 %v618
        %v1359 = vunpack.c.0.s8 %v619
        %v1360 = vunpack.c.1.s8 %v616
        %v1361 = vunpack.c.1.s8 %v617
        %v1362 = vunpack.c.1.s8 %v618
        %v1363 = vunpack.c.1.s8 %v619
        %v1364 = vunpack.c.2.s8 %v616
        %v1365 = vunpack.c.2.s8 %v617
        %v1366 = vunpack.c.2.s8 %v618
        %v1367 = vunpack.c.2.s8 %v619
        %v1368 = vunpack.c.3.s8 %v616
        %v1369 = vunpack.c.3.s8 %v617
        %v1370 = vunpack.c.3.s8 %v618
        %v1371 = vunpack.c.3.s8 %v619
        %v1372 = vunpack.c.0.s8 %v620
        %v1373 = vunpack.c.0.s8 %v621
        %v1374 = vunpack.c.0.s8 %v622
        %v1375 = vunpack.c.0.s8 %v623
        %v1376 = vunpack.c.1.s8 %v620
        %v1377 = vunpack.c.1.s8 %v621
        %v1378 = vunpack.c.1.s8 %v622
        %v1379 = vunpack.c.1.s8 %v623
        %v1380 = vunpack.c.2.s8 %v620
        %v1381 = vunpack.c.2.s8 %v621
        %v1382 = vunpack.c.2.s8 %v622
        %v1383 = vunpack.c.2.s8 %v623
        %v1384 = vunpack.c.3.s8 %v620
        %v1385 = vunpack.c.3.s8 %v621
        %v1386 = vunpack.c.3.s8 %v622
        %v1387 = vunpack.c.3.s8 %v623
        %v1388 = vunpack.c.0.s8 %v624
        %v1389 = vunpack.c.0.s8 %v625
        %v1390 = vunpack.c.0.s8 %v626
        %v1391 = vunpack.c.0.s8 %v627
        %v1392 = vunpack.c.1.s8 %v624
        %v1393 = vunpack.c.1.s8 %v625
        %v1394 = vunpack.c.1.s8 %v626
        %v1395 = vunpack.c.1.s8 %v627
        %v1396 = vunpack.c.2.s8 %v624
        %v1397 = vunpack.c.2.s8 %v625
        %v1398 = vunpack.c.2.s8 %v626
        %v1399 = vunpack.c.2.s8 %v627
        %v1400 = vunpack.c.3.s8 %v624
        %v1401 = vunpack.c.3.s8 %v625
        %v1402 = vunpack.c.3.s8 %v626
        %v1403 = vunpack.c.3.s8 %v627
        %v1404 = vunpack.c.0.s8 %v628
        %v1405 = vunpack.c.0.s8 %v629
        %v1406 = vunpack.c.0.s8 %v630
        %v1407 = vunpack.c.0.s8 %v631
        %v1408 = vunpack.c.1.s8 %v628
        %v1409 = vunpack.c.1.s8 %v629
        %v1410 = vunpack.c.1.s8 %v630
        %v1411 = vunpack.c.1.s8 %v631
        %v1412 = vunpack.c.2.s8 %v628
        %v1413 = vunpack.c.2.s8 %v629
        %v1414 = vunpack.c.2.s8 %v630
        %v1415 = vunpack.c.2.s8 %v631
        %v1416 = vunpack.c.3.s8 %v628
        %v1417 = vunpack.c.3.s8 %v629
        %v1418 = vunpack.c.3.s8 %v630
        %v1419 = vunpack.c.3.s8 %v631
        %v1420 = vunpack.c.0.s8 %v632
        %v1421 = vunpack.c.0.s8 %v633
        %v1422 = vunpack.c.0.s8 %v634
        %v1423 = vunpack.c.0.s8 %v635
        %v1424 = vunpack.c.1.s8 %v632
        %v1425 = vunpack.c.1.s8 %v633
        %v1426 = vunpack.c.1.s8 %v634
        %v1427 = vunpack.c.1.s8 %v635
        %v1428 = vunpack.c.2.s8 %v632
        %v1429 = vunpack.c.2.s8 %v633
        %v1430 = vunpack.c.2.s8 %v634
        %v1431 = vunpack.c.2.s8 %v635
        %v1432 = vunpack.c.3.s8 %v632
        %v1433 = vunpack.c.3.s8 %v633
        %v1434 = vunpack.c.3.s8 %v634
        %v1435 = vunpack.c.3.s8 %v635
        %v1436 = vunpack.c.0.s8 %v636
        %v1437 = vunpack.c.0.s8 %v637
        %v1438 = vunpack.c.0.s8 %v638
        %v1439 = vunpack.c.0.s8 %v639
        %v1440 = vunpack.c.1.s8 %v636
        %v1441 = vunpack.c.1.s8 %v637
        %v1442 = vunpack.c.1.s8 %v638
        %v1443 = vunpack.c.1.s8 %v639
        %v1444 = vunpack.c.2.s8 %v636
        %v1445 = vunpack.c.2.s8 %v637
        %v1446 = vunpack.c.2.s8 %v638
        %v1447 = vunpack.c.2.s8 %v639
        %v1448 = vunpack.c.3.s8 %v636
        %v1449 = vunpack.c.3.s8 %v637
        %v1450 = vunpack.c.3.s8 %v638
        %v1451 = vunpack.c.3.s8 %v639
        %v1452 = vunpack.c.0.s8 %v640
        %v1453 = vunpack.c.0.s8 %v641
        %v1454 = vunpack.c.0.s8 %v642
        %v1455 = vunpack.c.0.s8 %v643
        %v1456 = vunpack.c.1.s8 %v640
        %v1457 = vunpack.c.1.s8 %v641
        %v1458 = vunpack.c.1.s8 %v642
        %v1459 = vunpack.c.1.s8 %v643
        %v1460 = vunpack.c.2.s8 %v640
        %v1461 = vunpack.c.2.s8 %v641
        %v1462 = vunpack.c.2.s8 %v642
        %v1463 = vunpack.c.2.s8 %v643
        %v1464 = vunpack.c.3.s8 %v640
        %v1465 = vunpack.c.3.s8 %v641
        %v1466 = vunpack.c.3.s8 %v642
        %v1467 = vunpack.c.3.s8 %v643
        %v1468 = vunpack.c.0.s8 %v644
        %v1469 = vunpack.c.0.s8 %v645
        %v1470 = vunpack.c.0.s8 %v646
        %v1471 = vunpack.c.0.s8 %v647
        %v1472 = vunpack.c.1.s8 %v644
        %v1473 = vunpack.c.1.s8 %v645
        %v1474 = vunpack.c.1.s8 %v646
        %v1475 = vunpack.c.1.s8 %v647
        %v1476 = vunpack.c.2.s8 %v644
        %v1477 = vunpack.c.2.s8 %v645
        %v1478 = vunpack.c.2.s8 %v646
        %v1479 = vunpack.c.2.s8 %v647
        %v1480 = vunpack.c.3.s8 %v644
        %v1481 = vunpack.c.3.s8 %v645
        %v1482 = vunpack.c.3.s8 %v646
        %v1483 = vunpack.c.3.s8 %v647
        %v1484 = vunpack.c.0.s8 %v648
        %v1485 = vunpack.c.0.s8 %v649
        %v1486 = vunpack.c.0.s8 %v650
        %v1487 = vunpack.c.0.s8 %v651
        %v1488 = vunpack.c.1.s8 %v648
        %v1489 = vunpack.c.1.s8 %v649
        %v1490 = vunpack.c.1.s8 %v650
        %v1491 = vunpack.c.1.s8 %v651
        %v1492 = vunpack.c.2.s8 %v648
        %v1493 = vunpack.c.2.s8 %v649
        %v1494 = vunpack.c.2.s8 %v650
        %v1495 = vunpack.c.2.s8 %v651
        %v1496 = vunpack.c.3.s8 %v648
        %v1497 = vunpack.c.3.s8 %v649
        %v1498 = vunpack.c.3.s8 %v650
        %v1499 = vunpack.c.3.s8 %v651
        %v1500 = vunpack.c.0.s8 %v652
        %v1501 = vunpack.c.0.s8 %v653
        %v1502 = vunpack.c.0.s8 %v654
        %v1503 = vunpack.c.0.s8 %v655
        %v1504 = vunpack.c.1.s8 %v652
        %v1505 = vunpack.c.1.s8 %v653
        %v1506 = vunpack.c.1.s8 %v654
        %v1507 = vunpack.c.1.s8 %v655
        %v1508 = vunpack.c.2.s8 %v652
        %v1509 = vunpack.c.2.s8 %v653
        %v1510 = vunpack.c.2.s8 %v654
        %v1511 = vunpack.c.2.s8 %v655
        %v1512 = vunpack.c.3.s8 %v652
        %v1513 = vunpack.c.3.s8 %v653
        %v1514 = vunpack.c.3.s8 %v654
        %v1515 = vunpack.c.3.s8 %v655
        %v1516 = vunpack.c.0.s8 %v656
        %v1517 = vunpack.c.0.s8 %v657
        %v1518 = vunpack.c.0.s8 %v658
        %v1519 = vunpack.c.0.s8 %v659
        %v1520 = vunpack.c.1.s8 %v656
        %v1521 = vunpack.c.1.s8 %v657
        %v1522 = vunpack.c.1.s8 %v658
        %v1523 = vunpack.c.1.s8 %v659
        %v1524 = vunpack.c.2.s8 %v656
        %v1525 = vunpack.c.2.s8 %v657
        %v1526 = vunpack.c.2.s8 %v658
        %v1527 = vunpack.c.2.s8 %v659
        %v1528 = vunpack.c.3.s8 %v656
        %v1529 = vunpack.c.3.s8 %v657
        %v1530 = vunpack.c.3.s8 %v658
        %v1531 = vunpack.c.3.s8 %v659
        %v1532 = vunpack.c.0.s8 %v660
        %v1533 = vunpack.c.0.s8 %v661
        %v1534 = vunpack.c.0.s8 %v662
        %v1535 = vunpack.c.0.s8 %v663
        %v1536 = vunpack.c.1.s8 %v660
        %v1537 = vunpack.c.1.s8 %v661
        %v1538 = vunpack.c.1.s8 %v662
        %v1539 = vunpack.c.1.s8 %v663
        %v1540 = vunpack.c.2.s8 %v660
        %v1541 = vunpack.c.2.s8 %v661
        %v1542 = vunpack.c.2.s8 %v662
        %v1543 = vunpack.c.2.s8 %v663
        %v1544 = vunpack.c.3.s8 %v660
        %v1545 = vunpack.c.3.s8 %v661
        %v1546 = vunpack.c.3.s8 %v662
        %v1547 = vunpack.c.3.s8 %v663
        %v1548 = vunpack.c.0.s8 %v664
        %v1549 = vunpack.c.0.s8 %v665
        %v1550 = vunpack.c.0.s8 %v666
        %v1551 = vunpack.c.0.s8 %v667
        %v1552 = vunpack.c.1.s8 %v664
        %v1553 = vunpack.c.1.s8 %v665
        %v1554 = vunpack.c.1.s8 %v666
        %v1555 = vunpack.c.1.s8 %v667
        %v1556 = vunpack.c.2.s8 %v664
        %v1557 = vunpack.c.2.s8 %v665
        %v1558 = vunpack.c.2.s8 %v666
        %v1559 = vunpack.c.2.s8 %v667
        %v1560 = vunpack.c.3.s8 %v664
        %v1561 = vunpack.c.3.s8 %v665
        %v1562 = vunpack.c.3.s8 %v666
        %v1563 = vunpack.c.3.s8 %v667
        %v1564 = vunpack.c.0.s8 %v668
        %v1565 = vunpack.c.0.s8 %v669
        %v1566 = vunpack.c.0.s8 %v670
        %v1567 = vunpack.c.0.s8 %v671
        %v1568 = vunpack.c.1.s8 %v668
        %v1569 = vunpack.c.1.s8 %v669
        %v1570 = vunpack.c.1.s8 %v670
        %v1571 = vunpack.c.1.s8 %v671
        %v1572 = vunpack.c.2.s8 %v668
        %v1573 = vunpack.c.2.s8 %v669
        %v1574 = vunpack.c.2.s8 %v670
        %v1575 = vunpack.c.2.s8 %v671
        %v1576 = vunpack.c.3.s8 %v668
        %v1577 = vunpack.c.3.s8 %v669
        %v1578 = vunpack.c.3.s8 %v670
        %v1579 = vunpack.c.3.s8 %v671
        %v1580 = vunpack.c.0.s8 %v672
        %v1581 = vunpack.c.0.s8 %v673
        %v1582 = vunpack.c.0.s8 %v674
        %v1583 = vunpack.c.0.s8 %v675
        %v1584 = vunpack.c.1.s8 %v672
        %v1585 = vunpack.c.1.s8 %v673
        %v1586 = vunpack.c.1.s8 %v674
        %v1587 = vunpack.c.1.s8 %v675
        %v1588 = vunpack.c.2.s8 %v672
        %v1589 = vunpack.c.2.s8 %v673
        %v1590 = vunpack.c.2.s8 %v674
        %v1591 = vunpack.c.2.s8 %v675
        %v1592 = vunpack.c.3.s8 %v672
        %v1593 = vunpack.c.3.s8 %v673
        %v1594 = vunpack.c.3.s8 %v674
        %v1595 = vunpack.c.3.s8 %v675
        %v1596 = vunpack.c.0.s8 %v676
        %v1597 = vunpack.c.0.s8 %v677
        %v1598 = vunpack.c.0.s8 %v678
        %v1599 = vunpack.c.0.s8 %v679
        %v1600 = vunpack.c.1.s8 %v676
        %v1601 = vunpack.c.1.s8 %v677
        %v1602 = vunpack.c.1.s8 %v678
        %v1603 = vunpack.c.1.s8 %v679
        %v1604 = vunpack.c.2.s8 %v676
        %v1605 = vunpack.c.2.s8 %v677
        %v1606 = vunpack.c.2.s8 %v678
        %v1607 = vunpack.c.2.s8 %v679
        %v1608 = vunpack.c.3.s8 %v676
        %v1609 = vunpack.c.3.s8 %v677
        %v1610 = vunpack.c.3.s8 %v678
        %v1611 = vunpack.c.3.s8 %v679
        %v1612 = vunpack.c.0.s8 %v680
        %v1613 = vunpack.c.0.s8 %v681
        %v1614 = vunpack.c.0.s8 %v682
        %v1615 = vunpack.c.0.s8 %v683
        %v1616 = vunpack.c.1.s8 %v680
        %v1617 = vunpack.c.1.s8 %v681
        %v1618 = vunpack.c.1.s8 %v682
        %v1619 = vunpack.c.1.s8 %v683
        %v1620 = vunpack.c.2.s8 %v680
        %v1621 = vunpack.c.2.s8 %v681
        %v1622 = vunpack.c.2.s8 %v682
        %v1623 = vunpack.c.2.s8 %v683
        %v1624 = vunpack.c.3.s8 %v680
        %v1625 = vunpack.c.3.s8 %v681
        %v1626 = vunpack.c.3.s8 %v682
        %v1627 = vunpack.c.3.s8 %v683
        %v1628 = vunpack.c.0.s8 %v684
        %v1629 = vunpack.c.0.s8 %v685
        %v1630 = vunpack.c.0.s8 %v686
        %v1631 = vunpack.c.0.s8 %v687
        %v1632 = vunpack.c.1.s8 %v684
        %v1633 = vunpack.c.1.s8 %v685
        %v1634 = vunpack.c.1.s8 %v686
        %v1635 = vunpack.c.1.s8 %v687
        %v1636 = vunpack.c.2.s8 %v684
        %v1637 = vunpack.c.2.s8 %v685
        %v1638 = vunpack.c.2.s8 %v686
        %v1639 = vunpack.c.2.s8 %v687
        %v1640 = vunpack.c.3.s8 %v684
        %v1641 = vunpack.c.3.s8 %v685
        %v1642 = vunpack.c.3.s8 %v686
        %v1643 = vunpack.c.3.s8 %v687
        %v1644 = vunpack.c.0.s8 %v688
        %v1645 = vunpack.c.0.s8 %v689
        %v1646 = vunpack.c.0.s8 %v690
        %v1647 = vunpack.c.0.s8 %v691
        %v1648 = vunpack.c.1.s8 %v688
        %v1649 = vunpack.c.1.s8 %v689
        %v1650 = vunpack.c.1.s8 %v690
        %v1651 = vunpack.c.1.s8 %v691
        %v1652 = vunpack.c.2.s8 %v688
        %v1653 = vunpack.c.2.s8 %v689
        %v1654 = vunpack.c.2.s8 %v690
        %v1655 = vunpack.c.2.s8 %v691
        %v1656 = vunpack.c.3.s8 %v688
        %v1657 = vunpack.c.3.s8 %v689
        %v1658 = vunpack.c.3.s8 %v690
        %v1659 = vunpack.c.3.s8 %v691
        %v1660 = vunpack.c.0.s8 %v692
        %v1661 = vunpack.c.0.s8 %v693
        %v1662 = vunpack.c.0.s8 %v694
        %v1663 = vunpack.c.0.s8 %v695
        %v1664 = vunpack.c.1.s8 %v692
        %v1665 = vunpack.c.1.s8 %v693
        %v1666 = vunpack.c.1.s8 %v694
        %v1667 = vunpack.c.1.s8 %v695
        %v1668 = vunpack.c.2.s8 %v692
        %v1669 = vunpack.c.2.s8 %v693
        %v1670 = vunpack.c.2.s8 %v694
        %v1671 = vunpack.c.2.s8 %v695
        %v1672 = vunpack.c.3.s8 %v692
        %v1673 = vunpack.c.3.s8 %v693
        %v1674 = vunpack.c.3.s8 %v694
        %v1675 = vunpack.c.3.s8 %v695
        %v1676 = vunpack.c.0.s8 %v696
        %v1677 = vunpack.c.0.s8 %v697
        %v1678 = vunpack.c.0.s8 %v698
        %v1679 = vunpack.c.0.s8 %v699
        %v1680 = vunpack.c.1.s8 %v696
        %v1681 = vunpack.c.1.s8 %v697
        %v1682 = vunpack.c.1.s8 %v698
        %v1683 = vunpack.c.1.s8 %v699
        %v1684 = vunpack.c.2.s8 %v696
        %v1685 = vunpack.c.2.s8 %v697
        %v1686 = vunpack.c.2.s8 %v698
        %v1687 = vunpack.c.2.s8 %v699
        %v1688 = vunpack.c.3.s8 %v696
        %v1689 = vunpack.c.3.s8 %v697
        %v1690 = vunpack.c.3.s8 %v698
        %v1691 = vunpack.c.3.s8 %v699
        %v1692 = vunpack.c.0.s8 %v700
        %v1693 = vunpack.c.0.s8 %v701
        %v1694 = vunpack.c.0.s8 %v702
        %v1695 = vunpack.c.0.s8 %v703
        %v1696 = vunpack.c.1.s8 %v700
        %v1697 = vunpack.c.1.s8 %v701
        %v1698 = vunpack.c.1.s8 %v702
        %v1699 = vunpack.c.1.s8 %v703
        %v1700 = vunpack.c.2.s8 %v700
        %v1701 = vunpack.c.2.s8 %v701
        %v1702 = vunpack.c.2.s8 %v702
        %v1703 = vunpack.c.2.s8 %v703
        %v1704 = vunpack.c.3.s8 %v700
        %v1705 = vunpack.c.3.s8 %v701
        %v1706 = vunpack.c.3.s8 %v702
        %v1707 = vunpack.c.3.s8 %v703
        %v1708 = vunpack.c.0.s8 %v704
        %v1709 = vunpack.c.0.s8 %v705
        %v1710 = vunpack.c.0.s8 %v706
        %v1711 = vunpack.c.0.s8 %v707
        %v1712 = vunpack.c.1.s8 %v704
        %v1713 = vunpack.c.1.s8 %v705
        %v1714 = vunpack.c.1.s8 %v706
        %v1715 = vunpack.c.1.s8 %v707
        %v1716 = vunpack.c.2.s8 %v704
        %v1717 = vunpack.c.2.s8 %v705
        %v1718 = vunpack.c.2.s8 %v706
        %v1719 = vunpack.c.2.s8 %v707
        %v1720 = vunpack.c.3.s8 %v704
        %v1721 = vunpack.c.3.s8 %v705
        %v1722 = vunpack.c.3.s8 %v706
        %v1723 = vunpack.c.3.s8 %v707
        %v1724 = vunpack.c.0.s8 %v708
        %v1725 = vunpack.c.0.s8 %v709
        %v1726 = vunpack.c.0.s8 %v710
        %v1727 = vunpack.c.0.s8 %v711
        %v1728 = vunpack.c.1.s8 %v708
        %v1729 = vunpack.c.1.s8 %v709
        %v1730 = vunpack.c.1.s8 %v710
        %v1731 = vunpack.c.1.s8 %v711
        %v1732 = vunpack.c.2.s8 %v708
        %v1733 = vunpack.c.2.s8 %v709
        %v1734 = vunpack.c.2.s8 %v710
        %v1735 = vunpack.c.2.s8 %v711
        %v1736 = vunpack.c.3.s8 %v708
        %v1737 = vunpack.c.3.s8 %v709
        %v1738 = vunpack.c.3.s8 %v710
        %v1739 = vunpack.c.3.s8 %v711
        %v1740 = vunpack.c.0.s8 %v712
        %v1741 = vunpack.c.0.s8 %v713
        %v1742 = vunpack.c.0.s8 %v714
        %v1743 = vunpack.c.0.s8 %v715
        %v1744 = vunpack.c.1.s8 %v712
        %v1745 = vunpack.c.1.s8 %v713
        %v1746 = vunpack.c.1.s8 %v714
        %v1747 = vunpack.c.1.s8 %v715
        %v1748 = vunpack.c.2.s8 %v712
        %v1749 = vunpack.c.2.s8 %v713
        %v1750 = vunpack.c.2.s8 %v714
        %v1751 = vunpack.c.2.s8 %v715
        %v1752 = vunpack.c.3.s8 %v712
        %v1753 = vunpack.c.3.s8 %v713
        %v1754 = vunpack.c.3.s8 %v714
        %v1755 = vunpack.c.3.s8 %v715
        %v1756 = vunpack.c.0.s8 %v716
        %v1757 = vunpack.c.0.s8 %v717
        %v1758 = vunpack.c.0.s8 %v718
        %v1759 = vunpack.c.0.s8 %v719
        %v1760 = vunpack.c.1.s8 %v716
        %v1761 = vunpack.c.1.s8 %v717
        %v1762 = vunpack.c.1.s8 %v718
        %v1763 = vunpack.c.1.s8 %v719
        %v1764 = vunpack.c.2.s8 %v716
        %v1765 = vunpack.c.2.s8 %v717
        %v1766 = vunpack.c.2.s8 %v718
        %v1767 = vunpack.c.2.s8 %v719
        %v1768 = vunpack.c.3.s8 %v716
        %v1769 = vunpack.c.3.s8 %v717
        %v1770 = vunpack.c.3.s8 %v718
        %v1771 = vunpack.c.3.s8 %v719
        %v1772 = vunpack.c.0.s8 %v720
        %v1773 = vunpack.c.0.s8 %v721
        %v1774 = vunpack.c.0.s8 %v722
        %v1775 = vunpack.c.0.s8 %v723
        %v1776 = vunpack.c.1.s8 %v720
        %v1777 = vunpack.c.1.s8 %v721
        %v1778 = vunpack.c.1.s8 %v722
        %v1779 = vunpack.c.1.s8 %v723
        %v1780 = vunpack.c.2.s8 %v720
        %v1781 = vunpack.c.2.s8 %v721
        %v1782 = vunpack.c.2.s8 %v722
        %v1783 = vunpack.c.2.s8 %v723
        %v1784 = vunpack.c.3.s8 %v720
        %v1785 = vunpack.c.3.s8 %v721
        %v1786 = vunpack.c.3.s8 %v722
        %v1787 = vunpack.c.3.s8 %v723
        %v1788 = vunpack.c.0.s8 %v724
        %v1789 = vunpack.c.0.s8 %v725
        %v1790 = vunpack.c.0.s8 %v726
        %v1791 = vunpack.c.0.s8 %v727
        %v1792 = vunpack.c.1.s8 %v724
        %v1793 = vunpack.c.1.s8 %v725
        %v1794 = vunpack.c.1.s8 %v726
        %v1795 = vunpack.c.1.s8 %v727
        %v1796 = vunpack.c.2.s8 %v724
        %v1797 = vunpack.c.2.s8 %v725
        %v1798 = vunpack.c.2.s8 %v726
        %v1799 = vunpack.c.2.s8 %v727
        %v1800 = vunpack.c.3.s8 %v724
        %v1801 = vunpack.c.3.s8 %v725
        %v1802 = vunpack.c.3.s8 %v726
        %v1803 = vunpack.c.3.s8 %v727
        %v1804 = vunpack.c.0.s8 %v728
        %v1805 = vunpack.c.0.s8 %v729
        %v1806 = vunpack.c.0.s8 %v730
        %v1807 = vunpack.c.0.s8 %v731
        %v1808 = vunpack.c.1.s8 %v728
        %v1809 = vunpack.c.1.s8 %v729
        %v1810 = vunpack.c.1.s8 %v730
        %v1811 = vunpack.c.1.s8 %v731
        %v1812 = vunpack.c.2.s8 %v728
        %v1813 = vunpack.c.2.s8 %v729
        %v1814 = vunpack.c.2.s8 %v730
        %v1815 = vunpack.c.2.s8 %v731
        %v1816 = vunpack.c.3.s8 %v728
        %v1817 = vunpack.c.3.s8 %v729
        %v1818 = vunpack.c.3.s8 %v730
        %v1819 = vunpack.c.3.s8 %v731
        %v1820 = vunpack.c.0.s8 %v732
        %v1821 = vunpack.c.0.s8 %v733
        %v1822 = vunpack.c.0.s8 %v734
        %v1823 = vunpack.c.0.s8 %v735
        %v1824 = vunpack.c.1.s8 %v732
        %v1825 = vunpack.c.1.s8 %v733
        %v1826 = vunpack.c.1.s8 %v734
        %v1827 = vunpack.c.1.s8 %v735
        %v1828 = vunpack.c.2.s8 %v732
        %v1829 = vunpack.c.2.s8 %v733
        %v1830 = vunpack.c.2.s8 %v734
        %v1831 = vunpack.c.2.s8 %v735
        %v1832 = vunpack.c.3.s8 %v732
        %v1833 = vunpack.c.3.s8 %v733
        %v1834 = vunpack.c.3.s8 %v734
        %v1835 = vunpack.c.3.s8 %v735
        %v1836 = vunpack.c.0.s8 %v736
        %v1837 = vunpack.c.0.s8 %v737
        %v1838 = vunpack.c.0.s8 %v738
        %v1839 = vunpack.c.0.s8 %v739
        %v1840 = vunpack.c.1.s8 %v736
        %v1841 = vunpack.c.1.s8 %v737
        %v1842 = vunpack.c.1.s8 %v738
        %v1843 = vunpack.c.1.s8 %v739
        %v1844 = vunpack.c.2.s8 %v736
        %v1845 = vunpack.c.2.s8 %v737
        %v1846 = vunpack.c.2.s8 %v738
        %v1847 = vunpack.c.2.s8 %v739
        %v1848 = vunpack.c.3.s8 %v736
        %v1849 = vunpack.c.3.s8 %v737
        %v1850 = vunpack.c.3.s8 %v738
        %v1851 = vunpack.c.3.s8 %v739
        %v1852 = vunpack.c.0.s8 %v740
        %v1853 = vunpack.c.0.s8 %v741
        %v1854 = vunpack.c.0.s8 %v742
        %v1855 = vunpack.c.0.s8 %v743
        %v1856 = vunpack.c.1.s8 %v740
        %v1857 = vunpack.c.1.s8 %v741
        %v1858 = vunpack.c.1.s8 %v742
        %v1859 = vunpack.c.1.s8 %v743
        %v1860 = vunpack.c.2.s8 %v740
        %v1861 = vunpack.c.2.s8 %v741
        %v1862 = vunpack.c.2.s8 %v742
        %v1863 = vunpack.c.2.s8 %v743
        %v1864 = vunpack.c.3.s8 %v740
        %v1865 = vunpack.c.3.s8 %v741
        %v1866 = vunpack.c.3.s8 %v742
        %v1867 = vunpack.c.3.s8 %v743
        %v1868 = vunpack.c.0.s8 %v744
        %v1869 = vunpack.c.0.s8 %v745
        %v1870 = vunpack.c.0.s8 %v746
        %v1871 = vunpack.c.0.s8 %v747
        %v1872 = vunpack.c.1.s8 %v744
        %v1873 = vunpack.c.1.s8 %v745
        %v1874 = vunpack.c.1.s8 %v746
        %v1875 = vunpack.c.1.s8 %v747
        %v1876 = vunpack.c.2.s8 %v744
        %v1877 = vunpack.c.2.s8 %v745
        %v1878 = vunpack.c.2.s8 %v746
        %v1879 = vunpack.c.2.s8 %v747
        %v1880 = vunpack.c.3.s8 %v744
        %v1881 = vunpack.c.3.s8 %v745
        %v1882 = vunpack.c.3.s8 %v746
        %v1883 = vunpack.c.3.s8 %v747
        %v1884 = vunpack.c.0.s8 %v748
        %v1885 = vunpack.c.0.s8 %v749
        %v1886 = vunpack.c.0.s8 %v750
        %v1887 = vunpack.c.0.s8 %v751
        %v1888 = vunpack.c.1.s8 %v748
        %v1889 = vunpack.c.1.s8 %v749
        %v1890 = vunpack.c.1.s8 %v750
        %v1891 = vunpack.c.1.s8 %v751
        %v1892 = vunpack.c.2.s8 %v748
        %v1893 = vunpack.c.2.s8 %v749
        %v1894 = vunpack.c.2.s8 %v750
        %v1895 = vunpack.c.2.s8 %v751
        %v1896 = vunpack.c.3.s8 %v748
        %v1897 = vunpack.c.3.s8 %v749
        %v1898 = vunpack.c.3.s8 %v750
        %v1899 = vunpack.c.3.s8 %v751
        %v1900 = vunpack.c.0.s8 %v752
        %v1901 = vunpack.c.0.s8 %v753
        %v1902 = vunpack.c.0.s8 %v754
        %v1903 = vunpack.c.0.s8 %v755
        %v1904 = vunpack.c.1.s8 %v752
        %v1905 = vunpack.c.1.s8 %v753
        %v1906 = vunpack.c.1.s8 %v754
        %v1907 = vunpack.c.1.s8 %v755
        %v1908 = vunpack.c.2.s8 %v752
        %v1909 = vunpack.c.2.s8 %v753
        %v1910 = vunpack.c.2.s8 %v754
        %v1911 = vunpack.c.2.s8 %v755
        %v1912 = vunpack.c.3.s8 %v752
        %v1913 = vunpack.c.3.s8 %v753
        %v1914 = vunpack.c.3.s8 %v754
        %v1915 = vunpack.c.3.s8 %v755
        %v1916 = vunpack.c.0.s8 %v756
        %v1917 = vunpack.c.0.s8 %v757
        %v1918 = vunpack.c.0.s8 %v758
        %v1919 = vunpack.c.0.s8 %v759
        %v1920 = vunpack.c.1.s8 %v756
        %v1921 = vunpack.c.1.s8 %v757
        %v1922 = vunpack.c.1.s8 %v758
        %v1923 = vunpack.c.1.s8 %v759
        %v1924 = vunpack.c.2.s8 %v756
        %v1925 = vunpack.c.2.s8 %v757
        %v1926 = vunpack.c.2.s8 %v758
        %v1927 = vunpack.c.2.s8 %v759
        %v1928 = vunpack.c.3.s8 %v756
        %v1929 = vunpack.c.3.s8 %v757
        %v1930 = vunpack.c.3.s8 %v758
        %v1931 = vunpack.c.3.s8 %v759
        %v1932 = vunpack.c.0.s8 %v760
        %v1933 = vunpack.c.0.s8 %v761
        %v1934 = vunpack.c.0.s8 %v762
        %v1935 = vunpack.c.0.s8 %v763
        %v1936 = vunpack.c.1.s8 %v760
        %v1937 = vunpack.c.1.s8 %v761
        %v1938 = vunpack.c.1.s8 %v762
        %v1939 = vunpack.c.1.s8 %v763
        %v1940 = vunpack.c.2.s8 %v760
        %v1941 = vunpack.c.2.s8 %v761
        %v1942 = vunpack.c.2.s8 %v762
        %v1943 = vunpack.c.2.s8 %v763
        %v1944 = vunpack.c.3.s8 %v760
        %v1945 = vunpack.c.3.s8 %v761
        %v1946 = vunpack.c.3.s8 %v762
        %v1947 = vunpack.c.3.s8 %v763
        %v1948 = vunpack.c.0.s8 %v764
        %v1949 = vunpack.c.0.s8 %v765
        %v1950 = vunpack.c.0.s8 %v766
        %v1951 = vunpack.c.0.s8 %v767
        %v1952 = vunpack.c.1.s8 %v764
        %v1953 = vunpack.c.1.s8 %v765
        %v1954 = vunpack.c.1.s8 %v766
        %v1955 = vunpack.c.1.s8 %v767
        %v1956 = vunpack.c.2.s8 %v764
        %v1957 = vunpack.c.2.s8 %v765
        %v1958 = vunpack.c.2.s8 %v766
        %v1959 = vunpack.c.2.s8 %v767
        %v1960 = vunpack.c.3.s8 %v764
        %v1961 = vunpack.c.3.s8 %v765
        %v1962 = vunpack.c.3.s8 %v766
        %v1963 = vunpack.c.3.s8 %v767
        %v1964 = vunpack.c.0.s8 %v768
        %v1965 = vunpack.c.0.s8 %v769
        %v1966 = vunpack.c.0.s8 %v770
        %v1967 = vunpack.c.0.s8 %v771
        %v1968 = vunpack.c.1.s8 %v768
        %v1969 = vunpack.c.1.s8 %v769
        %v1970 = vunpack.c.1.s8 %v770
        %v1971 = vunpack.c.1.s8 %v771
        %v1972 = vunpack.c.2.s8 %v768
        %v1973 = vunpack.c.2.s8 %v769
        %v1974 = vunpack.c.2.s8 %v770
        %v1975 = vunpack.c.2.s8 %v771
        %v1976 = vunpack.c.3.s8 %v768
        %v1977 = vunpack.c.3.s8 %v769
        %v1978 = vunpack.c.3.s8 %v770
        %v1979 = vunpack.c.3.s8 %v771
        %v1980 = vunpack.c.0.s8 %v772
        %v1981 = vunpack.c.0.s8 %v773
        %v1982 = vunpack.c.0.s8 %v774
        %v1983 = vunpack.c.0.s8 %v775
        %v1984 = vunpack.c.1.s8 %v772
        %v1985 = vunpack.c.1.s8 %v773
        %v1986 = vunpack.c.1.s8 %v774
        %v1987 = vunpack.c.1.s8 %v775
        %v1988 = vunpack.c.2.s8 %v772
        %v1989 = vunpack.c.2.s8 %v773
        %v1990 = vunpack.c.2.s8 %v774
        %v1991 = vunpack.c.2.s8 %v775
        %v1992 = vunpack.c.3.s8 %v772
        %v1993 = vunpack.c.3.s8 %v773
        %v1994 = vunpack.c.3.s8 %v774
        %v1995 = vunpack.c.3.s8 %v775
        %v1996 = vunpack.c.0.s8 %v776
        %v1997 = vunpack.c.0.s8 %v777
        %v1998 = vunpack.c.0.s8 %v778
        %v1999 = vunpack.c.0.s8 %v779
        %v2000 = vunpack.c.1.s8 %v776
        %v2001 = vunpack.c.1.s8 %v777
        %v2002 = vunpack.c.1.s8 %v778
        %v2003 = vunpack.c.1.s8 %v779
        %v2004 = vunpack.c.2.s8 %v776
        %v2005 = vunpack.c.2.s8 %v777
        %v2006 = vunpack.c.2.s8 %v778
        %v2007 = vunpack.c.2.s8 %v779
        %v2008 = vunpack.c.3.s8 %v776
        %v2009 = vunpack.c.3.s8 %v777
        %v2010 = vunpack.c.3.s8 %v778
        %v2011 = vunpack.c.3.s8 %v779
        %v2012 = vunpack.c.0.s8 %v780
        %v2013 = vunpack.c.0.s8 %v781
        %v2014 = vunpack.c.0.s8 %v782
        %v2015 = vunpack.c.0.s8 %v783
        %v2016 = vunpack.c.1.s8 %v780
        %v2017 = vunpack.c.1.s8 %v781
        %v2018 = vunpack.c.1.s8 %v782
        %v2019 = vunpack.c.1.s8 %v783
        %v2020 = vunpack.c.2.s8 %v780
        %v2021 = vunpack.c.2.s8 %v781
        %v2022 = vunpack.c.2.s8 %v782
        %v2023 = vunpack.c.2.s8 %v783
        %v2024 = vunpack.c.3.s8 %v780
        %v2025 = vunpack.c.3.s8 %v781
        %v2026 = vunpack.c.3.s8 %v782
        %v2027 = vunpack.c.3.s8 %v783
        %v2028 = vunpack.c.0.s8 %v784
        %v2029 = vunpack.c.0.s8 %v785
        %v2030 = vunpack.c.0.s8 %v786
        %v2031 = vunpack.c.0.s8 %v787
        %v2032 = vunpack.c.1.s8 %v784
        %v2033 = vunpack.c.1.s8 %v785
        %v2034 = vunpack.c.1.s8 %v786
        %v2035 = vunpack.c.1.s8 %v787
        %v2036 = vunpack.c.2.s8 %v784
        %v2037 = vunpack.c.2.s8 %v785
        %v2038 = vunpack.c.2.s8 %v786
        %v2039 = vunpack.c.2.s8 %v787
        %v2040 = vunpack.c.3.s8 %v784
        %v2041 = vunpack.c.3.s8 %v785
        %v2042 = vunpack.c.3.s8 %v786
        %v2043 = vunpack.c.3.s8 %v787
        %v2044 = vunpack.c.0.s8 %v788
        %v2045 = vunpack.c.0.s8 %v789
        %v2046 = vunpack.c.0.s8 %v790
        %v2047 = vunpack.c.0.s8 %v791
        %v2048 = vunpack.c.1.s8 %v788
        %v2049 = vunpack.c.1.s8 %v789
        %v2050 = vunpack.c.1.s8 %v790
        %v2051 = vunpack.c.1.s8 %v791
        %v2052 = vunpack.c.2.s8 %v788
        %v2053 = vunpack.c.2.s8 %v789
        %v2054 = vunpack.c.2.s8 %v790
        %v2055 = vunpack.c.2.s8 %v791
        %v2056 = vunpack.c.3.s8 %v788
        %v2057 = vunpack.c.3.s8 %v789
        %v2058 = vunpack.c.3.s8 %v790
        %v2059 = vunpack.c.3.s8 %v791
        %v2060 = vunpack.c.0.s8 %v792
        %v2061 = vunpack.c.0.s8 %v793
        %v2062 = vunpack.c.0.s8 %v794
        %v2063 = vunpack.c.0.s8 %v795
        %v2064 = vunpack.c.1.s8 %v792
        %v2065 = vunpack.c.1.s8 %v793
        %v2066 = vunpack.c.1.s8 %v794
        %v2067 = vunpack.c.1.s8 %v795
        %v2068 = vunpack.c.2.s8 %v792
        %v2069 = vunpack.c.2.s8 %v793
        %v2070 = vunpack.c.2.s8 %v794
        %v2071 = vunpack.c.2.s8 %v795
        %v2072 = vunpack.c.3.s8 %v792
        %v2073 = vunpack.c.3.s8 %v793
        %v2074 = vunpack.c.3.s8 %v794
        %v2075 = vunpack.c.3.s8 %v795
        %v2076 = vunpack.c.0.s8 %v796
        %v2077 = vunpack.c.0.s8 %v797
        %v2078 = vunpack.c.0.s8 %v798
        %v2079 = vunpack.c.0.s8 %v799
        %v2080 = vunpack.c.1.s8 %v796
        %v2081 = vunpack.c.1.s8 %v797
        %v2082 = vunpack.c.1.s8 %v798
        %v2083 = vunpack.c.1.s8 %v799
        %v2084 = vunpack.c.2.s8 %v796
        %v2085 = vunpack.c.2.s8 %v797
        %v2086 = vunpack.c.2.s8 %v798
        %v2087 = vunpack.c.2.s8 %v799
        %v2088 = vunpack.c.3.s8 %v796
        %v2089 = vunpack.c.3.s8 %v797
        %v2090 = vunpack.c.3.s8 %v798
        %v2091 = vunpack.c.3.s8 %v799
        %v2092 = vunpack.c.0.s8 %v800
        %v2093 = vunpack.c.0.s8 %v801
        %v2094 = vunpack.c.0.s8 %v802
        %v2095 = vunpack.c.0.s8 %v803
        %v2096 = vunpack.c.1.s8 %v800
        %v2097 = vunpack.c.1.s8 %v801
        %v2098 = vunpack.c.1.s8 %v802
        %v2099 = vunpack.c.1.s8 %v803
        %v2100 = vunpack.c.2.s8 %v800
        %v2101 = vunpack.c.2.s8 %v801
        %v2102 = vunpack.c.2.s8 %v802
        %v2103 = vunpack.c.2.s8 %v803
        %v2104 = vunpack.c.3.s8 %v800
        %v2105 = vunpack.c.3.s8 %v801
        %v2106 = vunpack.c.3.s8 %v802
        %v2107 = vunpack.c.3.s8 %v803
        %v2108 = vunpack.c.0.s8 %v804
        %v2109 = vunpack.c.0.s8 %v805
        %v2110 = vunpack.c.0.s8 %v806
        %v2111 = vunpack.c.0.s8 %v807
        %v2112 = vunpack.c.1.s8 %v804
        %v2113 = vunpack.c.1.s8 %v805
        %v2114 = vunpack.c.1.s8 %v806
        %v2115 = vunpack.c.1.s8 %v807
        %v2116 = vunpack.c.2.s8 %v804
        %v2117 = vunpack.c.2.s8 %v805
        %v2118 = vunpack.c.2.s8 %v806
        %v2119 = vunpack.c.2.s8 %v807
        %v2120 = vunpack.c.3.s8 %v804
        %v2121 = vunpack.c.3.s8 %v805
        %v2122 = vunpack.c.3.s8 %v806
        %v2123 = vunpack.c.3.s8 %v807
        %v2124 = vunpack.c.0.s8 %v808
        %v2125 = vunpack.c.0.s8 %v809
        %v2126 = vunpack.c.0.s8 %v810
        %v2127 = vunpack.c.0.s8 %v811
        %v2128 = vunpack.c.1.s8 %v808
        %v2129 = vunpack.c.1.s8 %v809
        %v2130 = vunpack.c.1.s8 %v810
        %v2131 = vunpack.c.1.s8 %v811
        %v2132 = vunpack.c.2.s8 %v808
        %v2133 = vunpack.c.2.s8 %v809
        %v2134 = vunpack.c.2.s8 %v810
        %v2135 = vunpack.c.2.s8 %v811
        %v2136 = vunpack.c.3.s8 %v808
        %v2137 = vunpack.c.3.s8 %v809
        %v2138 = vunpack.c.3.s8 %v810
        %v2139 = vunpack.c.3.s8 %v811
        %v2140 = vunpack.c.0.s8 %v812
        %v2141 = vunpack.c.0.s8 %v813
        %v2142 = vunpack.c.0.s8 %v814
        %v2143 = vunpack.c.0.s8 %v815
        %v2144 = vunpack.c.1.s8 %v812
        %v2145 = vunpack.c.1.s8 %v813
        %v2146 = vunpack.c.1.s8 %v814
        %v2147 = vunpack.c.1.s8 %v815
        %v2148 = vunpack.c.2.s8 %v812
        %v2149 = vunpack.c.2.s8 %v813
        %v2150 = vunpack.c.2.s8 %v814
        %v2151 = vunpack.c.2.s8 %v815
        %v2152 = vunpack.c.3.s8 %v812
        %v2153 = vunpack.c.3.s8 %v813
        %v2154 = vunpack.c.3.s8 %v814
        %v2155 = vunpack.c.3.s8 %v815
        %v2156 = vunpack.c.0.s8 %v816
        %v2157 = vunpack.c.0.s8 %v817
        %v2158 = vunpack.c.0.s8 %v818
        %v2159 = vunpack.c.0.s8 %v819
        %v2160 = vunpack.c.1.s8 %v816
        %v2161 = vunpack.c.1.s8 %v817
        %v2162 = vunpack.c.1.s8 %v818
        %v2163 = vunpack.c.1.s8 %v819
        %v2164 = vunpack.c.2.s8 %v816
        %v2165 = vunpack.c.2.s8 %v817
        %v2166 = vunpack.c.2.s8 %v818
        %v2167 = vunpack.c.2.s8 %v819
        %v2168 = vunpack.c.3.s8 %v816
        %v2169 = vunpack.c.3.s8 %v817
        %v2170 = vunpack.c.3.s8 %v818
        %v2171 = vunpack.c.3.s8 %v819
        %v2172 = vunpack.c.0.s8 %v820
        %v2173 = vunpack.c.0.s8 %v821
        %v2174 = vunpack.c.0.s8 %v822
        %v2175 = vunpack.c.0.s8 %v823
        %v2176 = vunpack.c.1.s8 %v820
        %v2177 = vunpack.c.1.s8 %v821
        %v2178 = vunpack.c.1.s8 %v822
        %v2179 = vunpack.c.1.s8 %v823
        %v2180 = vunpack.c.2.s8 %v820
        %v2181 = vunpack.c.2.s8 %v821
        %v2182 = vunpack.c.2.s8 %v822
        %v2183 = vunpack.c.2.s8 %v823
        %v2184 = vunpack.c.3.s8 %v820
        %v2185 = vunpack.c.3.s8 %v821
        %v2186 = vunpack.c.3.s8 %v822
        %v2187 = vunpack.c.3.s8 %v823
        %v2188 = vunpack.c.0.s8 %v824
        %v2189 = vunpack.c.0.s8 %v825
        %v2190 = vunpack.c.0.s8 %v826
        %v2191 = vunpack.c.0.s8 %v827
        %v2192 = vunpack.c.1.s8 %v824
        %v2193 = vunpack.c.1.s8 %v825
        %v2194 = vunpack.c.1.s8 %v826
        %v2195 = vunpack.c.1.s8 %v827
        %v2196 = vunpack.c.2.s8 %v824
        %v2197 = vunpack.c.2.s8 %v825
        %v2198 = vunpack.c.2.s8 %v826
        %v2199 = vunpack.c.2.s8 %v827
        %v2200 = vunpack.c.3.s8 %v824
        %v2201 = vunpack.c.3.s8 %v825
        %v2202 = vunpack.c.3.s8 %v826
        %v2203 = vunpack.c.3.s8 %v827
        %v2204 = vunpack.c.0.s8 %v828
        %v2205 = vunpack.c.0.s8 %v829
        %v2206 = vunpack.c.0.s8 %v830
        %v2207 = vunpack.c.0.s8 %v831
        %v2208 = vunpack.c.1.s8 %v828
        %v2209 = vunpack.c.1.s8 %v829
        %v2210 = vunpack.c.1.s8 %v830
        %v2211 = vunpack.c.1.s8 %v831
        %v2212 = vunpack.c.2.s8 %v828
        %v2213 = vunpack.c.2.s8 %v829
        %v2214 = vunpack.c.2.s8 %v830
        %v2215 = vunpack.c.2.s8 %v831
        %v2216 = vunpack.c.3.s8 %v828
        %v2217 = vunpack.c.3.s8 %v829
        %v2218 = vunpack.c.3.s8 %v830
        %v2219 = vunpack.c.3.s8 %v831
        %v2220 = vunpack.c.0.s8 %v832
        %v2221 = vunpack.c.0.s8 %v833
        %v2222 = vunpack.c.0.s8 %v834
        %v2223 = vunpack.c.0.s8 %v835
        %v2224 = vunpack.c.1.s8 %v832
        %v2225 = vunpack.c.1.s8 %v833
        %v2226 = vunpack.c.1.s8 %v834
        %v2227 = vunpack.c.1.s8 %v835
        %v2228 = vunpack.c.2.s8 %v832
        %v2229 = vunpack.c.2.s8 %v833
        %v2230 = vunpack.c.2.s8 %v834
        %v2231 = vunpack.c.2.s8 %v835
        %v2232 = vunpack.c.3.s8 %v832
        %v2233 = vunpack.c.3.s8 %v833
        %v2234 = vunpack.c.3.s8 %v834
        %v2235 = vunpack.c.3.s8 %v835
        %v2236 = vunpack.c.0.s8 %v836
        %v2237 = vunpack.c.0.s8 %v837
        %v2238 = vunpack.c.0.s8 %v838
        %v2239 = vunpack.c.0.s8 %v839
        %v2240 = vunpack.c.1.s8 %v836
        %v2241 = vunpack.c.1.s8 %v837
        %v2242 = vunpack.c.1.s8 %v838
        %v2243 = vunpack.c.1.s8 %v839
        %v2244 = vunpack.c.2.s8 %v836
        %v2245 = vunpack.c.2.s8 %v837
        %v2246 = vunpack.c.2.s8 %v838
        %v2247 = vunpack.c.2.s8 %v839
        %v2248 = vunpack.c.3.s8 %v836
        %v2249 = vunpack.c.3.s8 %v837
        %v2250 = vunpack.c.3.s8 %v838
        %v2251 = vunpack.c.3.s8 %v839
        %v2252 = vunpack.c.0.s8 %v840
        %v2253 = vunpack.c.0.s8 %v841
        %v2254 = vunpack.c.0.s8 %v842
        %v2255 = vunpack.c.0.s8 %v843
        %v2256 = vunpack.c.1.s8 %v840
        %v2257 = vunpack.c.1.s8 %v841
        %v2258 = vunpack.c.1.s8 %v842
        %v2259 = vunpack.c.1.s8 %v843
        %v2260 = vunpack.c.2.s8 %v840
        %v2261 = vunpack.c.2.s8 %v841
        %v2262 = vunpack.c.2.s8 %v842
        %v2263 = vunpack.c.2.s8 %v843
        %v2264 = vunpack.c.3.s8 %v840
        %v2265 = vunpack.c.3.s8 %v841
        %v2266 = vunpack.c.3.s8 %v842
        %v2267 = vunpack.c.3.s8 %v843
        %v2268 = vunpack.c.0.s8 %v844
        %v2269 = vunpack.c.0.s8 %v845
        %v2270 = vunpack.c.0.s8 %v846
        %v2271 = vunpack.c.0.s8 %v847
        %v2272 = vunpack.c.1.s8 %v844
        %v2273 = vunpack.c.1.s8 %v845
        %v2274 = vunpack.c.1.s8 %v846
        %v2275 = vunpack.c.1.s8 %v847
        %v2276 = vunpack.c.2.s8 %v844
        %v2277 = vunpack.c.2.s8 %v845
        %v2278 = vunpack.c.2.s8 %v846
        %v2279 = vunpack.c.2.s8 %v847
        %v2280 = vunpack.c.3.s8 %v844
        %v2281 = vunpack.c.3.s8 %v845
        %v2282 = vunpack.c.3.s8 %v846
        %v2283 = vunpack.c.3.s8 %v847
        %v2284 = vunpack.c.0.s8 %v848
        %v2285 = vunpack.c.0.s8 %v849
        %v2286 = vunpack.c.0.s8 %v850
        %v2287 = vunpack.c.0.s8 %v851
        %v2288 = vunpack.c.1.s8 %v848
        %v2289 = vunpack.c.1.s8 %v849
        %v2290 = vunpack.c.1.s8 %v850
        %v2291 = vunpack.c.1.s8 %v851
        %v2292 = vunpack.c.2.s8 %v848
        %v2293 = vunpack.c.2.s8 %v849
        %v2294 = vunpack.c.2.s8 %v850
        %v2295 = vunpack.c.2.s8 %v851
        %v2296 = vunpack.c.3.s8 %v848
        %v2297 = vunpack.c.3.s8 %v849
        %v2298 = vunpack.c.3.s8 %v850
        %v2299 = vunpack.c.3.s8 %v851
        %v2300 = vunpack.c.0.s8 %v852
        %v2301 = vunpack.c.0.s8 %v853
        %v2302 = vunpack.c.0.s8 %v854
        %v2303 = vunpack.c.0.s8 %v855
        %v2304 = vunpack.c.1.s8 %v852
        %v2305 = vunpack.c.1.s8 %v853
        %v2306 = vunpack.c.1.s8 %v854
        %v2307 = vunpack.c.1.s8 %v855
        %v2308 = vunpack.c.2.s8 %v852
        %v2309 = vunpack.c.2.s8 %v853
        %v2310 = vunpack.c.2.s8 %v854
        %v2311 = vunpack.c.2.s8 %v855
        %v2312 = vunpack.c.3.s8 %v852
        %v2313 = vunpack.c.3.s8 %v853
        %v2314 = vunpack.c.3.s8 %v854
        %v2315 = vunpack.c.3.s8 %v855
        %v2316 = vunpack.c.0.s8 %v856
        %v2317 = vunpack.c.0.s8 %v857
        %v2318 = vunpack.c.0.s8 %v858
        %v2319 = vunpack.c.0.s8 %v859
        %v2320 = vunpack.c.1.s8 %v856
        %v2321 = vunpack.c.1.s8 %v857
        %v2322 = vunpack.c.1.s8 %v858
        %v2323 = vunpack.c.1.s8 %v859
        %v2324 = vunpack.c.2.s8 %v856
        %v2325 = vunpack.c.2.s8 %v857
        %v2326 = vunpack.c.2.s8 %v858
        %v2327 = vunpack.c.2.s8 %v859
        %v2328 = vunpack.c.3.s8 %v856
        %v2329 = vunpack.c.3.s8 %v857
        %v2330 = vunpack.c.3.s8 %v858
        %v2331 = vunpack.c.3.s8 %v859
        %v2332 = vunpack.c.0.s8 %v860
        %v2333 = vunpack.c.0.s8 %v861
        %v2334 = vunpack.c.0.s8 %v862
        %v2335 = vunpack.c.0.s8 %v863
        %v2336 = vunpack.c.1.s8 %v860
        %v2337 = vunpack.c.1.s8 %v861
        %v2338 = vunpack.c.1.s8 %v862
        %v2339 = vunpack.c.1.s8 %v863
        %v2340 = vunpack.c.2.s8 %v860
        %v2341 = vunpack.c.2.s8 %v861
        %v2342 = vunpack.c.2.s8 %v862
        %v2343 = vunpack.c.2.s8 %v863
        %v2344 = vunpack.c.3.s8 %v860
        %v2345 = vunpack.c.3.s8 %v861
        %v2346 = vunpack.c.3.s8 %v862
        %v2347 = vunpack.c.3.s8 %v863
        %v2348 = vunpack.c.0.s8 %v864
        %v2349 = vunpack.c.0.s8 %v865
        %v2350 = vunpack.c.0.s8 %v866
        %v2351 = vunpack.c.0.s8 %v867
        %v2352 = vunpack.c.1.s8 %v864
        %v2353 = vunpack.c.1.s8 %v865
        %v2354 = vunpack.c.1.s8 %v866
        %v2355 = vunpack.c.1.s8 %v867
        %v2356 = vunpack.c.2.s8 %v864
        %v2357 = vunpack.c.2.s8 %v865
        %v2358 = vunpack.c.2.s8 %v866
        %v2359 = vunpack.c.2.s8 %v867
        %v2360 = vunpack.c.3.s8 %v864
        %v2361 = vunpack.c.3.s8 %v865
        %v2362 = vunpack.c.3.s8 %v866
        %v2363 = vunpack.c.3.s8 %v867
        %v2364 = vunpack.c.0.s8 %v868
        %v2365 = vunpack.c.0.s8 %v869
        %v2366 = vunpack.c.0.s8 %v870
        %v2367 = vunpack.c.0.s8 %v871
        %v2368 = vunpack.c.1.s8 %v868
        %v2369 = vunpack.c.1.s8 %v869
        %v2370 = vunpack.c.1.s8 %v870
        %v2371 = vunpack.c.1.s8 %v871
        %v2372 = vunpack.c.2.s8 %v868
        %v2373 = vunpack.c.2.s8 %v869
        %v2374 = vunpack.c.2.s8 %v870
        %v2375 = vunpack.c.2.s8 %v871
        %v2376 = vunpack.c.3.s8 %v868
        %v2377 = vunpack.c.3.s8 %v869
        %v2378 = vunpack.c.3.s8 %v870
        %v2379 = vunpack.c.3.s8 %v871
        %v2380 = vunpack.c.0.s8 %v872
        %v2381 = vunpack.c.0.s8 %v873
        %v2382 = vunpack.c.0.s8 %v874
        %v2383 = vunpack.c.0.s8 %v875
        %v2384 = vunpack.c.1.s8 %v872
        %v2385 = vunpack.c.1.s8 %v873
        %v2386 = vunpack.c.1.s8 %v874
        %v2387 = vunpack.c.1.s8 %v875
        %v2388 = vunpack.c.2.s8 %v872
        %v2389 = vunpack.c.2.s8 %v873
        %v2390 = vunpack.c.2.s8 %v874
        %v2391 = vunpack.c.2.s8 %v875
        %v2392 = vunpack.c.3.s8 %v872
        %v2393 = vunpack.c.3.s8 %v873
        %v2394 = vunpack.c.3.s8 %v874
        %v2395 = vunpack.c.3.s8 %v875
        %v2396 = vunpack.c.0.s8 %v876
        %v2397 = vunpack.c.0.s8 %v877
        %v2398 = vunpack.c.0.s8 %v878
        %v2399 = vunpack.c.0.s8 %v879
        %v2400 = vunpack.c.1.s8 %v876
        %v2401 = vunpack.c.1.s8 %v877
        %v2402 = vunpack.c.1.s8 %v878
        %v2403 = vunpack.c.1.s8 %v879
        %v2404 = vunpack.c.2.s8 %v876
        %v2405 = vunpack.c.2.s8 %v877
        %v2406 = vunpack.c.2.s8 %v878
        %v2407 = vunpack.c.2.s8 %v879
        %v2408 = vunpack.c.3.s8 %v876
        %v2409 = vunpack.c.3.s8 %v877
        %v2410 = vunpack.c.3.s8 %v878
        %v2411 = vunpack.c.3.s8 %v879
        %v2412 = vunpack.c.0.s8 %v880
        %v2413 = vunpack.c.0.s8 %v881
        %v2414 = vunpack.c.0.s8 %v882
        %v2415 = vunpack.c.0.s8 %v883
        %v2416 = vunpack.c.1.s8 %v880
        %v2417 = vunpack.c.1.s8 %v881
        %v2418 = vunpack.c.1.s8 %v882
        %v2419 = vunpack.c.1.s8 %v883
        %v2420 = vunpack.c.2.s8 %v880
        %v2421 = vunpack.c.2.s8 %v881
        %v2422 = vunpack.c.2.s8 %v882
        %v2423 = vunpack.c.2.s8 %v883
        %v2424 = vunpack.c.3.s8 %v880
        %v2425 = vunpack.c.3.s8 %v881
        %v2426 = vunpack.c.3.s8 %v882
        %v2427 = vunpack.c.3.s8 %v883
        %v2428 = vunpack.c.0.s8 %v884
        %v2429 = vunpack.c.0.s8 %v885
        %v2430 = vunpack.c.0.s8 %v886
        %v2431 = vunpack.c.0.s8 %v887
        %v2432 = vunpack.c.1.s8 %v884
        %v2433 = vunpack.c.1.s8 %v885
        %v2434 = vunpack.c.1.s8 %v886
        %v2435 = vunpack.c.1.s8 %v887
        %v2436 = vunpack.c.2.s8 %v884
        %v2437 = vunpack.c.2.s8 %v885
        %v2438 = vunpack.c.2.s8 %v886
        %v2439 = vunpack.c.2.s8 %v887
        %v2440 = vunpack.c.3.s8 %v884
        %v2441 = vunpack.c.3.s8 %v885
        %v2442 = vunpack.c.3.s8 %v886
        %v2443 = vunpack.c.3.s8 %v887
        %v2444 = vunpack.c.0.s8 %v888
        %v2445 = vunpack.c.0.s8 %v889
        %v2446 = vunpack.c.0.s8 %v890
        %v2447 = vunpack.c.0.s8 %v891
        %v2448 = vunpack.c.1.s8 %v888
        %v2449 = vunpack.c.1.s8 %v889
        %v2450 = vunpack.c.1.s8 %v890
        %v2451 = vunpack.c.1.s8 %v891
        %v2452 = vunpack.c.2.s8 %v888
        %v2453 = vunpack.c.2.s8 %v889
        %v2454 = vunpack.c.2.s8 %v890
        %v2455 = vunpack.c.2.s8 %v891
        %v2456 = vunpack.c.3.s8 %v888
        %v2457 = vunpack.c.3.s8 %v889
        %v2458 = vunpack.c.3.s8 %v890
        %v2459 = vunpack.c.3.s8 %v891
        %v2460 = vunpack.c.0.s8 %v892
        %v2461 = vunpack.c.0.s8 %v893
        %v2462 = vunpack.c.0.s8 %v894
        %v2463 = vunpack.c.0.s8 %v895
        %v2464 = vunpack.c.1.s8 %v892
        %v2465 = vunpack.c.1.s8 %v893
        %v2466 = vunpack.c.1.s8 %v894
        %v2467 = vunpack.c.1.s8 %v895
        %v2468 = vunpack.c.2.s8 %v892
        %v2469 = vunpack.c.2.s8 %v893
        %v2470 = vunpack.c.2.s8 %v894
        %v2471 = vunpack.c.2.s8 %v895
        %v2472 = vunpack.c.3.s8 %v892
        %v2473 = vunpack.c.3.s8 %v893
        %v2474 = vunpack.c.3.s8 %v894
        %v2475 = vunpack.c.3.s8 %v895
        %v2476 = vunpack.c.0.s8 %v896
        %v2477 = vunpack.c.0.s8 %v897
        %v2478 = vunpack.c.0.s8 %v898
        %v2479 = vunpack.c.0.s8 %v899
        %v2480 = vunpack.c.1.s8 %v896
        %v2481 = vunpack.c.1.s8 %v897
        %v2482 = vunpack.c.1.s8 %v898
        %v2483 = vunpack.c.1.s8 %v899
        %v2484 = vunpack.c.2.s8 %v896
        %v2485 = vunpack.c.2.s8 %v897
        %v2486 = vunpack.c.2.s8 %v898
        %v2487 = vunpack.c.2.s8 %v899
        %v2488 = vunpack.c.3.s8 %v896
        %v2489 = vunpack.c.3.s8 %v897
        %v2490 = vunpack.c.3.s8 %v898
        %v2491 = vunpack.c.3.s8 %v899
        %v2492 = vunpack.c.0.s8 %v900
        %v2493 = vunpack.c.0.s8 %v901
        %v2494 = vunpack.c.0.s8 %v902
        %v2495 = vunpack.c.0.s8 %v903
        %v2496 = vunpack.c.1.s8 %v900
        %v2497 = vunpack.c.1.s8 %v901
        %v2498 = vunpack.c.1.s8 %v902
        %v2499 = vunpack.c.1.s8 %v903
        %v2500 = vunpack.c.2.s8 %v900
        %v2501 = vunpack.c.2.s8 %v901
        %v2502 = vunpack.c.2.s8 %v902
        %v2503 = vunpack.c.2.s8 %v903
        %v2504 = vunpack.c.3.s8 %v900
        %v2505 = vunpack.c.3.s8 %v901
        %v2506 = vunpack.c.3.s8 %v902
        %v2507 = vunpack.c.3.s8 %v903
        %v2508 = vunpack.c.0.s8 %v904
        %v2509 = vunpack.c.0.s8 %v905
        %v2510 = vunpack.c.0.s8 %v906
        %v2511 = vunpack.c.0.s8 %v907
        %v2512 = vunpack.c.1.s8 %v904
        %v2513 = vunpack.c.1.s8 %v905
        %v2514 = vunpack.c.1.s8 %v906
        %v2515 = vunpack.c.1.s8 %v907
        %v2516 = vunpack.c.2.s8 %v904
        %v2517 = vunpack.c.2.s8 %v905
        %v2518 = vunpack.c.2.s8 %v906
        %v2519 = vunpack.c.2.s8 %v907
        %v2520 = vunpack.c.3.s8 %v904
        %v2521 = vunpack.c.3.s8 %v905
        %v2522 = vunpack.c.3.s8 %v906
        %v2523 = vunpack.c.3.s8 %v907
        %v2524 = vunpack.c.0.s8 %v908
        %v2525 = vunpack.c.0.s8 %v909
        %v2526 = vunpack.c.0.s8 %v910
        %v2527 = vunpack.c.0.s8 %v911
        %v2528 = vunpack.c.1.s8 %v908
        %v2529 = vunpack.c.1.s8 %v909
        %v2530 = vunpack.c.1.s8 %v910
        %v2531 = vunpack.c.1.s8 %v911
        %v2532 = vunpack.c.2.s8 %v908
        %v2533 = vunpack.c.2.s8 %v909
        %v2534 = vunpack.c.2.s8 %v910
        %v2535 = vunpack.c.2.s8 %v911
        %v2536 = vunpack.c.3.s8 %v908
        %v2537 = vunpack.c.3.s8 %v909
        %v2538 = vunpack.c.3.s8 %v910
        %v2539 = vunpack.c.3.s8 %v911
        %v2540 = vunpack.c.0.s8 %v912
        %v2541 = vunpack.c.0.s8 %v913
        %v2542 = vunpack.c.0.s8 %v914
        %v2543 = vunpack.c.0.s8 %v915
        %v2544 = vunpack.c.1.s8 %v912
        %v2545 = vunpack.c.1.s8 %v913
        %v2546 = vunpack.c.1.s8 %v914
        %v2547 = vunpack.c.1.s8 %v915
        %v2548 = vunpack.c.2.s8 %v912
        %v2549 = vunpack.c.2.s8 %v913
        %v2550 = vunpack.c.2.s8 %v914
        %v2551 = vunpack.c.2.s8 %v915
        %v2552 = vunpack.c.3.s8 %v912
        %v2553 = vunpack.c.3.s8 %v913
        %v2554 = vunpack.c.3.s8 %v914
        %v2555 = vunpack.c.3.s8 %v915
        %v2556 = vunpack.c.0.s8 %v916
        %v2557 = vunpack.c.0.s8 %v917
        %v2558 = vunpack.c.0.s8 %v918
        %v2559 = vunpack.c.0.s8 %v919
        %v2560 = vunpack.c.1.s8 %v916
        %v2561 = vunpack.c.1.s8 %v917
        %v2562 = vunpack.c.1.s8 %v918
        %v2563 = vunpack.c.1.s8 %v919
        %v2564 = vunpack.c.2.s8 %v916
        %v2565 = vunpack.c.2.s8 %v917
        %v2566 = vunpack.c.2.s8 %v918
        %v2567 = vunpack.c.2.s8 %v919
        %v2568 = vunpack.c.3.s8 %v916
        %v2569 = vunpack.c.3.s8 %v917
        %v2570 = vunpack.c.3.s8 %v918
        %v2571 = vunpack.c.3.s8 %v919
        %v2572 = vunpack.c.0.s8 %v920
        %v2573 = vunpack.c.0.s8 %v921
        %v2574 = vunpack.c.0.s8 %v922
        %v2575 = vunpack.c.0.s8 %v923
        %v2576 = vunpack.c.1.s8 %v920
        %v2577 = vunpack.c.1.s8 %v921
        %v2578 = vunpack.c.1.s8 %v922
        %v2579 = vunpack.c.1.s8 %v923
        %v2580 = vunpack.c.2.s8 %v920
        %v2581 = vunpack.c.2.s8 %v921
        %v2582 = vunpack.c.2.s8 %v922
        %v2583 = vunpack.c.2.s8 %v923
        %v2584 = vunpack.c.3.s8 %v920
        %v2585 = vunpack.c.3.s8 %v921
        %v2586 = vunpack.c.3.s8 %v922
        %v2587 = vunpack.c.3.s8 %v923
        %v2588 = vunpack.c.0.s8 %v924
        %v2589 = vunpack.c.0.s8 %v925
        %v2590 = vunpack.c.0.s8 %v926
        %v2591 = vunpack.c.0.s8 %v927
        %v2592 = vunpack.c.1.s8 %v924
        %v2593 = vunpack.c.1.s8 %v925
        %v2594 = vunpack.c.1.s8 %v926
        %v2595 = vunpack.c.1.s8 %v927
        %v2596 = vunpack.c.2.s8 %v924
        %v2597 = vunpack.c.2.s8 %v925
        %v2598 = vunpack.c.2.s8 %v926
        %v2599 = vunpack.c.2.s8 %v927
        %v2600 = vunpack.c.3.s8 %v924
        %v2601 = vunpack.c.3.s8 %v925
        %v2602 = vunpack.c.3.s8 %v926
        %v2603 = vunpack.c.3.s8 %v927
        %v2604 = vunpack.c.0.s8 %v928
        %v2605 = vunpack.c.0.s8 %v929
        %v2606 = vunpack.c.0.s8 %v930
        %v2607 = vunpack.c.0.s8 %v931
        %v2608 = vunpack.c.1.s8 %v928
        %v2609 = vunpack.c.1.s8 %v929
        %v2610 = vunpack.c.1.s8 %v930
        %v2611 = vunpack.c.1.s8 %v931
        %v2612 = vunpack.c.2.s8 %v928
        %v2613 = vunpack.c.2.s8 %v929
        %v2614 = vunpack.c.2.s8 %v930
        %v2615 = vunpack.c.2.s8 %v931
        %v2616 = vunpack.c.3.s8 %v928
        %v2617 = vunpack.c.3.s8 %v929
        %v2618 = vunpack.c.3.s8 %v930
        %v2619 = vunpack.c.3.s8 %v931
        %v2620 = vunpack.c.0.s8 %v932
        %v2621 = vunpack.c.0.s8 %v933
        %v2622 = vunpack.c.0.s8 %v934
        %v2623 = vunpack.c.0.s8 %v935
        %v2624 = vunpack.c.1.s8 %v932
        %v2625 = vunpack.c.1.s8 %v933
        %v2626 = vunpack.c.1.s8 %v934
        %v2627 = vunpack.c.1.s8 %v935
        %v2628 = vunpack.c.2.s8 %v932
        %v2629 = vunpack.c.2.s8 %v933
        %v2630 = vunpack.c.2.s8 %v934
        %v2631 = vunpack.c.2.s8 %v935
        %v2632 = vunpack.c.3.s8 %v932
        %v2633 = vunpack.c.3.s8 %v933
        %v2634 = vunpack.c.3.s8 %v934
        %v2635 = vunpack.c.3.s8 %v935
        %v2636 = vunpack.c.0.s8 %v936
        %v2637 = vunpack.c.0.s8 %v937
        %v2638 = vunpack.c.0.s8 %v938
        %v2639 = vunpack.c.0.s8 %v939
        %v2640 = vunpack.c.1.s8 %v936
        %v2641 = vunpack.c.1.s8 %v937
        %v2642 = vunpack.c.1.s8 %v938
        %v2643 = vunpack.c.1.s8 %v939
        %v2644 = vunpack.c.2.s8 %v936
        %v2645 = vunpack.c.2.s8 %v937
        %v2646 = vunpack.c.2.s8 %v938
        %v2647 = vunpack.c.2.s8 %v939
        %v2648 = vunpack.c.3.s8 %v936
        %v2649 = vunpack.c.3.s8 %v937
        %v2650 = vunpack.c.3.s8 %v938
        %v2651 = vunpack.c.3.s8 %v939
        %v2652 = vunpack.c.0.s8 %v940
        %v2653 = vunpack.c.0.s8 %v941
        %v2654 = vunpack.c.0.s8 %v942
        %v2655 = vunpack.c.0.s8 %v943
        %v2656 = vunpack.c.1.s8 %v940
        %v2657 = vunpack.c.1.s8 %v941
        %v2658 = vunpack.c.1.s8 %v942
        %v2659 = vunpack.c.1.s8 %v943
        %v2660 = vunpack.c.2.s8 %v940
        %v2661 = vunpack.c.2.s8 %v941
        %v2662 = vunpack.c.2.s8 %v942
        %v2663 = vunpack.c.2.s8 %v943
        %v2664 = vunpack.c.3.s8 %v940
        %v2665 = vunpack.c.3.s8 %v941
        %v2666 = vunpack.c.3.s8 %v942
        %v2667 = vunpack.c.3.s8 %v943
        %v2668 = vunpack.c.0.s8 %v944
        %v2669 = vunpack.c.0.s8 %v945
        %v2670 = vunpack.c.0.s8 %v946
        %v2671 = vunpack.c.0.s8 %v947
        %v2672 = vunpack.c.1.s8 %v944
        %v2673 = vunpack.c.1.s8 %v945
        %v2674 = vunpack.c.1.s8 %v946
        %v2675 = vunpack.c.1.s8 %v947
        %v2676 = vunpack.c.2.s8 %v944
        %v2677 = vunpack.c.2.s8 %v945
        %v2678 = vunpack.c.2.s8 %v946
        %v2679 = vunpack.c.2.s8 %v947
        %v2680 = vunpack.c.3.s8 %v944
        %v2681 = vunpack.c.3.s8 %v945
        %v2682 = vunpack.c.3.s8 %v946
        %v2683 = vunpack.c.3.s8 %v947
        %v2684 = vunpack.c.0.s8 %v948
        %v2685 = vunpack.c.0.s8 %v949
        %v2686 = vunpack.c.0.s8 %v950
        %v2687 = vunpack.c.0.s8 %v951
        %v2688 = vunpack.c.1.s8 %v948
        %v2689 = vunpack.c.1.s8 %v949
        %v2690 = vunpack.c.1.s8 %v950
        %v2691 = vunpack.c.1.s8 %v951
        %v2692 = vunpack.c.2.s8 %v948
        %v2693 = vunpack.c.2.s8 %v949
        %v2694 = vunpack.c.2.s8 %v950
        %v2695 = vunpack.c.2.s8 %v951
        %v2696 = vunpack.c.3.s8 %v948
        %v2697 = vunpack.c.3.s8 %v949
        %v2698 = vunpack.c.3.s8 %v950
        %v2699 = vunpack.c.3.s8 %v951
        %v2700 = vunpack.c.0.s8 %v952
        %v2701 = vunpack.c.0.s8 %v953
        %v2702 = vunpack.c.0.s8 %v954
        %v2703 = vunpack.c.0.s8 %v955
        %v2704 = vunpack.c.1.s8 %v952
        %v2705 = vunpack.c.1.s8 %v953
        %v2706 = vunpack.c.1.s8 %v954
        %v2707 = vunpack.c.1.s8 %v955
        %v2708 = vunpack.c.2.s8 %v952
        %v2709 = vunpack.c.2.s8 %v953
        %v2710 = vunpack.c.2.s8 %v954
        %v2711 = vunpack.c.2.s8 %v955
        %v2712 = vunpack.c.3.s8 %v952
        %v2713 = vunpack.c.3.s8 %v953
        %v2714 = vunpack.c.3.s8 %v954
        %v2715 = vunpack.c.3.s8 %v955
        %v2716 = vunpack.c.0.s8 %v956
        %v2717 = vunpack.c.0.s8 %v957
        %v2718 = vunpack.c.0.s8 %v958
        %v2719 = vunpack.c.0.s8 %v959
        %v2720 = vunpack.c.1.s8 %v956
        %v2721 = vunpack.c.1.s8 %v957
        %v2722 = vunpack.c.1.s8 %v958
        %v2723 = vunpack.c.1.s8 %v959
        %v2724 = vunpack.c.2.s8 %v956
        %v2725 = vunpack.c.2.s8 %v957
        %v2726 = vunpack.c.2.s8 %v958
        %v2727 = vunpack.c.2.s8 %v959
        %v2728 = vunpack.c.3.s8 %v956
        %v2729 = vunpack.c.3.s8 %v957
        %v2730 = vunpack.c.3.s8 %v958
        %v2731 = vunpack.c.3.s8 %v959
        %v2732 = vunpack.c.0.s8 %v960
        %v2733 = vunpack.c.0.s8 %v961
        %v2734 = vunpack.c.0.s8 %v962
        %v2735 = vunpack.c.0.s8 %v963
        %v2736 = vunpack.c.1.s8 %v960
        %v2737 = vunpack.c.1.s8 %v961
        %v2738 = vunpack.c.1.s8 %v962
        %v2739 = vunpack.c.1.s8 %v963
        %v2740 = vunpack.c.2.s8 %v960
        %v2741 = vunpack.c.2.s8 %v961
        %v2742 = vunpack.c.2.s8 %v962
        %v2743 = vunpack.c.2.s8 %v963
        %v2744 = vunpack.c.3.s8 %v960
        %v2745 = vunpack.c.3.s8 %v961
        %v2746 = vunpack.c.3.s8 %v962
        %v2747 = vunpack.c.3.s8 %v963
        %v2748 = vunpack.c.0.s8 %v964
        %v2749 = vunpack.c.0.s8 %v965
        %v2750 = vunpack.c.0.s8 %v966
        %v2751 = vunpack.c.0.s8 %v967
        %v2752 = vunpack.c.1.s8 %v964
        %v2753 = vunpack.c.1.s8 %v965
        %v2754 = vunpack.c.1.s8 %v966
        %v2755 = vunpack.c.1.s8 %v967
        %v2756 = vunpack.c.2.s8 %v964
        %v2757 = vunpack.c.2.s8 %v965
        %v2758 = vunpack.c.2.s8 %v966
        %v2759 = vunpack.c.2.s8 %v967
        %v2760 = vunpack.c.3.s8 %v964
        %v2761 = vunpack.c.3.s8 %v965
        %v2762 = vunpack.c.3.s8 %v966
        %v2763 = vunpack.c.3.s8 %v967
        %v2764 = vunpack.c.0.s8 %v968
        %v2765 = vunpack.c.0.s8 %v969
        %v2766 = vunpack.c.0.s8 %v970
        %v2767 = vunpack.c.0.s8 %v971
        %v2768 = vunpack.c.1.s8 %v968
        %v2769 = vunpack.c.1.s8 %v969
        %v2770 = vunpack.c.1.s8 %v970
        %v2771 = vunpack.c.1.s8 %v971
        %v2772 = vunpack.c.2.s8 %v968
        %v2773 = vunpack.c.2.s8 %v969
        %v2774 = vunpack.c.2.s8 %v970
        %v2775 = vunpack.c.2.s8 %v971
        %v2776 = vunpack.c.3.s8 %v968
        %v2777 = vunpack.c.3.s8 %v969
        %v2778 = vunpack.c.3.s8 %v970
        %v2779 = vunpack.c.3.s8 %v971
        %v2780 = vunpack.c.0.s8 %v972
        %v2781 = vunpack.c.0.s8 %v973
        %v2782 = vunpack.c.0.s8 %v974
        %v2783 = vunpack.c.0.s8 %v975
        %v2784 = vunpack.c.1.s8 %v972
        %v2785 = vunpack.c.1.s8 %v973
        %v2786 = vunpack.c.1.s8 %v974
        %v2787 = vunpack.c.1.s8 %v975
        %v2788 = vunpack.c.2.s8 %v972
        %v2789 = vunpack.c.2.s8 %v973
        %v2790 = vunpack.c.2.s8 %v974
        %v2791 = vunpack.c.2.s8 %v975
        %v2792 = vunpack.c.3.s8 %v972
        %v2793 = vunpack.c.3.s8 %v973
        %v2794 = vunpack.c.3.s8 %v974
        %v2795 = vunpack.c.3.s8 %v975
        %v2796 = vunpack.c.0.s8 %v976
        %v2797 = vunpack.c.0.s8 %v977
        %v2798 = vunpack.c.0.s8 %v978
        %v2799 = vunpack.c.0.s8 %v979
        %v2800 = vunpack.c.1.s8 %v976
        %v2801 = vunpack.c.1.s8 %v977
        %v2802 = vunpack.c.1.s8 %v978
        %v2803 = vunpack.c.1.s8 %v979
        %v2804 = vunpack.c.2.s8 %v976
        %v2805 = vunpack.c.2.s8 %v977
        %v2806 = vunpack.c.2.s8 %v978
        %v2807 = vunpack.c.2.s8 %v979
        %v2808 = vunpack.c.3.s8 %v976
        %v2809 = vunpack.c.3.s8 %v977
        %v2810 = vunpack.c.3.s8 %v978
        %v2811 = vunpack.c.3.s8 %v979
        %v2812 = vunpack.c.0.s8 %v980
        %v2813 = vunpack.c.0.s8 %v981
        %v2814 = vunpack.c.0.s8 %v982
        %v2815 = vunpack.c.0.s8 %v983
        %v2816 = vunpack.c.1.s8 %v980
        %v2817 = vunpack.c.1.s8 %v981
        %v2818 = vunpack.c.1.s8 %v982
        %v2819 = vunpack.c.1.s8 %v983
        %v2820 = vunpack.c.2.s8 %v980
        %v2821 = vunpack.c.2.s8 %v981
        %v2822 = vunpack.c.2.s8 %v982
        %v2823 = vunpack.c.2.s8 %v983
        %v2824 = vunpack.c.3.s8 %v980
        %v2825 = vunpack.c.3.s8 %v981
        %v2826 = vunpack.c.3.s8 %v982
        %v2827 = vunpack.c.3.s8 %v983
        %v2828 = vunpack.c.0.s8 %v984
        %v2829 = vunpack.c.0.s8 %v985
        %v2830 = vunpack.c.0.s8 %v986
        %v2831 = vunpack.c.0.s8 %v987
        %v2832 = vunpack.c.1.s8 %v984
        %v2833 = vunpack.c.1.s8 %v985
        %v2834 = vunpack.c.1.s8 %v986
        %v2835 = vunpack.c.1.s8 %v987
        %v2836 = vunpack.c.2.s8 %v984
        %v2837 = vunpack.c.2.s8 %v985
        %v2838 = vunpack.c.2.s8 %v986
        %v2839 = vunpack.c.2.s8 %v987
        %v2840 = vunpack.c.3.s8 %v984
        %v2841 = vunpack.c.3.s8 %v985
        %v2842 = vunpack.c.3.s8 %v986
        %v2843 = vunpack.c.3.s8 %v987
        %v2844 = vunpack.c.0.s8 %v988
        %v2845 = vunpack.c.0.s8 %v989
        %v2846 = vunpack.c.0.s8 %v990
        %v2847 = vunpack.c.0.s8 %v991
        %v2848 = vunpack.c.1.s8 %v988
        %v2849 = vunpack.c.1.s8 %v989
        %v2850 = vunpack.c.1.s8 %v990
        %v2851 = vunpack.c.1.s8 %v991
        %v2852 = vunpack.c.2.s8 %v988
        %v2853 = vunpack.c.2.s8 %v989
        %v2854 = vunpack.c.2.s8 %v990
        %v2855 = vunpack.c.2.s8 %v991
        %v2856 = vunpack.c.3.s8 %v988
        %v2857 = vunpack.c.3.s8 %v989
        %v2858 = vunpack.c.3.s8 %v990
        %v2859 = vunpack.c.3.s8 %v991
        %v2860 = vunpack.c.0.s8 %v992
        %v2861 = vunpack.c.0.s8 %v993
        %v2862 = vunpack.c.0.s8 %v994
        %v2863 = vunpack.c.0.s8 %v995
        %v2864 = vunpack.c.1.s8 %v992
        %v2865 = vunpack.c.1.s8 %v993
        %v2866 = vunpack.c.1.s8 %v994
        %v2867 = vunpack.c.1.s8 %v995
        %v2868 = vunpack.c.2.s8 %v992
        %v2869 = vunpack.c.2.s8 %v993
        %v2870 = vunpack.c.2.s8 %v994
        %v2871 = vunpack.c.2.s8 %v995
        %v2872 = vunpack.c.3.s8 %v992
        %v2873 = vunpack.c.3.s8 %v993
        %v2874 = vunpack.c.3.s8 %v994
        %v2875 = vunpack.c.3.s8 %v995
        %v2876 = vunpack.c.0.s8 %v996
        %v2877 = vunpack.c.0.s8 %v997
        %v2878 = vunpack.c.0.s8 %v998
        %v2879 = vunpack.c.0.s8 %v999
        %v2880 = vunpack.c.1.s8 %v996
        %v2881 = vunpack.c.1.s8 %v997
        %v2882 = vunpack.c.1.s8 %v998
        %v2883 = vunpack.c.1.s8 %v999
        %v2884 = vunpack.c.2.s8 %v996
        %v2885 = vunpack.c.2.s8 %v997
        %v2886 = vunpack.c.2.s8 %v998
        %v2887 = vunpack.c.2.s8 %v999
        %v2888 = vunpack.c.3.s8 %v996
        %v2889 = vunpack.c.3.s8 %v997
        %v2890 = vunpack.c.3.s8 %v998
        %v2891 = vunpack.c.3.s8 %v999
        %v2892 = vunpack.c.0.s8 %v1000
        %v2893 = vunpack.c.0.s8 %v1001
        %v2894 = vunpack.c.0.s8 %v1002
        %v2895 = vunpack.c.0.s8 %v1003
        %v2896 = vunpack.c.1.s8 %v1000
        %v2897 = vunpack.c.1.s8 %v1001
        %v2898 = vunpack.c.1.s8 %v1002
        %v2899 = vunpack.c.1.s8 %v1003
        %v2900 = vunpack.c.2.s8 %v1000
        %v2901 = vunpack.c.2.s8 %v1001
        %v2902 = vunpack.c.2.s8 %v1002
        %v2903 = vunpack.c.2.s8 %v1003
        %v2904 = vunpack.c.3.s8 %v1000
        %v2905 = vunpack.c.3.s8 %v1001
        %v2906 = vunpack.c.3.s8 %v1002
        %v2907 = vunpack.c.3.s8 %v1003
        %v2908 = vunpack.c.0.s8 %v1004
        %v2909 = vunpack.c.0.s8 %v1005
        %v2910 = vunpack.c.0.s8 %v1006
        %v2911 = vunpack.c.0.s8 %v1007
        %v2912 = vunpack.c.1.s8 %v1004
        %v2913 = vunpack.c.1.s8 %v1005
        %v2914 = vunpack.c.1.s8 %v1006
        %v2915 = vunpack.c.1.s8 %v1007
        %v2916 = vunpack.c.2.s8 %v1004
        %v2917 = vunpack.c.2.s8 %v1005
        %v2918 = vunpack.c.2.s8 %v1006
        %v2919 = vunpack.c.2.s8 %v1007
        %v2920 = vunpack.c.3.s8 %v1004
        %v2921 = vunpack.c.3.s8 %v1005
        %v2922 = vunpack.c.3.s8 %v1006
        %v2923 = vunpack.c.3.s8 %v1007
        %v2924 = vunpack.c.0.s8 %v1008
        %v2925 = vunpack.c.0.s8 %v1009
        %v2926 = vunpack.c.0.s8 %v1010
        %v2927 = vunpack.c.0.s8 %v1011
        %v2928 = vunpack.c.1.s8 %v1008
        %v2929 = vunpack.c.1.s8 %v1009
        %v2930 = vunpack.c.1.s8 %v1010
        %v2931 = vunpack.c.1.s8 %v1011
        %v2932 = vunpack.c.2.s8 %v1008
        %v2933 = vunpack.c.2.s8 %v1009
        %v2934 = vunpack.c.2.s8 %v1010
        %v2935 = vunpack.c.2.s8 %v1011
        %v2936 = vunpack.c.3.s8 %v1008
        %v2937 = vunpack.c.3.s8 %v1009
        %v2938 = vunpack.c.3.s8 %v1010
        %v2939 = vunpack.c.3.s8 %v1011
        %v2940 = vunpack.c.0.s8 %v1012
        %v2941 = vunpack.c.0.s8 %v1013
        %v2942 = vunpack.c.0.s8 %v1014
        %v2943 = vunpack.c.0.s8 %v1015
        %v2944 = vunpack.c.1.s8 %v1012
        %v2945 = vunpack.c.1.s8 %v1013
        %v2946 = vunpack.c.1.s8 %v1014
        %v2947 = vunpack.c.1.s8 %v1015
        %v2948 = vunpack.c.2.s8 %v1012
        %v2949 = vunpack.c.2.s8 %v1013
        %v2950 = vunpack.c.2.s8 %v1014
        %v2951 = vunpack.c.2.s8 %v1015
        %v2952 = vunpack.c.3.s8 %v1012
        %v2953 = vunpack.c.3.s8 %v1013
        %v2954 = vunpack.c.3.s8 %v1014
        %v2955 = vunpack.c.3.s8 %v1015
        %v2956 = vunpack.c.0.s8 %v1016
        %v2957 = vunpack.c.0.s8 %v1017
        %v2958 = vunpack.c.0.s8 %v1018
        %v2959 = vunpack.c.0.s8 %v1019
        %v2960 = vunpack.c.1.s8 %v1016
        %v2961 = vunpack.c.1.s8 %v1017
        %v2962 = vunpack.c.1.s8 %v1018
        %v2963 = vunpack.c.1.s8 %v1019
        %v2964 = vunpack.c.2.s8 %v1016
        %v2965 = vunpack.c.2.s8 %v1017
        %v2966 = vunpack.c.2.s8 %v1018
        %v2967 = vunpack.c.2.s8 %v1019
        %v2968 = vunpack.c.3.s8 %v1016
        %v2969 = vunpack.c.3.s8 %v1017
        %v2970 = vunpack.c.3.s8 %v1018
        %v2971 = vunpack.c.3.s8 %v1019
        %v2972 = vunpack.c.0.s8 %v1020
        %v2973 = vunpack.c.0.s8 %v1021
        %v2974 = vunpack.c.0.s8 %v1022
        %v2975 = vunpack.c.0.s8 %v1023
        %v2976 = vunpack.c.1.s8 %v1020
        %v2977 = vunpack.c.1.s8 %v1021
        %v2978 = vunpack.c.1.s8 %v1022
        %v2979 = vunpack.c.1.s8 %v1023
        %v2980 = vunpack.c.2.s8 %v1020
        %v2981 = vunpack.c.2.s8 %v1021
        %v2982 = vunpack.c.2.s8 %v1022
        %v2983 = vunpack.c.2.s8 %v1023
        %v2984 = vunpack.c.3.s8 %v1020
        %v2985 = vunpack.c.3.s8 %v1021
        %v2986 = vunpack.c.3.s8 %v1022
        %v2987 = vunpack.c.3.s8 %v1023
        %v2988 = vunpack.c.0.s8 %v1024
        %v2989 = vunpack.c.0.s8 %v1025
        %v2990 = vunpack.c.0.s8 %v1026
        %v2991 = vunpack.c.0.s8 %v1027
        %v2992 = vunpack.c.1.s8 %v1024
        %v2993 = vunpack.c.1.s8 %v1025
        %v2994 = vunpack.c.1.s8 %v1026
        %v2995 = vunpack.c.1.s8 %v1027
        %v2996 = vunpack.c.2.s8 %v1024
        %v2997 = vunpack.c.2.s8 %v1025
        %v2998 = vunpack.c.2.s8 %v1026
        %v2999 = vunpack.c.2.s8 %v1027
        %v3000 = vunpack.c.3.s8 %v1024
        %v3001 = vunpack.c.3.s8 %v1025
        %v3002 = vunpack.c.3.s8 %v1026
        %v3003 = vunpack.c.3.s8 %v1027
        %v3004 = vunpack.c.0.s8 %v1028
        %v3005 = vunpack.c.0.s8 %v1029
        %v3006 = vunpack.c.0.s8 %v1030
        %v3007 = vunpack.c.0.s8 %v1031
        %v3008 = vunpack.c.1.s8 %v1028
        %v3009 = vunpack.c.1.s8 %v1029
        %v3010 = vunpack.c.1.s8 %v1030
        %v3011 = vunpack.c.1.s8 %v1031
        %v3012 = vunpack.c.2.s8 %v1028
        %v3013 = vunpack.c.2.s8 %v1029
        %v3014 = vunpack.c.2.s8 %v1030
        %v3015 = vunpack.c.2.s8 %v1031
        %v3016 = vunpack.c.3.s8 %v1028
        %v3017 = vunpack.c.3.s8 %v1029
        %v3018 = vunpack.c.3.s8 %v1030
        %v3019 = vunpack.c.3.s8 %v1031
        %v3020 = vunpack.c.0.s8 %v1032
        %v3021 = vunpack.c.0.s8 %v1033
        %v3022 = vunpack.c.0.s8 %v1034
        %v3023 = vunpack.c.0.s8 %v1035
        %v3024 = vunpack.c.1.s8 %v1032
        %v3025 = vunpack.c.1.s8 %v1033
        %v3026 = vunpack.c.1.s8 %v1034
        %v3027 = vunpack.c.1.s8 %v1035
        %v3028 = vunpack.c.2.s8 %v1032
        %v3029 = vunpack.c.2.s8 %v1033
        %v3030 = vunpack.c.2.s8 %v1034
        %v3031 = vunpack.c.2.s8 %v1035
        %v3032 = vunpack.c.3.s8 %v1032
        %v3033 = vunpack.c.3.s8 %v1033
        %v3034 = vunpack.c.3.s8 %v1034
        %v3035 = vunpack.c.3.s8 %v1035
        %v3036 = vunpack.c.0.s8 %v1036
        %v3037 = vunpack.c.0.s8 %v1037
        %v3038 = vunpack.c.0.s8 %v1038
        %v3039 = vunpack.c.0.s8 %v1039
        %v3040 = vunpack.c.1.s8 %v1036
        %v3041 = vunpack.c.1.s8 %v1037
        %v3042 = vunpack.c.1.s8 %v1038
        %v3043 = vunpack.c.1.s8 %v1039
        %v3044 = vunpack.c.2.s8 %v1036
        %v3045 = vunpack.c.2.s8 %v1037
        %v3046 = vunpack.c.2.s8 %v1038
        %v3047 = vunpack.c.2.s8 %v1039
        %v3048 = vunpack.c.3.s8 %v1036
        %v3049 = vunpack.c.3.s8 %v1037
        %v3050 = vunpack.c.3.s8 %v1038
        %v3051 = vunpack.c.3.s8 %v1039
        %v3052 = vunpack.c.0.s8 %v1040
        %v3053 = vunpack.c.0.s8 %v1041
        %v3054 = vunpack.c.0.s8 %v1042
        %v3055 = vunpack.c.0.s8 %v1043
        %v3056 = vunpack.c.1.s8 %v1040
        %v3057 = vunpack.c.1.s8 %v1041
        %v3058 = vunpack.c.1.s8 %v1042
        %v3059 = vunpack.c.1.s8 %v1043
        %v3060 = vunpack.c.2.s8 %v1040
        %v3061 = vunpack.c.2.s8 %v1041
        %v3062 = vunpack.c.2.s8 %v1042
        %v3063 = vunpack.c.2.s8 %v1043
        %v3064 = vunpack.c.3.s8 %v1040
        %v3065 = vunpack.c.3.s8 %v1041
        %v3066 = vunpack.c.3.s8 %v1042
        %v3067 = vunpack.c.3.s8 %v1043
        %v3068 = vunpack.c.0.s8 %v1044
        %v3069 = vunpack.c.0.s8 %v1045
        %v3070 = vunpack.c.0.s8 %v1046
        %v3071 = vunpack.c.0.s8 %v1047
        %v3072 = vunpack.c.1.s8 %v1044
        %v3073 = vunpack.c.1.s8 %v1045
        %v3074 = vunpack.c.1.s8 %v1046
        %v3075 = vunpack.c.1.s8 %v1047
        %v3076 = vunpack.c.2.s8 %v1044
        %v3077 = vunpack.c.2.s8 %v1045
        %v3078 = vunpack.c.2.s8 %v1046
        %v3079 = vunpack.c.2.s8 %v1047
        %v3080 = vunpack.c.3.s8 %v1044
        %v3081 = vunpack.c.3.s8 %v1045
        %v3082 = vunpack.c.3.s8 %v1046
        %v3083 = vunpack.c.3.s8 %v1047
        %v3084 = vunpack.c.0.s8 %v1048
        %v3085 = vunpack.c.0.s8 %v1049
        %v3086 = vunpack.c.0.s8 %v1050
        %v3087 = vunpack.c.0.s8 %v1051
        %v3088 = vunpack.c.1.s8 %v1048
        %v3089 = vunpack.c.1.s8 %v1049
        %v3090 = vunpack.c.1.s8 %v1050
        %v3091 = vunpack.c.1.s8 %v1051
        %v3092 = vunpack.c.2.s8 %v1048
        %v3093 = vunpack.c.2.s8 %v1049
        %v3094 = vunpack.c.2.s8 %v1050
        %v3095 = vunpack.c.2.s8 %v1051
        %v3096 = vunpack.c.3.s8 %v1048
        %v3097 = vunpack.c.3.s8 %v1049
        %v3098 = vunpack.c.3.s8 %v1050
        %v3099 = vunpack.c.3.s8 %v1051
        %v3100 = vcvt.s32.f32 %v1052
        %v3101 = vcvt.s32.f32 %v1053
        %v3102 = vcvt.s32.f32 %v1054
        %v3103 = vcvt.s32.f32 %v1055
        %v3104 = vcvt.s32.f32 %v1056
        %v3105 = vcvt.s32.f32 %v1057
        %v3106 = vcvt.s32.f32 %v1058
        %v3107 = vcvt.s32.f32 %v1059
        %v3108 = vcvt.s32.f32 %v1060
        %v3109 = vcvt.s32.f32 %v1061
        %v3110 = vcvt.s32.f32 %v1062
        %v3111 = vcvt.s32.f32 %v1063
        %v3112 = vcvt.s32.f32 %v1064
        %v3113 = vcvt.s32.f32 %v1065
        %v3114 = vcvt.s32.f32 %v1066
        %v3115 = vcvt.s32.f32 %v1067
        %v3116 = vcvt.s32.f32 %v1068
        %v3117 = vcvt.s32.f32 %v1069
        %v3118 = vcvt.s32.f32 %v1070
        %v3119 = vcvt.s32.f32 %v1071
        %v3120 = vcvt.s32.f32 %v1072
        %v3121 = vcvt.s32.f32 %v1073
        %v3122 = vcvt.s32.f32 %v1074
        %v3123 = vcvt.s32.f32 %v1075
        %v3124 = vcvt.s32.f32 %v1076
        %v3125 = vcvt.s32.f32 %v1077
        %v3126 = vcvt.s32.f32 %v1078
        %v3127 = vcvt.s32.f32 %v1079
        %v3128 = vcvt.s32.f32 %v1080
        %v3129 = vcvt.s32.f32 %v1081
        %v3130 = vcvt.s32.f32 %v1082
        %v3131 = vcvt.s32.f32 %v1083
        %v3132 = vcvt.s32.f32 %v1084
        %v3133 = vcvt.s32.f32 %v1085
        %v3134 = vcvt.s32.f32 %v1086
        %v3135 = vcvt.s32.f32 %v1087
        %v3136 = vcvt.s32.f32 %v1088
        %v3137 = vcvt.s32.f32 %v1089
        %v3138 = vcvt.s32.f32 %v1090
        %v3139 = vcvt.s32.f32 %v1091
        %v3140 = vcvt.s32.f32 %v1092
        %v3141 = vcvt.s32.f32 %v1093
        %v3142 = vcvt.s32.f32 %v1094
        %v3143 = vcvt.s32.f32 %v1095
        %v3144 = vcvt.s32.f32 %v1096
        %v3145 = vcvt.s32.f32 %v1097
        %v3146 = vcvt.s32.f32 %v1098
        %v3147 = vcvt.s32.f32 %v1099
        %v3148 = vcvt.s32.f32 %v1100
        %v3149 = vcvt.s32.f32 %v1101
        %v3150 = vcvt.s32.f32 %v1102
        %v3151 = vcvt.s32.f32 %v1103
        %v3152 = vcvt.s32.f32 %v1104
        %v3153 = vcvt.s32.f32 %v1105
        %v3154 = vcvt.s32.f32 %v1106
        %v3155 = vcvt.s32.f32 %v1107
        %v3156 = vcvt.s32.f32 %v1108
        %v3157 = vcvt.s32.f32 %v1109
        %v3158 = vcvt.s32.f32 %v1110
        %v3159 = vcvt.s32.f32 %v1111
        %v3160 = vcvt.s32.f32 %v1112
        %v3161 = vcvt.s32.f32 %v1113
        %v3162 = vcvt.s32.f32 %v1114
        %v3163 = vcvt.s32.f32 %v1115
        %v3164 = vcvt.s32.f32 %v1116
        %v3165 = vcvt.s32.f32 %v1117
        %v3166 = vcvt.s32.f32 %v1118
        %v3167 = vcvt.s32.f32 %v1119
        %v3168 = vcvt.s32.f32 %v1120
        %v3169 = vcvt.s32.f32 %v1121
        %v3170 = vcvt.s32.f32 %v1122
        %v3171 = vcvt.s32.f32 %v1123
        %v3172 = vcvt.s32.f32 %v1124
        %v3173 = vcvt.s32.f32 %v1125
        %v3174 = vcvt.s32.f32 %v1126
        %v3175 = vcvt.s32.f32 %v1127
        %v3176 = vcvt.s32.f32 %v1128
        %v3177 = vcvt.s32.f32 %v1129
        %v3178 = vcvt.s32.f32 %v1130
        %v3179 = vcvt.s32.f32 %v1131
        %v3180 = vcvt.s32.f32 %v1132
        %v3181 = vcvt.s32.f32 %v1133
        %v3182 = vcvt.s32.f32 %v1134
        %v3183 = vcvt.s32.f32 %v1135
        %v3184 = vcvt.s32.f32 %v1136
        %v3185 = vcvt.s32.f32 %v1137
        %v3186 = vcvt.s32.f32 %v1138
        %v3187 = vcvt.s32.f32 %v1139
        %v3188 = vcvt.s32.f32 %v1140
        %v3189 = vcvt.s32.f32 %v1141
        %v3190 = vcvt.s32.f32 %v1142
        %v3191 = vcvt.s32.f32 %v1143
        %v3192 = vcvt.s32.f32 %v1144
        %v3193 = vcvt.s32.f32 %v1145
        %v3194 = vcvt.s32.f32 %v1146
        %v3195 = vcvt.s32.f32 %v1147
        %v3196 = vcvt.s32.f32 %v1148
        %v3197 = vcvt.s32.f32 %v1149
        %v3198 = vcvt.s32.f32 %v1150
        %v3199 = vcvt.s32.f32 %v1151
        %v3200 = vcvt.s32.f32 %v1152
        %v3201 = vcvt.s32.f32 %v1153
        %v3202 = vcvt.s32.f32 %v1154
        %v3203 = vcvt.s32.f32 %v1155
        %v3204 = vcvt.s32.f32 %v1156
        %v3205 = vcvt.s32.f32 %v1157
        %v3206 = vcvt.s32.f32 %v1158
        %v3207 = vcvt.s32.f32 %v1159
        %v3208 = vcvt.s32.f32 %v1160
        %v3209 = vcvt.s32.f32 %v1161
        %v3210 = vcvt.s32.f32 %v1162
        %v3211 = vcvt.s32.f32 %v1163
        %v3212 = vcvt.s32.f32 %v1164
        %v3213 = vcvt.s32.f32 %v1165
        %v3214 = vcvt.s32.f32 %v1166
        %v3215 = vcvt.s32.f32 %v1167
        %v3216 = vcvt.s32.f32 %v1168
        %v3217 = vcvt.s32.f32 %v1169
        %v3218 = vcvt.s32.f32 %v1170
        %v3219 = vcvt.s32.f32 %v1171
        %v3220 = vcvt.s32.f32 %v1172
        %v3221 = vcvt.s32.f32 %v1173
        %v3222 = vcvt.s32.f32 %v1174
        %v3223 = vcvt.s32.f32 %v1175
        %v3224 = vcvt.s32.f32 %v1176
        %v3225 = vcvt.s32.f32 %v1177
        %v3226 = vcvt.s32.f32 %v1178
        %v3227 = vcvt.s32.f32 %v1179
        %v3228 = vcvt.s32.f32 %v1180
        %v3229 = vcvt.s32.f32 %v1181
        %v3230 = vcvt.s32.f32 %v1182
        %v3231 = vcvt.s32.f32 %v1183
        %v3232 = vcvt.s32.f32 %v1184
        %v3233 = vcvt.s32.f32 %v1185
        %v3234 = vcvt.s32.f32 %v1186
        %v3235 = vcvt.s32.f32 %v1187
        %v3236 = vcvt.s32.f32 %v1188
        %v3237 = vcvt.s32.f32 %v1189
        %v3238 = vcvt.s32.f32 %v1190
        %v3239 = vcvt.s32.f32 %v1191
        %v3240 = vcvt.s32.f32 %v1192
        %v3241 = vcvt.s32.f32 %v1193
        %v3242 = vcvt.s32.f32 %v1194
        %v3243 = vcvt.s32.f32 %v1195
        %v3244 = vcvt.s32.f32 %v1196
        %v3245 = vcvt.s32.f32 %v1197
        %v3246 = vcvt.s32.f32 %v1198
        %v3247 = vcvt.s32.f32 %v1199
        %v3248 = vcvt.s32.f32 %v1200
        %v3249 = vcvt.s32.f32 %v1201
        %v3250 = vcvt.s32.f32 %v1202
        %v3251 = vcvt.s32.f32 %v1203
        %v3252 = vcvt.s32.f32 %v1204
        %v3253 = vcvt.s32.f32 %v1205
        %v3254 = vcvt.s32.f32 %v1206
        %v3255 = vcvt.s32.f32 %v1207
        %v3256 = vcvt.s32.f32 %v1208
        %v3257 = vcvt.s32.f32 %v1209
        %v3258 = vcvt.s32.f32 %v1210
        %v3259 = vcvt.s32.f32 %v1211
        %v3260 = vcvt.s32.f32 %v1212
        %v3261 = vcvt.s32.f32 %v1213
        %v3262 = vcvt.s32.f32 %v1214
        %v3263 = vcvt.s32.f32 %v1215
        %v3264 = vcvt.s32.f32 %v1216
        %v3265 = vcvt.s32.f32 %v1217
        %v3266 = vcvt.s32.f32 %v1218
        %v3267 = vcvt.s32.f32 %v1219
        %v3268 = vcvt.s32.f32 %v1220
        %v3269 = vcvt.s32.f32 %v1221
        %v3270 = vcvt.s32.f32 %v1222
        %v3271 = vcvt.s32.f32 %v1223
        %v3272 = vcvt.s32.f32 %v1224
        %v3273 = vcvt.s32.f32 %v1225
        %v3274 = vcvt.s32.f32 %v1226
        %v3275 = vcvt.s32.f32 %v1227
        %v3276 = vcvt.s32.f32 %v1228
        %v3277 = vcvt.s32.f32 %v1229
        %v3278 = vcvt.s32.f32 %v1230
        %v3279 = vcvt.s32.f32 %v1231
        %v3280 = vcvt.s32.f32 %v1232
        %v3281 = vcvt.s32.f32 %v1233
        %v3282 = vcvt.s32.f32 %v1234
        %v3283 = vcvt.s32.f32 %v1235
        %v3284 = vcvt.s32.f32 %v1236
        %v3285 = vcvt.s32.f32 %v1237
        %v3286 = vcvt.s32.f32 %v1238
        %v3287 = vcvt.s32.f32 %v1239
        %v3288 = vcvt.s32.f32 %v1240
        %v3289 = vcvt.s32.f32 %v1241
        %v3290 = vcvt.s32.f32 %v1242
        %v3291 = vcvt.s32.f32 %v1243
        %v3292 = vcvt.s32.f32 %v1244
        %v3293 = vcvt.s32.f32 %v1245
        %v3294 = vcvt.s32.f32 %v1246
        %v3295 = vcvt.s32.f32 %v1247
        %v3296 = vcvt.s32.f32 %v1248
        %v3297 = vcvt.s32.f32 %v1249
        %v3298 = vcvt.s32.f32 %v1250
        %v3299 = vcvt.s32.f32 %v1251
        %v3300 = vcvt.s32.f32 %v1252
        %v3301 = vcvt.s32.f32 %v1253
        %v3302 = vcvt.s32.f32 %v1254
        %v3303 = vcvt.s32.f32 %v1255
        %v3304 = vcvt.s32.f32 %v1256
        %v3305 = vcvt.s32.f32 %v1257
        %v3306 = vcvt.s32.f32 %v1258
        %v3307 = vcvt.s32.f32 %v1259
        %v3308 = vcvt.s32.f32 %v1260
        %v3309 = vcvt.s32.f32 %v1261
        %v3310 = vcvt.s32.f32 %v1262
        %v3311 = vcvt.s32.f32 %v1263
        %v3312 = vcvt.s32.f32 %v1264
        %v3313 = vcvt.s32.f32 %v1265
        %v3314 = vcvt.s32.f32 %v1266
        %v3315 = vcvt.s32.f32 %v1267
        %v3316 = vcvt.s32.f32 %v1268
        %v3317 = vcvt.s32.f32 %v1269
        %v3318 = vcvt.s32.f32 %v1270
        %v3319 = vcvt.s32.f32 %v1271
        %v3320 = vcvt.s32.f32 %v1272
        %v3321 = vcvt.s32.f32 %v1273
        %v3322 = vcvt.s32.f32 %v1274
        %v3323 = vcvt.s32.f32 %v1275
        %v3324 = vcvt.s32.f32 %v1276
        %v3325 = vcvt.s32.f32 %v1277
        %v3326 = vcvt.s32.f32 %v1278
        %v3327 = vcvt.s32.f32 %v1279
        %v3328 = vcvt.s32.f32 %v1280
        %v3329 = vcvt.s32.f32 %v1281
        %v3330 = vcvt.s32.f32 %v1282
        %v3331 = vcvt.s32.f32 %v1283
        %v3332 = vcvt.s32.f32 %v1284
        %v3333 = vcvt.s32.f32 %v1285
        %v3334 = vcvt.s32.f32 %v1286
        %v3335 = vcvt.s32.f32 %v1287
        %v3336 = vcvt.s32.f32 %v1288
        %v3337 = vcvt.s32.f32 %v1289
        %v3338 = vcvt.s32.f32 %v1290
        %v3339 = vcvt.s32.f32 %v1291
        %v3340 = vcvt.s32.f32 %v1292
        %v3341 = vcvt.s32.f32 %v1293
        %v3342 = vcvt.s32.f32 %v1294
        %v3343 = vcvt.s32.f32 %v1295
        %v3344 = vcvt.s32.f32 %v1296
        %v3345 = vcvt.s32.f32 %v1297
        %v3346 = vcvt.s32.f32 %v1298
        %v3347 = vcvt.s32.f32 %v1299
        %v3348 = vcvt.s32.f32 %v1300
        %v3349 = vcvt.s32.f32 %v1301
        %v3350 = vcvt.s32.f32 %v1302
        %v3351 = vcvt.s32.f32 %v1303
        %v3352 = vcvt.s32.f32 %v1304
        %v3353 = vcvt.s32.f32 %v1305
        %v3354 = vcvt.s32.f32 %v1306
        %v3355 = vcvt.s32.f32 %v1307
        %v3356 = vcvt.s32.f32 %v1308
        %v3357 = vcvt.s32.f32 %v1309
        %v3358 = vcvt.s32.f32 %v1310
        %v3359 = vcvt.s32.f32 %v1311
        %v3360 = vcvt.s32.f32 %v1312
        %v3361 = vcvt.s32.f32 %v1313
        %v3362 = vcvt.s32.f32 %v1314
        %v3363 = vcvt.s32.f32 %v1315
        %v3364 = vcvt.s32.f32 %v1316
        %v3365 = vcvt.s32.f32 %v1317
        %v3366 = vcvt.s32.f32 %v1318
        %v3367 = vcvt.s32.f32 %v1319
        %v3368 = vcvt.s32.f32 %v1320
        %v3369 = vcvt.s32.f32 %v1321
        %v3370 = vcvt.s32.f32 %v1322
        %v3371 = vcvt.s32.f32 %v1323
        %v3372 = vcvt.s32.f32 %v1324
        %v3373 = vcvt.s32.f32 %v1325
        %v3374 = vcvt.s32.f32 %v1326
        %v3375 = vcvt.s32.f32 %v1327
        %v3376 = vcvt.s32.f32 %v1328
        %v3377 = vcvt.s32.f32 %v1329
        %v3378 = vcvt.s32.f32 %v1330
        %v3379 = vcvt.s32.f32 %v1331
        %v3380 = vcvt.s32.f32 %v1332
        %v3381 = vcvt.s32.f32 %v1333
        %v3382 = vcvt.s32.f32 %v1334
        %v3383 = vcvt.s32.f32 %v1335
        %v3384 = vcvt.s32.f32 %v1336
        %v3385 = vcvt.s32.f32 %v1337
        %v3386 = vcvt.s32.f32 %v1338
        %v3387 = vcvt.s32.f32 %v1339
        %v3388 = vcvt.s32.f32 %v1340
        %v3389 = vcvt.s32.f32 %v1341
        %v3390 = vcvt.s32.f32 %v1342
        %v3391 = vcvt.s32.f32 %v1343
        %v3392 = vcvt.s32.f32 %v1344
        %v3393 = vcvt.s32.f32 %v1345
        %v3394 = vcvt.s32.f32 %v1346
        %v3395 = vcvt.s32.f32 %v1347
        %v3396 = vcvt.s32.f32 %v1348
        %v3397 = vcvt.s32.f32 %v1349
        %v3398 = vcvt.s32.f32 %v1350
        %v3399 = vcvt.s32.f32 %v1351
        %v3400 = vcvt.s32.f32 %v1352
        %v3401 = vcvt.s32.f32 %v1353
        %v3402 = vcvt.s32.f32 %v1354
        %v3403 = vcvt.s32.f32 %v1355
        %v3404 = vcvt.s32.f32 %v1356
        %v3405 = vcvt.s32.f32 %v1357
        %v3406 = vcvt.s32.f32 %v1358
        %v3407 = vcvt.s32.f32 %v1359
        %v3408 = vcvt.s32.f32 %v1360
        %v3409 = vcvt.s32.f32 %v1361
        %v3410 = vcvt.s32.f32 %v1362
        %v3411 = vcvt.s32.f32 %v1363
        %v3412 = vcvt.s32.f32 %v1364
        %v3413 = vcvt.s32.f32 %v1365
        %v3414 = vcvt.s32.f32 %v1366
        %v3415 = vcvt.s32.f32 %v1367
        %v3416 = vcvt.s32.f32 %v1368
        %v3417 = vcvt.s32.f32 %v1369
        %v3418 = vcvt.s32.f32 %v1370
        %v3419 = vcvt.s32.f32 %v1371
        %v3420 = vcvt.s32.f32 %v1372
        %v3421 = vcvt.s32.f32 %v1373
        %v3422 = vcvt.s32.f32 %v1374
        %v3423 = vcvt.s32.f32 %v1375
        %v3424 = vcvt.s32.f32 %v1376
        %v3425 = vcvt.s32.f32 %v1377
        %v3426 = vcvt.s32.f32 %v1378
        %v3427 = vcvt.s32.f32 %v1379
        %v3428 = vcvt.s32.f32 %v1380
        %v3429 = vcvt.s32.f32 %v1381
        %v3430 = vcvt.s32.f32 %v1382
        %v3431 = vcvt.s32.f32 %v1383
        %v3432 = vcvt.s32.f32 %v1384
        %v3433 = vcvt.s32.f32 %v1385
        %v3434 = vcvt.s32.f32 %v1386
        %v3435 = vcvt.s32.f32 %v1387
        %v3436 = vcvt.s32.f32 %v1388
        %v3437 = vcvt.s32.f32 %v1389
        %v3438 = vcvt.s32.f32 %v1390
        %v3439 = vcvt.s32.f32 %v1391
        %v3440 = vcvt.s32.f32 %v1392
        %v3441 = vcvt.s32.f32 %v1393
        %v3442 = vcvt.s32.f32 %v1394
        %v3443 = vcvt.s32.f32 %v1395
        %v3444 = vcvt.s32.f32 %v1396
        %v3445 = vcvt.s32.f32 %v1397
        %v3446 = vcvt.s32.f32 %v1398
        %v3447 = vcvt.s32.f32 %v1399
        %v3448 = vcvt.s32.f32 %v1400
        %v3449 = vcvt.s32.f32 %v1401
        %v3450 = vcvt.s32.f32 %v1402
        %v3451 = vcvt.s32.f32 %v1403
        %v3452 = vcvt.s32.f32 %v1404
        %v3453 = vcvt.s32.f32 %v1405
        %v3454 = vcvt.s32.f32 %v1406
        %v3455 = vcvt.s32.f32 %v1407
        %v3456 = vcvt.s32.f32 %v1408
        %v3457 = vcvt.s32.f32 %v1409
        %v3458 = vcvt.s32.f32 %v1410
        %v3459 = vcvt.s32.f32 %v1411
        %v3460 = vcvt.s32.f32 %v1412
        %v3461 = vcvt.s32.f32 %v1413
        %v3462 = vcvt.s32.f32 %v1414
        %v3463 = vcvt.s32.f32 %v1415
        %v3464 = vcvt.s32.f32 %v1416
        %v3465 = vcvt.s32.f32 %v1417
        %v3466 = vcvt.s32.f32 %v1418
        %v3467 = vcvt.s32.f32 %v1419
        %v3468 = vcvt.s32.f32 %v1420
        %v3469 = vcvt.s32.f32 %v1421
        %v3470 = vcvt.s32.f32 %v1422
        %v3471 = vcvt.s32.f32 %v1423
        %v3472 = vcvt.s32.f32 %v1424
        %v3473 = vcvt.s32.f32 %v1425
        %v3474 = vcvt.s32.f32 %v1426
        %v3475 = vcvt.s32.f32 %v1427
        %v3476 = vcvt.s32.f32 %v1428
        %v3477 = vcvt.s32.f32 %v1429
        %v3478 = vcvt.s32.f32 %v1430
        %v3479 = vcvt.s32.f32 %v1431
        %v3480 = vcvt.s32.f32 %v1432
        %v3481 = vcvt.s32.f32 %v1433
        %v3482 = vcvt.s32.f32 %v1434
        %v3483 = vcvt.s32.f32 %v1435
        %v3484 = vcvt.s32.f32 %v1436
        %v3485 = vcvt.s32.f32 %v1437
        %v3486 = vcvt.s32.f32 %v1438
        %v3487 = vcvt.s32.f32 %v1439
        %v3488 = vcvt.s32.f32 %v1440
        %v3489 = vcvt.s32.f32 %v1441
        %v3490 = vcvt.s32.f32 %v1442
        %v3491 = vcvt.s32.f32 %v1443
        %v3492 = vcvt.s32.f32 %v1444
        %v3493 = vcvt.s32.f32 %v1445
        %v3494 = vcvt.s32.f32 %v1446
        %v3495 = vcvt.s32.f32 %v1447
        %v3496 = vcvt.s32.f32 %v1448
        %v3497 = vcvt.s32.f32 %v1449
        %v3498 = vcvt.s32.f32 %v1450
        %v3499 = vcvt.s32.f32 %v1451
        %v3500 = vcvt.s32.f32 %v1452
        %v3501 = vcvt.s32.f32 %v1453
        %v3502 = vcvt.s32.f32 %v1454
        %v3503 = vcvt.s32.f32 %v1455
        %v3504 = vcvt.s32.f32 %v1456
        %v3505 = vcvt.s32.f32 %v1457
        %v3506 = vcvt.s32.f32 %v1458
        %v3507 = vcvt.s32.f32 %v1459
        %v3508 = vcvt.s32.f32 %v1460
        %v3509 = vcvt.s32.f32 %v1461
        %v3510 = vcvt.s32.f32 %v1462
        %v3511 = vcvt.s32.f32 %v1463
        %v3512 = vcvt.s32.f32 %v1464
        %v3513 = vcvt.s32.f32 %v1465
        %v3514 = vcvt.s32.f32 %v1466
        %v3515 = vcvt.s32.f32 %v1467
        %v3516 = vcvt.s32.f32 %v1468
        %v3517 = vcvt.s32.f32 %v1469
        %v3518 = vcvt.s32.f32 %v1470
        %v3519 = vcvt.s32.f32 %v1471
        %v3520 = vcvt.s32.f32 %v1472
        %v3521 = vcvt.s32.f32 %v1473
        %v3522 = vcvt.s32.f32 %v1474
        %v3523 = vcvt.s32.f32 %v1475
        %v3524 = vcvt.s32.f32 %v1476
        %v3525 = vcvt.s32.f32 %v1477
        %v3526 = vcvt.s32.f32 %v1478
        %v3527 = vcvt.s32.f32 %v1479
        %v3528 = vcvt.s32.f32 %v1480
        %v3529 = vcvt.s32.f32 %v1481
        %v3530 = vcvt.s32.f32 %v1482
        %v3531 = vcvt.s32.f32 %v1483
        %v3532 = vcvt.s32.f32 %v1484
        %v3533 = vcvt.s32.f32 %v1485
        %v3534 = vcvt.s32.f32 %v1486
        %v3535 = vcvt.s32.f32 %v1487
        %v3536 = vcvt.s32.f32 %v1488
        %v3537 = vcvt.s32.f32 %v1489
        %v3538 = vcvt.s32.f32 %v1490
        %v3539 = vcvt.s32.f32 %v1491
        %v3540 = vcvt.s32.f32 %v1492
        %v3541 = vcvt.s32.f32 %v1493
        %v3542 = vcvt.s32.f32 %v1494
        %v3543 = vcvt.s32.f32 %v1495
        %v3544 = vcvt.s32.f32 %v1496
        %v3545 = vcvt.s32.f32 %v1497
        %v3546 = vcvt.s32.f32 %v1498
        %v3547 = vcvt.s32.f32 %v1499
        %v3548 = vcvt.s32.f32 %v1500
        %v3549 = vcvt.s32.f32 %v1501
        %v3550 = vcvt.s32.f32 %v1502
        %v3551 = vcvt.s32.f32 %v1503
        %v3552 = vcvt.s32.f32 %v1504
        %v3553 = vcvt.s32.f32 %v1505
        %v3554 = vcvt.s32.f32 %v1506
        %v3555 = vcvt.s32.f32 %v1507
        %v3556 = vcvt.s32.f32 %v1508
        %v3557 = vcvt.s32.f32 %v1509
        %v3558 = vcvt.s32.f32 %v1510
        %v3559 = vcvt.s32.f32 %v1511
        %v3560 = vcvt.s32.f32 %v1512
        %v3561 = vcvt.s32.f32 %v1513
        %v3562 = vcvt.s32.f32 %v1514
        %v3563 = vcvt.s32.f32 %v1515
        %v3564 = vcvt.s32.f32 %v1516
        %v3565 = vcvt.s32.f32 %v1517
        %v3566 = vcvt.s32.f32 %v1518
        %v3567 = vcvt.s32.f32 %v1519
        %v3568 = vcvt.s32.f32 %v1520
        %v3569 = vcvt.s32.f32 %v1521
        %v3570 = vcvt.s32.f32 %v1522
        %v3571 = vcvt.s32.f32 %v1523
        %v3572 = vcvt.s32.f32 %v1524
        %v3573 = vcvt.s32.f32 %v1525
        %v3574 = vcvt.s32.f32 %v1526
        %v3575 = vcvt.s32.f32 %v1527
        %v3576 = vcvt.s32.f32 %v1528
        %v3577 = vcvt.s32.f32 %v1529
        %v3578 = vcvt.s32.f32 %v1530
        %v3579 = vcvt.s32.f32 %v1531
        %v3580 = vcvt.s32.f32 %v1532
        %v3581 = vcvt.s32.f32 %v1533
        %v3582 = vcvt.s32.f32 %v1534
        %v3583 = vcvt.s32.f32 %v1535
        %v3584 = vcvt.s32.f32 %v1536
        %v3585 = vcvt.s32.f32 %v1537
        %v3586 = vcvt.s32.f32 %v1538
        %v3587 = vcvt.s32.f32 %v1539
        %v3588 = vcvt.s32.f32 %v1540
        %v3589 = vcvt.s32.f32 %v1541
        %v3590 = vcvt.s32.f32 %v1542
        %v3591 = vcvt.s32.f32 %v1543
        %v3592 = vcvt.s32.f32 %v1544
        %v3593 = vcvt.s32.f32 %v1545
        %v3594 = vcvt.s32.f32 %v1546
        %v3595 = vcvt.s32.f32 %v1547
        %v3596 = vcvt.s32.f32 %v1548
        %v3597 = vcvt.s32.f32 %v1549
        %v3598 = vcvt.s32.f32 %v1550
        %v3599 = vcvt.s32.f32 %v1551
        %v3600 = vcvt.s32.f32 %v1552
        %v3601 = vcvt.s32.f32 %v1553
        %v3602 = vcvt.s32.f32 %v1554
        %v3603 = vcvt.s32.f32 %v1555
        %v3604 = vcvt.s32.f32 %v1556
        %v3605 = vcvt.s32.f32 %v1557
        %v3606 = vcvt.s32.f32 %v1558
        %v3607 = vcvt.s32.f32 %v1559
        %v3608 = vcvt.s32.f32 %v1560
        %v3609 = vcvt.s32.f32 %v1561
        %v3610 = vcvt.s32.f32 %v1562
        %v3611 = vcvt.s32.f32 %v1563
        %v3612 = vcvt.s32.f32 %v1564
        %v3613 = vcvt.s32.f32 %v1565
        %v3614 = vcvt.s32.f32 %v1566
        %v3615 = vcvt.s32.f32 %v1567
        %v3616 = vcvt.s32.f32 %v1568
        %v3617 = vcvt.s32.f32 %v1569
        %v3618 = vcvt.s32.f32 %v1570
        %v3619 = vcvt.s32.f32 %v1571
        %v3620 = vcvt.s32.f32 %v1572
        %v3621 = vcvt.s32.f32 %v1573
        %v3622 = vcvt.s32.f32 %v1574
        %v3623 = vcvt.s32.f32 %v1575
        %v3624 = vcvt.s32.f32 %v1576
        %v3625 = vcvt.s32.f32 %v1577
        %v3626 = vcvt.s32.f32 %v1578
        %v3627 = vcvt.s32.f32 %v1579
        %v3628 = vcvt.s32.f32 %v1580
        %v3629 = vcvt.s32.f32 %v1581
        %v3630 = vcvt.s32.f32 %v1582
        %v3631 = vcvt.s32.f32 %v1583
        %v3632 = vcvt.s32.f32 %v1584
        %v3633 = vcvt.s32.f32 %v1585
        %v3634 = vcvt.s32.f32 %v1586
        %v3635 = vcvt.s32.f32 %v1587
        %v3636 = vcvt.s32.f32 %v1588
        %v3637 = vcvt.s32.f32 %v1589
        %v3638 = vcvt.s32.f32 %v1590
        %v3639 = vcvt.s32.f32 %v1591
        %v3640 = vcvt.s32.f32 %v1592
        %v3641 = vcvt.s32.f32 %v1593
        %v3642 = vcvt.s32.f32 %v1594
        %v3643 = vcvt.s32.f32 %v1595
        %v3644 = vcvt.s32.f32 %v1596
        %v3645 = vcvt.s32.f32 %v1597
        %v3646 = vcvt.s32.f32 %v1598
        %v3647 = vcvt.s32.f32 %v1599
        %v3648 = vcvt.s32.f32 %v1600
        %v3649 = vcvt.s32.f32 %v1601
        %v3650 = vcvt.s32.f32 %v1602
        %v3651 = vcvt.s32.f32 %v1603
        %v3652 = vcvt.s32.f32 %v1604
        %v3653 = vcvt.s32.f32 %v1605
        %v3654 = vcvt.s32.f32 %v1606
        %v3655 = vcvt.s32.f32 %v1607
        %v3656 = vcvt.s32.f32 %v1608
        %v3657 = vcvt.s32.f32 %v1609
        %v3658 = vcvt.s32.f32 %v1610
        %v3659 = vcvt.s32.f32 %v1611
        %v3660 = vcvt.s32.f32 %v1612
        %v3661 = vcvt.s32.f32 %v1613
        %v3662 = vcvt.s32.f32 %v1614
        %v3663 = vcvt.s32.f32 %v1615
        %v3664 = vcvt.s32.f32 %v1616
        %v3665 = vcvt.s32.f32 %v1617
        %v3666 = vcvt.s32.f32 %v1618
        %v3667 = vcvt.s32.f32 %v1619
        %v3668 = vcvt.s32.f32 %v1620
        %v3669 = vcvt.s32.f32 %v1621
        %v3670 = vcvt.s32.f32 %v1622
        %v3671 = vcvt.s32.f32 %v1623
        %v3672 = vcvt.s32.f32 %v1624
        %v3673 = vcvt.s32.f32 %v1625
        %v3674 = vcvt.s32.f32 %v1626
        %v3675 = vcvt.s32.f32 %v1627
        %v3676 = vcvt.s32.f32 %v1628
        %v3677 = vcvt.s32.f32 %v1629
        %v3678 = vcvt.s32.f32 %v1630
        %v3679 = vcvt.s32.f32 %v1631
        %v3680 = vcvt.s32.f32 %v1632
        %v3681 = vcvt.s32.f32 %v1633
        %v3682 = vcvt.s32.f32 %v1634
        %v3683 = vcvt.s32.f32 %v1635
        %v3684 = vcvt.s32.f32 %v1636
        %v3685 = vcvt.s32.f32 %v1637
        %v3686 = vcvt.s32.f32 %v1638
        %v3687 = vcvt.s32.f32 %v1639
        %v3688 = vcvt.s32.f32 %v1640
        %v3689 = vcvt.s32.f32 %v1641
        %v3690 = vcvt.s32.f32 %v1642
        %v3691 = vcvt.s32.f32 %v1643
        %v3692 = vcvt.s32.f32 %v1644
        %v3693 = vcvt.s32.f32 %v1645
        %v3694 = vcvt.s32.f32 %v1646
        %v3695 = vcvt.s32.f32 %v1647
        %v3696 = vcvt.s32.f32 %v1648
        %v3697 = vcvt.s32.f32 %v1649
        %v3698 = vcvt.s32.f32 %v1650
        %v3699 = vcvt.s32.f32 %v1651
        %v3700 = vcvt.s32.f32 %v1652
        %v3701 = vcvt.s32.f32 %v1653
        %v3702 = vcvt.s32.f32 %v1654
        %v3703 = vcvt.s32.f32 %v1655
        %v3704 = vcvt.s32.f32 %v1656
        %v3705 = vcvt.s32.f32 %v1657
        %v3706 = vcvt.s32.f32 %v1658
        %v3707 = vcvt.s32.f32 %v1659
        %v3708 = vcvt.s32.f32 %v1660
        %v3709 = vcvt.s32.f32 %v1661
        %v3710 = vcvt.s32.f32 %v1662
        %v3711 = vcvt.s32.f32 %v1663
        %v3712 = vcvt.s32.f32 %v1664
        %v3713 = vcvt.s32.f32 %v1665
        %v3714 = vcvt.s32.f32 %v1666
        %v3715 = vcvt.s32.f32 %v1667
        %v3716 = vcvt.s32.f32 %v1668
        %v3717 = vcvt.s32.f32 %v1669
        %v3718 = vcvt.s32.f32 %v1670
        %v3719 = vcvt.s32.f32 %v1671
        %v3720 = vcvt.s32.f32 %v1672
        %v3721 = vcvt.s32.f32 %v1673
        %v3722 = vcvt.s32.f32 %v1674
        %v3723 = vcvt.s32.f32 %v1675
        %v3724 = vcvt.s32.f32 %v1676
        %v3725 = vcvt.s32.f32 %v1677
        %v3726 = vcvt.s32.f32 %v1678
        %v3727 = vcvt.s32.f32 %v1679
        %v3728 = vcvt.s32.f32 %v1680
        %v3729 = vcvt.s32.f32 %v1681
        %v3730 = vcvt.s32.f32 %v1682
        %v3731 = vcvt.s32.f32 %v1683
        %v3732 = vcvt.s32.f32 %v1684
        %v3733 = vcvt.s32.f32 %v1685
        %v3734 = vcvt.s32.f32 %v1686
        %v3735 = vcvt.s32.f32 %v1687
        %v3736 = vcvt.s32.f32 %v1688
        %v3737 = vcvt.s32.f32 %v1689
        %v3738 = vcvt.s32.f32 %v1690
        %v3739 = vcvt.s32.f32 %v1691
        %v3740 = vcvt.s32.f32 %v1692
        %v3741 = vcvt.s32.f32 %v1693
        %v3742 = vcvt.s32.f32 %v1694
        %v3743 = vcvt.s32.f32 %v1695
        %v3744 = vcvt.s32.f32 %v1696
        %v3745 = vcvt.s32.f32 %v1697
        %v3746 = vcvt.s32.f32 %v1698
        %v3747 = vcvt.s32.f32 %v1699
        %v3748 = vcvt.s32.f32 %v1700
        %v3749 = vcvt.s32.f32 %v1701
        %v3750 = vcvt.s32.f32 %v1702
        %v3751 = vcvt.s32.f32 %v1703
        %v3752 = vcvt.s32.f32 %v1704
        %v3753 = vcvt.s32.f32 %v1705
        %v3754 = vcvt.s32.f32 %v1706
        %v3755 = vcvt.s32.f32 %v1707
        %v3756 = vcvt.s32.f32 %v1708
        %v3757 = vcvt.s32.f32 %v1709
        %v3758 = vcvt.s32.f32 %v1710
        %v3759 = vcvt.s32.f32 %v1711
        %v3760 = vcvt.s32.f32 %v1712
        %v3761 = vcvt.s32.f32 %v1713
        %v3762 = vcvt.s32.f32 %v1714
        %v3763 = vcvt.s32.f32 %v1715
        %v3764 = vcvt.s32.f32 %v1716
        %v3765 = vcvt.s32.f32 %v1717
        %v3766 = vcvt.s32.f32 %v1718
        %v3767 = vcvt.s32.f32 %v1719
        %v3768 = vcvt.s32.f32 %v1720
        %v3769 = vcvt.s32.f32 %v1721
        %v3770 = vcvt.s32.f32 %v1722
        %v3771 = vcvt.s32.f32 %v1723
        %v3772 = vcvt.s32.f32 %v1724
        %v3773 = vcvt.s32.f32 %v1725
        %v3774 = vcvt.s32.f32 %v1726
        %v3775 = vcvt.s32.f32 %v1727
        %v3776 = vcvt.s32.f32 %v1728
        %v3777 = vcvt.s32.f32 %v1729
        %v3778 = vcvt.s32.f32 %v1730
        %v3779 = vcvt.s32.f32 %v1731
        %v3780 = vcvt.s32.f32 %v1732
        %v3781 = vcvt.s32.f32 %v1733
        %v3782 = vcvt.s32.f32 %v1734
        %v3783 = vcvt.s32.f32 %v1735
        %v3784 = vcvt.s32.f32 %v1736
        %v3785 = vcvt.s32.f32 %v1737
        %v3786 = vcvt.s32.f32 %v1738
        %v3787 = vcvt.s32.f32 %v1739
        %v3788 = vcvt.s32.f32 %v1740
        %v3789 = vcvt.s32.f32 %v1741
        %v3790 = vcvt.s32.f32 %v1742
        %v3791 = vcvt.s32.f32 %v1743
        %v3792 = vcvt.s32.f32 %v1744
        %v3793 = vcvt.s32.f32 %v1745
        %v3794 = vcvt.s32.f32 %v1746
        %v3795 = vcvt.s32.f32 %v1747
        %v3796 = vcvt.s32.f32 %v1748
        %v3797 = vcvt.s32.f32 %v1749
        %v3798 = vcvt.s32.f32 %v1750
        %v3799 = vcvt.s32.f32 %v1751
        %v3800 = vcvt.s32.f32 %v1752
        %v3801 = vcvt.s32.f32 %v1753
        %v3802 = vcvt.s32.f32 %v1754
        %v3803 = vcvt.s32.f32 %v1755
        %v3804 = vcvt.s32.f32 %v1756
        %v3805 = vcvt.s32.f32 %v1757
        %v3806 = vcvt.s32.f32 %v1758
        %v3807 = vcvt.s32.f32 %v1759
        %v3808 = vcvt.s32.f32 %v1760
        %v3809 = vcvt.s32.f32 %v1761
        %v3810 = vcvt.s32.f32 %v1762
        %v3811 = vcvt.s32.f32 %v1763
        %v3812 = vcvt.s32.f32 %v1764
        %v3813 = vcvt.s32.f32 %v1765
        %v3814 = vcvt.s32.f32 %v1766
        %v3815 = vcvt.s32.f32 %v1767
        %v3816 = vcvt.s32.f32 %v1768
        %v3817 = vcvt.s32.f32 %v1769
        %v3818 = vcvt.s32.f32 %v1770
        %v3819 = vcvt.s32.f32 %v1771
        %v3820 = vcvt.s32.f32 %v1772
        %v3821 = vcvt.s32.f32 %v1773
        %v3822 = vcvt.s32.f32 %v1774
        %v3823 = vcvt.s32.f32 %v1775
        %v3824 = vcvt.s32.f32 %v1776
        %v3825 = vcvt.s32.f32 %v1777
        %v3826 = vcvt.s32.f32 %v1778
        %v3827 = vcvt.s32.f32 %v1779
        %v3828 = vcvt.s32.f32 %v1780
        %v3829 = vcvt.s32.f32 %v1781
        %v3830 = vcvt.s32.f32 %v1782
        %v3831 = vcvt.s32.f32 %v1783
        %v3832 = vcvt.s32.f32 %v1784
        %v3833 = vcvt.s32.f32 %v1785
        %v3834 = vcvt.s32.f32 %v1786
        %v3835 = vcvt.s32.f32 %v1787
        %v3836 = vcvt.s32.f32 %v1788
        %v3837 = vcvt.s32.f32 %v1789
        %v3838 = vcvt.s32.f32 %v1790
        %v3839 = vcvt.s32.f32 %v1791
        %v3840 = vcvt.s32.f32 %v1792
        %v3841 = vcvt.s32.f32 %v1793
        %v3842 = vcvt.s32.f32 %v1794
        %v3843 = vcvt.s32.f32 %v1795
        %v3844 = vcvt.s32.f32 %v1796
        %v3845 = vcvt.s32.f32 %v1797
        %v3846 = vcvt.s32.f32 %v1798
        %v3847 = vcvt.s32.f32 %v1799
        %v3848 = vcvt.s32.f32 %v1800
        %v3849 = vcvt.s32.f32 %v1801
        %v3850 = vcvt.s32.f32 %v1802
        %v3851 = vcvt.s32.f32 %v1803
        %v3852 = vcvt.s32.f32 %v1804
        %v3853 = vcvt.s32.f32 %v1805
        %v3854 = vcvt.s32.f32 %v1806
        %v3855 = vcvt.s32.f32 %v1807
        %v3856 = vcvt.s32.f32 %v1808
        %v3857 = vcvt.s32.f32 %v1809
        %v3858 = vcvt.s32.f32 %v1810
        %v3859 = vcvt.s32.f32 %v1811
        %v3860 = vcvt.s32.f32 %v1812
        %v3861 = vcvt.s32.f32 %v1813
        %v3862 = vcvt.s32.f32 %v1814
        %v3863 = vcvt.s32.f32 %v1815
        %v3864 = vcvt.s32.f32 %v1816
        %v3865 = vcvt.s32.f32 %v1817
        %v3866 = vcvt.s32.f32 %v1818
        %v3867 = vcvt.s32.f32 %v1819
        %v3868 = vcvt.s32.f32 %v1820
        %v3869 = vcvt.s32.f32 %v1821
        %v3870 = vcvt.s32.f32 %v1822
        %v3871 = vcvt.s32.f32 %v1823
        %v3872 = vcvt.s32.f32 %v1824
        %v3873 = vcvt.s32.f32 %v1825
        %v3874 = vcvt.s32.f32 %v1826
        %v3875 = vcvt.s32.f32 %v1827
        %v3876 = vcvt.s32.f32 %v1828
        %v3877 = vcvt.s32.f32 %v1829
        %v3878 = vcvt.s32.f32 %v1830
        %v3879 = vcvt.s32.f32 %v1831
        %v3880 = vcvt.s32.f32 %v1832
        %v3881 = vcvt.s32.f32 %v1833
        %v3882 = vcvt.s32.f32 %v1834
        %v3883 = vcvt.s32.f32 %v1835
        %v3884 = vcvt.s32.f32 %v1836
        %v3885 = vcvt.s32.f32 %v1837
        %v3886 = vcvt.s32.f32 %v1838
        %v3887 = vcvt.s32.f32 %v1839
        %v3888 = vcvt.s32.f32 %v1840
        %v3889 = vcvt.s32.f32 %v1841
        %v3890 = vcvt.s32.f32 %v1842
        %v3891 = vcvt.s32.f32 %v1843
        %v3892 = vcvt.s32.f32 %v1844
        %v3893 = vcvt.s32.f32 %v1845
        %v3894 = vcvt.s32.f32 %v1846
        %v3895 = vcvt.s32.f32 %v1847
        %v3896 = vcvt.s32.f32 %v1848
        %v3897 = vcvt.s32.f32 %v1849
        %v3898 = vcvt.s32.f32 %v1850
        %v3899 = vcvt.s32.f32 %v1851
        %v3900 = vcvt.s32.f32 %v1852
        %v3901 = vcvt.s32.f32 %v1853
        %v3902 = vcvt.s32.f32 %v1854
        %v3903 = vcvt.s32.f32 %v1855
        %v3904 = vcvt.s32.f32 %v1856
        %v3905 = vcvt.s32.f32 %v1857
        %v3906 = vcvt.s32.f32 %v1858
        %v3907 = vcvt.s32.f32 %v1859
        %v3908 = vcvt.s32.f32 %v1860
        %v3909 = vcvt.s32.f32 %v1861
        %v3910 = vcvt.s32.f32 %v1862
        %v3911 = vcvt.s32.f32 %v1863
        %v3912 = vcvt.s32.f32 %v1864
        %v3913 = vcvt.s32.f32 %v1865
        %v3914 = vcvt.s32.f32 %v1866
        %v3915 = vcvt.s32.f32 %v1867
        %v3916 = vcvt.s32.f32 %v1868
        %v3917 = vcvt.s32.f32 %v1869
        %v3918 = vcvt.s32.f32 %v1870
        %v3919 = vcvt.s32.f32 %v1871
        %v3920 = vcvt.s32.f32 %v1872
        %v3921 = vcvt.s32.f32 %v1873
        %v3922 = vcvt.s32.f32 %v1874
        %v3923 = vcvt.s32.f32 %v1875
        %v3924 = vcvt.s32.f32 %v1876
        %v3925 = vcvt.s32.f32 %v1877
        %v3926 = vcvt.s32.f32 %v1878
        %v3927 = vcvt.s32.f32 %v1879
        %v3928 = vcvt.s32.f32 %v1880
        %v3929 = vcvt.s32.f32 %v1881
        %v3930 = vcvt.s32.f32 %v1882
        %v3931 = vcvt.s32.f32 %v1883
        %v3932 = vcvt.s32.f32 %v1884
        %v3933 = vcvt.s32.f32 %v1885
        %v3934 = vcvt.s32.f32 %v1886
        %v3935 = vcvt.s32.f32 %v1887
        %v3936 = vcvt.s32.f32 %v1888
        %v3937 = vcvt.s32.f32 %v1889
        %v3938 = vcvt.s32.f32 %v1890
        %v3939 = vcvt.s32.f32 %v1891
        %v3940 = vcvt.s32.f32 %v1892
        %v3941 = vcvt.s32.f32 %v1893
        %v3942 = vcvt.s32.f32 %v1894
        %v3943 = vcvt.s32.f32 %v1895
        %v3944 = vcvt.s32.f32 %v1896
        %v3945 = vcvt.s32.f32 %v1897
        %v3946 = vcvt.s32.f32 %v1898
        %v3947 = vcvt.s32.f32 %v1899
        %v3948 = vcvt.s32.f32 %v1900
        %v3949 = vcvt.s32.f32 %v1901
        %v3950 = vcvt.s32.f32 %v1902
        %v3951 = vcvt.s32.f32 %v1903
        %v3952 = vcvt.s32.f32 %v1904
        %v3953 = vcvt.s32.f32 %v1905
        %v3954 = vcvt.s32.f32 %v1906
        %v3955 = vcvt.s32.f32 %v1907
        %v3956 = vcvt.s32.f32 %v1908
        %v3957 = vcvt.s32.f32 %v1909
        %v3958 = vcvt.s32.f32 %v1910
        %v3959 = vcvt.s32.f32 %v1911
        %v3960 = vcvt.s32.f32 %v1912
        %v3961 = vcvt.s32.f32 %v1913
        %v3962 = vcvt.s32.f32 %v1914
        %v3963 = vcvt.s32.f32 %v1915
        %v3964 = vcvt.s32.f32 %v1916
        %v3965 = vcvt.s32.f32 %v1917
        %v3966 = vcvt.s32.f32 %v1918
        %v3967 = vcvt.s32.f32 %v1919
        %v3968 = vcvt.s32.f32 %v1920
        %v3969 = vcvt.s32.f32 %v1921
        %v3970 = vcvt.s32.f32 %v1922
        %v3971 = vcvt.s32.f32 %v1923
        %v3972 = vcvt.s32.f32 %v1924
        %v3973 = vcvt.s32.f32 %v1925
        %v3974 = vcvt.s32.f32 %v1926
        %v3975 = vcvt.s32.f32 %v1927
        %v3976 = vcvt.s32.f32 %v1928
        %v3977 = vcvt.s32.f32 %v1929
        %v3978 = vcvt.s32.f32 %v1930
        %v3979 = vcvt.s32.f32 %v1931
        %v3980 = vcvt.s32.f32 %v1932
        %v3981 = vcvt.s32.f32 %v1933
        %v3982 = vcvt.s32.f32 %v1934
        %v3983 = vcvt.s32.f32 %v1935
        %v3984 = vcvt.s32.f32 %v1936
        %v3985 = vcvt.s32.f32 %v1937
        %v3986 = vcvt.s32.f32 %v1938
        %v3987 = vcvt.s32.f32 %v1939
        %v3988 = vcvt.s32.f32 %v1940
        %v3989 = vcvt.s32.f32 %v1941
        %v3990 = vcvt.s32.f32 %v1942
        %v3991 = vcvt.s32.f32 %v1943
        %v3992 = vcvt.s32.f32 %v1944
        %v3993 = vcvt.s32.f32 %v1945
        %v3994 = vcvt.s32.f32 %v1946
        %v3995 = vcvt.s32.f32 %v1947
        %v3996 = vcvt.s32.f32 %v1948
        %v3997 = vcvt.s32.f32 %v1949
        %v3998 = vcvt.s32.f32 %v1950
        %v3999 = vcvt.s32.f32 %v1951
        %v4000 = vcvt.s32.f32 %v1952
        %v4001 = vcvt.s32.f32 %v1953
        %v4002 = vcvt.s32.f32 %v1954
        %v4003 = vcvt.s32.f32 %v1955
        %v4004 = vcvt.s32.f32 %v1956
        %v4005 = vcvt.s32.f32 %v1957
        %v4006 = vcvt.s32.f32 %v1958
        %v4007 = vcvt.s32.f32 %v1959
        %v4008 = vcvt.s32.f32 %v1960
        %v4009 = vcvt.s32.f32 %v1961
        %v4010 = vcvt.s32.f32 %v1962
        %v4011 = vcvt.s32.f32 %v1963
        %v4012 = vcvt.s32.f32 %v1964
        %v4013 = vcvt.s32.f32 %v1965
        %v4014 = vcvt.s32.f32 %v1966
        %v4015 = vcvt.s32.f32 %v1967
        %v4016 = vcvt.s32.f32 %v1968
        %v4017 = vcvt.s32.f32 %v1969
        %v4018 = vcvt.s32.f32 %v1970
        %v4019 = vcvt.s32.f32 %v1971
        %v4020 = vcvt.s32.f32 %v1972
        %v4021 = vcvt.s32.f32 %v1973
        %v4022 = vcvt.s32.f32 %v1974
        %v4023 = vcvt.s32.f32 %v1975
        %v4024 = vcvt.s32.f32 %v1976
        %v4025 = vcvt.s32.f32 %v1977
        %v4026 = vcvt.s32.f32 %v1978
        %v4027 = vcvt.s32.f32 %v1979
        %v4028 = vcvt.s32.f32 %v1980
        %v4029 = vcvt.s32.f32 %v1981
        %v4030 = vcvt.s32.f32 %v1982
        %v4031 = vcvt.s32.f32 %v1983
        %v4032 = vcvt.s32.f32 %v1984
        %v4033 = vcvt.s32.f32 %v1985
        %v4034 = vcvt.s32.f32 %v1986
        %v4035 = vcvt.s32.f32 %v1987
        %v4036 = vcvt.s32.f32 %v1988
        %v4037 = vcvt.s32.f32 %v1989
        %v4038 = vcvt.s32.f32 %v1990
        %v4039 = vcvt.s32.f32 %v1991
        %v4040 = vcvt.s32.f32 %v1992
        %v4041 = vcvt.s32.f32 %v1993
        %v4042 = vcvt.s32.f32 %v1994
        %v4043 = vcvt.s32.f32 %v1995
        %v4044 = vcvt.s32.f32 %v1996
        %v4045 = vcvt.s32.f32 %v1997
        %v4046 = vcvt.s32.f32 %v1998
        %v4047 = vcvt.s32.f32 %v1999
        %v4048 = vcvt.s32.f32 %v2000
        %v4049 = vcvt.s32.f32 %v2001
        %v4050 = vcvt.s32.f32 %v2002
        %v4051 = vcvt.s32.f32 %v2003
        %v4052 = vcvt.s32.f32 %v2004
        %v4053 = vcvt.s32.f32 %v2005
        %v4054 = vcvt.s32.f32 %v2006
        %v4055 = vcvt.s32.f32 %v2007
        %v4056 = vcvt.s32.f32 %v2008
        %v4057 = vcvt.s32.f32 %v2009
        %v4058 = vcvt.s32.f32 %v2010
        %v4059 = vcvt.s32.f32 %v2011
        %v4060 = vcvt.s32.f32 %v2012
        %v4061 = vcvt.s32.f32 %v2013
        %v4062 = vcvt.s32.f32 %v2014
        %v4063 = vcvt.s32.f32 %v2015
        %v4064 = vcvt.s32.f32 %v2016
        %v4065 = vcvt.s32.f32 %v2017
        %v4066 = vcvt.s32.f32 %v2018
        %v4067 = vcvt.s32.f32 %v2019
        %v4068 = vcvt.s32.f32 %v2020
        %v4069 = vcvt.s32.f32 %v2021
        %v4070 = vcvt.s32.f32 %v2022
        %v4071 = vcvt.s32.f32 %v2023
        %v4072 = vcvt.s32.f32 %v2024
        %v4073 = vcvt.s32.f32 %v2025
        %v4074 = vcvt.s32.f32 %v2026
        %v4075 = vcvt.s32.f32 %v2027
        %v4076 = vcvt.s32.f32 %v2028
        %v4077 = vcvt.s32.f32 %v2029
        %v4078 = vcvt.s32.f32 %v2030
        %v4079 = vcvt.s32.f32 %v2031
        %v4080 = vcvt.s32.f32 %v2032
        %v4081 = vcvt.s32.f32 %v2033
        %v4082 = vcvt.s32.f32 %v2034
        %v4083 = vcvt.s32.f32 %v2035
        %v4084 = vcvt.s32.f32 %v2036
        %v4085 = vcvt.s32.f32 %v2037
        %v4086 = vcvt.s32.f32 %v2038
        %v4087 = vcvt.s32.f32 %v2039
        %v4088 = vcvt.s32.f32 %v2040
        %v4089 = vcvt.s32.f32 %v2041
        %v4090 = vcvt.s32.f32 %v2042
        %v4091 = vcvt.s32.f32 %v2043
        %v4092 = vcvt.s32.f32 %v2044
        %v4093 = vcvt.s32.f32 %v2045
        %v4094 = vcvt.s32.f32 %v2046
        %v4095 = vcvt.s32.f32 %v2047
        %v4096 = vcvt.s32.f32 %v2048
        %v4097 = vcvt.s32.f32 %v2049
        %v4098 = vcvt.s32.f32 %v2050
        %v4099 = vcvt.s32.f32 %v2051
        %v4100 = vcvt.s32.f32 %v2052
        %v4101 = vcvt.s32.f32 %v2053
        %v4102 = vcvt.s32.f32 %v2054
        %v4103 = vcvt.s32.f32 %v2055
        %v4104 = vcvt.s32.f32 %v2056
        %v4105 = vcvt.s32.f32 %v2057
        %v4106 = vcvt.s32.f32 %v2058
        %v4107 = vcvt.s32.f32 %v2059
        %v4108 = vcvt.s32.f32 %v2060
        %v4109 = vcvt.s32.f32 %v2061
        %v4110 = vcvt.s32.f32 %v2062
        %v4111 = vcvt.s32.f32 %v2063
        %v4112 = vcvt.s32.f32 %v2064
        %v4113 = vcvt.s32.f32 %v2065
        %v4114 = vcvt.s32.f32 %v2066
        %v4115 = vcvt.s32.f32 %v2067
        %v4116 = vcvt.s32.f32 %v2068
        %v4117 = vcvt.s32.f32 %v2069
        %v4118 = vcvt.s32.f32 %v2070
        %v4119 = vcvt.s32.f32 %v2071
        %v4120 = vcvt.s32.f32 %v2072
        %v4121 = vcvt.s32.f32 %v2073
        %v4122 = vcvt.s32.f32 %v2074
        %v4123 = vcvt.s32.f32 %v2075
        %v4124 = vcvt.s32.f32 %v2076
        %v4125 = vcvt.s32.f32 %v2077
        %v4126 = vcvt.s32.f32 %v2078
        %v4127 = vcvt.s32.f32 %v2079
        %v4128 = vcvt.s32.f32 %v2080
        %v4129 = vcvt.s32.f32 %v2081
        %v4130 = vcvt.s32.f32 %v2082
        %v4131 = vcvt.s32.f32 %v2083
        %v4132 = vcvt.s32.f32 %v2084
        %v4133 = vcvt.s32.f32 %v2085
        %v4134 = vcvt.s32.f32 %v2086
        %v4135 = vcvt.s32.f32 %v2087
        %v4136 = vcvt.s32.f32 %v2088
        %v4137 = vcvt.s32.f32 %v2089
        %v4138 = vcvt.s32.f32 %v2090
        %v4139 = vcvt.s32.f32 %v2091
        %v4140 = vcvt.s32.f32 %v2092
        %v4141 = vcvt.s32.f32 %v2093
        %v4142 = vcvt.s32.f32 %v2094
        %v4143 = vcvt.s32.f32 %v2095
        %v4144 = vcvt.s32.f32 %v2096
        %v4145 = vcvt.s32.f32 %v2097
        %v4146 = vcvt.s32.f32 %v2098
        %v4147 = vcvt.s32.f32 %v2099
        %v4148 = vcvt.s32.f32 %v2100
        %v4149 = vcvt.s32.f32 %v2101
        %v4150 = vcvt.s32.f32 %v2102
        %v4151 = vcvt.s32.f32 %v2103
        %v4152 = vcvt.s32.f32 %v2104
        %v4153 = vcvt.s32.f32 %v2105
        %v4154 = vcvt.s32.f32 %v2106
        %v4155 = vcvt.s32.f32 %v2107
        %v4156 = vcvt.s32.f32 %v2108
        %v4157 = vcvt.s32.f32 %v2109
        %v4158 = vcvt.s32.f32 %v2110
        %v4159 = vcvt.s32.f32 %v2111
        %v4160 = vcvt.s32.f32 %v2112
        %v4161 = vcvt.s32.f32 %v2113
        %v4162 = vcvt.s32.f32 %v2114
        %v4163 = vcvt.s32.f32 %v2115
        %v4164 = vcvt.s32.f32 %v2116
        %v4165 = vcvt.s32.f32 %v2117
        %v4166 = vcvt.s32.f32 %v2118
        %v4167 = vcvt.s32.f32 %v2119
        %v4168 = vcvt.s32.f32 %v2120
        %v4169 = vcvt.s32.f32 %v2121
        %v4170 = vcvt.s32.f32 %v2122
        %v4171 = vcvt.s32.f32 %v2123
        %v4172 = vcvt.s32.f32 %v2124
        %v4173 = vcvt.s32.f32 %v2125
        %v4174 = vcvt.s32.f32 %v2126
        %v4175 = vcvt.s32.f32 %v2127
        %v4176 = vcvt.s32.f32 %v2128
        %v4177 = vcvt.s32.f32 %v2129
        %v4178 = vcvt.s32.f32 %v2130
        %v4179 = vcvt.s32.f32 %v2131
        %v4180 = vcvt.s32.f32 %v2132
        %v4181 = vcvt.s32.f32 %v2133
        %v4182 = vcvt.s32.f32 %v2134
        %v4183 = vcvt.s32.f32 %v2135
        %v4184 = vcvt.s32.f32 %v2136
        %v4185 = vcvt.s32.f32 %v2137
        %v4186 = vcvt.s32.f32 %v2138
        %v4187 = vcvt.s32.f32 %v2139
        %v4188 = vcvt.s32.f32 %v2140
        %v4189 = vcvt.s32.f32 %v2141
        %v4190 = vcvt.s32.f32 %v2142
        %v4191 = vcvt.s32.f32 %v2143
        %v4192 = vcvt.s32.f32 %v2144
        %v4193 = vcvt.s32.f32 %v2145
        %v4194 = vcvt.s32.f32 %v2146
        %v4195 = vcvt.s32.f32 %v2147
        %v4196 = vcvt.s32.f32 %v2148
        %v4197 = vcvt.s32.f32 %v2149
        %v4198 = vcvt.s32.f32 %v2150
        %v4199 = vcvt.s32.f32 %v2151
        %v4200 = vcvt.s32.f32 %v2152
        %v4201 = vcvt.s32.f32 %v2153
        %v4202 = vcvt.s32.f32 %v2154
        %v4203 = vcvt.s32.f32 %v2155
        %v4204 = vcvt.s32.f32 %v2156
        %v4205 = vcvt.s32.f32 %v2157
        %v4206 = vcvt.s32.f32 %v2158
        %v4207 = vcvt.s32.f32 %v2159
        %v4208 = vcvt.s32.f32 %v2160
        %v4209 = vcvt.s32.f32 %v2161
        %v4210 = vcvt.s32.f32 %v2162
        %v4211 = vcvt.s32.f32 %v2163
        %v4212 = vcvt.s32.f32 %v2164
        %v4213 = vcvt.s32.f32 %v2165
        %v4214 = vcvt.s32.f32 %v2166
        %v4215 = vcvt.s32.f32 %v2167
        %v4216 = vcvt.s32.f32 %v2168
        %v4217 = vcvt.s32.f32 %v2169
        %v4218 = vcvt.s32.f32 %v2170
        %v4219 = vcvt.s32.f32 %v2171
        %v4220 = vcvt.s32.f32 %v2172
        %v4221 = vcvt.s32.f32 %v2173
        %v4222 = vcvt.s32.f32 %v2174
        %v4223 = vcvt.s32.f32 %v2175
        %v4224 = vcvt.s32.f32 %v2176
        %v4225 = vcvt.s32.f32 %v2177
        %v4226 = vcvt.s32.f32 %v2178
        %v4227 = vcvt.s32.f32 %v2179
        %v4228 = vcvt.s32.f32 %v2180
        %v4229 = vcvt.s32.f32 %v2181
        %v4230 = vcvt.s32.f32 %v2182
        %v4231 = vcvt.s32.f32 %v2183
        %v4232 = vcvt.s32.f32 %v2184
        %v4233 = vcvt.s32.f32 %v2185
        %v4234 = vcvt.s32.f32 %v2186
        %v4235 = vcvt.s32.f32 %v2187
        %v4236 = vcvt.s32.f32 %v2188
        %v4237 = vcvt.s32.f32 %v2189
        %v4238 = vcvt.s32.f32 %v2190
        %v4239 = vcvt.s32.f32 %v2191
        %v4240 = vcvt.s32.f32 %v2192
        %v4241 = vcvt.s32.f32 %v2193
        %v4242 = vcvt.s32.f32 %v2194
        %v4243 = vcvt.s32.f32 %v2195
        %v4244 = vcvt.s32.f32 %v2196
        %v4245 = vcvt.s32.f32 %v2197
        %v4246 = vcvt.s32.f32 %v2198
        %v4247 = vcvt.s32.f32 %v2199
        %v4248 = vcvt.s32.f32 %v2200
        %v4249 = vcvt.s32.f32 %v2201
        %v4250 = vcvt.s32.f32 %v2202
        %v4251 = vcvt.s32.f32 %v2203
        %v4252 = vcvt.s32.f32 %v2204
        %v4253 = vcvt.s32.f32 %v2205
        %v4254 = vcvt.s32.f32 %v2206
        %v4255 = vcvt.s32.f32 %v2207
        %v4256 = vcvt.s32.f32 %v2208
        %v4257 = vcvt.s32.f32 %v2209
        %v4258 = vcvt.s32.f32 %v2210
        %v4259 = vcvt.s32.f32 %v2211
        %v4260 = vcvt.s32.f32 %v2212
        %v4261 = vcvt.s32.f32 %v2213
        %v4262 = vcvt.s32.f32 %v2214
        %v4263 = vcvt.s32.f32 %v2215
        %v4264 = vcvt.s32.f32 %v2216
        %v4265 = vcvt.s32.f32 %v2217
        %v4266 = vcvt.s32.f32 %v2218
        %v4267 = vcvt.s32.f32 %v2219
        %v4268 = vcvt.s32.f32 %v2220
        %v4269 = vcvt.s32.f32 %v2221
        %v4270 = vcvt.s32.f32 %v2222
        %v4271 = vcvt.s32.f32 %v2223
        %v4272 = vcvt.s32.f32 %v2224
        %v4273 = vcvt.s32.f32 %v2225
        %v4274 = vcvt.s32.f32 %v2226
        %v4275 = vcvt.s32.f32 %v2227
        %v4276 = vcvt.s32.f32 %v2228
        %v4277 = vcvt.s32.f32 %v2229
        %v4278 = vcvt.s32.f32 %v2230
        %v4279 = vcvt.s32.f32 %v2231
        %v4280 = vcvt.s32.f32 %v2232
        %v4281 = vcvt.s32.f32 %v2233
        %v4282 = vcvt.s32.f32 %v2234
        %v4283 = vcvt.s32.f32 %v2235
        %v4284 = vcvt.s32.f32 %v2236
        %v4285 = vcvt.s32.f32 %v2237
        %v4286 = vcvt.s32.f32 %v2238
        %v4287 = vcvt.s32.f32 %v2239
        %v4288 = vcvt.s32.f32 %v2240
        %v4289 = vcvt.s32.f32 %v2241
        %v4290 = vcvt.s32.f32 %v2242
        %v4291 = vcvt.s32.f32 %v2243
        %v4292 = vcvt.s32.f32 %v2244
        %v4293 = vcvt.s32.f32 %v2245
        %v4294 = vcvt.s32.f32 %v2246
        %v4295 = vcvt.s32.f32 %v2247
        %v4296 = vcvt.s32.f32 %v2248
        %v4297 = vcvt.s32.f32 %v2249
        %v4298 = vcvt.s32.f32 %v2250
        %v4299 = vcvt.s32.f32 %v2251
        %v4300 = vcvt.s32.f32 %v2252
        %v4301 = vcvt.s32.f32 %v2253
        %v4302 = vcvt.s32.f32 %v2254
        %v4303 = vcvt.s32.f32 %v2255
        %v4304 = vcvt.s32.f32 %v2256
        %v4305 = vcvt.s32.f32 %v2257
        %v4306 = vcvt.s32.f32 %v2258
        %v4307 = vcvt.s32.f32 %v2259
        %v4308 = vcvt.s32.f32 %v2260
        %v4309 = vcvt.s32.f32 %v2261
        %v4310 = vcvt.s32.f32 %v2262
        %v4311 = vcvt.s32.f32 %v2263
        %v4312 = vcvt.s32.f32 %v2264
        %v4313 = vcvt.s32.f32 %v2265
        %v4314 = vcvt.s32.f32 %v2266
        %v4315 = vcvt.s32.f32 %v2267
        %v4316 = vcvt.s32.f32 %v2268
        %v4317 = vcvt.s32.f32 %v2269
        %v4318 = vcvt.s32.f32 %v2270
        %v4319 = vcvt.s32.f32 %v2271
        %v4320 = vcvt.s32.f32 %v2272
        %v4321 = vcvt.s32.f32 %v2273
        %v4322 = vcvt.s32.f32 %v2274
        %v4323 = vcvt.s32.f32 %v2275
        %v4324 = vcvt.s32.f32 %v2276
        %v4325 = vcvt.s32.f32 %v2277
        %v4326 = vcvt.s32.f32 %v2278
        %v4327 = vcvt.s32.f32 %v2279
        %v4328 = vcvt.s32.f32 %v2280
        %v4329 = vcvt.s32.f32 %v2281
        %v4330 = vcvt.s32.f32 %v2282
        %v4331 = vcvt.s32.f32 %v2283
        %v4332 = vcvt.s32.f32 %v2284
        %v4333 = vcvt.s32.f32 %v2285
        %v4334 = vcvt.s32.f32 %v2286
        %v4335 = vcvt.s32.f32 %v2287
        %v4336 = vcvt.s32.f32 %v2288
        %v4337 = vcvt.s32.f32 %v2289
        %v4338 = vcvt.s32.f32 %v2290
        %v4339 = vcvt.s32.f32 %v2291
        %v4340 = vcvt.s32.f32 %v2292
        %v4341 = vcvt.s32.f32 %v2293
        %v4342 = vcvt.s32.f32 %v2294
        %v4343 = vcvt.s32.f32 %v2295
        %v4344 = vcvt.s32.f32 %v2296
        %v4345 = vcvt.s32.f32 %v2297
        %v4346 = vcvt.s32.f32 %v2298
        %v4347 = vcvt.s32.f32 %v2299
        %v4348 = vcvt.s32.f32 %v2300
        %v4349 = vcvt.s32.f32 %v2301
        %v4350 = vcvt.s32.f32 %v2302
        %v4351 = vcvt.s32.f32 %v2303
        %v4352 = vcvt.s32.f32 %v2304
        %v4353 = vcvt.s32.f32 %v2305
        %v4354 = vcvt.s32.f32 %v2306
        %v4355 = vcvt.s32.f32 %v2307
        %v4356 = vcvt.s32.f32 %v2308
        %v4357 = vcvt.s32.f32 %v2309
        %v4358 = vcvt.s32.f32 %v2310
        %v4359 = vcvt.s32.f32 %v2311
        %v4360 = vcvt.s32.f32 %v2312
        %v4361 = vcvt.s32.f32 %v2313
        %v4362 = vcvt.s32.f32 %v2314
        %v4363 = vcvt.s32.f32 %v2315
        %v4364 = vcvt.s32.f32 %v2316
        %v4365 = vcvt.s32.f32 %v2317
        %v4366 = vcvt.s32.f32 %v2318
        %v4367 = vcvt.s32.f32 %v2319
        %v4368 = vcvt.s32.f32 %v2320
        %v4369 = vcvt.s32.f32 %v2321
        %v4370 = vcvt.s32.f32 %v2322
        %v4371 = vcvt.s32.f32 %v2323
        %v4372 = vcvt.s32.f32 %v2324
        %v4373 = vcvt.s32.f32 %v2325
        %v4374 = vcvt.s32.f32 %v2326
        %v4375 = vcvt.s32.f32 %v2327
        %v4376 = vcvt.s32.f32 %v2328
        %v4377 = vcvt.s32.f32 %v2329
        %v4378 = vcvt.s32.f32 %v2330
        %v4379 = vcvt.s32.f32 %v2331
        %v4380 = vcvt.s32.f32 %v2332
        %v4381 = vcvt.s32.f32 %v2333
        %v4382 = vcvt.s32.f32 %v2334
        %v4383 = vcvt.s32.f32 %v2335
        %v4384 = vcvt.s32.f32 %v2336
        %v4385 = vcvt.s32.f32 %v2337
        %v4386 = vcvt.s32.f32 %v2338
        %v4387 = vcvt.s32.f32 %v2339
        %v4388 = vcvt.s32.f32 %v2340
        %v4389 = vcvt.s32.f32 %v2341
        %v4390 = vcvt.s32.f32 %v2342
        %v4391 = vcvt.s32.f32 %v2343
        %v4392 = vcvt.s32.f32 %v2344
        %v4393 = vcvt.s32.f32 %v2345
        %v4394 = vcvt.s32.f32 %v2346
        %v4395 = vcvt.s32.f32 %v2347
        %v4396 = vcvt.s32.f32 %v2348
        %v4397 = vcvt.s32.f32 %v2349
        %v4398 = vcvt.s32.f32 %v2350
        %v4399 = vcvt.s32.f32 %v2351
        %v4400 = vcvt.s32.f32 %v2352
        %v4401 = vcvt.s32.f32 %v2353
        %v4402 = vcvt.s32.f32 %v2354
        %v4403 = vcvt.s32.f32 %v2355
        %v4404 = vcvt.s32.f32 %v2356
        %v4405 = vcvt.s32.f32 %v2357
        %v4406 = vcvt.s32.f32 %v2358
        %v4407 = vcvt.s32.f32 %v2359
        %v4408 = vcvt.s32.f32 %v2360
        %v4409 = vcvt.s32.f32 %v2361
        %v4410 = vcvt.s32.f32 %v2362
        %v4411 = vcvt.s32.f32 %v2363
        %v4412 = vcvt.s32.f32 %v2364
        %v4413 = vcvt.s32.f32 %v2365
        %v4414 = vcvt.s32.f32 %v2366
        %v4415 = vcvt.s32.f32 %v2367
        %v4416 = vcvt.s32.f32 %v2368
        %v4417 = vcvt.s32.f32 %v2369
        %v4418 = vcvt.s32.f32 %v2370
        %v4419 = vcvt.s32.f32 %v2371
        %v4420 = vcvt.s32.f32 %v2372
        %v4421 = vcvt.s32.f32 %v2373
        %v4422 = vcvt.s32.f32 %v2374
        %v4423 = vcvt.s32.f32 %v2375
        %v4424 = vcvt.s32.f32 %v2376
        %v4425 = vcvt.s32.f32 %v2377
        %v4426 = vcvt.s32.f32 %v2378
        %v4427 = vcvt.s32.f32 %v2379
        %v4428 = vcvt.s32.f32 %v2380
        %v4429 = vcvt.s32.f32 %v2381
        %v4430 = vcvt.s32.f32 %v2382
        %v4431 = vcvt.s32.f32 %v2383
        %v4432 = vcvt.s32.f32 %v2384
        %v4433 = vcvt.s32.f32 %v2385
        %v4434 = vcvt.s32.f32 %v2386
        %v4435 = vcvt.s32.f32 %v2387
        %v4436 = vcvt.s32.f32 %v2388
        %v4437 = vcvt.s32.f32 %v2389
        %v4438 = vcvt.s32.f32 %v2390
        %v4439 = vcvt.s32.f32 %v2391
        %v4440 = vcvt.s32.f32 %v2392
        %v4441 = vcvt.s32.f32 %v2393
        %v4442 = vcvt.s32.f32 %v2394
        %v4443 = vcvt.s32.f32 %v2395
        %v4444 = vcvt.s32.f32 %v2396
        %v4445 = vcvt.s32.f32 %v2397
        %v4446 = vcvt.s32.f32 %v2398
        %v4447 = vcvt.s32.f32 %v2399
        %v4448 = vcvt.s32.f32 %v2400
        %v4449 = vcvt.s32.f32 %v2401
        %v4450 = vcvt.s32.f32 %v2402
        %v4451 = vcvt.s32.f32 %v2403
        %v4452 = vcvt.s32.f32 %v2404
        %v4453 = vcvt.s32.f32 %v2405
        %v4454 = vcvt.s32.f32 %v2406
        %v4455 = vcvt.s32.f32 %v2407
        %v4456 = vcvt.s32.f32 %v2408
        %v4457 = vcvt.s32.f32 %v2409
        %v4458 = vcvt.s32.f32 %v2410
        %v4459 = vcvt.s32.f32 %v2411
        %v4460 = vcvt.s32.f32 %v2412
        %v4461 = vcvt.s32.f32 %v2413
        %v4462 = vcvt.s32.f32 %v2414
        %v4463 = vcvt.s32.f32 %v2415
        %v4464 = vcvt.s32.f32 %v2416
        %v4465 = vcvt.s32.f32 %v2417
        %v4466 = vcvt.s32.f32 %v2418
        %v4467 = vcvt.s32.f32 %v2419
        %v4468 = vcvt.s32.f32 %v2420
        %v4469 = vcvt.s32.f32 %v2421
        %v4470 = vcvt.s32.f32 %v2422
        %v4471 = vcvt.s32.f32 %v2423
        %v4472 = vcvt.s32.f32 %v2424
        %v4473 = vcvt.s32.f32 %v2425
        %v4474 = vcvt.s32.f32 %v2426
        %v4475 = vcvt.s32.f32 %v2427
        %v4476 = vcvt.s32.f32 %v2428
        %v4477 = vcvt.s32.f32 %v2429
        %v4478 = vcvt.s32.f32 %v2430
        %v4479 = vcvt.s32.f32 %v2431
        %v4480 = vcvt.s32.f32 %v2432
        %v4481 = vcvt.s32.f32 %v2433
        %v4482 = vcvt.s32.f32 %v2434
        %v4483 = vcvt.s32.f32 %v2435
        %v4484 = vcvt.s32.f32 %v2436
        %v4485 = vcvt.s32.f32 %v2437
        %v4486 = vcvt.s32.f32 %v2438
        %v4487 = vcvt.s32.f32 %v2439
        %v4488 = vcvt.s32.f32 %v2440
        %v4489 = vcvt.s32.f32 %v2441
        %v4490 = vcvt.s32.f32 %v2442
        %v4491 = vcvt.s32.f32 %v2443
        %v4492 = vcvt.s32.f32 %v2444
        %v4493 = vcvt.s32.f32 %v2445
        %v4494 = vcvt.s32.f32 %v2446
        %v4495 = vcvt.s32.f32 %v2447
        %v4496 = vcvt.s32.f32 %v2448
        %v4497 = vcvt.s32.f32 %v2449
        %v4498 = vcvt.s32.f32 %v2450
        %v4499 = vcvt.s32.f32 %v2451
        %v4500 = vcvt.s32.f32 %v2452
        %v4501 = vcvt.s32.f32 %v2453
        %v4502 = vcvt.s32.f32 %v2454
        %v4503 = vcvt.s32.f32 %v2455
        %v4504 = vcvt.s32.f32 %v2456
        %v4505 = vcvt.s32.f32 %v2457
        %v4506 = vcvt.s32.f32 %v2458
        %v4507 = vcvt.s32.f32 %v2459
        %v4508 = vcvt.s32.f32 %v2460
        %v4509 = vcvt.s32.f32 %v2461
        %v4510 = vcvt.s32.f32 %v2462
        %v4511 = vcvt.s32.f32 %v2463
        %v4512 = vcvt.s32.f32 %v2464
        %v4513 = vcvt.s32.f32 %v2465
        %v4514 = vcvt.s32.f32 %v2466
        %v4515 = vcvt.s32.f32 %v2467
        %v4516 = vcvt.s32.f32 %v2468
        %v4517 = vcvt.s32.f32 %v2469
        %v4518 = vcvt.s32.f32 %v2470
        %v4519 = vcvt.s32.f32 %v2471
        %v4520 = vcvt.s32.f32 %v2472
        %v4521 = vcvt.s32.f32 %v2473
        %v4522 = vcvt.s32.f32 %v2474
        %v4523 = vcvt.s32.f32 %v2475
        %v4524 = vcvt.s32.f32 %v2476
        %v4525 = vcvt.s32.f32 %v2477
        %v4526 = vcvt.s32.f32 %v2478
        %v4527 = vcvt.s32.f32 %v2479
        %v4528 = vcvt.s32.f32 %v2480
        %v4529 = vcvt.s32.f32 %v2481
        %v4530 = vcvt.s32.f32 %v2482
        %v4531 = vcvt.s32.f32 %v2483
        %v4532 = vcvt.s32.f32 %v2484
        %v4533 = vcvt.s32.f32 %v2485
        %v4534 = vcvt.s32.f32 %v2486
        %v4535 = vcvt.s32.f32 %v2487
        %v4536 = vcvt.s32.f32 %v2488
        %v4537 = vcvt.s32.f32 %v2489
        %v4538 = vcvt.s32.f32 %v2490
        %v4539 = vcvt.s32.f32 %v2491
        %v4540 = vcvt.s32.f32 %v2492
        %v4541 = vcvt.s32.f32 %v2493
        %v4542 = vcvt.s32.f32 %v2494
        %v4543 = vcvt.s32.f32 %v2495
        %v4544 = vcvt.s32.f32 %v2496
        %v4545 = vcvt.s32.f32 %v2497
        %v4546 = vcvt.s32.f32 %v2498
        %v4547 = vcvt.s32.f32 %v2499
        %v4548 = vcvt.s32.f32 %v2500
        %v4549 = vcvt.s32.f32 %v2501
        %v4550 = vcvt.s32.f32 %v2502
        %v4551 = vcvt.s32.f32 %v2503
        %v4552 = vcvt.s32.f32 %v2504
        %v4553 = vcvt.s32.f32 %v2505
        %v4554 = vcvt.s32.f32 %v2506
        %v4555 = vcvt.s32.f32 %v2507
        %v4556 = vcvt.s32.f32 %v2508
        %v4557 = vcvt.s32.f32 %v2509
        %v4558 = vcvt.s32.f32 %v2510
        %v4559 = vcvt.s32.f32 %v2511
        %v4560 = vcvt.s32.f32 %v2512
        %v4561 = vcvt.s32.f32 %v2513
        %v4562 = vcvt.s32.f32 %v2514
        %v4563 = vcvt.s32.f32 %v2515
        %v4564 = vcvt.s32.f32 %v2516
        %v4565 = vcvt.s32.f32 %v2517
        %v4566 = vcvt.s32.f32 %v2518
        %v4567 = vcvt.s32.f32 %v2519
        %v4568 = vcvt.s32.f32 %v2520
        %v4569 = vcvt.s32.f32 %v2521
        %v4570 = vcvt.s32.f32 %v2522
        %v4571 = vcvt.s32.f32 %v2523
        %v4572 = vcvt.s32.f32 %v2524
        %v4573 = vcvt.s32.f32 %v2525
        %v4574 = vcvt.s32.f32 %v2526
        %v4575 = vcvt.s32.f32 %v2527
        %v4576 = vcvt.s32.f32 %v2528
        %v4577 = vcvt.s32.f32 %v2529
        %v4578 = vcvt.s32.f32 %v2530
        %v4579 = vcvt.s32.f32 %v2531
        %v4580 = vcvt.s32.f32 %v2532
        %v4581 = vcvt.s32.f32 %v2533
        %v4582 = vcvt.s32.f32 %v2534
        %v4583 = vcvt.s32.f32 %v2535
        %v4584 = vcvt.s32.f32 %v2536
        %v4585 = vcvt.s32.f32 %v2537
        %v4586 = vcvt.s32.f32 %v2538
        %v4587 = vcvt.s32.f32 %v2539
        %v4588 = vcvt.s32.f32 %v2540
        %v4589 = vcvt.s32.f32 %v2541
        %v4590 = vcvt.s32.f32 %v2542
        %v4591 = vcvt.s32.f32 %v2543
        %v4592 = vcvt.s32.f32 %v2544
        %v4593 = vcvt.s32.f32 %v2545
        %v4594 = vcvt.s32.f32 %v2546
        %v4595 = vcvt.s32.f32 %v2547
        %v4596 = vcvt.s32.f32 %v2548
        %v4597 = vcvt.s32.f32 %v2549
        %v4598 = vcvt.s32.f32 %v2550
        %v4599 = vcvt.s32.f32 %v2551
        %v4600 = vcvt.s32.f32 %v2552
        %v4601 = vcvt.s32.f32 %v2553
        %v4602 = vcvt.s32.f32 %v2554
        %v4603 = vcvt.s32.f32 %v2555
        %v4604 = vcvt.s32.f32 %v2556
        %v4605 = vcvt.s32.f32 %v2557
        %v4606 = vcvt.s32.f32 %v2558
        %v4607 = vcvt.s32.f32 %v2559
        %v4608 = vcvt.s32.f32 %v2560
        %v4609 = vcvt.s32.f32 %v2561
        %v4610 = vcvt.s32.f32 %v2562
        %v4611 = vcvt.s32.f32 %v2563
        %v4612 = vcvt.s32.f32 %v2564
        %v4613 = vcvt.s32.f32 %v2565
        %v4614 = vcvt.s32.f32 %v2566
        %v4615 = vcvt.s32.f32 %v2567
        %v4616 = vcvt.s32.f32 %v2568
        %v4617 = vcvt.s32.f32 %v2569
        %v4618 = vcvt.s32.f32 %v2570
        %v4619 = vcvt.s32.f32 %v2571
        %v4620 = vcvt.s32.f32 %v2572
        %v4621 = vcvt.s32.f32 %v2573
        %v4622 = vcvt.s32.f32 %v2574
        %v4623 = vcvt.s32.f32 %v2575
        %v4624 = vcvt.s32.f32 %v2576
        %v4625 = vcvt.s32.f32 %v2577
        %v4626 = vcvt.s32.f32 %v2578
        %v4627 = vcvt.s32.f32 %v2579
        %v4628 = vcvt.s32.f32 %v2580
        %v4629 = vcvt.s32.f32 %v2581
        %v4630 = vcvt.s32.f32 %v2582
        %v4631 = vcvt.s32.f32 %v2583
        %v4632 = vcvt.s32.f32 %v2584
        %v4633 = vcvt.s32.f32 %v2585
        %v4634 = vcvt.s32.f32 %v2586
        %v4635 = vcvt.s32.f32 %v2587
        %v4636 = vcvt.s32.f32 %v2588
        %v4637 = vcvt.s32.f32 %v2589
        %v4638 = vcvt.s32.f32 %v2590
        %v4639 = vcvt.s32.f32 %v2591
        %v4640 = vcvt.s32.f32 %v2592
        %v4641 = vcvt.s32.f32 %v2593
        %v4642 = vcvt.s32.f32 %v2594
        %v4643 = vcvt.s32.f32 %v2595
        %v4644 = vcvt.s32.f32 %v2596
        %v4645 = vcvt.s32.f32 %v2597
        %v4646 = vcvt.s32.f32 %v2598
        %v4647 = vcvt.s32.f32 %v2599
        %v4648 = vcvt.s32.f32 %v2600
        %v4649 = vcvt.s32.f32 %v2601
        %v4650 = vcvt.s32.f32 %v2602
        %v4651 = vcvt.s32.f32 %v2603
        %v4652 = vcvt.s32.f32 %v2604
        %v4653 = vcvt.s32.f32 %v2605
        %v4654 = vcvt.s32.f32 %v2606
        %v4655 = vcvt.s32.f32 %v2607
        %v4656 = vcvt.s32.f32 %v2608
        %v4657 = vcvt.s32.f32 %v2609
        %v4658 = vcvt.s32.f32 %v2610
        %v4659 = vcvt.s32.f32 %v2611
        %v4660 = vcvt.s32.f32 %v2612
        %v4661 = vcvt.s32.f32 %v2613
        %v4662 = vcvt.s32.f32 %v2614
        %v4663 = vcvt.s32.f32 %v2615
        %v4664 = vcvt.s32.f32 %v2616
        %v4665 = vcvt.s32.f32 %v2617
        %v4666 = vcvt.s32.f32 %v2618
        %v4667 = vcvt.s32.f32 %v2619
        %v4668 = vcvt.s32.f32 %v2620
        %v4669 = vcvt.s32.f32 %v2621
        %v4670 = vcvt.s32.f32 %v2622
        %v4671 = vcvt.s32.f32 %v2623
        %v4672 = vcvt.s32.f32 %v2624
        %v4673 = vcvt.s32.f32 %v2625
        %v4674 = vcvt.s32.f32 %v2626
        %v4675 = vcvt.s32.f32 %v2627
        %v4676 = vcvt.s32.f32 %v2628
        %v4677 = vcvt.s32.f32 %v2629
        %v4678 = vcvt.s32.f32 %v2630
        %v4679 = vcvt.s32.f32 %v2631
        %v4680 = vcvt.s32.f32 %v2632
        %v4681 = vcvt.s32.f32 %v2633
        %v4682 = vcvt.s32.f32 %v2634
        %v4683 = vcvt.s32.f32 %v2635
        %v4684 = vcvt.s32.f32 %v2636
        %v4685 = vcvt.s32.f32 %v2637
        %v4686 = vcvt.s32.f32 %v2638
        %v4687 = vcvt.s32.f32 %v2639
        %v4688 = vcvt.s32.f32 %v2640
        %v4689 = vcvt.s32.f32 %v2641
        %v4690 = vcvt.s32.f32 %v2642
        %v4691 = vcvt.s32.f32 %v2643
        %v4692 = vcvt.s32.f32 %v2644
        %v4693 = vcvt.s32.f32 %v2645
        %v4694 = vcvt.s32.f32 %v2646
        %v4695 = vcvt.s32.f32 %v2647
        %v4696 = vcvt.s32.f32 %v2648
        %v4697 = vcvt.s32.f32 %v2649
        %v4698 = vcvt.s32.f32 %v2650
        %v4699 = vcvt.s32.f32 %v2651
        %v4700 = vcvt.s32.f32 %v2652
        %v4701 = vcvt.s32.f32 %v2653
        %v4702 = vcvt.s32.f32 %v2654
        %v4703 = vcvt.s32.f32 %v2655
        %v4704 = vcvt.s32.f32 %v2656
        %v4705 = vcvt.s32.f32 %v2657
        %v4706 = vcvt.s32.f32 %v2658
        %v4707 = vcvt.s32.f32 %v2659
        %v4708 = vcvt.s32.f32 %v2660
        %v4709 = vcvt.s32.f32 %v2661
        %v4710 = vcvt.s32.f32 %v2662
        %v4711 = vcvt.s32.f32 %v2663
        %v4712 = vcvt.s32.f32 %v2664
        %v4713 = vcvt.s32.f32 %v2665
        %v4714 = vcvt.s32.f32 %v2666
        %v4715 = vcvt.s32.f32 %v2667
        %v4716 = vcvt.s32.f32 %v2668
        %v4717 = vcvt.s32.f32 %v2669
        %v4718 = vcvt.s32.f32 %v2670
        %v4719 = vcvt.s32.f32 %v2671
        %v4720 = vcvt.s32.f32 %v2672
        %v4721 = vcvt.s32.f32 %v2673
        %v4722 = vcvt.s32.f32 %v2674
        %v4723 = vcvt.s32.f32 %v2675
        %v4724 = vcvt.s32.f32 %v2676
        %v4725 = vcvt.s32.f32 %v2677
        %v4726 = vcvt.s32.f32 %v2678
        %v4727 = vcvt.s32.f32 %v2679
        %v4728 = vcvt.s32.f32 %v2680
        %v4729 = vcvt.s32.f32 %v2681
        %v4730 = vcvt.s32.f32 %v2682
        %v4731 = vcvt.s32.f32 %v2683
        %v4732 = vcvt.s32.f32 %v2684
        %v4733 = vcvt.s32.f32 %v2685
        %v4734 = vcvt.s32.f32 %v2686
        %v4735 = vcvt.s32.f32 %v2687
        %v4736 = vcvt.s32.f32 %v2688
        %v4737 = vcvt.s32.f32 %v2689
        %v4738 = vcvt.s32.f32 %v2690
        %v4739 = vcvt.s32.f32 %v2691
        %v4740 = vcvt.s32.f32 %v2692
        %v4741 = vcvt.s32.f32 %v2693
        %v4742 = vcvt.s32.f32 %v2694
        %v4743 = vcvt.s32.f32 %v2695
        %v4744 = vcvt.s32.f32 %v2696
        %v4745 = vcvt.s32.f32 %v2697
        %v4746 = vcvt.s32.f32 %v2698
        %v4747 = vcvt.s32.f32 %v2699
        %v4748 = vcvt.s32.f32 %v2700
        %v4749 = vcvt.s32.f32 %v2701
        %v4750 = vcvt.s32.f32 %v2702
        %v4751 = vcvt.s32.f32 %v2703
        %v4752 = vcvt.s32.f32 %v2704
        %v4753 = vcvt.s32.f32 %v2705
        %v4754 = vcvt.s32.f32 %v2706
        %v4755 = vcvt.s32.f32 %v2707
        %v4756 = vcvt.s32.f32 %v2708
        %v4757 = vcvt.s32.f32 %v2709
        %v4758 = vcvt.s32.f32 %v2710
        %v4759 = vcvt.s32.f32 %v2711
        %v4760 = vcvt.s32.f32 %v2712
        %v4761 = vcvt.s32.f32 %v2713
        %v4762 = vcvt.s32.f32 %v2714
        %v4763 = vcvt.s32.f32 %v2715
        %v4764 = vcvt.s32.f32 %v2716
        %v4765 = vcvt.s32.f32 %v2717
        %v4766 = vcvt.s32.f32 %v2718
        %v4767 = vcvt.s32.f32 %v2719
        %v4768 = vcvt.s32.f32 %v2720
        %v4769 = vcvt.s32.f32 %v2721
        %v4770 = vcvt.s32.f32 %v2722
        %v4771 = vcvt.s32.f32 %v2723
        %v4772 = vcvt.s32.f32 %v2724
        %v4773 = vcvt.s32.f32 %v2725
        %v4774 = vcvt.s32.f32 %v2726
        %v4775 = vcvt.s32.f32 %v2727
        %v4776 = vcvt.s32.f32 %v2728
        %v4777 = vcvt.s32.f32 %v2729
        %v4778 = vcvt.s32.f32 %v2730
        %v4779 = vcvt.s32.f32 %v2731
        %v4780 = vcvt.s32.f32 %v2732
        %v4781 = vcvt.s32.f32 %v2733
        %v4782 = vcvt.s32.f32 %v2734
        %v4783 = vcvt.s32.f32 %v2735
        %v4784 = vcvt.s32.f32 %v2736
        %v4785 = vcvt.s32.f32 %v2737
        %v4786 = vcvt.s32.f32 %v2738
        %v4787 = vcvt.s32.f32 %v2739
        %v4788 = vcvt.s32.f32 %v2740
        %v4789 = vcvt.s32.f32 %v2741
        %v4790 = vcvt.s32.f32 %v2742
        %v4791 = vcvt.s32.f32 %v2743
        %v4792 = vcvt.s32.f32 %v2744
        %v4793 = vcvt.s32.f32 %v2745
        %v4794 = vcvt.s32.f32 %v2746
        %v4795 = vcvt.s32.f32 %v2747
        %v4796 = vcvt.s32.f32 %v2748
        %v4797 = vcvt.s32.f32 %v2749
        %v4798 = vcvt.s32.f32 %v2750
        %v4799 = vcvt.s32.f32 %v2751
        %v4800 = vcvt.s32.f32 %v2752
        %v4801 = vcvt.s32.f32 %v2753
        %v4802 = vcvt.s32.f32 %v2754
        %v4803 = vcvt.s32.f32 %v2755
        %v4804 = vcvt.s32.f32 %v2756
        %v4805 = vcvt.s32.f32 %v2757
        %v4806 = vcvt.s32.f32 %v2758
        %v4807 = vcvt.s32.f32 %v2759
        %v4808 = vcvt.s32.f32 %v2760
        %v4809 = vcvt.s32.f32 %v2761
        %v4810 = vcvt.s32.f32 %v2762
        %v4811 = vcvt.s32.f32 %v2763
        %v4812 = vcvt.s32.f32 %v2764
        %v4813 = vcvt.s32.f32 %v2765
        %v4814 = vcvt.s32.f32 %v2766
        %v4815 = vcvt.s32.f32 %v2767
        %v4816 = vcvt.s32.f32 %v2768
        %v4817 = vcvt.s32.f32 %v2769
        %v4818 = vcvt.s32.f32 %v2770
        %v4819 = vcvt.s32.f32 %v2771
        %v4820 = vcvt.s32.f32 %v2772
        %v4821 = vcvt.s32.f32 %v2773
        %v4822 = vcvt.s32.f32 %v2774
        %v4823 = vcvt.s32.f32 %v2775
        %v4824 = vcvt.s32.f32 %v2776
        %v4825 = vcvt.s32.f32 %v2777
        %v4826 = vcvt.s32.f32 %v2778
        %v4827 = vcvt.s32.f32 %v2779
        %v4828 = vcvt.s32.f32 %v2780
        %v4829 = vcvt.s32.f32 %v2781
        %v4830 = vcvt.s32.f32 %v2782
        %v4831 = vcvt.s32.f32 %v2783
        %v4832 = vcvt.s32.f32 %v2784
        %v4833 = vcvt.s32.f32 %v2785
        %v4834 = vcvt.s32.f32 %v2786
        %v4835 = vcvt.s32.f32 %v2787
        %v4836 = vcvt.s32.f32 %v2788
        %v4837 = vcvt.s32.f32 %v2789
        %v4838 = vcvt.s32.f32 %v2790
        %v4839 = vcvt.s32.f32 %v2791
        %v4840 = vcvt.s32.f32 %v2792
        %v4841 = vcvt.s32.f32 %v2793
        %v4842 = vcvt.s32.f32 %v2794
        %v4843 = vcvt.s32.f32 %v2795
        %v4844 = vcvt.s32.f32 %v2796
        %v4845 = vcvt.s32.f32 %v2797
        %v4846 = vcvt.s32.f32 %v2798
        %v4847 = vcvt.s32.f32 %v2799
        %v4848 = vcvt.s32.f32 %v2800
        %v4849 = vcvt.s32.f32 %v2801
        %v4850 = vcvt.s32.f32 %v2802
        %v4851 = vcvt.s32.f32 %v2803
        %v4852 = vcvt.s32.f32 %v2804
        %v4853 = vcvt.s32.f32 %v2805
        %v4854 = vcvt.s32.f32 %v2806
        %v4855 = vcvt.s32.f32 %v2807
        %v4856 = vcvt.s32.f32 %v2808
        %v4857 = vcvt.s32.f32 %v2809
        %v4858 = vcvt.s32.f32 %v2810
        %v4859 = vcvt.s32.f32 %v2811
        %v4860 = vcvt.s32.f32 %v2812
        %v4861 = vcvt.s32.f32 %v2813
        %v4862 = vcvt.s32.f32 %v2814
        %v4863 = vcvt.s32.f32 %v2815
        %v4864 = vcvt.s32.f32 %v2816
        %v4865 = vcvt.s32.f32 %v2817
        %v4866 = vcvt.s32.f32 %v2818
        %v4867 = vcvt.s32.f32 %v2819
        %v4868 = vcvt.s32.f32 %v2820
        %v4869 = vcvt.s32.f32 %v2821
        %v4870 = vcvt.s32.f32 %v2822
        %v4871 = vcvt.s32.f32 %v2823
        %v4872 = vcvt.s32.f32 %v2824
        %v4873 = vcvt.s32.f32 %v2825
        %v4874 = vcvt.s32.f32 %v2826
        %v4875 = vcvt.s32.f32 %v2827
        %v4876 = vcvt.s32.f32 %v2828
        %v4877 = vcvt.s32.f32 %v2829
        %v4878 = vcvt.s32.f32 %v2830
        %v4879 = vcvt.s32.f32 %v2831
        %v4880 = vcvt.s32.f32 %v2832
        %v4881 = vcvt.s32.f32 %v2833
        %v4882 = vcvt.s32.f32 %v2834
        %v4883 = vcvt.s32.f32 %v2835
        %v4884 = vcvt.s32.f32 %v2836
        %v4885 = vcvt.s32.f32 %v2837
        %v4886 = vcvt.s32.f32 %v2838
        %v4887 = vcvt.s32.f32 %v2839
        %v4888 = vcvt.s32.f32 %v2840
        %v4889 = vcvt.s32.f32 %v2841
        %v4890 = vcvt.s32.f32 %v2842
        %v4891 = vcvt.s32.f32 %v2843
        %v4892 = vcvt.s32.f32 %v2844
        %v4893 = vcvt.s32.f32 %v2845
        %v4894 = vcvt.s32.f32 %v2846
        %v4895 = vcvt.s32.f32 %v2847
        %v4896 = vcvt.s32.f32 %v2848
        %v4897 = vcvt.s32.f32 %v2849
        %v4898 = vcvt.s32.f32 %v2850
        %v4899 = vcvt.s32.f32 %v2851
        %v4900 = vcvt.s32.f32 %v2852
        %v4901 = vcvt.s32.f32 %v2853
        %v4902 = vcvt.s32.f32 %v2854
        %v4903 = vcvt.s32.f32 %v2855
        %v4904 = vcvt.s32.f32 %v2856
        %v4905 = vcvt.s32.f32 %v2857
        %v4906 = vcvt.s32.f32 %v2858
        %v4907 = vcvt.s32.f32 %v2859
        %v4908 = vcvt.s32.f32 %v2860
        %v4909 = vcvt.s32.f32 %v2861
        %v4910 = vcvt.s32.f32 %v2862
        %v4911 = vcvt.s32.f32 %v2863
        %v4912 = vcvt.s32.f32 %v2864
        %v4913 = vcvt.s32.f32 %v2865
        %v4914 = vcvt.s32.f32 %v2866
        %v4915 = vcvt.s32.f32 %v2867
        %v4916 = vcvt.s32.f32 %v2868
        %v4917 = vcvt.s32.f32 %v2869
        %v4918 = vcvt.s32.f32 %v2870
        %v4919 = vcvt.s32.f32 %v2871
        %v4920 = vcvt.s32.f32 %v2872
        %v4921 = vcvt.s32.f32 %v2873
        %v4922 = vcvt.s32.f32 %v2874
        %v4923 = vcvt.s32.f32 %v2875
        %v4924 = vcvt.s32.f32 %v2876
        %v4925 = vcvt.s32.f32 %v2877
        %v4926 = vcvt.s32.f32 %v2878
        %v4927 = vcvt.s32.f32 %v2879
        %v4928 = vcvt.s32.f32 %v2880
        %v4929 = vcvt.s32.f32 %v2881
        %v4930 = vcvt.s32.f32 %v2882
        %v4931 = vcvt.s32.f32 %v2883
        %v4932 = vcvt.s32.f32 %v2884
        %v4933 = vcvt.s32.f32 %v2885
        %v4934 = vcvt.s32.f32 %v2886
        %v4935 = vcvt.s32.f32 %v2887
        %v4936 = vcvt.s32.f32 %v2888
        %v4937 = vcvt.s32.f32 %v2889
        %v4938 = vcvt.s32.f32 %v2890
        %v4939 = vcvt.s32.f32 %v2891
        %v4940 = vcvt.s32.f32 %v2892
        %v4941 = vcvt.s32.f32 %v2893
        %v4942 = vcvt.s32.f32 %v2894
        %v4943 = vcvt.s32.f32 %v2895
        %v4944 = vcvt.s32.f32 %v2896
        %v4945 = vcvt.s32.f32 %v2897
        %v4946 = vcvt.s32.f32 %v2898
        %v4947 = vcvt.s32.f32 %v2899
        %v4948 = vcvt.s32.f32 %v2900
        %v4949 = vcvt.s32.f32 %v2901
        %v4950 = vcvt.s32.f32 %v2902
        %v4951 = vcvt.s32.f32 %v2903
        %v4952 = vcvt.s32.f32 %v2904
        %v4953 = vcvt.s32.f32 %v2905
        %v4954 = vcvt.s32.f32 %v2906
        %v4955 = vcvt.s32.f32 %v2907
        %v4956 = vcvt.s32.f32 %v2908
        %v4957 = vcvt.s32.f32 %v2909
        %v4958 = vcvt.s32.f32 %v2910
        %v4959 = vcvt.s32.f32 %v2911
        %v4960 = vcvt.s32.f32 %v2912
        %v4961 = vcvt.s32.f32 %v2913
        %v4962 = vcvt.s32.f32 %v2914
        %v4963 = vcvt.s32.f32 %v2915
        %v4964 = vcvt.s32.f32 %v2916
        %v4965 = vcvt.s32.f32 %v2917
        %v4966 = vcvt.s32.f32 %v2918
        %v4967 = vcvt.s32.f32 %v2919
        %v4968 = vcvt.s32.f32 %v2920
        %v4969 = vcvt.s32.f32 %v2921
        %v4970 = vcvt.s32.f32 %v2922
        %v4971 = vcvt.s32.f32 %v2923
        %v4972 = vcvt.s32.f32 %v2924
        %v4973 = vcvt.s32.f32 %v2925
        %v4974 = vcvt.s32.f32 %v2926
        %v4975 = vcvt.s32.f32 %v2927
        %v4976 = vcvt.s32.f32 %v2928
        %v4977 = vcvt.s32.f32 %v2929
        %v4978 = vcvt.s32.f32 %v2930
        %v4979 = vcvt.s32.f32 %v2931
        %v4980 = vcvt.s32.f32 %v2932
        %v4981 = vcvt.s32.f32 %v2933
        %v4982 = vcvt.s32.f32 %v2934
        %v4983 = vcvt.s32.f32 %v2935
        %v4984 = vcvt.s32.f32 %v2936
        %v4985 = vcvt.s32.f32 %v2937
        %v4986 = vcvt.s32.f32 %v2938
        %v4987 = vcvt.s32.f32 %v2939
        %v4988 = vcvt.s32.f32 %v2940
        %v4989 = vcvt.s32.f32 %v2941
        %v4990 = vcvt.s32.f32 %v2942
        %v4991 = vcvt.s32.f32 %v2943
        %v4992 = vcvt.s32.f32 %v2944
        %v4993 = vcvt.s32.f32 %v2945
        %v4994 = vcvt.s32.f32 %v2946
        %v4995 = vcvt.s32.f32 %v2947
        %v4996 = vcvt.s32.f32 %v2948
        %v4997 = vcvt.s32.f32 %v2949
        %v4998 = vcvt.s32.f32 %v2950
        %v4999 = vcvt.s32.f32 %v2951
        %v5000 = vcvt.s32.f32 %v2952
        %v5001 = vcvt.s32.f32 %v2953
        %v5002 = vcvt.s32.f32 %v2954
        %v5003 = vcvt.s32.f32 %v2955
        %v5004 = vcvt.s32.f32 %v2956
        %v5005 = vcvt.s32.f32 %v2957
        %v5006 = vcvt.s32.f32 %v2958
        %v5007 = vcvt.s32.f32 %v2959
        %v5008 = vcvt.s32.f32 %v2960
        %v5009 = vcvt.s32.f32 %v2961
        %v5010 = vcvt.s32.f32 %v2962
        %v5011 = vcvt.s32.f32 %v2963
        %v5012 = vcvt.s32.f32 %v2964
        %v5013 = vcvt.s32.f32 %v2965
        %v5014 = vcvt.s32.f32 %v2966
        %v5015 = vcvt.s32.f32 %v2967
        %v5016 = vcvt.s32.f32 %v2968
        %v5017 = vcvt.s32.f32 %v2969
        %v5018 = vcvt.s32.f32 %v2970
        %v5019 = vcvt.s32.f32 %v2971
        %v5020 = vcvt.s32.f32 %v2972
        %v5021 = vcvt.s32.f32 %v2973
        %v5022 = vcvt.s32.f32 %v2974
        %v5023 = vcvt.s32.f32 %v2975
        %v5024 = vcvt.s32.f32 %v2976
        %v5025 = vcvt.s32.f32 %v2977
        %v5026 = vcvt.s32.f32 %v2978
        %v5027 = vcvt.s32.f32 %v2979
        %v5028 = vcvt.s32.f32 %v2980
        %v5029 = vcvt.s32.f32 %v2981
        %v5030 = vcvt.s32.f32 %v2982
        %v5031 = vcvt.s32.f32 %v2983
        %v5032 = vcvt.s32.f32 %v2984
        %v5033 = vcvt.s32.f32 %v2985
        %v5034 = vcvt.s32.f32 %v2986
        %v5035 = vcvt.s32.f32 %v2987
        %v5036 = vcvt.s32.f32 %v2988
        %v5037 = vcvt.s32.f32 %v2989
        %v5038 = vcvt.s32.f32 %v2990
        %v5039 = vcvt.s32.f32 %v2991
        %v5040 = vcvt.s32.f32 %v2992
        %v5041 = vcvt.s32.f32 %v2993
        %v5042 = vcvt.s32.f32 %v2994
        %v5043 = vcvt.s32.f32 %v2995
        %v5044 = vcvt.s32.f32 %v2996
        %v5045 = vcvt.s32.f32 %v2997
        %v5046 = vcvt.s32.f32 %v2998
        %v5047 = vcvt.s32.f32 %v2999
        %v5048 = vcvt.s32.f32 %v3000
        %v5049 = vcvt.s32.f32 %v3001
        %v5050 = vcvt.s32.f32 %v3002
        %v5051 = vcvt.s32.f32 %v3003
        %v5052 = vcvt.s32.f32 %v3004
        %v5053 = vcvt.s32.f32 %v3005
        %v5054 = vcvt.s32.f32 %v3006
        %v5055 = vcvt.s32.f32 %v3007
        %v5056 = vcvt.s32.f32 %v3008
        %v5057 = vcvt.s32.f32 %v3009
        %v5058 = vcvt.s32.f32 %v3010
        %v5059 = vcvt.s32.f32 %v3011
        %v5060 = vcvt.s32.f32 %v3012
        %v5061 = vcvt.s32.f32 %v3013
        %v5062 = vcvt.s32.f32 %v3014
        %v5063 = vcvt.s32.f32 %v3015
        %v5064 = vcvt.s32.f32 %v3016
        %v5065 = vcvt.s32.f32 %v3017
        %v5066 = vcvt.s32.f32 %v3018
        %v5067 = vcvt.s32.f32 %v3019
        %v5068 = vcvt.s32.f32 %v3020
        %v5069 = vcvt.s32.f32 %v3021
        %v5070 = vcvt.s32.f32 %v3022
        %v5071 = vcvt.s32.f32 %v3023
        %v5072 = vcvt.s32.f32 %v3024
        %v5073 = vcvt.s32.f32 %v3025
        %v5074 = vcvt.s32.f32 %v3026
        %v5075 = vcvt.s32.f32 %v3027
        %v5076 = vcvt.s32.f32 %v3028
        %v5077 = vcvt.s32.f32 %v3029
        %v5078 = vcvt.s32.f32 %v3030
        %v5079 = vcvt.s32.f32 %v3031
        %v5080 = vcvt.s32.f32 %v3032
        %v5081 = vcvt.s32.f32 %v3033
        %v5082 = vcvt.s32.f32 %v3034
        %v5083 = vcvt.s32.f32 %v3035
        %v5084 = vcvt.s32.f32 %v3036
        %v5085 = vcvt.s32.f32 %v3037
        %v5086 = vcvt.s32.f32 %v3038
        %v5087 = vcvt.s32.f32 %v3039
        %v5088 = vcvt.s32.f32 %v3040
        %v5089 = vcvt.s32.f32 %v3041
        %v5090 = vcvt.s32.f32 %v3042
        %v5091 = vcvt.s32.f32 %v3043
        %v5092 = vcvt.s32.f32 %v3044
        %v5093 = vcvt.s32.f32 %v3045
        %v5094 = vcvt.s32.f32 %v3046
        %v5095 = vcvt.s32.f32 %v3047
        %v5096 = vcvt.s32.f32 %v3048
        %v5097 = vcvt.s32.f32 %v3049
        %v5098 = vcvt.s32.f32 %v3050
        %v5099 = vcvt.s32.f32 %v3051
        %v5100 = vcvt.s32.f32 %v3052
        %v5101 = vcvt.s32.f32 %v3053
        %v5102 = vcvt.s32.f32 %v3054
        %v5103 = vcvt.s32.f32 %v3055
        %v5104 = vcvt.s32.f32 %v3056
        %v5105 = vcvt.s32.f32 %v3057
        %v5106 = vcvt.s32.f32 %v3058
        %v5107 = vcvt.s32.f32 %v3059
        %v5108 = vcvt.s32.f32 %v3060
        %v5109 = vcvt.s32.f32 %v3061
        %v5110 = vcvt.s32.f32 %v3062
        %v5111 = vcvt.s32.f32 %v3063
        %v5112 = vcvt.s32.f32 %v3064
        %v5113 = vcvt.s32.f32 %v3065
        %v5114 = vcvt.s32.f32 %v3066
        %v5115 = vcvt.s32.f32 %v3067
        %v5116 = vcvt.s32.f32 %v3068
        %v5117 = vcvt.s32.f32 %v3069
        %v5118 = vcvt.s32.f32 %v3070
        %v5119 = vcvt.s32.f32 %v3071
        %v5120 = vcvt.s32.f32 %v3072
        %v5121 = vcvt.s32.f32 %v3073
        %v5122 = vcvt.s32.f32 %v3074
        %v5123 = vcvt.s32.f32 %v3075
        %v5124 = vcvt.s32.f32 %v3076
        %v5125 = vcvt.s32.f32 %v3077
        %v5126 = vcvt.s32.f32 %v3078
        %v5127 = vcvt.s32.f32 %v3079
        %v5128 = vcvt.s32.f32 %v3080
        %v5129 = vcvt.s32.f32 %v3081
        %v5130 = vcvt.s32.f32 %v3082
        %v5131 = vcvt.s32.f32 %v3083
        %v5132 = vcvt.s32.f32 %v3084
        %v5133 = vcvt.s32.f32 %v3085
        %v5134 = vcvt.s32.f32 %v3086
        %v5135 = vcvt.s32.f32 %v3087
        %v5136 = vcvt.s32.f32 %v3088
        %v5137 = vcvt.s32.f32 %v3089
        %v5138 = vcvt.s32.f32 %v3090
        %v5139 = vcvt.s32.f32 %v3091
        %v5140 = vcvt.s32.f32 %v3092
        %v5141 = vcvt.s32.f32 %v3093
        %v5142 = vcvt.s32.f32 %v3094
        %v5143 = vcvt.s32.f32 %v3095
        %v5144 = vcvt.s32.f32 %v3096
        %v5145 = vcvt.s32.f32 %v3097
        %v5146 = vcvt.s32.f32 %v3098
        %v5147 = vcvt.s32.f32 %v3099
        %v5148 = vpack.c.bf16 %v3104, %v3100
        %v5149 = vpack.c.bf16 %v3105, %v3101
        %v5150 = vpack.c.bf16 %v3106, %v3102
        %v5151 = vpack.c.bf16 %v3107, %v3103
        %v5152 = vpack.c.bf16 %v3112, %v3108
        %v5153 = vpack.c.bf16 %v3113, %v3109
        %v5154 = vpack.c.bf16 %v3114, %v3110
        %v5155 = vpack.c.bf16 %v3115, %v3111
        %v5156 = vpack.c.bf16 %v3120, %v3116
        %v5157 = vpack.c.bf16 %v3121, %v3117
        %v5158 = vpack.c.bf16 %v3122, %v3118
        %v5159 = vpack.c.bf16 %v3123, %v3119
        %v5160 = vpack.c.bf16 %v3128, %v3124
        %v5161 = vpack.c.bf16 %v3129, %v3125
        %v5162 = vpack.c.bf16 %v3130, %v3126
        %v5163 = vpack.c.bf16 %v3131, %v3127
        %v5164 = vpack.c.bf16 %v3136, %v3132
        %v5165 = vpack.c.bf16 %v3137, %v3133
        %v5166 = vpack.c.bf16 %v3138, %v3134
        %v5167 = vpack.c.bf16 %v3139, %v3135
        %v5168 = vpack.c.bf16 %v3144, %v3140
        %v5169 = vpack.c.bf16 %v3145, %v3141
        %v5170 = vpack.c.bf16 %v3146, %v3142
        %v5171 = vpack.c.bf16 %v3147, %v3143
        %v5172 = vpack.c.bf16 %v3152, %v3148
        %v5173 = vpack.c.bf16 %v3153, %v3149
        %v5174 = vpack.c.bf16 %v3154, %v3150
        %v5175 = vpack.c.bf16 %v3155, %v3151
        %v5176 = vpack.c.bf16 %v3160, %v3156
        %v5177 = vpack.c.bf16 %v3161, %v3157
        %v5178 = vpack.c.bf16 %v3162, %v3158
        %v5179 = vpack.c.bf16 %v3163, %v3159
        %v5180 = vpack.c.bf16 %v3168, %v3164
        %v5181 = vpack.c.bf16 %v3169, %v3165
        %v5182 = vpack.c.bf16 %v3170, %v3166
        %v5183 = vpack.c.bf16 %v3171, %v3167
        %v5184 = vpack.c.bf16 %v3176, %v3172
        %v5185 = vpack.c.bf16 %v3177, %v3173
        %v5186 = vpack.c.bf16 %v3178, %v3174
        %v5187 = vpack.c.bf16 %v3179, %v3175
        %v5188 = vpack.c.bf16 %v3184, %v3180
        %v5189 = vpack.c.bf16 %v3185, %v3181
        %v5190 = vpack.c.bf16 %v3186, %v3182
        %v5191 = vpack.c.bf16 %v3187, %v3183
        %v5192 = vpack.c.bf16 %v3192, %v3188
        %v5193 = vpack.c.bf16 %v3193, %v3189
        %v5194 = vpack.c.bf16 %v3194, %v3190
        %v5195 = vpack.c.bf16 %v3195, %v3191
        %v5196 = vpack.c.bf16 %v3200, %v3196
        %v5197 = vpack.c.bf16 %v3201, %v3197
        %v5198 = vpack.c.bf16 %v3202, %v3198
        %v5199 = vpack.c.bf16 %v3203, %v3199
        %v5200 = vpack.c.bf16 %v3208, %v3204
        %v5201 = vpack.c.bf16 %v3209, %v3205
        %v5202 = vpack.c.bf16 %v3210, %v3206
        %v5203 = vpack.c.bf16 %v3211, %v3207
        %v5204 = vpack.c.bf16 %v3216, %v3212
        %v5205 = vpack.c.bf16 %v3217, %v3213
        %v5206 = vpack.c.bf16 %v3218, %v3214
        %v5207 = vpack.c.bf16 %v3219, %v3215
        %v5208 = vpack.c.bf16 %v3224, %v3220
        %v5209 = vpack.c.bf16 %v3225, %v3221
        %v5210 = vpack.c.bf16 %v3226, %v3222
        %v5211 = vpack.c.bf16 %v3227, %v3223
        %v5212 = vpack.c.bf16 %v3232, %v3228
        %v5213 = vpack.c.bf16 %v3233, %v3229
        %v5214 = vpack.c.bf16 %v3234, %v3230
        %v5215 = vpack.c.bf16 %v3235, %v3231
        %v5216 = vpack.c.bf16 %v3240, %v3236
        %v5217 = vpack.c.bf16 %v3241, %v3237
        %v5218 = vpack.c.bf16 %v3242, %v3238
        %v5219 = vpack.c.bf16 %v3243, %v3239
        %v5220 = vpack.c.bf16 %v3248, %v3244
        %v5221 = vpack.c.bf16 %v3249, %v3245
        %v5222 = vpack.c.bf16 %v3250, %v3246
        %v5223 = vpack.c.bf16 %v3251, %v3247
        %v5224 = vpack.c.bf16 %v3256, %v3252
        %v5225 = vpack.c.bf16 %v3257, %v3253
        %v5226 = vpack.c.bf16 %v3258, %v3254
        %v5227 = vpack.c.bf16 %v3259, %v3255
        %v5228 = vpack.c.bf16 %v3264, %v3260
        %v5229 = vpack.c.bf16 %v3265, %v3261
        %v5230 = vpack.c.bf16 %v3266, %v3262
        %v5231 = vpack.c.bf16 %v3267, %v3263
        %v5232 = vpack.c.bf16 %v3272, %v3268
        %v5233 = vpack.c.bf16 %v3273, %v3269
        %v5234 = vpack.c.bf16 %v3274, %v3270
        %v5235 = vpack.c.bf16 %v3275, %v3271
        %v5236 = vpack.c.bf16 %v3280, %v3276
        %v5237 = vpack.c.bf16 %v3281, %v3277
        %v5238 = vpack.c.bf16 %v3282, %v3278
        %v5239 = vpack.c.bf16 %v3283, %v3279
        %v5240 = vpack.c.bf16 %v3288, %v3284
        %v5241 = vpack.c.bf16 %v3289, %v3285
        %v5242 = vpack.c.bf16 %v3290, %v3286
        %v5243 = vpack.c.bf16 %v3291, %v3287
        %v5244 = vpack.c.bf16 %v3296, %v3292
        %v5245 = vpack.c.bf16 %v3297, %v3293
        %v5246 = vpack.c.bf16 %v3298, %v3294
        %v5247 = vpack.c.bf16 %v3299, %v3295
        %v5248 = vpack.c.bf16 %v3304, %v3300
        %v5249 = vpack.c.bf16 %v3305, %v3301
        %v5250 = vpack.c.bf16 %v3306, %v3302
        %v5251 = vpack.c.bf16 %v3307, %v3303
        %v5252 = vpack.c.bf16 %v3312, %v3308
        %v5253 = vpack.c.bf16 %v3313, %v3309
        %v5254 = vpack.c.bf16 %v3314, %v3310
        %v5255 = vpack.c.bf16 %v3315, %v3311
        %v5256 = vpack.c.bf16 %v3320, %v3316
        %v5257 = vpack.c.bf16 %v3321, %v3317
        %v5258 = vpack.c.bf16 %v3322, %v3318
        %v5259 = vpack.c.bf16 %v3323, %v3319
        %v5260 = vpack.c.bf16 %v3328, %v3324
        %v5261 = vpack.c.bf16 %v3329, %v3325
        %v5262 = vpack.c.bf16 %v3330, %v3326
        %v5263 = vpack.c.bf16 %v3331, %v3327
        %v5264 = vpack.c.bf16 %v3336, %v3332
        %v5265 = vpack.c.bf16 %v3337, %v3333
        %v5266 = vpack.c.bf16 %v3338, %v3334
        %v5267 = vpack.c.bf16 %v3339, %v3335
        %v5268 = vpack.c.bf16 %v3344, %v3340
        %v5269 = vpack.c.bf16 %v3345, %v3341
        %v5270 = vpack.c.bf16 %v3346, %v3342
        %v5271 = vpack.c.bf16 %v3347, %v3343
        %v5272 = vpack.c.bf16 %v3352, %v3348
        %v5273 = vpack.c.bf16 %v3353, %v3349
        %v5274 = vpack.c.bf16 %v3354, %v3350
        %v5275 = vpack.c.bf16 %v3355, %v3351
        %v5276 = vpack.c.bf16 %v3360, %v3356
        %v5277 = vpack.c.bf16 %v3361, %v3357
        %v5278 = vpack.c.bf16 %v3362, %v3358
        %v5279 = vpack.c.bf16 %v3363, %v3359
        %v5280 = vpack.c.bf16 %v3368, %v3364
        %v5281 = vpack.c.bf16 %v3369, %v3365
        %v5282 = vpack.c.bf16 %v3370, %v3366
        %v5283 = vpack.c.bf16 %v3371, %v3367
        %v5284 = vpack.c.bf16 %v3376, %v3372
        %v5285 = vpack.c.bf16 %v3377, %v3373
        %v5286 = vpack.c.bf16 %v3378, %v3374
        %v5287 = vpack.c.bf16 %v3379, %v3375
        %v5288 = vpack.c.bf16 %v3384, %v3380
        %v5289 = vpack.c.bf16 %v3385, %v3381
        %v5290 = vpack.c.bf16 %v3386, %v3382
        %v5291 = vpack.c.bf16 %v3387, %v3383
        %v5292 = vpack.c.bf16 %v3392, %v3388
        %v5293 = vpack.c.bf16 %v3393, %v3389
        %v5294 = vpack.c.bf16 %v3394, %v3390
        %v5295 = vpack.c.bf16 %v3395, %v3391
        %v5296 = vpack.c.bf16 %v3400, %v3396
        %v5297 = vpack.c.bf16 %v3401, %v3397
        %v5298 = vpack.c.bf16 %v3402, %v3398
        %v5299 = vpack.c.bf16 %v3403, %v3399
        %v5300 = vpack.c.bf16 %v3408, %v3404
        %v5301 = vpack.c.bf16 %v3409, %v3405
        %v5302 = vpack.c.bf16 %v3410, %v3406
        %v5303 = vpack.c.bf16 %v3411, %v3407
        %v5304 = vpack.c.bf16 %v3416, %v3412
        %v5305 = vpack.c.bf16 %v3417, %v3413
        %v5306 = vpack.c.bf16 %v3418, %v3414
        %v5307 = vpack.c.bf16 %v3419, %v3415
        %v5308 = vpack.c.bf16 %v3424, %v3420
        %v5309 = vpack.c.bf16 %v3425, %v3421
        %v5310 = vpack.c.bf16 %v3426, %v3422
        %v5311 = vpack.c.bf16 %v3427, %v3423
        %v5312 = vpack.c.bf16 %v3432, %v3428
        %v5313 = vpack.c.bf16 %v3433, %v3429
        %v5314 = vpack.c.bf16 %v3434, %v3430
        %v5315 = vpack.c.bf16 %v3435, %v3431
        %v5316 = vpack.c.bf16 %v3440, %v3436
        %v5317 = vpack.c.bf16 %v3441, %v3437
        %v5318 = vpack.c.bf16 %v3442, %v3438
        %v5319 = vpack.c.bf16 %v3443, %v3439
        %v5320 = vpack.c.bf16 %v3448, %v3444
        %v5321 = vpack.c.bf16 %v3449, %v3445
        %v5322 = vpack.c.bf16 %v3450, %v3446
        %v5323 = vpack.c.bf16 %v3451, %v3447
        %v5324 = vpack.c.bf16 %v3456, %v3452
        %v5325 = vpack.c.bf16 %v3457, %v3453
        %v5326 = vpack.c.bf16 %v3458, %v3454
        %v5327 = vpack.c.bf16 %v3459, %v3455
        %v5328 = vpack.c.bf16 %v3464, %v3460
        %v5329 = vpack.c.bf16 %v3465, %v3461
        %v5330 = vpack.c.bf16 %v3466, %v3462
        %v5331 = vpack.c.bf16 %v3467, %v3463
        %v5332 = vpack.c.bf16 %v3472, %v3468
        %v5333 = vpack.c.bf16 %v3473, %v3469
        %v5334 = vpack.c.bf16 %v3474, %v3470
        %v5335 = vpack.c.bf16 %v3475, %v3471
        %v5336 = vpack.c.bf16 %v3480, %v3476
        %v5337 = vpack.c.bf16 %v3481, %v3477
        %v5338 = vpack.c.bf16 %v3482, %v3478
        %v5339 = vpack.c.bf16 %v3483, %v3479
        %v5340 = vpack.c.bf16 %v3488, %v3484
        %v5341 = vpack.c.bf16 %v3489, %v3485
        %v5342 = vpack.c.bf16 %v3490, %v3486
        %v5343 = vpack.c.bf16 %v3491, %v3487
        %v5344 = vpack.c.bf16 %v3496, %v3492
        %v5345 = vpack.c.bf16 %v3497, %v3493
        %v5346 = vpack.c.bf16 %v3498, %v3494
        %v5347 = vpack.c.bf16 %v3499, %v3495
        %v5348 = vpack.c.bf16 %v3504, %v3500
        %v5349 = vpack.c.bf16 %v3505, %v3501
        %v5350 = vpack.c.bf16 %v3506, %v3502
        %v5351 = vpack.c.bf16 %v3507, %v3503
        %v5352 = vpack.c.bf16 %v3512, %v3508
        %v5353 = vpack.c.bf16 %v3513, %v3509
        %v5354 = vpack.c.bf16 %v3514, %v3510
        %v5355 = vpack.c.bf16 %v3515, %v3511
        %v5356 = vpack.c.bf16 %v3520, %v3516
        %v5357 = vpack.c.bf16 %v3521, %v3517
        %v5358 = vpack.c.bf16 %v3522, %v3518
        %v5359 = vpack.c.bf16 %v3523, %v3519
        %v5360 = vpack.c.bf16 %v3528, %v3524
        %v5361 = vpack.c.bf16 %v3529, %v3525
        %v5362 = vpack.c.bf16 %v3530, %v3526
        %v5363 = vpack.c.bf16 %v3531, %v3527
        %v5364 = vpack.c.bf16 %v3536, %v3532
        %v5365 = vpack.c.bf16 %v3537, %v3533
        %v5366 = vpack.c.bf16 %v3538, %v3534
        %v5367 = vpack.c.bf16 %v3539, %v3535
        %v5368 = vpack.c.bf16 %v3544, %v3540
        %v5369 = vpack.c.bf16 %v3545, %v3541
        %v5370 = vpack.c.bf16 %v3546, %v3542
        %v5371 = vpack.c.bf16 %v3547, %v3543
        %v5372 = vpack.c.bf16 %v3552, %v3548
        %v5373 = vpack.c.bf16 %v3553, %v3549
        %v5374 = vpack.c.bf16 %v3554, %v3550
        %v5375 = vpack.c.bf16 %v3555, %v3551
        %v5376 = vpack.c.bf16 %v3560, %v3556
        %v5377 = vpack.c.bf16 %v3561, %v3557
        %v5378 = vpack.c.bf16 %v3562, %v3558
        %v5379 = vpack.c.bf16 %v3563, %v3559
        %v5380 = vpack.c.bf16 %v3568, %v3564
        %v5381 = vpack.c.bf16 %v3569, %v3565
        %v5382 = vpack.c.bf16 %v3570, %v3566
        %v5383 = vpack.c.bf16 %v3571, %v3567
        %v5384 = vpack.c.bf16 %v3576, %v3572
        %v5385 = vpack.c.bf16 %v3577, %v3573
        %v5386 = vpack.c.bf16 %v3578, %v3574
        %v5387 = vpack.c.bf16 %v3579, %v3575
        %v5388 = vpack.c.bf16 %v3584, %v3580
        %v5389 = vpack.c.bf16 %v3585, %v3581
        %v5390 = vpack.c.bf16 %v3586, %v3582
        %v5391 = vpack.c.bf16 %v3587, %v3583
        %v5392 = vpack.c.bf16 %v3592, %v3588
        %v5393 = vpack.c.bf16 %v3593, %v3589
        %v5394 = vpack.c.bf16 %v3594, %v3590
        %v5395 = vpack.c.bf16 %v3595, %v3591
        %v5396 = vpack.c.bf16 %v3600, %v3596
        %v5397 = vpack.c.bf16 %v3601, %v3597
        %v5398 = vpack.c.bf16 %v3602, %v3598
        %v5399 = vpack.c.bf16 %v3603, %v3599
        %v5400 = vpack.c.bf16 %v3608, %v3604
        %v5401 = vpack.c.bf16 %v3609, %v3605
        %v5402 = vpack.c.bf16 %v3610, %v3606
        %v5403 = vpack.c.bf16 %v3611, %v3607
        %v5404 = vpack.c.bf16 %v3616, %v3612
        %v5405 = vpack.c.bf16 %v3617, %v3613
        %v5406 = vpack.c.bf16 %v3618, %v3614
        %v5407 = vpack.c.bf16 %v3619, %v3615
        %v5408 = vpack.c.bf16 %v3624, %v3620
        %v5409 = vpack.c.bf16 %v3625, %v3621
        %v5410 = vpack.c.bf16 %v3626, %v3622
        %v5411 = vpack.c.bf16 %v3627, %v3623
        %v5412 = vpack.c.bf16 %v3632, %v3628
        %v5413 = vpack.c.bf16 %v3633, %v3629
        %v5414 = vpack.c.bf16 %v3634, %v3630
        %v5415 = vpack.c.bf16 %v3635, %v3631
        %v5416 = vpack.c.bf16 %v3640, %v3636
        %v5417 = vpack.c.bf16 %v3641, %v3637
        %v5418 = vpack.c.bf16 %v3642, %v3638
        %v5419 = vpack.c.bf16 %v3643, %v3639
        %v5420 = vpack.c.bf16 %v3648, %v3644
        %v5421 = vpack.c.bf16 %v3649, %v3645
        %v5422 = vpack.c.bf16 %v3650, %v3646
        %v5423 = vpack.c.bf16 %v3651, %v3647
        %v5424 = vpack.c.bf16 %v3656, %v3652
        %v5425 = vpack.c.bf16 %v3657, %v3653
        %v5426 = vpack.c.bf16 %v3658, %v3654
        %v5427 = vpack.c.bf16 %v3659, %v3655
        %v5428 = vpack.c.bf16 %v3664, %v3660
        %v5429 = vpack.c.bf16 %v3665, %v3661
        %v5430 = vpack.c.bf16 %v3666, %v3662
        %v5431 = vpack.c.bf16 %v3667, %v3663
        %v5432 = vpack.c.bf16 %v3672, %v3668
        %v5433 = vpack.c.bf16 %v3673, %v3669
        %v5434 = vpack.c.bf16 %v3674, %v3670
        %v5435 = vpack.c.bf16 %v3675, %v3671
        %v5436 = vpack.c.bf16 %v3680, %v3676
        %v5437 = vpack.c.bf16 %v3681, %v3677
        %v5438 = vpack.c.bf16 %v3682, %v3678
        %v5439 = vpack.c.bf16 %v3683, %v3679
        %v5440 = vpack.c.bf16 %v3688, %v3684
        %v5441 = vpack.c.bf16 %v3689, %v3685
        %v5442 = vpack.c.bf16 %v3690, %v3686
        %v5443 = vpack.c.bf16 %v3691, %v3687
        %v5444 = vpack.c.bf16 %v3696, %v3692
        %v5445 = vpack.c.bf16 %v3697, %v3693
        %v5446 = vpack.c.bf16 %v3698, %v3694
        %v5447 = vpack.c.bf16 %v3699, %v3695
        %v5448 = vpack.c.bf16 %v3704, %v3700
        %v5449 = vpack.c.bf16 %v3705, %v3701
        %v5450 = vpack.c.bf16 %v3706, %v3702
        %v5451 = vpack.c.bf16 %v3707, %v3703
        %v5452 = vpack.c.bf16 %v3712, %v3708
        %v5453 = vpack.c.bf16 %v3713, %v3709
        %v5454 = vpack.c.bf16 %v3714, %v3710
        %v5455 = vpack.c.bf16 %v3715, %v3711
        %v5456 = vpack.c.bf16 %v3720, %v3716
        %v5457 = vpack.c.bf16 %v3721, %v3717
        %v5458 = vpack.c.bf16 %v3722, %v3718
        %v5459 = vpack.c.bf16 %v3723, %v3719
        %v5460 = vpack.c.bf16 %v3728, %v3724
        %v5461 = vpack.c.bf16 %v3729, %v3725
        %v5462 = vpack.c.bf16 %v3730, %v3726
        %v5463 = vpack.c.bf16 %v3731, %v3727
        %v5464 = vpack.c.bf16 %v3736, %v3732
        %v5465 = vpack.c.bf16 %v3737, %v3733
        %v5466 = vpack.c.bf16 %v3738, %v3734
        %v5467 = vpack.c.bf16 %v3739, %v3735
        %v5468 = vpack.c.bf16 %v3744, %v3740
        %v5469 = vpack.c.bf16 %v3745, %v3741
        %v5470 = vpack.c.bf16 %v3746, %v3742
        %v5471 = vpack.c.bf16 %v3747, %v3743
        %v5472 = vpack.c.bf16 %v3752, %v3748
        %v5473 = vpack.c.bf16 %v3753, %v3749
        %v5474 = vpack.c.bf16 %v3754, %v3750
        %v5475 = vpack.c.bf16 %v3755, %v3751
        %v5476 = vpack.c.bf16 %v3760, %v3756
        %v5477 = vpack.c.bf16 %v3761, %v3757
        %v5478 = vpack.c.bf16 %v3762, %v3758
        %v5479 = vpack.c.bf16 %v3763, %v3759
        %v5480 = vpack.c.bf16 %v3768, %v3764
        %v5481 = vpack.c.bf16 %v3769, %v3765
        %v5482 = vpack.c.bf16 %v3770, %v3766
        %v5483 = vpack.c.bf16 %v3771, %v3767
        %v5484 = vpack.c.bf16 %v3776, %v3772
        %v5485 = vpack.c.bf16 %v3777, %v3773
        %v5486 = vpack.c.bf16 %v3778, %v3774
        %v5487 = vpack.c.bf16 %v3779, %v3775
        %v5488 = vpack.c.bf16 %v3784, %v3780
        %v5489 = vpack.c.bf16 %v3785, %v3781
        %v5490 = vpack.c.bf16 %v3786, %v3782
        %v5491 = vpack.c.bf16 %v3787, %v3783
        %v5492 = vpack.c.bf16 %v3792, %v3788
        %v5493 = vpack.c.bf16 %v3793, %v3789
        %v5494 = vpack.c.bf16 %v3794, %v3790
        %v5495 = vpack.c.bf16 %v3795, %v3791
        %v5496 = vpack.c.bf16 %v3800, %v3796
        %v5497 = vpack.c.bf16 %v3801, %v3797
        %v5498 = vpack.c.bf16 %v3802, %v3798
        %v5499 = vpack.c.bf16 %v3803, %v3799
        %v5500 = vpack.c.bf16 %v3808, %v3804
        %v5501 = vpack.c.bf16 %v3809, %v3805
        %v5502 = vpack.c.bf16 %v3810, %v3806
        %v5503 = vpack.c.bf16 %v3811, %v3807
        %v5504 = vpack.c.bf16 %v3816, %v3812
        %v5505 = vpack.c.bf16 %v3817, %v3813
        %v5506 = vpack.c.bf16 %v3818, %v3814
        %v5507 = vpack.c.bf16 %v3819, %v3815
        %v5508 = vpack.c.bf16 %v3824, %v3820
        %v5509 = vpack.c.bf16 %v3825, %v3821
        %v5510 = vpack.c.bf16 %v3826, %v3822
        %v5511 = vpack.c.bf16 %v3827, %v3823
        %v5512 = vpack.c.bf16 %v3832, %v3828
        %v5513 = vpack.c.bf16 %v3833, %v3829
        %v5514 = vpack.c.bf16 %v3834, %v3830
        %v5515 = vpack.c.bf16 %v3835, %v3831
        %v5516 = vpack.c.bf16 %v3840, %v3836
        %v5517 = vpack.c.bf16 %v3841, %v3837
        %v5518 = vpack.c.bf16 %v3842, %v3838
        %v5519 = vpack.c.bf16 %v3843, %v3839
        %v5520 = vpack.c.bf16 %v3848, %v3844
        %v5521 = vpack.c.bf16 %v3849, %v3845
        %v5522 = vpack.c.bf16 %v3850, %v3846
        %v5523 = vpack.c.bf16 %v3851, %v3847
        %v5524 = vpack.c.bf16 %v3856, %v3852
        %v5525 = vpack.c.bf16 %v3857, %v3853
        %v5526 = vpack.c.bf16 %v3858, %v3854
        %v5527 = vpack.c.bf16 %v3859, %v3855
        %v5528 = vpack.c.bf16 %v3864, %v3860
        %v5529 = vpack.c.bf16 %v3865, %v3861
        %v5530 = vpack.c.bf16 %v3866, %v3862
        %v5531 = vpack.c.bf16 %v3867, %v3863
        %v5532 = vpack.c.bf16 %v3872, %v3868
        %v5533 = vpack.c.bf16 %v3873, %v3869
        %v5534 = vpack.c.bf16 %v3874, %v3870
        %v5535 = vpack.c.bf16 %v3875, %v3871
        %v5536 = vpack.c.bf16 %v3880, %v3876
        %v5537 = vpack.c.bf16 %v3881, %v3877
        %v5538 = vpack.c.bf16 %v3882, %v3878
        %v5539 = vpack.c.bf16 %v3883, %v3879
        %v5540 = vpack.c.bf16 %v3888, %v3884
        %v5541 = vpack.c.bf16 %v3889, %v3885
        %v5542 = vpack.c.bf16 %v3890, %v3886
        %v5543 = vpack.c.bf16 %v3891, %v3887
        %v5544 = vpack.c.bf16 %v3896, %v3892
        %v5545 = vpack.c.bf16 %v3897, %v3893
        %v5546 = vpack.c.bf16 %v3898, %v3894
        %v5547 = vpack.c.bf16 %v3899, %v3895
        %v5548 = vpack.c.bf16 %v3904, %v3900
        %v5549 = vpack.c.bf16 %v3905, %v3901
        %v5550 = vpack.c.bf16 %v3906, %v3902
        %v5551 = vpack.c.bf16 %v3907, %v3903
        %v5552 = vpack.c.bf16 %v3912, %v3908
        %v5553 = vpack.c.bf16 %v3913, %v3909
        %v5554 = vpack.c.bf16 %v3914, %v3910
        %v5555 = vpack.c.bf16 %v3915, %v3911
        %v5556 = vpack.c.bf16 %v3920, %v3916
        %v5557 = vpack.c.bf16 %v3921, %v3917
        %v5558 = vpack.c.bf16 %v3922, %v3918
        %v5559 = vpack.c.bf16 %v3923, %v3919
        %v5560 = vpack.c.bf16 %v3928, %v3924
        %v5561 = vpack.c.bf16 %v3929, %v3925
        %v5562 = vpack.c.bf16 %v3930, %v3926
        %v5563 = vpack.c.bf16 %v3931, %v3927
        %v5564 = vpack.c.bf16 %v3936, %v3932
        %v5565 = vpack.c.bf16 %v3937, %v3933
        %v5566 = vpack.c.bf16 %v3938, %v3934
        %v5567 = vpack.c.bf16 %v3939, %v3935
        %v5568 = vpack.c.bf16 %v3944, %v3940
        %v5569 = vpack.c.bf16 %v3945, %v3941
        %v5570 = vpack.c.bf16 %v3946, %v3942
        %v5571 = vpack.c.bf16 %v3947, %v3943
        %v5572 = vpack.c.bf16 %v3952, %v3948
        %v5573 = vpack.c.bf16 %v3953, %v3949
        %v5574 = vpack.c.bf16 %v3954, %v3950
        %v5575 = vpack.c.bf16 %v3955, %v3951
        %v5576 = vpack.c.bf16 %v3960, %v3956
        %v5577 = vpack.c.bf16 %v3961, %v3957
        %v5578 = vpack.c.bf16 %v3962, %v3958
        %v5579 = vpack.c.bf16 %v3963, %v3959
        %v5580 = vpack.c.bf16 %v3968, %v3964
        %v5581 = vpack.c.bf16 %v3969, %v3965
        %v5582 = vpack.c.bf16 %v3970, %v3966
        %v5583 = vpack.c.bf16 %v3971, %v3967
        %v5584 = vpack.c.bf16 %v3976, %v3972
        %v5585 = vpack.c.bf16 %v3977, %v3973
        %v5586 = vpack.c.bf16 %v3978, %v3974
        %v5587 = vpack.c.bf16 %v3979, %v3975
        %v5588 = vpack.c.bf16 %v3984, %v3980
        %v5589 = vpack.c.bf16 %v3985, %v3981
        %v5590 = vpack.c.bf16 %v3986, %v3982
        %v5591 = vpack.c.bf16 %v3987, %v3983
        %v5592 = vpack.c.bf16 %v3992, %v3988
        %v5593 = vpack.c.bf16 %v3993, %v3989
        %v5594 = vpack.c.bf16 %v3994, %v3990
        %v5595 = vpack.c.bf16 %v3995, %v3991
        %v5596 = vpack.c.bf16 %v4000, %v3996
        %v5597 = vpack.c.bf16 %v4001, %v3997
        %v5598 = vpack.c.bf16 %v4002, %v3998
        %v5599 = vpack.c.bf16 %v4003, %v3999
        %v5600 = vpack.c.bf16 %v4008, %v4004
        %v5601 = vpack.c.bf16 %v4009, %v4005
        %v5602 = vpack.c.bf16 %v4010, %v4006
        %v5603 = vpack.c.bf16 %v4011, %v4007
        %v5604 = vpack.c.bf16 %v4016, %v4012
        %v5605 = vpack.c.bf16 %v4017, %v4013
        %v5606 = vpack.c.bf16 %v4018, %v4014
        %v5607 = vpack.c.bf16 %v4019, %v4015
        %v5608 = vpack.c.bf16 %v4024, %v4020
        %v5609 = vpack.c.bf16 %v4025, %v4021
        %v5610 = vpack.c.bf16 %v4026, %v4022
        %v5611 = vpack.c.bf16 %v4027, %v4023
        %v5612 = vpack.c.bf16 %v4032, %v4028
        %v5613 = vpack.c.bf16 %v4033, %v4029
        %v5614 = vpack.c.bf16 %v4034, %v4030
        %v5615 = vpack.c.bf16 %v4035, %v4031
        %v5616 = vpack.c.bf16 %v4040, %v4036
        %v5617 = vpack.c.bf16 %v4041, %v4037
        %v5618 = vpack.c.bf16 %v4042, %v4038
        %v5619 = vpack.c.bf16 %v4043, %v4039
        %v5620 = vpack.c.bf16 %v4048, %v4044
        %v5621 = vpack.c.bf16 %v4049, %v4045
        %v5622 = vpack.c.bf16 %v4050, %v4046
        %v5623 = vpack.c.bf16 %v4051, %v4047
        %v5624 = vpack.c.bf16 %v4056, %v4052
        %v5625 = vpack.c.bf16 %v4057, %v4053
        %v5626 = vpack.c.bf16 %v4058, %v4054
        %v5627 = vpack.c.bf16 %v4059, %v4055
        %v5628 = vpack.c.bf16 %v4064, %v4060
        %v5629 = vpack.c.bf16 %v4065, %v4061
        %v5630 = vpack.c.bf16 %v4066, %v4062
        %v5631 = vpack.c.bf16 %v4067, %v4063
        %v5632 = vpack.c.bf16 %v4072, %v4068
        %v5633 = vpack.c.bf16 %v4073, %v4069
        %v5634 = vpack.c.bf16 %v4074, %v4070
        %v5635 = vpack.c.bf16 %v4075, %v4071
        %v5636 = vpack.c.bf16 %v4080, %v4076
        %v5637 = vpack.c.bf16 %v4081, %v4077
        %v5638 = vpack.c.bf16 %v4082, %v4078
        %v5639 = vpack.c.bf16 %v4083, %v4079
        %v5640 = vpack.c.bf16 %v4088, %v4084
        %v5641 = vpack.c.bf16 %v4089, %v4085
        %v5642 = vpack.c.bf16 %v4090, %v4086
        %v5643 = vpack.c.bf16 %v4091, %v4087
        %v5644 = vpack.c.bf16 %v4096, %v4092
        %v5645 = vpack.c.bf16 %v4097, %v4093
        %v5646 = vpack.c.bf16 %v4098, %v4094
        %v5647 = vpack.c.bf16 %v4099, %v4095
        %v5648 = vpack.c.bf16 %v4104, %v4100
        %v5649 = vpack.c.bf16 %v4105, %v4101
        %v5650 = vpack.c.bf16 %v4106, %v4102
        %v5651 = vpack.c.bf16 %v4107, %v4103
        %v5652 = vpack.c.bf16 %v4112, %v4108
        %v5653 = vpack.c.bf16 %v4113, %v4109
        %v5654 = vpack.c.bf16 %v4114, %v4110
        %v5655 = vpack.c.bf16 %v4115, %v4111
        %v5656 = vpack.c.bf16 %v4120, %v4116
        %v5657 = vpack.c.bf16 %v4121, %v4117
        %v5658 = vpack.c.bf16 %v4122, %v4118
        %v5659 = vpack.c.bf16 %v4123, %v4119
        %v5660 = vpack.c.bf16 %v4128, %v4124
        %v5661 = vpack.c.bf16 %v4129, %v4125
        %v5662 = vpack.c.bf16 %v4130, %v4126
        %v5663 = vpack.c.bf16 %v4131, %v4127
        %v5664 = vpack.c.bf16 %v4136, %v4132
        %v5665 = vpack.c.bf16 %v4137, %v4133
        %v5666 = vpack.c.bf16 %v4138, %v4134
        %v5667 = vpack.c.bf16 %v4139, %v4135
        %v5668 = vpack.c.bf16 %v4144, %v4140
        %v5669 = vpack.c.bf16 %v4145, %v4141
        %v5670 = vpack.c.bf16 %v4146, %v4142
        %v5671 = vpack.c.bf16 %v4147, %v4143
        %v5672 = vpack.c.bf16 %v4152, %v4148
        %v5673 = vpack.c.bf16 %v4153, %v4149
        %v5674 = vpack.c.bf16 %v4154, %v4150
        %v5675 = vpack.c.bf16 %v4155, %v4151
        %v5676 = vpack.c.bf16 %v4160, %v4156
        %v5677 = vpack.c.bf16 %v4161, %v4157
        %v5678 = vpack.c.bf16 %v4162, %v4158
        %v5679 = vpack.c.bf16 %v4163, %v4159
        %v5680 = vpack.c.bf16 %v4168, %v4164
        %v5681 = vpack.c.bf16 %v4169, %v4165
        %v5682 = vpack.c.bf16 %v4170, %v4166
        %v5683 = vpack.c.bf16 %v4171, %v4167
        %v5684 = vpack.c.bf16 %v4176, %v4172
        %v5685 = vpack.c.bf16 %v4177, %v4173
        %v5686 = vpack.c.bf16 %v4178, %v4174
        %v5687 = vpack.c.bf16 %v4179, %v4175
        %v5688 = vpack.c.bf16 %v4184, %v4180
        %v5689 = vpack.c.bf16 %v4185, %v4181
        %v5690 = vpack.c.bf16 %v4186, %v4182
        %v5691 = vpack.c.bf16 %v4187, %v4183
        %v5692 = vpack.c.bf16 %v4192, %v4188
        %v5693 = vpack.c.bf16 %v4193, %v4189
        %v5694 = vpack.c.bf16 %v4194, %v4190
        %v5695 = vpack.c.bf16 %v4195, %v4191
        %v5696 = vpack.c.bf16 %v4200, %v4196
        %v5697 = vpack.c.bf16 %v4201, %v4197
        %v5698 = vpack.c.bf16 %v4202, %v4198
        %v5699 = vpack.c.bf16 %v4203, %v4199
        %v5700 = vpack.c.bf16 %v4208, %v4204
        %v5701 = vpack.c.bf16 %v4209, %v4205
        %v5702 = vpack.c.bf16 %v4210, %v4206
        %v5703 = vpack.c.bf16 %v4211, %v4207
        %v5704 = vpack.c.bf16 %v4216, %v4212
        %v5705 = vpack.c.bf16 %v4217, %v4213
        %v5706 = vpack.c.bf16 %v4218, %v4214
        %v5707 = vpack.c.bf16 %v4219, %v4215
        %v5708 = vpack.c.bf16 %v4224, %v4220
        %v5709 = vpack.c.bf16 %v4225, %v4221
        %v5710 = vpack.c.bf16 %v4226, %v4222
        %v5711 = vpack.c.bf16 %v4227, %v4223
        %v5712 = vpack.c.bf16 %v4232, %v4228
        %v5713 = vpack.c.bf16 %v4233, %v4229
        %v5714 = vpack.c.bf16 %v4234, %v4230
        %v5715 = vpack.c.bf16 %v4235, %v4231
        %v5716 = vpack.c.bf16 %v4240, %v4236
        %v5717 = vpack.c.bf16 %v4241, %v4237
        %v5718 = vpack.c.bf16 %v4242, %v4238
        %v5719 = vpack.c.bf16 %v4243, %v4239
        %v5720 = vpack.c.bf16 %v4248, %v4244
        %v5721 = vpack.c.bf16 %v4249, %v4245
        %v5722 = vpack.c.bf16 %v4250, %v4246
        %v5723 = vpack.c.bf16 %v4251, %v4247
        %v5724 = vpack.c.bf16 %v4256, %v4252
        %v5725 = vpack.c.bf16 %v4257, %v4253
        %v5726 = vpack.c.bf16 %v4258, %v4254
        %v5727 = vpack.c.bf16 %v4259, %v4255
        %v5728 = vpack.c.bf16 %v4264, %v4260
        %v5729 = vpack.c.bf16 %v4265, %v4261
        %v5730 = vpack.c.bf16 %v4266, %v4262
        %v5731 = vpack.c.bf16 %v4267, %v4263
        %v5732 = vpack.c.bf16 %v4272, %v4268
        %v5733 = vpack.c.bf16 %v4273, %v4269
        %v5734 = vpack.c.bf16 %v4274, %v4270
        %v5735 = vpack.c.bf16 %v4275, %v4271
        %v5736 = vpack.c.bf16 %v4280, %v4276
        %v5737 = vpack.c.bf16 %v4281, %v4277
        %v5738 = vpack.c.bf16 %v4282, %v4278
        %v5739 = vpack.c.bf16 %v4283, %v4279
        %v5740 = vpack.c.bf16 %v4288, %v4284
        %v5741 = vpack.c.bf16 %v4289, %v4285
        %v5742 = vpack.c.bf16 %v4290, %v4286
        %v5743 = vpack.c.bf16 %v4291, %v4287
        %v5744 = vpack.c.bf16 %v4296, %v4292
        %v5745 = vpack.c.bf16 %v4297, %v4293
        %v5746 = vpack.c.bf16 %v4298, %v4294
        %v5747 = vpack.c.bf16 %v4299, %v4295
        %v5748 = vpack.c.bf16 %v4304, %v4300
        %v5749 = vpack.c.bf16 %v4305, %v4301
        %v5750 = vpack.c.bf16 %v4306, %v4302
        %v5751 = vpack.c.bf16 %v4307, %v4303
        %v5752 = vpack.c.bf16 %v4312, %v4308
        %v5753 = vpack.c.bf16 %v4313, %v4309
        %v5754 = vpack.c.bf16 %v4314, %v4310
        %v5755 = vpack.c.bf16 %v4315, %v4311
        %v5756 = vpack.c.bf16 %v4320, %v4316
        %v5757 = vpack.c.bf16 %v4321, %v4317
        %v5758 = vpack.c.bf16 %v4322, %v4318
        %v5759 = vpack.c.bf16 %v4323, %v4319
        %v5760 = vpack.c.bf16 %v4328, %v4324
        %v5761 = vpack.c.bf16 %v4329, %v4325
        %v5762 = vpack.c.bf16 %v4330, %v4326
        %v5763 = vpack.c.bf16 %v4331, %v4327
        %v5764 = vpack.c.bf16 %v4336, %v4332
        %v5765 = vpack.c.bf16 %v4337, %v4333
        %v5766 = vpack.c.bf16 %v4338, %v4334
        %v5767 = vpack.c.bf16 %v4339, %v4335
        %v5768 = vpack.c.bf16 %v4344, %v4340
        %v5769 = vpack.c.bf16 %v4345, %v4341
        %v5770 = vpack.c.bf16 %v4346, %v4342
        %v5771 = vpack.c.bf16 %v4347, %v4343
        %v5772 = vpack.c.bf16 %v4352, %v4348
        %v5773 = vpack.c.bf16 %v4353, %v4349
        %v5774 = vpack.c.bf16 %v4354, %v4350
        %v5775 = vpack.c.bf16 %v4355, %v4351
        %v5776 = vpack.c.bf16 %v4360, %v4356
        %v5777 = vpack.c.bf16 %v4361, %v4357
        %v5778 = vpack.c.bf16 %v4362, %v4358
        %v5779 = vpack.c.bf16 %v4363, %v4359
        %v5780 = vpack.c.bf16 %v4368, %v4364
        %v5781 = vpack.c.bf16 %v4369, %v4365
        %v5782 = vpack.c.bf16 %v4370, %v4366
        %v5783 = vpack.c.bf16 %v4371, %v4367
        %v5784 = vpack.c.bf16 %v4376, %v4372
        %v5785 = vpack.c.bf16 %v4377, %v4373
        %v5786 = vpack.c.bf16 %v4378, %v4374
        %v5787 = vpack.c.bf16 %v4379, %v4375
        %v5788 = vpack.c.bf16 %v4384, %v4380
        %v5789 = vpack.c.bf16 %v4385, %v4381
        %v5790 = vpack.c.bf16 %v4386, %v4382
        %v5791 = vpack.c.bf16 %v4387, %v4383
        %v5792 = vpack.c.bf16 %v4392, %v4388
        %v5793 = vpack.c.bf16 %v4393, %v4389
        %v5794 = vpack.c.bf16 %v4394, %v4390
        %v5795 = vpack.c.bf16 %v4395, %v4391
        %v5796 = vpack.c.bf16 %v4400, %v4396
        %v5797 = vpack.c.bf16 %v4401, %v4397
        %v5798 = vpack.c.bf16 %v4402, %v4398
        %v5799 = vpack.c.bf16 %v4403, %v4399
        %v5800 = vpack.c.bf16 %v4408, %v4404
        %v5801 = vpack.c.bf16 %v4409, %v4405
        %v5802 = vpack.c.bf16 %v4410, %v4406
        %v5803 = vpack.c.bf16 %v4411, %v4407
        %v5804 = vpack.c.bf16 %v4416, %v4412
        %v5805 = vpack.c.bf16 %v4417, %v4413
        %v5806 = vpack.c.bf16 %v4418, %v4414
        %v5807 = vpack.c.bf16 %v4419, %v4415
        %v5808 = vpack.c.bf16 %v4424, %v4420
        %v5809 = vpack.c.bf16 %v4425, %v4421
        %v5810 = vpack.c.bf16 %v4426, %v4422
        %v5811 = vpack.c.bf16 %v4427, %v4423
        %v5812 = vpack.c.bf16 %v4432, %v4428
        %v5813 = vpack.c.bf16 %v4433, %v4429
        %v5814 = vpack.c.bf16 %v4434, %v4430
        %v5815 = vpack.c.bf16 %v4435, %v4431
        %v5816 = vpack.c.bf16 %v4440, %v4436
        %v5817 = vpack.c.bf16 %v4441, %v4437
        %v5818 = vpack.c.bf16 %v4442, %v4438
        %v5819 = vpack.c.bf16 %v4443, %v4439
        %v5820 = vpack.c.bf16 %v4448, %v4444
        %v5821 = vpack.c.bf16 %v4449, %v4445
        %v5822 = vpack.c.bf16 %v4450, %v4446
        %v5823 = vpack.c.bf16 %v4451, %v4447
        %v5824 = vpack.c.bf16 %v4456, %v4452
        %v5825 = vpack.c.bf16 %v4457, %v4453
        %v5826 = vpack.c.bf16 %v4458, %v4454
        %v5827 = vpack.c.bf16 %v4459, %v4455
        %v5828 = vpack.c.bf16 %v4464, %v4460
        %v5829 = vpack.c.bf16 %v4465, %v4461
        %v5830 = vpack.c.bf16 %v4466, %v4462
        %v5831 = vpack.c.bf16 %v4467, %v4463
        %v5832 = vpack.c.bf16 %v4472, %v4468
        %v5833 = vpack.c.bf16 %v4473, %v4469
        %v5834 = vpack.c.bf16 %v4474, %v4470
        %v5835 = vpack.c.bf16 %v4475, %v4471
        %v5836 = vpack.c.bf16 %v4480, %v4476
        %v5837 = vpack.c.bf16 %v4481, %v4477
        %v5838 = vpack.c.bf16 %v4482, %v4478
        %v5839 = vpack.c.bf16 %v4483, %v4479
        %v5840 = vpack.c.bf16 %v4488, %v4484
        %v5841 = vpack.c.bf16 %v4489, %v4485
        %v5842 = vpack.c.bf16 %v4490, %v4486
        %v5843 = vpack.c.bf16 %v4491, %v4487
        %v5844 = vpack.c.bf16 %v4496, %v4492
        %v5845 = vpack.c.bf16 %v4497, %v4493
        %v5846 = vpack.c.bf16 %v4498, %v4494
        %v5847 = vpack.c.bf16 %v4499, %v4495
        %v5848 = vpack.c.bf16 %v4504, %v4500
        %v5849 = vpack.c.bf16 %v4505, %v4501
        %v5850 = vpack.c.bf16 %v4506, %v4502
        %v5851 = vpack.c.bf16 %v4507, %v4503
        %v5852 = vpack.c.bf16 %v4512, %v4508
        %v5853 = vpack.c.bf16 %v4513, %v4509
        %v5854 = vpack.c.bf16 %v4514, %v4510
        %v5855 = vpack.c.bf16 %v4515, %v4511
        %v5856 = vpack.c.bf16 %v4520, %v4516
        %v5857 = vpack.c.bf16 %v4521, %v4517
        %v5858 = vpack.c.bf16 %v4522, %v4518
        %v5859 = vpack.c.bf16 %v4523, %v4519
        %v5860 = vpack.c.bf16 %v4528, %v4524
        %v5861 = vpack.c.bf16 %v4529, %v4525
        %v5862 = vpack.c.bf16 %v4530, %v4526
        %v5863 = vpack.c.bf16 %v4531, %v4527
        %v5864 = vpack.c.bf16 %v4536, %v4532
        %v5865 = vpack.c.bf16 %v4537, %v4533
        %v5866 = vpack.c.bf16 %v4538, %v4534
        %v5867 = vpack.c.bf16 %v4539, %v4535
        %v5868 = vpack.c.bf16 %v4544, %v4540
        %v5869 = vpack.c.bf16 %v4545, %v4541
        %v5870 = vpack.c.bf16 %v4546, %v4542
        %v5871 = vpack.c.bf16 %v4547, %v4543
        %v5872 = vpack.c.bf16 %v4552, %v4548
        %v5873 = vpack.c.bf16 %v4553, %v4549
        %v5874 = vpack.c.bf16 %v4554, %v4550
        %v5875 = vpack.c.bf16 %v4555, %v4551
        %v5876 = vpack.c.bf16 %v4560, %v4556
        %v5877 = vpack.c.bf16 %v4561, %v4557
        %v5878 = vpack.c.bf16 %v4562, %v4558
        %v5879 = vpack.c.bf16 %v4563, %v4559
        %v5880 = vpack.c.bf16 %v4568, %v4564
        %v5881 = vpack.c.bf16 %v4569, %v4565
        %v5882 = vpack.c.bf16 %v4570, %v4566
        %v5883 = vpack.c.bf16 %v4571, %v4567
        %v5884 = vpack.c.bf16 %v4576, %v4572
        %v5885 = vpack.c.bf16 %v4577, %v4573
        %v5886 = vpack.c.bf16 %v4578, %v4574
        %v5887 = vpack.c.bf16 %v4579, %v4575
        %v5888 = vpack.c.bf16 %v4584, %v4580
        %v5889 = vpack.c.bf16 %v4585, %v4581
        %v5890 = vpack.c.bf16 %v4586, %v4582
        %v5891 = vpack.c.bf16 %v4587, %v4583
        %v5892 = vpack.c.bf16 %v4592, %v4588
        %v5893 = vpack.c.bf16 %v4593, %v4589
        %v5894 = vpack.c.bf16 %v4594, %v4590
        %v5895 = vpack.c.bf16 %v4595, %v4591
        %v5896 = vpack.c.bf16 %v4600, %v4596
        %v5897 = vpack.c.bf16 %v4601, %v4597
        %v5898 = vpack.c.bf16 %v4602, %v4598
        %v5899 = vpack.c.bf16 %v4603, %v4599
        %v5900 = vpack.c.bf16 %v4608, %v4604
        %v5901 = vpack.c.bf16 %v4609, %v4605
        %v5902 = vpack.c.bf16 %v4610, %v4606
        %v5903 = vpack.c.bf16 %v4611, %v4607
        %v5904 = vpack.c.bf16 %v4616, %v4612
        %v5905 = vpack.c.bf16 %v4617, %v4613
        %v5906 = vpack.c.bf16 %v4618, %v4614
        %v5907 = vpack.c.bf16 %v4619, %v4615
        %v5908 = vpack.c.bf16 %v4624, %v4620
        %v5909 = vpack.c.bf16 %v4625, %v4621
        %v5910 = vpack.c.bf16 %v4626, %v4622
        %v5911 = vpack.c.bf16 %v4627, %v4623
        %v5912 = vpack.c.bf16 %v4632, %v4628
        %v5913 = vpack.c.bf16 %v4633, %v4629
        %v5914 = vpack.c.bf16 %v4634, %v4630
        %v5915 = vpack.c.bf16 %v4635, %v4631
        %v5916 = vpack.c.bf16 %v4640, %v4636
        %v5917 = vpack.c.bf16 %v4641, %v4637
        %v5918 = vpack.c.bf16 %v4642, %v4638
        %v5919 = vpack.c.bf16 %v4643, %v4639
        %v5920 = vpack.c.bf16 %v4648, %v4644
        %v5921 = vpack.c.bf16 %v4649, %v4645
        %v5922 = vpack.c.bf16 %v4650, %v4646
        %v5923 = vpack.c.bf16 %v4651, %v4647
        %v5924 = vpack.c.bf16 %v4656, %v4652
        %v5925 = vpack.c.bf16 %v4657, %v4653
        %v5926 = vpack.c.bf16 %v4658, %v4654
        %v5927 = vpack.c.bf16 %v4659, %v4655
        %v5928 = vpack.c.bf16 %v4664, %v4660
        %v5929 = vpack.c.bf16 %v4665, %v4661
        %v5930 = vpack.c.bf16 %v4666, %v4662
        %v5931 = vpack.c.bf16 %v4667, %v4663
        %v5932 = vpack.c.bf16 %v4672, %v4668
        %v5933 = vpack.c.bf16 %v4673, %v4669
        %v5934 = vpack.c.bf16 %v4674, %v4670
        %v5935 = vpack.c.bf16 %v4675, %v4671
        %v5936 = vpack.c.bf16 %v4680, %v4676
        %v5937 = vpack.c.bf16 %v4681, %v4677
        %v5938 = vpack.c.bf16 %v4682, %v4678
        %v5939 = vpack.c.bf16 %v4683, %v4679
        %v5940 = vpack.c.bf16 %v4688, %v4684
        %v5941 = vpack.c.bf16 %v4689, %v4685
        %v5942 = vpack.c.bf16 %v4690, %v4686
        %v5943 = vpack.c.bf16 %v4691, %v4687
        %v5944 = vpack.c.bf16 %v4696, %v4692
        %v5945 = vpack.c.bf16 %v4697, %v4693
        %v5946 = vpack.c.bf16 %v4698, %v4694
        %v5947 = vpack.c.bf16 %v4699, %v4695
        %v5948 = vpack.c.bf16 %v4704, %v4700
        %v5949 = vpack.c.bf16 %v4705, %v4701
        %v5950 = vpack.c.bf16 %v4706, %v4702
        %v5951 = vpack.c.bf16 %v4707, %v4703
        %v5952 = vpack.c.bf16 %v4712, %v4708
        %v5953 = vpack.c.bf16 %v4713, %v4709
        %v5954 = vpack.c.bf16 %v4714, %v4710
        %v5955 = vpack.c.bf16 %v4715, %v4711
        %v5956 = vpack.c.bf16 %v4720, %v4716
        %v5957 = vpack.c.bf16 %v4721, %v4717
        %v5958 = vpack.c.bf16 %v4722, %v4718
        %v5959 = vpack.c.bf16 %v4723, %v4719
        %v5960 = vpack.c.bf16 %v4728, %v4724
        %v5961 = vpack.c.bf16 %v4729, %v4725
        %v5962 = vpack.c.bf16 %v4730, %v4726
        %v5963 = vpack.c.bf16 %v4731, %v4727
        %v5964 = vpack.c.bf16 %v4736, %v4732
        %v5965 = vpack.c.bf16 %v4737, %v4733
        %v5966 = vpack.c.bf16 %v4738, %v4734
        %v5967 = vpack.c.bf16 %v4739, %v4735
        %v5968 = vpack.c.bf16 %v4744, %v4740
        %v5969 = vpack.c.bf16 %v4745, %v4741
        %v5970 = vpack.c.bf16 %v4746, %v4742
        %v5971 = vpack.c.bf16 %v4747, %v4743
        %v5972 = vpack.c.bf16 %v4752, %v4748
        %v5973 = vpack.c.bf16 %v4753, %v4749
        %v5974 = vpack.c.bf16 %v4754, %v4750
        %v5975 = vpack.c.bf16 %v4755, %v4751
        %v5976 = vpack.c.bf16 %v4760, %v4756
        %v5977 = vpack.c.bf16 %v4761, %v4757
        %v5978 = vpack.c.bf16 %v4762, %v4758
        %v5979 = vpack.c.bf16 %v4763, %v4759
        %v5980 = vpack.c.bf16 %v4768, %v4764
        %v5981 = vpack.c.bf16 %v4769, %v4765
        %v5982 = vpack.c.bf16 %v4770, %v4766
        %v5983 = vpack.c.bf16 %v4771, %v4767
        %v5984 = vpack.c.bf16 %v4776, %v4772
        %v5985 = vpack.c.bf16 %v4777, %v4773
        %v5986 = vpack.c.bf16 %v4778, %v4774
        %v5987 = vpack.c.bf16 %v4779, %v4775
        %v5988 = vpack.c.bf16 %v4784, %v4780
        %v5989 = vpack.c.bf16 %v4785, %v4781
        %v5990 = vpack.c.bf16 %v4786, %v4782
        %v5991 = vpack.c.bf16 %v4787, %v4783
        %v5992 = vpack.c.bf16 %v4792, %v4788
        %v5993 = vpack.c.bf16 %v4793, %v4789
        %v5994 = vpack.c.bf16 %v4794, %v4790
        %v5995 = vpack.c.bf16 %v4795, %v4791
        %v5996 = vpack.c.bf16 %v4800, %v4796
        %v5997 = vpack.c.bf16 %v4801, %v4797
        %v5998 = vpack.c.bf16 %v4802, %v4798
        %v5999 = vpack.c.bf16 %v4803, %v4799
        %v6000 = vpack.c.bf16 %v4808, %v4804
        %v6001 = vpack.c.bf16 %v4809, %v4805
        %v6002 = vpack.c.bf16 %v4810, %v4806
        %v6003 = vpack.c.bf16 %v4811, %v4807
        %v6004 = vpack.c.bf16 %v4816, %v4812
        %v6005 = vpack.c.bf16 %v4817, %v4813
        %v6006 = vpack.c.bf16 %v4818, %v4814
        %v6007 = vpack.c.bf16 %v4819, %v4815
        %v6008 = vpack.c.bf16 %v4824, %v4820
        %v6009 = vpack.c.bf16 %v4825, %v4821
        %v6010 = vpack.c.bf16 %v4826, %v4822
        %v6011 = vpack.c.bf16 %v4827, %v4823
        %v6012 = vpack.c.bf16 %v4832, %v4828
        %v6013 = vpack.c.bf16 %v4833, %v4829
        %v6014 = vpack.c.bf16 %v4834, %v4830
        %v6015 = vpack.c.bf16 %v4835, %v4831
        %v6016 = vpack.c.bf16 %v4840, %v4836
        %v6017 = vpack.c.bf16 %v4841, %v4837
        %v6018 = vpack.c.bf16 %v4842, %v4838
        %v6019 = vpack.c.bf16 %v4843, %v4839
        %v6020 = vpack.c.bf16 %v4848, %v4844
        %v6021 = vpack.c.bf16 %v4849, %v4845
        %v6022 = vpack.c.bf16 %v4850, %v4846
        %v6023 = vpack.c.bf16 %v4851, %v4847
        %v6024 = vpack.c.bf16 %v4856, %v4852
        %v6025 = vpack.c.bf16 %v4857, %v4853
        %v6026 = vpack.c.bf16 %v4858, %v4854
        %v6027 = vpack.c.bf16 %v4859, %v4855
        %v6028 = vpack.c.bf16 %v4864, %v4860
        %v6029 = vpack.c.bf16 %v4865, %v4861
        %v6030 = vpack.c.bf16 %v4866, %v4862
        %v6031 = vpack.c.bf16 %v4867, %v4863
        %v6032 = vpack.c.bf16 %v4872, %v4868
        %v6033 = vpack.c.bf16 %v4873, %v4869
        %v6034 = vpack.c.bf16 %v4874, %v4870
        %v6035 = vpack.c.bf16 %v4875, %v4871
        %v6036 = vpack.c.bf16 %v4880, %v4876
        %v6037 = vpack.c.bf16 %v4881, %v4877
        %v6038 = vpack.c.bf16 %v4882, %v4878
        %v6039 = vpack.c.bf16 %v4883, %v4879
        %v6040 = vpack.c.bf16 %v4888, %v4884
        %v6041 = vpack.c.bf16 %v4889, %v4885
        %v6042 = vpack.c.bf16 %v4890, %v4886
        %v6043 = vpack.c.bf16 %v4891, %v4887
        %v6044 = vpack.c.bf16 %v4896, %v4892
        %v6045 = vpack.c.bf16 %v4897, %v4893
        %v6046 = vpack.c.bf16 %v4898, %v4894
        %v6047 = vpack.c.bf16 %v4899, %v4895
        %v6048 = vpack.c.bf16 %v4904, %v4900
        %v6049 = vpack.c.bf16 %v4905, %v4901
        %v6050 = vpack.c.bf16 %v4906, %v4902
        %v6051 = vpack.c.bf16 %v4907, %v4903
        %v6052 = vpack.c.bf16 %v4912, %v4908
        %v6053 = vpack.c.bf16 %v4913, %v4909
        %v6054 = vpack.c.bf16 %v4914, %v4910
        %v6055 = vpack.c.bf16 %v4915, %v4911
        %v6056 = vpack.c.bf16 %v4920, %v4916
        %v6057 = vpack.c.bf16 %v4921, %v4917
        %v6058 = vpack.c.bf16 %v4922, %v4918
        %v6059 = vpack.c.bf16 %v4923, %v4919
        %v6060 = vpack.c.bf16 %v4928, %v4924
        %v6061 = vpack.c.bf16 %v4929, %v4925
        %v6062 = vpack.c.bf16 %v4930, %v4926
        %v6063 = vpack.c.bf16 %v4931, %v4927
        %v6064 = vpack.c.bf16 %v4936, %v4932
        %v6065 = vpack.c.bf16 %v4937, %v4933
        %v6066 = vpack.c.bf16 %v4938, %v4934
        %v6067 = vpack.c.bf16 %v4939, %v4935
        %v6068 = vpack.c.bf16 %v4944, %v4940
        %v6069 = vpack.c.bf16 %v4945, %v4941
        %v6070 = vpack.c.bf16 %v4946, %v4942
        %v6071 = vpack.c.bf16 %v4947, %v4943
        %v6072 = vpack.c.bf16 %v4952, %v4948
        %v6073 = vpack.c.bf16 %v4953, %v4949
        %v6074 = vpack.c.bf16 %v4954, %v4950
        %v6075 = vpack.c.bf16 %v4955, %v4951
        %v6076 = vpack.c.bf16 %v4960, %v4956
        %v6077 = vpack.c.bf16 %v4961, %v4957
        %v6078 = vpack.c.bf16 %v4962, %v4958
        %v6079 = vpack.c.bf16 %v4963, %v4959
        %v6080 = vpack.c.bf16 %v4968, %v4964
        %v6081 = vpack.c.bf16 %v4969, %v4965
        %v6082 = vpack.c.bf16 %v4970, %v4966
        %v6083 = vpack.c.bf16 %v4971, %v4967
        %v6084 = vpack.c.bf16 %v4976, %v4972
        %v6085 = vpack.c.bf16 %v4977, %v4973
        %v6086 = vpack.c.bf16 %v4978, %v4974
        %v6087 = vpack.c.bf16 %v4979, %v4975
        %v6088 = vpack.c.bf16 %v4984, %v4980
        %v6089 = vpack.c.bf16 %v4985, %v4981
        %v6090 = vpack.c.bf16 %v4986, %v4982
        %v6091 = vpack.c.bf16 %v4987, %v4983
        %v6092 = vpack.c.bf16 %v4992, %v4988
        %v6093 = vpack.c.bf16 %v4993, %v4989
        %v6094 = vpack.c.bf16 %v4994, %v4990
        %v6095 = vpack.c.bf16 %v4995, %v4991
        %v6096 = vpack.c.bf16 %v5000, %v4996
        %v6097 = vpack.c.bf16 %v5001, %v4997
        %v6098 = vpack.c.bf16 %v5002, %v4998
        %v6099 = vpack.c.bf16 %v5003, %v4999
        %v6100 = vpack.c.bf16 %v5008, %v5004
        %v6101 = vpack.c.bf16 %v5009, %v5005
        %v6102 = vpack.c.bf16 %v5010, %v5006
        %v6103 = vpack.c.bf16 %v5011, %v5007
        %v6104 = vpack.c.bf16 %v5016, %v5012
        %v6105 = vpack.c.bf16 %v5017, %v5013
        %v6106 = vpack.c.bf16 %v5018, %v5014
        %v6107 = vpack.c.bf16 %v5019, %v5015
        %v6108 = vpack.c.bf16 %v5024, %v5020
        %v6109 = vpack.c.bf16 %v5025, %v5021
        %v6110 = vpack.c.bf16 %v5026, %v5022
        %v6111 = vpack.c.bf16 %v5027, %v5023
        %v6112 = vpack.c.bf16 %v5032, %v5028
        %v6113 = vpack.c.bf16 %v5033, %v5029
        %v6114 = vpack.c.bf16 %v5034, %v5030
        %v6115 = vpack.c.bf16 %v5035, %v5031
        %v6116 = vpack.c.bf16 %v5040, %v5036
        %v6117 = vpack.c.bf16 %v5041, %v5037
        %v6118 = vpack.c.bf16 %v5042, %v5038
        %v6119 = vpack.c.bf16 %v5043, %v5039
        %v6120 = vpack.c.bf16 %v5048, %v5044
        %v6121 = vpack.c.bf16 %v5049, %v5045
        %v6122 = vpack.c.bf16 %v5050, %v5046
        %v6123 = vpack.c.bf16 %v5051, %v5047
        %v6124 = vpack.c.bf16 %v5056, %v5052
        %v6125 = vpack.c.bf16 %v5057, %v5053
        %v6126 = vpack.c.bf16 %v5058, %v5054
        %v6127 = vpack.c.bf16 %v5059, %v5055
        %v6128 = vpack.c.bf16 %v5064, %v5060
        %v6129 = vpack.c.bf16 %v5065, %v5061
        %v6130 = vpack.c.bf16 %v5066, %v5062
        %v6131 = vpack.c.bf16 %v5067, %v5063
        %v6132 = vpack.c.bf16 %v5072, %v5068
        %v6133 = vpack.c.bf16 %v5073, %v5069
        %v6134 = vpack.c.bf16 %v5074, %v5070
        %v6135 = vpack.c.bf16 %v5075, %v5071
        %v6136 = vpack.c.bf16 %v5080, %v5076
        %v6137 = vpack.c.bf16 %v5081, %v5077
        %v6138 = vpack.c.bf16 %v5082, %v5078
        %v6139 = vpack.c.bf16 %v5083, %v5079
        %v6140 = vpack.c.bf16 %v5088, %v5084
        %v6141 = vpack.c.bf16 %v5089, %v5085
        %v6142 = vpack.c.bf16 %v5090, %v5086
        %v6143 = vpack.c.bf16 %v5091, %v5087
        %v6144 = vpack.c.bf16 %v5096, %v5092
        %v6145 = vpack.c.bf16 %v5097, %v5093
        %v6146 = vpack.c.bf16 %v5098, %v5094
        %v6147 = vpack.c.bf16 %v5099, %v5095
        %v6148 = vpack.c.bf16 %v5104, %v5100
        %v6149 = vpack.c.bf16 %v5105, %v5101
        %v6150 = vpack.c.bf16 %v5106, %v5102
        %v6151 = vpack.c.bf16 %v5107, %v5103
        %v6152 = vpack.c.bf16 %v5112, %v5108
        %v6153 = vpack.c.bf16 %v5113, %v5109
        %v6154 = vpack.c.bf16 %v5114, %v5110
        %v6155 = vpack.c.bf16 %v5115, %v5111
        %v6156 = vpack.c.bf16 %v5120, %v5116
        %v6157 = vpack.c.bf16 %v5121, %v5117
        %v6158 = vpack.c.bf16 %v5122, %v5118
        %v6159 = vpack.c.bf16 %v5123, %v5119
        %v6160 = vpack.c.bf16 %v5128, %v5124
        %v6161 = vpack.c.bf16 %v5129, %v5125
        %v6162 = vpack.c.bf16 %v5130, %v5126
        %v6163 = vpack.c.bf16 %v5131, %v5127
        %v6164 = vpack.c.bf16 %v5136, %v5132
        %v6165 = vpack.c.bf16 %v5137, %v5133
        %v6166 = vpack.c.bf16 %v5138, %v5134
        %v6167 = vpack.c.bf16 %v5139, %v5135
        %v6168 = vpack.c.bf16 %v5144, %v5140
        %v6169 = vpack.c.bf16 %v5145, %v5141
        %v6170 = vpack.c.bf16 %v5146, %v5142
        %v6171 = vpack.c.bf16 %v5147, %v5143
        %v6172 = vld [vmem:[#allocation2] sm:$0xff]
        %6173 = vmatpush.bf16.msra.mxu0 %v5176
        %6174 = vmatpush.bf16.msra.mxu0 %v5172
        %6175 = vmatpush.bf16.msra.mxu0 %v5168
        %6176 = vmatpush.bf16.msra.mxu0 %v5164
        %6177 = vmatpush.bf16.msra.mxu0 %v5160
        %6178 = vmatpush.bf16.msra.mxu0 %v5156
        %6179 = vmatpush.bf16.msra.mxu0 %v5152
        %6180 = vmatpush.bf16.msra.mxu0 %v5148
        %6181 = vmatmul.bf16.gmra.mxu0 %v508
        %v6182 = vpop.f32.mrf.mxu0
        %v6183 = vadd.f32 0.0, %v6182
        %v6184 = vpop.f32.mrf.mxu0
        %6185 = vdwg.mxu0
        %6186 = vmatpush.bf16.msra.mxu0 %v5208
        %6187 = vmatpush.bf16.msra.mxu0 %v5204
        %6188 = vmatpush.bf16.msra.mxu0 %v5200
        %6189 = vmatpush.bf16.msra.mxu0 %v5196
        %6190 = vmatpush.bf16.msra.mxu0 %v5192
        %6191 = vmatpush.bf16.msra.mxu0 %v5188
        %6192 = vmatpush.bf16.msra.mxu0 %v5184
        %6193 = vmatpush.bf16.msra.mxu0 %v5180
        %6194 = vmatmul.bf16.gmra.mxu0 %v509
        %v6195 = vpop.f32.mrf.mxu0
        %v6196 = vadd.f32 %v6183, %v6195
        %v6197 = vpop.f32.mrf.mxu0
        %6198 = vdwg.mxu0
        %6199 = vmatpush.bf16.msra.mxu0 %v5240
        %6200 = vmatpush.bf16.msra.mxu0 %v5236
        %6201 = vmatpush.bf16.msra.mxu0 %v5232
        %6202 = vmatpush.bf16.msra.mxu0 %v5228
        %6203 = vmatpush.bf16.msra.mxu0 %v5224
        %6204 = vmatpush.bf16.msra.mxu0 %v5220
        %6205 = vmatpush.bf16.msra.mxu0 %v5216
        %6206 = vmatpush.bf16.msra.mxu0 %v5212
        %6207 = vmatmul.bf16.gmra.mxu0 %v510
        %v6208 = vpop.f32.mrf.mxu0
        %v6209 = vadd.f32 %v6196, %v6208
        %v6210 = vpop.f32.mrf.mxu0
        %6211 = vdwg.mxu0
        %6212 = vmatpush.bf16.msra.mxu0 %v5272
        %6213 = vmatpush.bf16.msra.mxu0 %v5268
        %6214 = vmatpush.bf16.msra.mxu0 %v5264
        %6215 = vmatpush.bf16.msra.mxu0 %v5260
        %6216 = vmatpush.bf16.msra.mxu0 %v5256
        %6217 = vmatpush.bf16.msra.mxu0 %v5252
        %6218 = vmatpush.bf16.msra.mxu0 %v5248
        %6219 = vmatpush.bf16.msra.mxu0 %v5244
        %6220 = vmatmul.bf16.gmra.mxu0 %v511
        %v6221 = vpop.f32.mrf.mxu0
        %v6222 = vadd.f32 %v6209, %v6221
        %v6223 = vpop.f32.mrf.mxu0
        %6224 = vdwg.mxu0
        %6225 = vmatpush.bf16.msra.mxu0 %v5304
        %6226 = vmatpush.bf16.msra.mxu0 %v5300
        %6227 = vmatpush.bf16.msra.mxu0 %v5296
        %6228 = vmatpush.bf16.msra.mxu0 %v5292
        %6229 = vmatpush.bf16.msra.mxu0 %v5288
        %6230 = vmatpush.bf16.msra.mxu0 %v5284
        %6231 = vmatpush.bf16.msra.mxu0 %v5280
        %6232 = vmatpush.bf16.msra.mxu0 %v5276
        %6233 = vmatmul.bf16.gmra.mxu0 %v512
        %v6234 = vpop.f32.mrf.mxu0
        %v6235 = vadd.f32 %v6222, %v6234
        %v6236 = vpop.f32.mrf.mxu0
        %6237 = vdwg.mxu0
        %6238 = vmatpush.bf16.msra.mxu0 %v5336
        %6239 = vmatpush.bf16.msra.mxu0 %v5332
        %6240 = vmatpush.bf16.msra.mxu0 %v5328
        %6241 = vmatpush.bf16.msra.mxu0 %v5324
        %6242 = vmatpush.bf16.msra.mxu0 %v5320
        %6243 = vmatpush.bf16.msra.mxu0 %v5316
        %6244 = vmatpush.bf16.msra.mxu0 %v5312
        %6245 = vmatpush.bf16.msra.mxu0 %v5308
        %6246 = vmatmul.bf16.gmra.mxu0 %v513
        %v6247 = vpop.f32.mrf.mxu0
        %v6248 = vadd.f32 %v6235, %v6247
        %v6249 = vpop.f32.mrf.mxu0
        %6250 = vdwg.mxu0
        %6251 = vmatpush.bf16.msra.mxu0 %v5368
        %6252 = vmatpush.bf16.msra.mxu0 %v5364
        %6253 = vmatpush.bf16.msra.mxu0 %v5360
        %6254 = vmatpush.bf16.msra.mxu0 %v5356
        %6255 = vmatpush.bf16.msra.mxu0 %v5352
        %6256 = vmatpush.bf16.msra.mxu0 %v5348
        %6257 = vmatpush.bf16.msra.mxu0 %v5344
        %6258 = vmatpush.bf16.msra.mxu0 %v5340
        %6259 = vmatmul.bf16.gmra.mxu0 %v514
        %v6260 = vpop.f32.mrf.mxu0
        %v6261 = vadd.f32 %v6248, %v6260
        %v6262 = vpop.f32.mrf.mxu0
        %6263 = vdwg.mxu0
        %6264 = vmatpush.bf16.msra.mxu0 %v5400
        %6265 = vmatpush.bf16.msra.mxu0 %v5396
        %6266 = vmatpush.bf16.msra.mxu0 %v5392
        %6267 = vmatpush.bf16.msra.mxu0 %v5388
        %6268 = vmatpush.bf16.msra.mxu0 %v5384
        %6269 = vmatpush.bf16.msra.mxu0 %v5380
        %6270 = vmatpush.bf16.msra.mxu0 %v5376
        %6271 = vmatpush.bf16.msra.mxu0 %v5372
        %6272 = vmatmul.bf16.gmra.mxu0 %v515
        %v6273 = vpop.f32.mrf.mxu0
        %v6274 = vadd.f32 %v6261, %v6273
        %v6275 = vpop.f32.mrf.mxu0
        %6276 = vdwg.mxu0
        %6277 = vmatpush.bf16.msra.mxu0 %v5432
        %6278 = vmatpush.bf16.msra.mxu0 %v5428
        %6279 = vmatpush.bf16.msra.mxu0 %v5424
        %6280 = vmatpush.bf16.msra.mxu0 %v5420
        %6281 = vmatpush.bf16.msra.mxu0 %v5416
        %6282 = vmatpush.bf16.msra.mxu0 %v5412
        %6283 = vmatpush.bf16.msra.mxu0 %v5408
        %6284 = vmatpush.bf16.msra.mxu0 %v5404
        %6285 = vmatmul.bf16.gmra.mxu0 %v516
        %v6286 = vpop.f32.mrf.mxu0
        %v6287 = vadd.f32 %v6274, %v6286
        %v6288 = vpop.f32.mrf.mxu0
        %6289 = vdwg.mxu0
        %6290 = vmatpush.bf16.msra.mxu0 %v5464
        %6291 = vmatpush.bf16.msra.mxu0 %v5460
        %6292 = vmatpush.bf16.msra.mxu0 %v5456
        %6293 = vmatpush.bf16.msra.mxu0 %v5452
        %6294 = vmatpush.bf16.msra.mxu0 %v5448
        %6295 = vmatpush.bf16.msra.mxu0 %v5444
        %6296 = vmatpush.bf16.msra.mxu0 %v5440
        %6297 = vmatpush.bf16.msra.mxu0 %v5436
        %6298 = vmatmul.bf16.gmra.mxu0 %v517
        %v6299 = vpop.f32.mrf.mxu0
        %v6300 = vadd.f32 %v6287, %v6299
        %v6301 = vpop.f32.mrf.mxu0
        %6302 = vdwg.mxu0
        %6303 = vmatpush.bf16.msra.mxu0 %v5496
        %6304 = vmatpush.bf16.msra.mxu0 %v5492
        %6305 = vmatpush.bf16.msra.mxu0 %v5488
        %6306 = vmatpush.bf16.msra.mxu0 %v5484
        %6307 = vmatpush.bf16.msra.mxu0 %v5480
        %6308 = vmatpush.bf16.msra.mxu0 %v5476
        %6309 = vmatpush.bf16.msra.mxu0 %v5472
        %6310 = vmatpush.bf16.msra.mxu0 %v5468
        %6311 = vmatmul.bf16.gmra.mxu0 %v518
        %v6312 = vpop.f32.mrf.mxu0
        %v6313 = vadd.f32 %v6300, %v6312
        %v6314 = vpop.f32.mrf.mxu0
        %6315 = vdwg.mxu0
        %6316 = vmatpush.bf16.msra.mxu0 %v5528
        %6317 = vmatpush.bf16.msra.mxu0 %v5524
        %6318 = vmatpush.bf16.msra.mxu0 %v5520
        %6319 = vmatpush.bf16.msra.mxu0 %v5516
        %6320 = vmatpush.bf16.msra.mxu0 %v5512
        %6321 = vmatpush.bf16.msra.mxu0 %v5508
        %6322 = vmatpush.bf16.msra.mxu0 %v5504
        %6323 = vmatpush.bf16.msra.mxu0 %v5500
        %6324 = vmatmul.bf16.gmra.mxu0 %v519
        %v6325 = vpop.f32.mrf.mxu0
        %v6326 = vadd.f32 %v6313, %v6325
        %v6327 = vpop.f32.mrf.mxu0
        %6328 = vdwg.mxu0
        %6329 = vmatpush.bf16.msra.mxu0 %v5560
        %6330 = vmatpush.bf16.msra.mxu0 %v5556
        %6331 = vmatpush.bf16.msra.mxu0 %v5552
        %6332 = vmatpush.bf16.msra.mxu0 %v5548
        %6333 = vmatpush.bf16.msra.mxu0 %v5544
        %6334 = vmatpush.bf16.msra.mxu0 %v5540
        %6335 = vmatpush.bf16.msra.mxu0 %v5536
        %6336 = vmatpush.bf16.msra.mxu0 %v5532
        %6337 = vmatmul.bf16.gmra.mxu0 %v520
        %v6338 = vpop.f32.mrf.mxu0
        %v6339 = vadd.f32 %v6326, %v6338
        %v6340 = vpop.f32.mrf.mxu0
        %6341 = vdwg.mxu0
        %6342 = vmatpush.bf16.msra.mxu0 %v5592
        %6343 = vmatpush.bf16.msra.mxu0 %v5588
        %6344 = vmatpush.bf16.msra.mxu0 %v5584
        %6345 = vmatpush.bf16.msra.mxu0 %v5580
        %6346 = vmatpush.bf16.msra.mxu0 %v5576
        %6347 = vmatpush.bf16.msra.mxu0 %v5572
        %6348 = vmatpush.bf16.msra.mxu0 %v5568
        %6349 = vmatpush.bf16.msra.mxu0 %v5564
        %6350 = vmatmul.bf16.gmra.mxu0 %v521
        %v6351 = vpop.f32.mrf.mxu0
        %v6352 = vadd.f32 %v6339, %v6351
        %v6353 = vpop.f32.mrf.mxu0
        %6354 = vdwg.mxu0
        %6355 = vmatpush.bf16.msra.mxu0 %v5624
        %6356 = vmatpush.bf16.msra.mxu0 %v5620
        %6357 = vmatpush.bf16.msra.mxu0 %v5616
        %6358 = vmatpush.bf16.msra.mxu0 %v5612
        %6359 = vmatpush.bf16.msra.mxu0 %v5608
        %6360 = vmatpush.bf16.msra.mxu0 %v5604
        %6361 = vmatpush.bf16.msra.mxu0 %v5600
        %6362 = vmatpush.bf16.msra.mxu0 %v5596
        %6363 = vmatmul.bf16.gmra.mxu0 %v522
        %v6364 = vpop.f32.mrf.mxu0
        %v6365 = vadd.f32 %v6352, %v6364
        %v6366 = vpop.f32.mrf.mxu0
        %6367 = vdwg.mxu0
        %6368 = vmatpush.bf16.msra.mxu0 %v5656
        %6369 = vmatpush.bf16.msra.mxu0 %v5652
        %6370 = vmatpush.bf16.msra.mxu0 %v5648
        %6371 = vmatpush.bf16.msra.mxu0 %v5644
        %6372 = vmatpush.bf16.msra.mxu0 %v5640
        %6373 = vmatpush.bf16.msra.mxu0 %v5636
        %6374 = vmatpush.bf16.msra.mxu0 %v5632
        %6375 = vmatpush.bf16.msra.mxu0 %v5628
        %6376 = vmatmul.bf16.gmra.mxu0 %v523
        %v6377 = vpop.f32.mrf.mxu0
        %v6378 = vadd.f32 %v6365, %v6377
        %v6379 = vpop.f32.mrf.mxu0
        %6380 = vdwg.mxu0
        %6381 = vmatpush.bf16.msra.mxu0 %v5688
        %6382 = vmatpush.bf16.msra.mxu0 %v5684
        %6383 = vmatpush.bf16.msra.mxu0 %v5680
        %6384 = vmatpush.bf16.msra.mxu0 %v5676
        %6385 = vmatpush.bf16.msra.mxu0 %v5672
        %6386 = vmatpush.bf16.msra.mxu0 %v5668
        %6387 = vmatpush.bf16.msra.mxu0 %v5664
        %6388 = vmatpush.bf16.msra.mxu0 %v5660
        %6389 = vmatmul.bf16.gmra.mxu0 %v524
        %v6390 = vpop.f32.mrf.mxu0
        %v6391 = vadd.f32 %v6378, %v6390
        %v6392 = vpop.f32.mrf.mxu0
        %6393 = vdwg.mxu0
        %6394 = vmatpush.bf16.msra.mxu0 %v5720
        %6395 = vmatpush.bf16.msra.mxu0 %v5716
        %6396 = vmatpush.bf16.msra.mxu0 %v5712
        %6397 = vmatpush.bf16.msra.mxu0 %v5708
        %6398 = vmatpush.bf16.msra.mxu0 %v5704
        %6399 = vmatpush.bf16.msra.mxu0 %v5700
        %6400 = vmatpush.bf16.msra.mxu0 %v5696
        %6401 = vmatpush.bf16.msra.mxu0 %v5692
        %6402 = vmatmul.bf16.gmra.mxu0 %v525
        %v6403 = vpop.f32.mrf.mxu0
        %v6404 = vadd.f32 %v6391, %v6403
        %v6405 = vpop.f32.mrf.mxu0
        %6406 = vdwg.mxu0
        %6407 = vmatpush.bf16.msra.mxu0 %v5752
        %6408 = vmatpush.bf16.msra.mxu0 %v5748
        %6409 = vmatpush.bf16.msra.mxu0 %v5744
        %6410 = vmatpush.bf16.msra.mxu0 %v5740
        %6411 = vmatpush.bf16.msra.mxu0 %v5736
        %6412 = vmatpush.bf16.msra.mxu0 %v5732
        %6413 = vmatpush.bf16.msra.mxu0 %v5728
        %6414 = vmatpush.bf16.msra.mxu0 %v5724
        %6415 = vmatmul.bf16.gmra.mxu0 %v526
        %v6416 = vpop.f32.mrf.mxu0
        %v6417 = vadd.f32 %v6404, %v6416
        %v6418 = vpop.f32.mrf.mxu0
        %6419 = vdwg.mxu0
        %6420 = vmatpush.bf16.msra.mxu0 %v5784
        %6421 = vmatpush.bf16.msra.mxu0 %v5780
        %6422 = vmatpush.bf16.msra.mxu0 %v5776
        %6423 = vmatpush.bf16.msra.mxu0 %v5772
        %6424 = vmatpush.bf16.msra.mxu0 %v5768
        %6425 = vmatpush.bf16.msra.mxu0 %v5764
        %6426 = vmatpush.bf16.msra.mxu0 %v5760
        %6427 = vmatpush.bf16.msra.mxu0 %v5756
        %6428 = vmatmul.bf16.gmra.mxu0 %v527
        %v6429 = vpop.f32.mrf.mxu0
        %v6430 = vadd.f32 %v6417, %v6429
        %v6431 = vpop.f32.mrf.mxu0
        %6432 = vdwg.mxu0
        %6433 = vmatpush.bf16.msra.mxu0 %v5816
        %6434 = vmatpush.bf16.msra.mxu0 %v5812
        %6435 = vmatpush.bf16.msra.mxu0 %v5808
        %6436 = vmatpush.bf16.msra.mxu0 %v5804
        %6437 = vmatpush.bf16.msra.mxu0 %v5800
        %6438 = vmatpush.bf16.msra.mxu0 %v5796
        %6439 = vmatpush.bf16.msra.mxu0 %v5792
        %6440 = vmatpush.bf16.msra.mxu0 %v5788
        %6441 = vmatmul.bf16.gmra.mxu0 %v528
        %v6442 = vpop.f32.mrf.mxu0
        %v6443 = vadd.f32 %v6430, %v6442
        %v6444 = vpop.f32.mrf.mxu0
        %6445 = vdwg.mxu0
        %6446 = vmatpush.bf16.msra.mxu0 %v5848
        %6447 = vmatpush.bf16.msra.mxu0 %v5844
        %6448 = vmatpush.bf16.msra.mxu0 %v5840
        %6449 = vmatpush.bf16.msra.mxu0 %v5836
        %6450 = vmatpush.bf16.msra.mxu0 %v5832
        %6451 = vmatpush.bf16.msra.mxu0 %v5828
        %6452 = vmatpush.bf16.msra.mxu0 %v5824
        %6453 = vmatpush.bf16.msra.mxu0 %v5820
        %6454 = vmatmul.bf16.gmra.mxu0 %v529
        %v6455 = vpop.f32.mrf.mxu0
        %v6456 = vadd.f32 %v6443, %v6455
        %v6457 = vpop.f32.mrf.mxu0
        %6458 = vdwg.mxu0
        %6459 = vmatpush.bf16.msra.mxu0 %v5880
        %6460 = vmatpush.bf16.msra.mxu0 %v5876
        %6461 = vmatpush.bf16.msra.mxu0 %v5872
        %6462 = vmatpush.bf16.msra.mxu0 %v5868
        %6463 = vmatpush.bf16.msra.mxu0 %v5864
        %6464 = vmatpush.bf16.msra.mxu0 %v5860
        %6465 = vmatpush.bf16.msra.mxu0 %v5856
        %6466 = vmatpush.bf16.msra.mxu0 %v5852
        %6467 = vmatmul.bf16.gmra.mxu0 %v530
        %v6468 = vpop.f32.mrf.mxu0
        %v6469 = vadd.f32 %v6456, %v6468
        %v6470 = vpop.f32.mrf.mxu0
        %6471 = vdwg.mxu0
        %6472 = vmatpush.bf16.msra.mxu0 %v5912
        %6473 = vmatpush.bf16.msra.mxu0 %v5908
        %6474 = vmatpush.bf16.msra.mxu0 %v5904
        %6475 = vmatpush.bf16.msra.mxu0 %v5900
        %6476 = vmatpush.bf16.msra.mxu0 %v5896
        %6477 = vmatpush.bf16.msra.mxu0 %v5892
        %6478 = vmatpush.bf16.msra.mxu0 %v5888
        %6479 = vmatpush.bf16.msra.mxu0 %v5884
        %6480 = vmatmul.bf16.gmra.mxu0 %v531
        %v6481 = vpop.f32.mrf.mxu0
        %v6482 = vadd.f32 %v6469, %v6481
        %v6483 = vpop.f32.mrf.mxu0
        %6484 = vdwg.mxu0
        %6485 = vmatpush.bf16.msra.mxu0 %v5944
        %6486 = vmatpush.bf16.msra.mxu0 %v5940
        %6487 = vmatpush.bf16.msra.mxu0 %v5936
        %6488 = vmatpush.bf16.msra.mxu0 %v5932
        %6489 = vmatpush.bf16.msra.mxu0 %v5928
        %6490 = vmatpush.bf16.msra.mxu0 %v5924
        %6491 = vmatpush.bf16.msra.mxu0 %v5920
        %6492 = vmatpush.bf16.msra.mxu0 %v5916
        %6493 = vmatmul.bf16.gmra.mxu0 %v532
        %v6494 = vpop.f32.mrf.mxu0
        %v6495 = vadd.f32 %v6482, %v6494
        %v6496 = vpop.f32.mrf.mxu0
        %6497 = vdwg.mxu0
        %6498 = vmatpush.bf16.msra.mxu0 %v5976
        %6499 = vmatpush.bf16.msra.mxu0 %v5972
        %6500 = vmatpush.bf16.msra.mxu0 %v5968
        %6501 = vmatpush.bf16.msra.mxu0 %v5964
        %6502 = vmatpush.bf16.msra.mxu0 %v5960
        %6503 = vmatpush.bf16.msra.mxu0 %v5956
        %6504 = vmatpush.bf16.msra.mxu0 %v5952
        %6505 = vmatpush.bf16.msra.mxu0 %v5948
        %6506 = vmatmul.bf16.gmra.mxu0 %v533
        %v6507 = vpop.f32.mrf.mxu0
        %v6508 = vadd.f32 %v6495, %v6507
        %v6509 = vpop.f32.mrf.mxu0
        %6510 = vdwg.mxu0
        %6511 = vmatpush.bf16.msra.mxu0 %v6008
        %6512 = vmatpush.bf16.msra.mxu0 %v6004
        %6513 = vmatpush.bf16.msra.mxu0 %v6000
        %6514 = vmatpush.bf16.msra.mxu0 %v5996
        %6515 = vmatpush.bf16.msra.mxu0 %v5992
        %6516 = vmatpush.bf16.msra.mxu0 %v5988
        %6517 = vmatpush.bf16.msra.mxu0 %v5984
        %6518 = vmatpush.bf16.msra.mxu0 %v5980
        %6519 = vmatmul.bf16.gmra.mxu0 %v534
        %v6520 = vpop.f32.mrf.mxu0
        %v6521 = vadd.f32 %v6508, %v6520
        %v6522 = vpop.f32.mrf.mxu0
        %6523 = vdwg.mxu0
        %6524 = vmatpush.bf16.msra.mxu0 %v6040
        %6525 = vmatpush.bf16.msra.mxu0 %v6036
        %6526 = vmatpush.bf16.msra.mxu0 %v6032
        %6527 = vmatpush.bf16.msra.mxu0 %v6028
        %6528 = vmatpush.bf16.msra.mxu0 %v6024
        %6529 = vmatpush.bf16.msra.mxu0 %v6020
        %6530 = vmatpush.bf16.msra.mxu0 %v6016
        %6531 = vmatpush.bf16.msra.mxu0 %v6012
        %6532 = vmatmul.bf16.gmra.mxu0 %v535
        %v6533 = vpop.f32.mrf.mxu0
        %v6534 = vadd.f32 %v6521, %v6533
        %v6535 = vpop.f32.mrf.mxu0
        %6536 = vdwg.mxu0
        %6537 = vmatpush.bf16.msra.mxu0 %v6072
        %6538 = vmatpush.bf16.msra.mxu0 %v6068
        %6539 = vmatpush.bf16.msra.mxu0 %v6064
        %6540 = vmatpush.bf16.msra.mxu0 %v6060
        %6541 = vmatpush.bf16.msra.mxu0 %v6056
        %6542 = vmatpush.bf16.msra.mxu0 %v6052
        %6543 = vmatpush.bf16.msra.mxu0 %v6048
        %6544 = vmatpush.bf16.msra.mxu0 %v6044
        %6545 = vmatmul.bf16.gmra.mxu0 %v536
        %v6546 = vpop.f32.mrf.mxu0
        %v6547 = vadd.f32 %v6534, %v6546
        %v6548 = vpop.f32.mrf.mxu0
        %6549 = vdwg.mxu0
        %6550 = vmatpush.bf16.msra.mxu0 %v6104
        %6551 = vmatpush.bf16.msra.mxu0 %v6100
        %6552 = vmatpush.bf16.msra.mxu0 %v6096
        %6553 = vmatpush.bf16.msra.mxu0 %v6092
        %6554 = vmatpush.bf16.msra.mxu0 %v6088
        %6555 = vmatpush.bf16.msra.mxu0 %v6084
        %6556 = vmatpush.bf16.msra.mxu0 %v6080
        %6557 = vmatpush.bf16.msra.mxu0 %v6076
        %6558 = vmatmul.bf16.gmra.mxu0 %v537
        %v6559 = vpop.f32.mrf.mxu0
        %v6560 = vadd.f32 %v6547, %v6559
        %v6561 = vpop.f32.mrf.mxu0
        %6562 = vdwg.mxu0
        %6563 = vmatpush.bf16.msra.mxu0 %v6136
        %6564 = vmatpush.bf16.msra.mxu0 %v6132
        %6565 = vmatpush.bf16.msra.mxu0 %v6128
        %6566 = vmatpush.bf16.msra.mxu0 %v6124
        %6567 = vmatpush.bf16.msra.mxu0 %v6120
        %6568 = vmatpush.bf16.msra.mxu0 %v6116
        %6569 = vmatpush.bf16.msra.mxu0 %v6112
        %6570 = vmatpush.bf16.msra.mxu0 %v6108
        %6571 = vmatmul.bf16.gmra.mxu0 %v538
        %v6572 = vpop.f32.mrf.mxu0
        %v6573 = vadd.f32 %v6560, %v6572
        %v6574 = vpop.f32.mrf.mxu0
        %6575 = vdwg.mxu0
        %6576 = vmatpush.bf16.msra.mxu0 %v6168
        %6577 = vmatpush.bf16.msra.mxu0 %v6164
        %6578 = vmatpush.bf16.msra.mxu0 %v6160
        %6579 = vmatpush.bf16.msra.mxu0 %v6156
        %6580 = vmatpush.bf16.msra.mxu0 %v6152
        %6581 = vmatpush.bf16.msra.mxu0 %v6148
        %6582 = vmatpush.bf16.msra.mxu0 %v6144
        %6583 = vmatpush.bf16.msra.mxu0 %v6140
        %6584 = vmatmul.bf16.gmra.mxu0 %v539
        %v6585 = vpop.f32.mrf.mxu0
        %v6586 = vadd.f32 %v6573, %v6585
        %v6587 = vpop.f32.mrf.mxu0
        %6588 = vdwg.mxu0
        %6589 = vmatpush.bf16.msra.mxu0 %v5177
        %6590 = vmatpush.bf16.msra.mxu0 %v5173
        %6591 = vmatpush.bf16.msra.mxu0 %v5169
        %6592 = vmatpush.bf16.msra.mxu0 %v5165
        %6593 = vmatpush.bf16.msra.mxu0 %v5161
        %6594 = vmatpush.bf16.msra.mxu0 %v5157
        %6595 = vmatpush.bf16.msra.mxu0 %v5153
        %6596 = vmatpush.bf16.msra.mxu0 %v5149
        %6597 = vmatmul.bf16.gmra.mxu0 %v508
        %v6598 = vpop.f32.mrf.mxu0
        %v6599 = vadd.f32 0.0, %v6598
        %v6600 = vpop.f32.mrf.mxu0
        %6601 = vdwg.mxu0
        %6602 = vmatpush.bf16.msra.mxu0 %v5209
        %6603 = vmatpush.bf16.msra.mxu0 %v5205
        %6604 = vmatpush.bf16.msra.mxu0 %v5201
        %6605 = vmatpush.bf16.msra.mxu0 %v5197
        %6606 = vmatpush.bf16.msra.mxu0 %v5193
        %6607 = vmatpush.bf16.msra.mxu0 %v5189
        %6608 = vmatpush.bf16.msra.mxu0 %v5185
        %6609 = vmatpush.bf16.msra.mxu0 %v5181
        %6610 = vmatmul.bf16.gmra.mxu0 %v509
        %v6611 = vpop.f32.mrf.mxu0
        %v6612 = vadd.f32 %v6599, %v6611
        %v6613 = vpop.f32.mrf.mxu0
        %6614 = vdwg.mxu0
        %6615 = vmatpush.bf16.msra.mxu0 %v5241
        %6616 = vmatpush.bf16.msra.mxu0 %v5237
        %6617 = vmatpush.bf16.msra.mxu0 %v5233
        %6618 = vmatpush.bf16.msra.mxu0 %v5229
        %6619 = vmatpush.bf16.msra.mxu0 %v5225
        %6620 = vmatpush.bf16.msra.mxu0 %v5221
        %6621 = vmatpush.bf16.msra.mxu0 %v5217
        %6622 = vmatpush.bf16.msra.mxu0 %v5213
        %6623 = vmatmul.bf16.gmra.mxu0 %v510
        %v6624 = vpop.f32.mrf.mxu0
        %v6625 = vadd.f32 %v6612, %v6624
        %v6626 = vpop.f32.mrf.mxu0
        %6627 = vdwg.mxu0
        %6628 = vmatpush.bf16.msra.mxu0 %v5273
        %6629 = vmatpush.bf16.msra.mxu0 %v5269
        %6630 = vmatpush.bf16.msra.mxu0 %v5265
        %6631 = vmatpush.bf16.msra.mxu0 %v5261
        %6632 = vmatpush.bf16.msra.mxu0 %v5257
        %6633 = vmatpush.bf16.msra.mxu0 %v5253
        %6634 = vmatpush.bf16.msra.mxu0 %v5249
        %6635 = vmatpush.bf16.msra.mxu0 %v5245
        %6636 = vmatmul.bf16.gmra.mxu0 %v511
        %v6637 = vpop.f32.mrf.mxu0
        %v6638 = vadd.f32 %v6625, %v6637
        %v6639 = vpop.f32.mrf.mxu0
        %6640 = vdwg.mxu0
        %6641 = vmatpush.bf16.msra.mxu0 %v5305
        %6642 = vmatpush.bf16.msra.mxu0 %v5301
        %6643 = vmatpush.bf16.msra.mxu0 %v5297
        %6644 = vmatpush.bf16.msra.mxu0 %v5293
        %6645 = vmatpush.bf16.msra.mxu0 %v5289
        %6646 = vmatpush.bf16.msra.mxu0 %v5285
        %6647 = vmatpush.bf16.msra.mxu0 %v5281
        %6648 = vmatpush.bf16.msra.mxu0 %v5277
        %6649 = vmatmul.bf16.gmra.mxu0 %v512
        %v6650 = vpop.f32.mrf.mxu0
        %v6651 = vadd.f32 %v6638, %v6650
        %v6652 = vpop.f32.mrf.mxu0
        %6653 = vdwg.mxu0
        %6654 = vmatpush.bf16.msra.mxu0 %v5337
        %6655 = vmatpush.bf16.msra.mxu0 %v5333
        %6656 = vmatpush.bf16.msra.mxu0 %v5329
        %6657 = vmatpush.bf16.msra.mxu0 %v5325
        %6658 = vmatpush.bf16.msra.mxu0 %v5321
        %6659 = vmatpush.bf16.msra.mxu0 %v5317
        %6660 = vmatpush.bf16.msra.mxu0 %v5313
        %6661 = vmatpush.bf16.msra.mxu0 %v5309
        %6662 = vmatmul.bf16.gmra.mxu0 %v513
        %v6663 = vpop.f32.mrf.mxu0
        %v6664 = vadd.f32 %v6651, %v6663
        %v6665 = vpop.f32.mrf.mxu0
        %6666 = vdwg.mxu0
        %6667 = vmatpush.bf16.msra.mxu0 %v5369
        %6668 = vmatpush.bf16.msra.mxu0 %v5365
        %6669 = vmatpush.bf16.msra.mxu0 %v5361
        %6670 = vmatpush.bf16.msra.mxu0 %v5357
        %6671 = vmatpush.bf16.msra.mxu0 %v5353
        %6672 = vmatpush.bf16.msra.mxu0 %v5349
        %6673 = vmatpush.bf16.msra.mxu0 %v5345
        %6674 = vmatpush.bf16.msra.mxu0 %v5341
        %6675 = vmatmul.bf16.gmra.mxu0 %v514
        %v6676 = vpop.f32.mrf.mxu0
        %v6677 = vadd.f32 %v6664, %v6676
        %v6678 = vpop.f32.mrf.mxu0
        %6679 = vdwg.mxu0
        %6680 = vmatpush.bf16.msra.mxu0 %v5401
        %6681 = vmatpush.bf16.msra.mxu0 %v5397
        %6682 = vmatpush.bf16.msra.mxu0 %v5393
        %6683 = vmatpush.bf16.msra.mxu0 %v5389
        %6684 = vmatpush.bf16.msra.mxu0 %v5385
        %6685 = vmatpush.bf16.msra.mxu0 %v5381
        %6686 = vmatpush.bf16.msra.mxu0 %v5377
        %6687 = vmatpush.bf16.msra.mxu0 %v5373
        %6688 = vmatmul.bf16.gmra.mxu0 %v515
        %v6689 = vpop.f32.mrf.mxu0
        %v6690 = vadd.f32 %v6677, %v6689
        %v6691 = vpop.f32.mrf.mxu0
        %6692 = vdwg.mxu0
        %6693 = vmatpush.bf16.msra.mxu0 %v5433
        %6694 = vmatpush.bf16.msra.mxu0 %v5429
        %6695 = vmatpush.bf16.msra.mxu0 %v5425
        %6696 = vmatpush.bf16.msra.mxu0 %v5421
        %6697 = vmatpush.bf16.msra.mxu0 %v5417
        %6698 = vmatpush.bf16.msra.mxu0 %v5413
        %6699 = vmatpush.bf16.msra.mxu0 %v5409
        %6700 = vmatpush.bf16.msra.mxu0 %v5405
        %6701 = vmatmul.bf16.gmra.mxu0 %v516
        %v6702 = vpop.f32.mrf.mxu0
        %v6703 = vadd.f32 %v6690, %v6702
        %v6704 = vpop.f32.mrf.mxu0
        %6705 = vdwg.mxu0
        %6706 = vmatpush.bf16.msra.mxu0 %v5465
        %6707 = vmatpush.bf16.msra.mxu0 %v5461
        %6708 = vmatpush.bf16.msra.mxu0 %v5457
        %6709 = vmatpush.bf16.msra.mxu0 %v5453
        %6710 = vmatpush.bf16.msra.mxu0 %v5449
        %6711 = vmatpush.bf16.msra.mxu0 %v5445
        %6712 = vmatpush.bf16.msra.mxu0 %v5441
        %6713 = vmatpush.bf16.msra.mxu0 %v5437
        %6714 = vmatmul.bf16.gmra.mxu0 %v517
        %v6715 = vpop.f32.mrf.mxu0
        %v6716 = vadd.f32 %v6703, %v6715
        %v6717 = vpop.f32.mrf.mxu0
        %6718 = vdwg.mxu0
        %6719 = vmatpush.bf16.msra.mxu0 %v5497
        %6720 = vmatpush.bf16.msra.mxu0 %v5493
        %6721 = vmatpush.bf16.msra.mxu0 %v5489
        %6722 = vmatpush.bf16.msra.mxu0 %v5485
        %6723 = vmatpush.bf16.msra.mxu0 %v5481
        %6724 = vmatpush.bf16.msra.mxu0 %v5477
        %6725 = vmatpush.bf16.msra.mxu0 %v5473
        %6726 = vmatpush.bf16.msra.mxu0 %v5469
        %6727 = vmatmul.bf16.gmra.mxu0 %v518
        %v6728 = vpop.f32.mrf.mxu0
        %v6729 = vadd.f32 %v6716, %v6728
        %v6730 = vpop.f32.mrf.mxu0
        %6731 = vdwg.mxu0
        %6732 = vmatpush.bf16.msra.mxu0 %v5529
        %6733 = vmatpush.bf16.msra.mxu0 %v5525
        %6734 = vmatpush.bf16.msra.mxu0 %v5521
        %6735 = vmatpush.bf16.msra.mxu0 %v5517
        %6736 = vmatpush.bf16.msra.mxu0 %v5513
        %6737 = vmatpush.bf16.msra.mxu0 %v5509
        %6738 = vmatpush.bf16.msra.mxu0 %v5505
        %6739 = vmatpush.bf16.msra.mxu0 %v5501
        %6740 = vmatmul.bf16.gmra.mxu0 %v519
        %v6741 = vpop.f32.mrf.mxu0
        %v6742 = vadd.f32 %v6729, %v6741
        %v6743 = vpop.f32.mrf.mxu0
        %6744 = vdwg.mxu0
        %6745 = vmatpush.bf16.msra.mxu0 %v5561
        %6746 = vmatpush.bf16.msra.mxu0 %v5557
        %6747 = vmatpush.bf16.msra.mxu0 %v5553
        %6748 = vmatpush.bf16.msra.mxu0 %v5549
        %6749 = vmatpush.bf16.msra.mxu0 %v5545
        %6750 = vmatpush.bf16.msra.mxu0 %v5541
        %6751 = vmatpush.bf16.msra.mxu0 %v5537
        %6752 = vmatpush.bf16.msra.mxu0 %v5533
        %6753 = vmatmul.bf16.gmra.mxu0 %v520
        %v6754 = vpop.f32.mrf.mxu0
        %v6755 = vadd.f32 %v6742, %v6754
        %v6756 = vpop.f32.mrf.mxu0
        %6757 = vdwg.mxu0
        %6758 = vmatpush.bf16.msra.mxu0 %v5593
        %6759 = vmatpush.bf16.msra.mxu0 %v5589
        %6760 = vmatpush.bf16.msra.mxu0 %v5585
        %6761 = vmatpush.bf16.msra.mxu0 %v5581
        %6762 = vmatpush.bf16.msra.mxu0 %v5577
        %6763 = vmatpush.bf16.msra.mxu0 %v5573
        %6764 = vmatpush.bf16.msra.mxu0 %v5569
        %6765 = vmatpush.bf16.msra.mxu0 %v5565
        %6766 = vmatmul.bf16.gmra.mxu0 %v521
        %v6767 = vpop.f32.mrf.mxu0
        %v6768 = vadd.f32 %v6755, %v6767
        %v6769 = vpop.f32.mrf.mxu0
        %6770 = vdwg.mxu0
        %6771 = vmatpush.bf16.msra.mxu0 %v5625
        %6772 = vmatpush.bf16.msra.mxu0 %v5621
        %6773 = vmatpush.bf16.msra.mxu0 %v5617
        %6774 = vmatpush.bf16.msra.mxu0 %v5613
        %6775 = vmatpush.bf16.msra.mxu0 %v5609
        %6776 = vmatpush.bf16.msra.mxu0 %v5605
        %6777 = vmatpush.bf16.msra.mxu0 %v5601
        %6778 = vmatpush.bf16.msra.mxu0 %v5597
        %6779 = vmatmul.bf16.gmra.mxu0 %v522
        %v6780 = vpop.f32.mrf.mxu0
        %v6781 = vadd.f32 %v6768, %v6780
        %v6782 = vpop.f32.mrf.mxu0
        %6783 = vdwg.mxu0
        %6784 = vmatpush.bf16.msra.mxu0 %v5657
        %6785 = vmatpush.bf16.msra.mxu0 %v5653
        %6786 = vmatpush.bf16.msra.mxu0 %v5649
        %6787 = vmatpush.bf16.msra.mxu0 %v5645
        %6788 = vmatpush.bf16.msra.mxu0 %v5641
        %6789 = vmatpush.bf16.msra.mxu0 %v5637
        %6790 = vmatpush.bf16.msra.mxu0 %v5633
        %6791 = vmatpush.bf16.msra.mxu0 %v5629
        %6792 = vmatmul.bf16.gmra.mxu0 %v523
        %v6793 = vpop.f32.mrf.mxu0
        %v6794 = vadd.f32 %v6781, %v6793
        %v6795 = vpop.f32.mrf.mxu0
        %6796 = vdwg.mxu0
        %6797 = vmatpush.bf16.msra.mxu0 %v5689
        %6798 = vmatpush.bf16.msra.mxu0 %v5685
        %6799 = vmatpush.bf16.msra.mxu0 %v5681
        %6800 = vmatpush.bf16.msra.mxu0 %v5677
        %6801 = vmatpush.bf16.msra.mxu0 %v5673
        %6802 = vmatpush.bf16.msra.mxu0 %v5669
        %6803 = vmatpush.bf16.msra.mxu0 %v5665
        %6804 = vmatpush.bf16.msra.mxu0 %v5661
        %6805 = vmatmul.bf16.gmra.mxu0 %v524
        %v6806 = vpop.f32.mrf.mxu0
        %v6807 = vadd.f32 %v6794, %v6806
        %v6808 = vpop.f32.mrf.mxu0
        %6809 = vdwg.mxu0
        %6810 = vmatpush.bf16.msra.mxu0 %v5721
        %6811 = vmatpush.bf16.msra.mxu0 %v5717
        %6812 = vmatpush.bf16.msra.mxu0 %v5713
        %6813 = vmatpush.bf16.msra.mxu0 %v5709
        %6814 = vmatpush.bf16.msra.mxu0 %v5705
        %6815 = vmatpush.bf16.msra.mxu0 %v5701
        %6816 = vmatpush.bf16.msra.mxu0 %v5697
        %6817 = vmatpush.bf16.msra.mxu0 %v5693
        %6818 = vmatmul.bf16.gmra.mxu0 %v525
        %v6819 = vpop.f32.mrf.mxu0
        %v6820 = vadd.f32 %v6807, %v6819
        %v6821 = vpop.f32.mrf.mxu0
        %6822 = vdwg.mxu0
        %6823 = vmatpush.bf16.msra.mxu0 %v5753
        %6824 = vmatpush.bf16.msra.mxu0 %v5749
        %6825 = vmatpush.bf16.msra.mxu0 %v5745
        %6826 = vmatpush.bf16.msra.mxu0 %v5741
        %6827 = vmatpush.bf16.msra.mxu0 %v5737
        %6828 = vmatpush.bf16.msra.mxu0 %v5733
        %6829 = vmatpush.bf16.msra.mxu0 %v5729
        %6830 = vmatpush.bf16.msra.mxu0 %v5725
        %6831 = vmatmul.bf16.gmra.mxu0 %v526
        %v6832 = vpop.f32.mrf.mxu0
        %v6833 = vadd.f32 %v6820, %v6832
        %v6834 = vpop.f32.mrf.mxu0
        %6835 = vdwg.mxu0
        %6836 = vmatpush.bf16.msra.mxu0 %v5785
        %6837 = vmatpush.bf16.msra.mxu0 %v5781
        %6838 = vmatpush.bf16.msra.mxu0 %v5777
        %6839 = vmatpush.bf16.msra.mxu0 %v5773
        %6840 = vmatpush.bf16.msra.mxu0 %v5769
        %6841 = vmatpush.bf16.msra.mxu0 %v5765
        %6842 = vmatpush.bf16.msra.mxu0 %v5761
        %6843 = vmatpush.bf16.msra.mxu0 %v5757
        %6844 = vmatmul.bf16.gmra.mxu0 %v527
        %v6845 = vpop.f32.mrf.mxu0
        %v6846 = vadd.f32 %v6833, %v6845
        %v6847 = vpop.f32.mrf.mxu0
        %6848 = vdwg.mxu0
        %6849 = vmatpush.bf16.msra.mxu0 %v5817
        %6850 = vmatpush.bf16.msra.mxu0 %v5813
        %6851 = vmatpush.bf16.msra.mxu0 %v5809
        %6852 = vmatpush.bf16.msra.mxu0 %v5805
        %6853 = vmatpush.bf16.msra.mxu0 %v5801
        %6854 = vmatpush.bf16.msra.mxu0 %v5797
        %6855 = vmatpush.bf16.msra.mxu0 %v5793
        %6856 = vmatpush.bf16.msra.mxu0 %v5789
        %6857 = vmatmul.bf16.gmra.mxu0 %v528
        %v6858 = vpop.f32.mrf.mxu0
        %v6859 = vadd.f32 %v6846, %v6858
        %v6860 = vpop.f32.mrf.mxu0
        %6861 = vdwg.mxu0
        %6862 = vmatpush.bf16.msra.mxu0 %v5849
        %6863 = vmatpush.bf16.msra.mxu0 %v5845
        %6864 = vmatpush.bf16.msra.mxu0 %v5841
        %6865 = vmatpush.bf16.msra.mxu0 %v5837
        %6866 = vmatpush.bf16.msra.mxu0 %v5833
        %6867 = vmatpush.bf16.msra.mxu0 %v5829
        %6868 = vmatpush.bf16.msra.mxu0 %v5825
        %6869 = vmatpush.bf16.msra.mxu0 %v5821
        %6870 = vmatmul.bf16.gmra.mxu0 %v529
        %v6871 = vpop.f32.mrf.mxu0
        %v6872 = vadd.f32 %v6859, %v6871
        %v6873 = vpop.f32.mrf.mxu0
        %6874 = vdwg.mxu0
        %6875 = vmatpush.bf16.msra.mxu0 %v5881
        %6876 = vmatpush.bf16.msra.mxu0 %v5877
        %6877 = vmatpush.bf16.msra.mxu0 %v5873
        %6878 = vmatpush.bf16.msra.mxu0 %v5869
        %6879 = vmatpush.bf16.msra.mxu0 %v5865
        %6880 = vmatpush.bf16.msra.mxu0 %v5861
        %6881 = vmatpush.bf16.msra.mxu0 %v5857
        %6882 = vmatpush.bf16.msra.mxu0 %v5853
        %6883 = vmatmul.bf16.gmra.mxu0 %v530
        %v6884 = vpop.f32.mrf.mxu0
        %v6885 = vadd.f32 %v6872, %v6884
        %v6886 = vpop.f32.mrf.mxu0
        %6887 = vdwg.mxu0
        %6888 = vmatpush.bf16.msra.mxu0 %v5913
        %6889 = vmatpush.bf16.msra.mxu0 %v5909
        %6890 = vmatpush.bf16.msra.mxu0 %v5905
        %6891 = vmatpush.bf16.msra.mxu0 %v5901
        %6892 = vmatpush.bf16.msra.mxu0 %v5897
        %6893 = vmatpush.bf16.msra.mxu0 %v5893
        %6894 = vmatpush.bf16.msra.mxu0 %v5889
        %6895 = vmatpush.bf16.msra.mxu0 %v5885
        %6896 = vmatmul.bf16.gmra.mxu0 %v531
        %v6897 = vpop.f32.mrf.mxu0
        %v6898 = vadd.f32 %v6885, %v6897
        %v6899 = vpop.f32.mrf.mxu0
        %6900 = vdwg.mxu0
        %6901 = vmatpush.bf16.msra.mxu0 %v5945
        %6902 = vmatpush.bf16.msra.mxu0 %v5941
        %6903 = vmatpush.bf16.msra.mxu0 %v5937
        %6904 = vmatpush.bf16.msra.mxu0 %v5933
        %6905 = vmatpush.bf16.msra.mxu0 %v5929
        %6906 = vmatpush.bf16.msra.mxu0 %v5925
        %6907 = vmatpush.bf16.msra.mxu0 %v5921
        %6908 = vmatpush.bf16.msra.mxu0 %v5917
        %6909 = vmatmul.bf16.gmra.mxu0 %v532
        %v6910 = vpop.f32.mrf.mxu0
        %v6911 = vadd.f32 %v6898, %v6910
        %v6912 = vpop.f32.mrf.mxu0
        %6913 = vdwg.mxu0
        %6914 = vmatpush.bf16.msra.mxu0 %v5977
        %6915 = vmatpush.bf16.msra.mxu0 %v5973
        %6916 = vmatpush.bf16.msra.mxu0 %v5969
        %6917 = vmatpush.bf16.msra.mxu0 %v5965
        %6918 = vmatpush.bf16.msra.mxu0 %v5961
        %6919 = vmatpush.bf16.msra.mxu0 %v5957
        %6920 = vmatpush.bf16.msra.mxu0 %v5953
        %6921 = vmatpush.bf16.msra.mxu0 %v5949
        %6922 = vmatmul.bf16.gmra.mxu0 %v533
        %v6923 = vpop.f32.mrf.mxu0
        %v6924 = vadd.f32 %v6911, %v6923
        %v6925 = vpop.f32.mrf.mxu0
        %6926 = vdwg.mxu0
        %6927 = vmatpush.bf16.msra.mxu0 %v6009
        %6928 = vmatpush.bf16.msra.mxu0 %v6005
        %6929 = vmatpush.bf16.msra.mxu0 %v6001
        %6930 = vmatpush.bf16.msra.mxu0 %v5997
        %6931 = vmatpush.bf16.msra.mxu0 %v5993
        %6932 = vmatpush.bf16.msra.mxu0 %v5989
        %6933 = vmatpush.bf16.msra.mxu0 %v5985
        %6934 = vmatpush.bf16.msra.mxu0 %v5981
        %6935 = vmatmul.bf16.gmra.mxu0 %v534
        %v6936 = vpop.f32.mrf.mxu0
        %v6937 = vadd.f32 %v6924, %v6936
        %v6938 = vpop.f32.mrf.mxu0
        %6939 = vdwg.mxu0
        %6940 = vmatpush.bf16.msra.mxu0 %v6041
        %6941 = vmatpush.bf16.msra.mxu0 %v6037
        %6942 = vmatpush.bf16.msra.mxu0 %v6033
        %6943 = vmatpush.bf16.msra.mxu0 %v6029
        %6944 = vmatpush.bf16.msra.mxu0 %v6025
        %6945 = vmatpush.bf16.msra.mxu0 %v6021
        %6946 = vmatpush.bf16.msra.mxu0 %v6017
        %6947 = vmatpush.bf16.msra.mxu0 %v6013
        %6948 = vmatmul.bf16.gmra.mxu0 %v535
        %v6949 = vpop.f32.mrf.mxu0
        %v6950 = vadd.f32 %v6937, %v6949
        %v6951 = vpop.f32.mrf.mxu0
        %6952 = vdwg.mxu0
        %6953 = vmatpush.bf16.msra.mxu0 %v6073
        %6954 = vmatpush.bf16.msra.mxu0 %v6069
        %6955 = vmatpush.bf16.msra.mxu0 %v6065
        %6956 = vmatpush.bf16.msra.mxu0 %v6061
        %6957 = vmatpush.bf16.msra.mxu0 %v6057
        %6958 = vmatpush.bf16.msra.mxu0 %v6053
        %6959 = vmatpush.bf16.msra.mxu0 %v6049
        %6960 = vmatpush.bf16.msra.mxu0 %v6045
        %6961 = vmatmul.bf16.gmra.mxu0 %v536
        %v6962 = vpop.f32.mrf.mxu0
        %v6963 = vadd.f32 %v6950, %v6962
        %v6964 = vpop.f32.mrf.mxu0
        %6965 = vdwg.mxu0
        %6966 = vmatpush.bf16.msra.mxu0 %v6105
        %6967 = vmatpush.bf16.msra.mxu0 %v6101
        %6968 = vmatpush.bf16.msra.mxu0 %v6097
        %6969 = vmatpush.bf16.msra.mxu0 %v6093
        %6970 = vmatpush.bf16.msra.mxu0 %v6089
        %6971 = vmatpush.bf16.msra.mxu0 %v6085
        %6972 = vmatpush.bf16.msra.mxu0 %v6081
        %6973 = vmatpush.bf16.msra.mxu0 %v6077
        %6974 = vmatmul.bf16.gmra.mxu0 %v537
        %v6975 = vpop.f32.mrf.mxu0
        %v6976 = vadd.f32 %v6963, %v6975
        %v6977 = vpop.f32.mrf.mxu0
        %6978 = vdwg.mxu0
        %6979 = vmatpush.bf16.msra.mxu0 %v6137
        %6980 = vmatpush.bf16.msra.mxu0 %v6133
        %6981 = vmatpush.bf16.msra.mxu0 %v6129
        %6982 = vmatpush.bf16.msra.mxu0 %v6125
        %6983 = vmatpush.bf16.msra.mxu0 %v6121
        %6984 = vmatpush.bf16.msra.mxu0 %v6117
        %6985 = vmatpush.bf16.msra.mxu0 %v6113
        %6986 = vmatpush.bf16.msra.mxu0 %v6109
        %6987 = vmatmul.bf16.gmra.mxu0 %v538
        %v6988 = vpop.f32.mrf.mxu0
        %v6989 = vadd.f32 %v6976, %v6988
        %v6990 = vpop.f32.mrf.mxu0
        %6991 = vdwg.mxu0
        %6992 = vmatpush.bf16.msra.mxu0 %v6169
        %6993 = vmatpush.bf16.msra.mxu0 %v6165
        %6994 = vmatpush.bf16.msra.mxu0 %v6161
        %6995 = vmatpush.bf16.msra.mxu0 %v6157
        %6996 = vmatpush.bf16.msra.mxu0 %v6153
        %6997 = vmatpush.bf16.msra.mxu0 %v6149
        %6998 = vmatpush.bf16.msra.mxu0 %v6145
        %6999 = vmatpush.bf16.msra.mxu0 %v6141
        %7000 = vmatmul.bf16.gmra.mxu0 %v539
        %v7001 = vpop.f32.mrf.mxu0
        %v7002 = vadd.f32 %v6989, %v7001
        %v7003 = vpop.f32.mrf.mxu0
        %7004 = vdwg.mxu0
        %7005 = vmatpush.bf16.msra.mxu0 %v5178
        %7006 = vmatpush.bf16.msra.mxu0 %v5174
        %7007 = vmatpush.bf16.msra.mxu0 %v5170
        %7008 = vmatpush.bf16.msra.mxu0 %v5166
        %7009 = vmatpush.bf16.msra.mxu0 %v5162
        %7010 = vmatpush.bf16.msra.mxu0 %v5158
        %7011 = vmatpush.bf16.msra.mxu0 %v5154
        %7012 = vmatpush.bf16.msra.mxu0 %v5150
        %7013 = vmatmul.bf16.gmra.mxu0 %v508
        %v7014 = vpop.f32.mrf.mxu0
        %v7015 = vadd.f32 0.0, %v7014
        %v7016 = vpop.f32.mrf.mxu0
        %7017 = vdwg.mxu0
        %7018 = vmatpush.bf16.msra.mxu0 %v5210
        %7019 = vmatpush.bf16.msra.mxu0 %v5206
        %7020 = vmatpush.bf16.msra.mxu0 %v5202
        %7021 = vmatpush.bf16.msra.mxu0 %v5198
        %7022 = vmatpush.bf16.msra.mxu0 %v5194
        %7023 = vmatpush.bf16.msra.mxu0 %v5190
        %7024 = vmatpush.bf16.msra.mxu0 %v5186
        %7025 = vmatpush.bf16.msra.mxu0 %v5182
        %7026 = vmatmul.bf16.gmra.mxu0 %v509
        %v7027 = vpop.f32.mrf.mxu0
        %v7028 = vadd.f32 %v7015, %v7027
        %v7029 = vpop.f32.mrf.mxu0
        %7030 = vdwg.mxu0
        %7031 = vmatpush.bf16.msra.mxu0 %v5242
        %7032 = vmatpush.bf16.msra.mxu0 %v5238
        %7033 = vmatpush.bf16.msra.mxu0 %v5234
        %7034 = vmatpush.bf16.msra.mxu0 %v5230
        %7035 = vmatpush.bf16.msra.mxu0 %v5226
        %7036 = vmatpush.bf16.msra.mxu0 %v5222
        %7037 = vmatpush.bf16.msra.mxu0 %v5218
        %7038 = vmatpush.bf16.msra.mxu0 %v5214
        %7039 = vmatmul.bf16.gmra.mxu0 %v510
        %v7040 = vpop.f32.mrf.mxu0
        %v7041 = vadd.f32 %v7028, %v7040
        %v7042 = vpop.f32.mrf.mxu0
        %7043 = vdwg.mxu0
        %7044 = vmatpush.bf16.msra.mxu0 %v5274
        %7045 = vmatpush.bf16.msra.mxu0 %v5270
        %7046 = vmatpush.bf16.msra.mxu0 %v5266
        %7047 = vmatpush.bf16.msra.mxu0 %v5262
        %7048 = vmatpush.bf16.msra.mxu0 %v5258
        %7049 = vmatpush.bf16.msra.mxu0 %v5254
        %7050 = vmatpush.bf16.msra.mxu0 %v5250
        %7051 = vmatpush.bf16.msra.mxu0 %v5246
        %7052 = vmatmul.bf16.gmra.mxu0 %v511
        %v7053 = vpop.f32.mrf.mxu0
        %v7054 = vadd.f32 %v7041, %v7053
        %v7055 = vpop.f32.mrf.mxu0
        %7056 = vdwg.mxu0
        %7057 = vmatpush.bf16.msra.mxu0 %v5306
        %7058 = vmatpush.bf16.msra.mxu0 %v5302
        %7059 = vmatpush.bf16.msra.mxu0 %v5298
        %7060 = vmatpush.bf16.msra.mxu0 %v5294
        %7061 = vmatpush.bf16.msra.mxu0 %v5290
        %7062 = vmatpush.bf16.msra.mxu0 %v5286
        %7063 = vmatpush.bf16.msra.mxu0 %v5282
        %7064 = vmatpush.bf16.msra.mxu0 %v5278
        %7065 = vmatmul.bf16.gmra.mxu0 %v512
        %v7066 = vpop.f32.mrf.mxu0
        %v7067 = vadd.f32 %v7054, %v7066
        %v7068 = vpop.f32.mrf.mxu0
        %7069 = vdwg.mxu0
        %7070 = vmatpush.bf16.msra.mxu0 %v5338
        %7071 = vmatpush.bf16.msra.mxu0 %v5334
        %7072 = vmatpush.bf16.msra.mxu0 %v5330
        %7073 = vmatpush.bf16.msra.mxu0 %v5326
        %7074 = vmatpush.bf16.msra.mxu0 %v5322
        %7075 = vmatpush.bf16.msra.mxu0 %v5318
        %7076 = vmatpush.bf16.msra.mxu0 %v5314
        %7077 = vmatpush.bf16.msra.mxu0 %v5310
        %7078 = vmatmul.bf16.gmra.mxu0 %v513
        %v7079 = vpop.f32.mrf.mxu0
        %v7080 = vadd.f32 %v7067, %v7079
        %v7081 = vpop.f32.mrf.mxu0
        %7082 = vdwg.mxu0
        %7083 = vmatpush.bf16.msra.mxu0 %v5370
        %7084 = vmatpush.bf16.msra.mxu0 %v5366
        %7085 = vmatpush.bf16.msra.mxu0 %v5362
        %7086 = vmatpush.bf16.msra.mxu0 %v5358
        %7087 = vmatpush.bf16.msra.mxu0 %v5354
        %7088 = vmatpush.bf16.msra.mxu0 %v5350
        %7089 = vmatpush.bf16.msra.mxu0 %v5346
        %7090 = vmatpush.bf16.msra.mxu0 %v5342
        %7091 = vmatmul.bf16.gmra.mxu0 %v514
        %v7092 = vpop.f32.mrf.mxu0
        %v7093 = vadd.f32 %v7080, %v7092
        %v7094 = vpop.f32.mrf.mxu0
        %7095 = vdwg.mxu0
        %7096 = vmatpush.bf16.msra.mxu0 %v5402
        %7097 = vmatpush.bf16.msra.mxu0 %v5398
        %7098 = vmatpush.bf16.msra.mxu0 %v5394
        %7099 = vmatpush.bf16.msra.mxu0 %v5390
        %7100 = vmatpush.bf16.msra.mxu0 %v5386
        %7101 = vmatpush.bf16.msra.mxu0 %v5382
        %7102 = vmatpush.bf16.msra.mxu0 %v5378
        %7103 = vmatpush.bf16.msra.mxu0 %v5374
        %7104 = vmatmul.bf16.gmra.mxu0 %v515
        %v7105 = vpop.f32.mrf.mxu0
        %v7106 = vadd.f32 %v7093, %v7105
        %v7107 = vpop.f32.mrf.mxu0
        %7108 = vdwg.mxu0
        %7109 = vmatpush.bf16.msra.mxu0 %v5434
        %7110 = vmatpush.bf16.msra.mxu0 %v5430
        %7111 = vmatpush.bf16.msra.mxu0 %v5426
        %7112 = vmatpush.bf16.msra.mxu0 %v5422
        %7113 = vmatpush.bf16.msra.mxu0 %v5418
        %7114 = vmatpush.bf16.msra.mxu0 %v5414
        %7115 = vmatpush.bf16.msra.mxu0 %v5410
        %7116 = vmatpush.bf16.msra.mxu0 %v5406
        %7117 = vmatmul.bf16.gmra.mxu0 %v516
        %v7118 = vpop.f32.mrf.mxu0
        %v7119 = vadd.f32 %v7106, %v7118
        %v7120 = vpop.f32.mrf.mxu0
        %7121 = vdwg.mxu0
        %7122 = vmatpush.bf16.msra.mxu0 %v5466
        %7123 = vmatpush.bf16.msra.mxu0 %v5462
        %7124 = vmatpush.bf16.msra.mxu0 %v5458
        %7125 = vmatpush.bf16.msra.mxu0 %v5454
        %7126 = vmatpush.bf16.msra.mxu0 %v5450
        %7127 = vmatpush.bf16.msra.mxu0 %v5446
        %7128 = vmatpush.bf16.msra.mxu0 %v5442
        %7129 = vmatpush.bf16.msra.mxu0 %v5438
        %7130 = vmatmul.bf16.gmra.mxu0 %v517
        %v7131 = vpop.f32.mrf.mxu0
        %v7132 = vadd.f32 %v7119, %v7131
        %v7133 = vpop.f32.mrf.mxu0
        %7134 = vdwg.mxu0
        %7135 = vmatpush.bf16.msra.mxu0 %v5498
        %7136 = vmatpush.bf16.msra.mxu0 %v5494
        %7137 = vmatpush.bf16.msra.mxu0 %v5490
        %7138 = vmatpush.bf16.msra.mxu0 %v5486
        %7139 = vmatpush.bf16.msra.mxu0 %v5482
        %7140 = vmatpush.bf16.msra.mxu0 %v5478
        %7141 = vmatpush.bf16.msra.mxu0 %v5474
        %7142 = vmatpush.bf16.msra.mxu0 %v5470
        %7143 = vmatmul.bf16.gmra.mxu0 %v518
        %v7144 = vpop.f32.mrf.mxu0
        %v7145 = vadd.f32 %v7132, %v7144
        %v7146 = vpop.f32.mrf.mxu0
        %7147 = vdwg.mxu0
        %7148 = vmatpush.bf16.msra.mxu0 %v5530
        %7149 = vmatpush.bf16.msra.mxu0 %v5526
        %7150 = vmatpush.bf16.msra.mxu0 %v5522
        %7151 = vmatpush.bf16.msra.mxu0 %v5518
        %7152 = vmatpush.bf16.msra.mxu0 %v5514
        %7153 = vmatpush.bf16.msra.mxu0 %v5510
        %7154 = vmatpush.bf16.msra.mxu0 %v5506
        %7155 = vmatpush.bf16.msra.mxu0 %v5502
        %7156 = vmatmul.bf16.gmra.mxu0 %v519
        %v7157 = vpop.f32.mrf.mxu0
        %v7158 = vadd.f32 %v7145, %v7157
        %v7159 = vpop.f32.mrf.mxu0
        %7160 = vdwg.mxu0
        %7161 = vmatpush.bf16.msra.mxu0 %v5562
        %7162 = vmatpush.bf16.msra.mxu0 %v5558
        %7163 = vmatpush.bf16.msra.mxu0 %v5554
        %7164 = vmatpush.bf16.msra.mxu0 %v5550
        %7165 = vmatpush.bf16.msra.mxu0 %v5546
        %7166 = vmatpush.bf16.msra.mxu0 %v5542
        %7167 = vmatpush.bf16.msra.mxu0 %v5538
        %7168 = vmatpush.bf16.msra.mxu0 %v5534
        %7169 = vmatmul.bf16.gmra.mxu0 %v520
        %v7170 = vpop.f32.mrf.mxu0
        %v7171 = vadd.f32 %v7158, %v7170
        %v7172 = vpop.f32.mrf.mxu0
        %7173 = vdwg.mxu0
        %7174 = vmatpush.bf16.msra.mxu0 %v5594
        %7175 = vmatpush.bf16.msra.mxu0 %v5590
        %7176 = vmatpush.bf16.msra.mxu0 %v5586
        %7177 = vmatpush.bf16.msra.mxu0 %v5582
        %7178 = vmatpush.bf16.msra.mxu0 %v5578
        %7179 = vmatpush.bf16.msra.mxu0 %v5574
        %7180 = vmatpush.bf16.msra.mxu0 %v5570
        %7181 = vmatpush.bf16.msra.mxu0 %v5566
        %7182 = vmatmul.bf16.gmra.mxu0 %v521
        %v7183 = vpop.f32.mrf.mxu0
        %v7184 = vadd.f32 %v7171, %v7183
        %v7185 = vpop.f32.mrf.mxu0
        %7186 = vdwg.mxu0
        %7187 = vmatpush.bf16.msra.mxu0 %v5626
        %7188 = vmatpush.bf16.msra.mxu0 %v5622
        %7189 = vmatpush.bf16.msra.mxu0 %v5618
        %7190 = vmatpush.bf16.msra.mxu0 %v5614
        %7191 = vmatpush.bf16.msra.mxu0 %v5610
        %7192 = vmatpush.bf16.msra.mxu0 %v5606
        %7193 = vmatpush.bf16.msra.mxu0 %v5602
        %7194 = vmatpush.bf16.msra.mxu0 %v5598
        %7195 = vmatmul.bf16.gmra.mxu0 %v522
        %v7196 = vpop.f32.mrf.mxu0
        %v7197 = vadd.f32 %v7184, %v7196
        %v7198 = vpop.f32.mrf.mxu0
        %7199 = vdwg.mxu0
        %7200 = vmatpush.bf16.msra.mxu0 %v5658
        %7201 = vmatpush.bf16.msra.mxu0 %v5654
        %7202 = vmatpush.bf16.msra.mxu0 %v5650
        %7203 = vmatpush.bf16.msra.mxu0 %v5646
        %7204 = vmatpush.bf16.msra.mxu0 %v5642
        %7205 = vmatpush.bf16.msra.mxu0 %v5638
        %7206 = vmatpush.bf16.msra.mxu0 %v5634
        %7207 = vmatpush.bf16.msra.mxu0 %v5630
        %7208 = vmatmul.bf16.gmra.mxu0 %v523
        %v7209 = vpop.f32.mrf.mxu0
        %v7210 = vadd.f32 %v7197, %v7209
        %v7211 = vpop.f32.mrf.mxu0
        %7212 = vdwg.mxu0
        %7213 = vmatpush.bf16.msra.mxu0 %v5690
        %7214 = vmatpush.bf16.msra.mxu0 %v5686
        %7215 = vmatpush.bf16.msra.mxu0 %v5682
        %7216 = vmatpush.bf16.msra.mxu0 %v5678
        %7217 = vmatpush.bf16.msra.mxu0 %v5674
        %7218 = vmatpush.bf16.msra.mxu0 %v5670
        %7219 = vmatpush.bf16.msra.mxu0 %v5666
        %7220 = vmatpush.bf16.msra.mxu0 %v5662
        %7221 = vmatmul.bf16.gmra.mxu0 %v524
        %v7222 = vpop.f32.mrf.mxu0
        %v7223 = vadd.f32 %v7210, %v7222
        %v7224 = vpop.f32.mrf.mxu0
        %7225 = vdwg.mxu0
        %7226 = vmatpush.bf16.msra.mxu0 %v5722
        %7227 = vmatpush.bf16.msra.mxu0 %v5718
        %7228 = vmatpush.bf16.msra.mxu0 %v5714
        %7229 = vmatpush.bf16.msra.mxu0 %v5710
        %7230 = vmatpush.bf16.msra.mxu0 %v5706
        %7231 = vmatpush.bf16.msra.mxu0 %v5702
        %7232 = vmatpush.bf16.msra.mxu0 %v5698
        %7233 = vmatpush.bf16.msra.mxu0 %v5694
        %7234 = vmatmul.bf16.gmra.mxu0 %v525
        %v7235 = vpop.f32.mrf.mxu0
        %v7236 = vadd.f32 %v7223, %v7235
        %v7237 = vpop.f32.mrf.mxu0
        %7238 = vdwg.mxu0
        %7239 = vmatpush.bf16.msra.mxu0 %v5754
        %7240 = vmatpush.bf16.msra.mxu0 %v5750
        %7241 = vmatpush.bf16.msra.mxu0 %v5746
        %7242 = vmatpush.bf16.msra.mxu0 %v5742
        %7243 = vmatpush.bf16.msra.mxu0 %v5738
        %7244 = vmatpush.bf16.msra.mxu0 %v5734
        %7245 = vmatpush.bf16.msra.mxu0 %v5730
        %7246 = vmatpush.bf16.msra.mxu0 %v5726
        %7247 = vmatmul.bf16.gmra.mxu0 %v526
        %v7248 = vpop.f32.mrf.mxu0
        %v7249 = vadd.f32 %v7236, %v7248
        %v7250 = vpop.f32.mrf.mxu0
        %7251 = vdwg.mxu0
        %7252 = vmatpush.bf16.msra.mxu0 %v5786
        %7253 = vmatpush.bf16.msra.mxu0 %v5782
        %7254 = vmatpush.bf16.msra.mxu0 %v5778
        %7255 = vmatpush.bf16.msra.mxu0 %v5774
        %7256 = vmatpush.bf16.msra.mxu0 %v5770
        %7257 = vmatpush.bf16.msra.mxu0 %v5766
        %7258 = vmatpush.bf16.msra.mxu0 %v5762
        %7259 = vmatpush.bf16.msra.mxu0 %v5758
        %7260 = vmatmul.bf16.gmra.mxu0 %v527
        %v7261 = vpop.f32.mrf.mxu0
        %v7262 = vadd.f32 %v7249, %v7261
        %v7263 = vpop.f32.mrf.mxu0
        %7264 = vdwg.mxu0
        %7265 = vmatpush.bf16.msra.mxu0 %v5818
        %7266 = vmatpush.bf16.msra.mxu0 %v5814
        %7267 = vmatpush.bf16.msra.mxu0 %v5810
        %7268 = vmatpush.bf16.msra.mxu0 %v5806
        %7269 = vmatpush.bf16.msra.mxu0 %v5802
        %7270 = vmatpush.bf16.msra.mxu0 %v5798
        %7271 = vmatpush.bf16.msra.mxu0 %v5794
        %7272 = vmatpush.bf16.msra.mxu0 %v5790
        %7273 = vmatmul.bf16.gmra.mxu0 %v528
        %v7274 = vpop.f32.mrf.mxu0
        %v7275 = vadd.f32 %v7262, %v7274
        %v7276 = vpop.f32.mrf.mxu0
        %7277 = vdwg.mxu0
        %7278 = vmatpush.bf16.msra.mxu0 %v5850
        %7279 = vmatpush.bf16.msra.mxu0 %v5846
        %7280 = vmatpush.bf16.msra.mxu0 %v5842
        %7281 = vmatpush.bf16.msra.mxu0 %v5838
        %7282 = vmatpush.bf16.msra.mxu0 %v5834
        %7283 = vmatpush.bf16.msra.mxu0 %v5830
        %7284 = vmatpush.bf16.msra.mxu0 %v5826
        %7285 = vmatpush.bf16.msra.mxu0 %v5822
        %7286 = vmatmul.bf16.gmra.mxu0 %v529
        %v7287 = vpop.f32.mrf.mxu0
        %v7288 = vadd.f32 %v7275, %v7287
        %v7289 = vpop.f32.mrf.mxu0
        %7290 = vdwg.mxu0
        %7291 = vmatpush.bf16.msra.mxu0 %v5882
        %7292 = vmatpush.bf16.msra.mxu0 %v5878
        %7293 = vmatpush.bf16.msra.mxu0 %v5874
        %7294 = vmatpush.bf16.msra.mxu0 %v5870
        %7295 = vmatpush.bf16.msra.mxu0 %v5866
        %7296 = vmatpush.bf16.msra.mxu0 %v5862
        %7297 = vmatpush.bf16.msra.mxu0 %v5858
        %7298 = vmatpush.bf16.msra.mxu0 %v5854
        %7299 = vmatmul.bf16.gmra.mxu0 %v530
        %v7300 = vpop.f32.mrf.mxu0
        %v7301 = vadd.f32 %v7288, %v7300
        %v7302 = vpop.f32.mrf.mxu0
        %7303 = vdwg.mxu0
        %7304 = vmatpush.bf16.msra.mxu0 %v5914
        %7305 = vmatpush.bf16.msra.mxu0 %v5910
        %7306 = vmatpush.bf16.msra.mxu0 %v5906
        %7307 = vmatpush.bf16.msra.mxu0 %v5902
        %7308 = vmatpush.bf16.msra.mxu0 %v5898
        %7309 = vmatpush.bf16.msra.mxu0 %v5894
        %7310 = vmatpush.bf16.msra.mxu0 %v5890
        %7311 = vmatpush.bf16.msra.mxu0 %v5886
        %7312 = vmatmul.bf16.gmra.mxu0 %v531
        %v7313 = vpop.f32.mrf.mxu0
        %v7314 = vadd.f32 %v7301, %v7313
        %v7315 = vpop.f32.mrf.mxu0
        %7316 = vdwg.mxu0
        %7317 = vmatpush.bf16.msra.mxu0 %v5946
        %7318 = vmatpush.bf16.msra.mxu0 %v5942
        %7319 = vmatpush.bf16.msra.mxu0 %v5938
        %7320 = vmatpush.bf16.msra.mxu0 %v5934
        %7321 = vmatpush.bf16.msra.mxu0 %v5930
        %7322 = vmatpush.bf16.msra.mxu0 %v5926
        %7323 = vmatpush.bf16.msra.mxu0 %v5922
        %7324 = vmatpush.bf16.msra.mxu0 %v5918
        %7325 = vmatmul.bf16.gmra.mxu0 %v532
        %v7326 = vpop.f32.mrf.mxu0
        %v7327 = vadd.f32 %v7314, %v7326
        %v7328 = vpop.f32.mrf.mxu0
        %7329 = vdwg.mxu0
        %7330 = vmatpush.bf16.msra.mxu0 %v5978
        %7331 = vmatpush.bf16.msra.mxu0 %v5974
        %7332 = vmatpush.bf16.msra.mxu0 %v5970
        %7333 = vmatpush.bf16.msra.mxu0 %v5966
        %7334 = vmatpush.bf16.msra.mxu0 %v5962
        %7335 = vmatpush.bf16.msra.mxu0 %v5958
        %7336 = vmatpush.bf16.msra.mxu0 %v5954
        %7337 = vmatpush.bf16.msra.mxu0 %v5950
        %7338 = vmatmul.bf16.gmra.mxu0 %v533
        %v7339 = vpop.f32.mrf.mxu0
        %v7340 = vadd.f32 %v7327, %v7339
        %v7341 = vpop.f32.mrf.mxu0
        %7342 = vdwg.mxu0
        %7343 = vmatpush.bf16.msra.mxu0 %v6010
        %7344 = vmatpush.bf16.msra.mxu0 %v6006
        %7345 = vmatpush.bf16.msra.mxu0 %v6002
        %7346 = vmatpush.bf16.msra.mxu0 %v5998
        %7347 = vmatpush.bf16.msra.mxu0 %v5994
        %7348 = vmatpush.bf16.msra.mxu0 %v5990
        %7349 = vmatpush.bf16.msra.mxu0 %v5986
        %7350 = vmatpush.bf16.msra.mxu0 %v5982
        %7351 = vmatmul.bf16.gmra.mxu0 %v534
        %v7352 = vpop.f32.mrf.mxu0
        %v7353 = vadd.f32 %v7340, %v7352
        %v7354 = vpop.f32.mrf.mxu0
        %7355 = vdwg.mxu0
        %7356 = vmatpush.bf16.msra.mxu0 %v6042
        %7357 = vmatpush.bf16.msra.mxu0 %v6038
        %7358 = vmatpush.bf16.msra.mxu0 %v6034
        %7359 = vmatpush.bf16.msra.mxu0 %v6030
        %7360 = vmatpush.bf16.msra.mxu0 %v6026
        %7361 = vmatpush.bf16.msra.mxu0 %v6022
        %7362 = vmatpush.bf16.msra.mxu0 %v6018
        %7363 = vmatpush.bf16.msra.mxu0 %v6014
        %7364 = vmatmul.bf16.gmra.mxu0 %v535
        %v7365 = vpop.f32.mrf.mxu0
        %v7366 = vadd.f32 %v7353, %v7365
        %v7367 = vpop.f32.mrf.mxu0
        %7368 = vdwg.mxu0
        %7369 = vmatpush.bf16.msra.mxu0 %v6074
        %7370 = vmatpush.bf16.msra.mxu0 %v6070
        %7371 = vmatpush.bf16.msra.mxu0 %v6066
        %7372 = vmatpush.bf16.msra.mxu0 %v6062
        %7373 = vmatpush.bf16.msra.mxu0 %v6058
        %7374 = vmatpush.bf16.msra.mxu0 %v6054
        %7375 = vmatpush.bf16.msra.mxu0 %v6050
        %7376 = vmatpush.bf16.msra.mxu0 %v6046
        %7377 = vmatmul.bf16.gmra.mxu0 %v536
        %v7378 = vpop.f32.mrf.mxu0
        %v7379 = vadd.f32 %v7366, %v7378
        %v7380 = vpop.f32.mrf.mxu0
        %7381 = vdwg.mxu0
        %7382 = vmatpush.bf16.msra.mxu0 %v6106
        %7383 = vmatpush.bf16.msra.mxu0 %v6102
        %7384 = vmatpush.bf16.msra.mxu0 %v6098
        %7385 = vmatpush.bf16.msra.mxu0 %v6094
        %7386 = vmatpush.bf16.msra.mxu0 %v6090
        %7387 = vmatpush.bf16.msra.mxu0 %v6086
        %7388 = vmatpush.bf16.msra.mxu0 %v6082
        %7389 = vmatpush.bf16.msra.mxu0 %v6078
        %7390 = vmatmul.bf16.gmra.mxu0 %v537
        %v7391 = vpop.f32.mrf.mxu0
        %v7392 = vadd.f32 %v7379, %v7391
        %v7393 = vpop.f32.mrf.mxu0
        %7394 = vdwg.mxu0
        %7395 = vmatpush.bf16.msra.mxu0 %v6138
        %7396 = vmatpush.bf16.msra.mxu0 %v6134
        %7397 = vmatpush.bf16.msra.mxu0 %v6130
        %7398 = vmatpush.bf16.msra.mxu0 %v6126
        %7399 = vmatpush.bf16.msra.mxu0 %v6122
        %7400 = vmatpush.bf16.msra.mxu0 %v6118
        %7401 = vmatpush.bf16.msra.mxu0 %v6114
        %7402 = vmatpush.bf16.msra.mxu0 %v6110
        %7403 = vmatmul.bf16.gmra.mxu0 %v538
        %v7404 = vpop.f32.mrf.mxu0
        %v7405 = vadd.f32 %v7392, %v7404
        %v7406 = vpop.f32.mrf.mxu0
        %7407 = vdwg.mxu0
        %7408 = vmatpush.bf16.msra.mxu0 %v6170
        %7409 = vmatpush.bf16.msra.mxu0 %v6166
        %7410 = vmatpush.bf16.msra.mxu0 %v6162
        %7411 = vmatpush.bf16.msra.mxu0 %v6158
        %7412 = vmatpush.bf16.msra.mxu0 %v6154
        %7413 = vmatpush.bf16.msra.mxu0 %v6150
        %7414 = vmatpush.bf16.msra.mxu0 %v6146
        %7415 = vmatpush.bf16.msra.mxu0 %v6142
        %7416 = vmatmul.bf16.gmra.mxu0 %v539
        %v7417 = vpop.f32.mrf.mxu0
        %v7418 = vadd.f32 %v7405, %v7417
        %v7419 = vpop.f32.mrf.mxu0
        %7420 = vdwg.mxu0
        %7421 = vmatpush.bf16.msra.mxu0 %v5179
        %7422 = vmatpush.bf16.msra.mxu0 %v5175
        %7423 = vmatpush.bf16.msra.mxu0 %v5171
        %7424 = vmatpush.bf16.msra.mxu0 %v5167
        %7425 = vmatpush.bf16.msra.mxu0 %v5163
        %7426 = vmatpush.bf16.msra.mxu0 %v5159
        %7427 = vmatpush.bf16.msra.mxu0 %v5155
        %7428 = vmatpush.bf16.msra.mxu0 %v5151
        %7429 = vmatmul.bf16.gmra.mxu0 %v508
        %v7430 = vpop.f32.mrf.mxu0
        %v7431 = vadd.f32 0.0, %v7430
        %v7432 = vpop.f32.mrf.mxu0
        %7433 = vdwg.mxu0
        %7434 = vmatpush.bf16.msra.mxu0 %v5211
        %7435 = vmatpush.bf16.msra.mxu0 %v5207
        %7436 = vmatpush.bf16.msra.mxu0 %v5203
        %7437 = vmatpush.bf16.msra.mxu0 %v5199
        %7438 = vmatpush.bf16.msra.mxu0 %v5195
        %7439 = vmatpush.bf16.msra.mxu0 %v5191
        %7440 = vmatpush.bf16.msra.mxu0 %v5187
        %7441 = vmatpush.bf16.msra.mxu0 %v5183
        %7442 = vmatmul.bf16.gmra.mxu0 %v509
        %v7443 = vpop.f32.mrf.mxu0
        %v7444 = vadd.f32 %v7431, %v7443
        %v7445 = vpop.f32.mrf.mxu0
        %7446 = vdwg.mxu0
        %7447 = vmatpush.bf16.msra.mxu0 %v5243
        %7448 = vmatpush.bf16.msra.mxu0 %v5239
        %7449 = vmatpush.bf16.msra.mxu0 %v5235
        %7450 = vmatpush.bf16.msra.mxu0 %v5231
        %7451 = vmatpush.bf16.msra.mxu0 %v5227
        %7452 = vmatpush.bf16.msra.mxu0 %v5223
        %7453 = vmatpush.bf16.msra.mxu0 %v5219
        %7454 = vmatpush.bf16.msra.mxu0 %v5215
        %7455 = vmatmul.bf16.gmra.mxu0 %v510
        %v7456 = vpop.f32.mrf.mxu0
        %v7457 = vadd.f32 %v7444, %v7456
        %v7458 = vpop.f32.mrf.mxu0
        %7459 = vdwg.mxu0
        %7460 = vmatpush.bf16.msra.mxu0 %v5275
        %7461 = vmatpush.bf16.msra.mxu0 %v5271
        %7462 = vmatpush.bf16.msra.mxu0 %v5267
        %7463 = vmatpush.bf16.msra.mxu0 %v5263
        %7464 = vmatpush.bf16.msra.mxu0 %v5259
        %7465 = vmatpush.bf16.msra.mxu0 %v5255
        %7466 = vmatpush.bf16.msra.mxu0 %v5251
        %7467 = vmatpush.bf16.msra.mxu0 %v5247
        %7468 = vmatmul.bf16.gmra.mxu0 %v511
        %v7469 = vpop.f32.mrf.mxu0
        %v7470 = vadd.f32 %v7457, %v7469
        %v7471 = vpop.f32.mrf.mxu0
        %7472 = vdwg.mxu0
        %7473 = vmatpush.bf16.msra.mxu0 %v5307
        %7474 = vmatpush.bf16.msra.mxu0 %v5303
        %7475 = vmatpush.bf16.msra.mxu0 %v5299
        %7476 = vmatpush.bf16.msra.mxu0 %v5295
        %7477 = vmatpush.bf16.msra.mxu0 %v5291
        %7478 = vmatpush.bf16.msra.mxu0 %v5287
        %7479 = vmatpush.bf16.msra.mxu0 %v5283
        %7480 = vmatpush.bf16.msra.mxu0 %v5279
        %7481 = vmatmul.bf16.gmra.mxu0 %v512
        %v7482 = vpop.f32.mrf.mxu0
        %v7483 = vadd.f32 %v7470, %v7482
        %v7484 = vpop.f32.mrf.mxu0
        %7485 = vdwg.mxu0
        %7486 = vmatpush.bf16.msra.mxu0 %v5339
        %7487 = vmatpush.bf16.msra.mxu0 %v5335
        %7488 = vmatpush.bf16.msra.mxu0 %v5331
        %7489 = vmatpush.bf16.msra.mxu0 %v5327
        %7490 = vmatpush.bf16.msra.mxu0 %v5323
        %7491 = vmatpush.bf16.msra.mxu0 %v5319
        %7492 = vmatpush.bf16.msra.mxu0 %v5315
        %7493 = vmatpush.bf16.msra.mxu0 %v5311
        %7494 = vmatmul.bf16.gmra.mxu0 %v513
        %v7495 = vpop.f32.mrf.mxu0
        %v7496 = vadd.f32 %v7483, %v7495
        %v7497 = vpop.f32.mrf.mxu0
        %7498 = vdwg.mxu0
        %7499 = vmatpush.bf16.msra.mxu0 %v5371
        %7500 = vmatpush.bf16.msra.mxu0 %v5367
        %7501 = vmatpush.bf16.msra.mxu0 %v5363
        %7502 = vmatpush.bf16.msra.mxu0 %v5359
        %7503 = vmatpush.bf16.msra.mxu0 %v5355
        %7504 = vmatpush.bf16.msra.mxu0 %v5351
        %7505 = vmatpush.bf16.msra.mxu0 %v5347
        %7506 = vmatpush.bf16.msra.mxu0 %v5343
        %7507 = vmatmul.bf16.gmra.mxu0 %v514
        %v7508 = vpop.f32.mrf.mxu0
        %v7509 = vadd.f32 %v7496, %v7508
        %v7510 = vpop.f32.mrf.mxu0
        %7511 = vdwg.mxu0
        %7512 = vmatpush.bf16.msra.mxu0 %v5403
        %7513 = vmatpush.bf16.msra.mxu0 %v5399
        %7514 = vmatpush.bf16.msra.mxu0 %v5395
        %7515 = vmatpush.bf16.msra.mxu0 %v5391
        %7516 = vmatpush.bf16.msra.mxu0 %v5387
        %7517 = vmatpush.bf16.msra.mxu0 %v5383
        %7518 = vmatpush.bf16.msra.mxu0 %v5379
        %7519 = vmatpush.bf16.msra.mxu0 %v5375
        %7520 = vmatmul.bf16.gmra.mxu0 %v515
        %v7521 = vpop.f32.mrf.mxu0
        %v7522 = vadd.f32 %v7509, %v7521
        %v7523 = vpop.f32.mrf.mxu0
        %7524 = vdwg.mxu0
        %7525 = vmatpush.bf16.msra.mxu0 %v5435
        %7526 = vmatpush.bf16.msra.mxu0 %v5431
        %7527 = vmatpush.bf16.msra.mxu0 %v5427
        %7528 = vmatpush.bf16.msra.mxu0 %v5423
        %7529 = vmatpush.bf16.msra.mxu0 %v5419
        %7530 = vmatpush.bf16.msra.mxu0 %v5415
        %7531 = vmatpush.bf16.msra.mxu0 %v5411
        %7532 = vmatpush.bf16.msra.mxu0 %v5407
        %7533 = vmatmul.bf16.gmra.mxu0 %v516
        %v7534 = vpop.f32.mrf.mxu0
        %v7535 = vadd.f32 %v7522, %v7534
        %v7536 = vpop.f32.mrf.mxu0
        %7537 = vdwg.mxu0
        %7538 = vmatpush.bf16.msra.mxu0 %v5467
        %7539 = vmatpush.bf16.msra.mxu0 %v5463
        %7540 = vmatpush.bf16.msra.mxu0 %v5459
        %7541 = vmatpush.bf16.msra.mxu0 %v5455
        %7542 = vmatpush.bf16.msra.mxu0 %v5451
        %7543 = vmatpush.bf16.msra.mxu0 %v5447
        %7544 = vmatpush.bf16.msra.mxu0 %v5443
        %7545 = vmatpush.bf16.msra.mxu0 %v5439
        %7546 = vmatmul.bf16.gmra.mxu0 %v517
        %v7547 = vpop.f32.mrf.mxu0
        %v7548 = vadd.f32 %v7535, %v7547
        %v7549 = vpop.f32.mrf.mxu0
        %7550 = vdwg.mxu0
        %7551 = vmatpush.bf16.msra.mxu0 %v5499
        %7552 = vmatpush.bf16.msra.mxu0 %v5495
        %7553 = vmatpush.bf16.msra.mxu0 %v5491
        %7554 = vmatpush.bf16.msra.mxu0 %v5487
        %7555 = vmatpush.bf16.msra.mxu0 %v5483
        %7556 = vmatpush.bf16.msra.mxu0 %v5479
        %7557 = vmatpush.bf16.msra.mxu0 %v5475
        %7558 = vmatpush.bf16.msra.mxu0 %v5471
        %7559 = vmatmul.bf16.gmra.mxu0 %v518
        %v7560 = vpop.f32.mrf.mxu0
        %v7561 = vadd.f32 %v7548, %v7560
        %v7562 = vpop.f32.mrf.mxu0
        %7563 = vdwg.mxu0
        %7564 = vmatpush.bf16.msra.mxu0 %v5531
        %7565 = vmatpush.bf16.msra.mxu0 %v5527
        %7566 = vmatpush.bf16.msra.mxu0 %v5523
        %7567 = vmatpush.bf16.msra.mxu0 %v5519
        %7568 = vmatpush.bf16.msra.mxu0 %v5515
        %7569 = vmatpush.bf16.msra.mxu0 %v5511
        %7570 = vmatpush.bf16.msra.mxu0 %v5507
        %7571 = vmatpush.bf16.msra.mxu0 %v5503
        %7572 = vmatmul.bf16.gmra.mxu0 %v519
        %v7573 = vpop.f32.mrf.mxu0
        %v7574 = vadd.f32 %v7561, %v7573
        %v7575 = vpop.f32.mrf.mxu0
        %7576 = vdwg.mxu0
        %7577 = vmatpush.bf16.msra.mxu0 %v5563
        %7578 = vmatpush.bf16.msra.mxu0 %v5559
        %7579 = vmatpush.bf16.msra.mxu0 %v5555
        %7580 = vmatpush.bf16.msra.mxu0 %v5551
        %7581 = vmatpush.bf16.msra.mxu0 %v5547
        %7582 = vmatpush.bf16.msra.mxu0 %v5543
        %7583 = vmatpush.bf16.msra.mxu0 %v5539
        %7584 = vmatpush.bf16.msra.mxu0 %v5535
        %7585 = vmatmul.bf16.gmra.mxu0 %v520
        %v7586 = vpop.f32.mrf.mxu0
        %v7587 = vadd.f32 %v7574, %v7586
        %v7588 = vpop.f32.mrf.mxu0
        %7589 = vdwg.mxu0
        %7590 = vmatpush.bf16.msra.mxu0 %v5595
        %7591 = vmatpush.bf16.msra.mxu0 %v5591
        %7592 = vmatpush.bf16.msra.mxu0 %v5587
        %7593 = vmatpush.bf16.msra.mxu0 %v5583
        %7594 = vmatpush.bf16.msra.mxu0 %v5579
        %7595 = vmatpush.bf16.msra.mxu0 %v5575
        %7596 = vmatpush.bf16.msra.mxu0 %v5571
        %7597 = vmatpush.bf16.msra.mxu0 %v5567
        %7598 = vmatmul.bf16.gmra.mxu0 %v521
        %v7599 = vpop.f32.mrf.mxu0
        %v7600 = vadd.f32 %v7587, %v7599
        %v7601 = vpop.f32.mrf.mxu0
        %7602 = vdwg.mxu0
        %7603 = vmatpush.bf16.msra.mxu0 %v5627
        %7604 = vmatpush.bf16.msra.mxu0 %v5623
        %7605 = vmatpush.bf16.msra.mxu0 %v5619
        %7606 = vmatpush.bf16.msra.mxu0 %v5615
        %7607 = vmatpush.bf16.msra.mxu0 %v5611
        %7608 = vmatpush.bf16.msra.mxu0 %v5607
        %7609 = vmatpush.bf16.msra.mxu0 %v5603
        %7610 = vmatpush.bf16.msra.mxu0 %v5599
        %7611 = vmatmul.bf16.gmra.mxu0 %v522
        %v7612 = vpop.f32.mrf.mxu0
        %v7613 = vadd.f32 %v7600, %v7612
        %v7614 = vpop.f32.mrf.mxu0
        %7615 = vdwg.mxu0
        %7616 = vmatpush.bf16.msra.mxu0 %v5659
        %7617 = vmatpush.bf16.msra.mxu0 %v5655
        %7618 = vmatpush.bf16.msra.mxu0 %v5651
        %7619 = vmatpush.bf16.msra.mxu0 %v5647
        %7620 = vmatpush.bf16.msra.mxu0 %v5643
        %7621 = vmatpush.bf16.msra.mxu0 %v5639
        %7622 = vmatpush.bf16.msra.mxu0 %v5635
        %7623 = vmatpush.bf16.msra.mxu0 %v5631
        %7624 = vmatmul.bf16.gmra.mxu0 %v523
        %v7625 = vpop.f32.mrf.mxu0
        %v7626 = vadd.f32 %v7613, %v7625
        %v7627 = vpop.f32.mrf.mxu0
        %7628 = vdwg.mxu0
        %7629 = vmatpush.bf16.msra.mxu0 %v5691
        %7630 = vmatpush.bf16.msra.mxu0 %v5687
        %7631 = vmatpush.bf16.msra.mxu0 %v5683
        %7632 = vmatpush.bf16.msra.mxu0 %v5679
        %7633 = vmatpush.bf16.msra.mxu0 %v5675
        %7634 = vmatpush.bf16.msra.mxu0 %v5671
        %7635 = vmatpush.bf16.msra.mxu0 %v5667
        %7636 = vmatpush.bf16.msra.mxu0 %v5663
        %7637 = vmatmul.bf16.gmra.mxu0 %v524
        %v7638 = vpop.f32.mrf.mxu0
        %v7639 = vadd.f32 %v7626, %v7638
        %v7640 = vpop.f32.mrf.mxu0
        %7641 = vdwg.mxu0
        %7642 = vmatpush.bf16.msra.mxu0 %v5723
        %7643 = vmatpush.bf16.msra.mxu0 %v5719
        %7644 = vmatpush.bf16.msra.mxu0 %v5715
        %7645 = vmatpush.bf16.msra.mxu0 %v5711
        %7646 = vmatpush.bf16.msra.mxu0 %v5707
        %7647 = vmatpush.bf16.msra.mxu0 %v5703
        %7648 = vmatpush.bf16.msra.mxu0 %v5699
        %7649 = vmatpush.bf16.msra.mxu0 %v5695
        %7650 = vmatmul.bf16.gmra.mxu0 %v525
        %v7651 = vpop.f32.mrf.mxu0
        %v7652 = vadd.f32 %v7639, %v7651
        %v7653 = vpop.f32.mrf.mxu0
        %7654 = vdwg.mxu0
        %7655 = vmatpush.bf16.msra.mxu0 %v5755
        %7656 = vmatpush.bf16.msra.mxu0 %v5751
        %7657 = vmatpush.bf16.msra.mxu0 %v5747
        %7658 = vmatpush.bf16.msra.mxu0 %v5743
        %7659 = vmatpush.bf16.msra.mxu0 %v5739
        %7660 = vmatpush.bf16.msra.mxu0 %v5735
        %7661 = vmatpush.bf16.msra.mxu0 %v5731
        %7662 = vmatpush.bf16.msra.mxu0 %v5727
        %7663 = vmatmul.bf16.gmra.mxu0 %v526
        %v7664 = vpop.f32.mrf.mxu0
        %v7665 = vadd.f32 %v7652, %v7664
        %v7666 = vpop.f32.mrf.mxu0
        %7667 = vdwg.mxu0
        %7668 = vmatpush.bf16.msra.mxu0 %v5787
        %7669 = vmatpush.bf16.msra.mxu0 %v5783
        %7670 = vmatpush.bf16.msra.mxu0 %v5779
        %7671 = vmatpush.bf16.msra.mxu0 %v5775
        %7672 = vmatpush.bf16.msra.mxu0 %v5771
        %7673 = vmatpush.bf16.msra.mxu0 %v5767
        %7674 = vmatpush.bf16.msra.mxu0 %v5763
        %7675 = vmatpush.bf16.msra.mxu0 %v5759
        %7676 = vmatmul.bf16.gmra.mxu0 %v527
        %v7677 = vpop.f32.mrf.mxu0
        %v7678 = vadd.f32 %v7665, %v7677
        %v7679 = vpop.f32.mrf.mxu0
        %7680 = vdwg.mxu0
        %7681 = vmatpush.bf16.msra.mxu0 %v5819
        %7682 = vmatpush.bf16.msra.mxu0 %v5815
        %7683 = vmatpush.bf16.msra.mxu0 %v5811
        %7684 = vmatpush.bf16.msra.mxu0 %v5807
        %7685 = vmatpush.bf16.msra.mxu0 %v5803
        %7686 = vmatpush.bf16.msra.mxu0 %v5799
        %7687 = vmatpush.bf16.msra.mxu0 %v5795
        %7688 = vmatpush.bf16.msra.mxu0 %v5791
        %7689 = vmatmul.bf16.gmra.mxu0 %v528
        %v7690 = vpop.f32.mrf.mxu0
        %v7691 = vadd.f32 %v7678, %v7690
        %v7692 = vpop.f32.mrf.mxu0
        %7693 = vdwg.mxu0
        %7694 = vmatpush.bf16.msra.mxu0 %v5851
        %7695 = vmatpush.bf16.msra.mxu0 %v5847
        %7696 = vmatpush.bf16.msra.mxu0 %v5843
        %7697 = vmatpush.bf16.msra.mxu0 %v5839
        %7698 = vmatpush.bf16.msra.mxu0 %v5835
        %7699 = vmatpush.bf16.msra.mxu0 %v5831
        %7700 = vmatpush.bf16.msra.mxu0 %v5827
        %7701 = vmatpush.bf16.msra.mxu0 %v5823
        %7702 = vmatmul.bf16.gmra.mxu0 %v529
        %v7703 = vpop.f32.mrf.mxu0
        %v7704 = vadd.f32 %v7691, %v7703
        %v7705 = vpop.f32.mrf.mxu0
        %7706 = vdwg.mxu0
        %7707 = vmatpush.bf16.msra.mxu0 %v5883
        %7708 = vmatpush.bf16.msra.mxu0 %v5879
        %7709 = vmatpush.bf16.msra.mxu0 %v5875
        %7710 = vmatpush.bf16.msra.mxu0 %v5871
        %7711 = vmatpush.bf16.msra.mxu0 %v5867
        %7712 = vmatpush.bf16.msra.mxu0 %v5863
        %7713 = vmatpush.bf16.msra.mxu0 %v5859
        %7714 = vmatpush.bf16.msra.mxu0 %v5855
        %7715 = vmatmul.bf16.gmra.mxu0 %v530
        %v7716 = vpop.f32.mrf.mxu0
        %v7717 = vadd.f32 %v7704, %v7716
        %v7718 = vpop.f32.mrf.mxu0
        %7719 = vdwg.mxu0
        %7720 = vmatpush.bf16.msra.mxu0 %v5915
        %7721 = vmatpush.bf16.msra.mxu0 %v5911
        %7722 = vmatpush.bf16.msra.mxu0 %v5907
        %7723 = vmatpush.bf16.msra.mxu0 %v5903
        %7724 = vmatpush.bf16.msra.mxu0 %v5899
        %7725 = vmatpush.bf16.msra.mxu0 %v5895
        %7726 = vmatpush.bf16.msra.mxu0 %v5891
        %7727 = vmatpush.bf16.msra.mxu0 %v5887
        %7728 = vmatmul.bf16.gmra.mxu0 %v531
        %v7729 = vpop.f32.mrf.mxu0
        %v7730 = vadd.f32 %v7717, %v7729
        %v7731 = vpop.f32.mrf.mxu0
        %7732 = vdwg.mxu0
        %7733 = vmatpush.bf16.msra.mxu0 %v5947
        %7734 = vmatpush.bf16.msra.mxu0 %v5943
        %7735 = vmatpush.bf16.msra.mxu0 %v5939
        %7736 = vmatpush.bf16.msra.mxu0 %v5935
        %7737 = vmatpush.bf16.msra.mxu0 %v5931
        %7738 = vmatpush.bf16.msra.mxu0 %v5927
        %7739 = vmatpush.bf16.msra.mxu0 %v5923
        %7740 = vmatpush.bf16.msra.mxu0 %v5919
        %7741 = vmatmul.bf16.gmra.mxu0 %v532
        %v7742 = vpop.f32.mrf.mxu0
        %v7743 = vadd.f32 %v7730, %v7742
        %v7744 = vpop.f32.mrf.mxu0
        %7745 = vdwg.mxu0
        %7746 = vmatpush.bf16.msra.mxu0 %v5979
        %7747 = vmatpush.bf16.msra.mxu0 %v5975
        %7748 = vmatpush.bf16.msra.mxu0 %v5971
        %7749 = vmatpush.bf16.msra.mxu0 %v5967
        %7750 = vmatpush.bf16.msra.mxu0 %v5963
        %7751 = vmatpush.bf16.msra.mxu0 %v5959
        %7752 = vmatpush.bf16.msra.mxu0 %v5955
        %7753 = vmatpush.bf16.msra.mxu0 %v5951
        %7754 = vmatmul.bf16.gmra.mxu0 %v533
        %v7755 = vpop.f32.mrf.mxu0
        %v7756 = vadd.f32 %v7743, %v7755
        %v7757 = vpop.f32.mrf.mxu0
        %7758 = vdwg.mxu0
        %7759 = vmatpush.bf16.msra.mxu0 %v6011
        %7760 = vmatpush.bf16.msra.mxu0 %v6007
        %7761 = vmatpush.bf16.msra.mxu0 %v6003
        %7762 = vmatpush.bf16.msra.mxu0 %v5999
        %7763 = vmatpush.bf16.msra.mxu0 %v5995
        %7764 = vmatpush.bf16.msra.mxu0 %v5991
        %7765 = vmatpush.bf16.msra.mxu0 %v5987
        %7766 = vmatpush.bf16.msra.mxu0 %v5983
        %7767 = vmatmul.bf16.gmra.mxu0 %v534
        %v7768 = vpop.f32.mrf.mxu0
        %v7769 = vadd.f32 %v7756, %v7768
        %v7770 = vpop.f32.mrf.mxu0
        %7771 = vdwg.mxu0
        %7772 = vmatpush.bf16.msra.mxu0 %v6043
        %7773 = vmatpush.bf16.msra.mxu0 %v6039
        %7774 = vmatpush.bf16.msra.mxu0 %v6035
        %7775 = vmatpush.bf16.msra.mxu0 %v6031
        %7776 = vmatpush.bf16.msra.mxu0 %v6027
        %7777 = vmatpush.bf16.msra.mxu0 %v6023
        %7778 = vmatpush.bf16.msra.mxu0 %v6019
        %7779 = vmatpush.bf16.msra.mxu0 %v6015
        %7780 = vmatmul.bf16.gmra.mxu0 %v535
        %v7781 = vpop.f32.mrf.mxu0
        %v7782 = vadd.f32 %v7769, %v7781
        %v7783 = vpop.f32.mrf.mxu0
        %7784 = vdwg.mxu0
        %7785 = vmatpush.bf16.msra.mxu0 %v6075
        %7786 = vmatpush.bf16.msra.mxu0 %v6071
        %7787 = vmatpush.bf16.msra.mxu0 %v6067
        %7788 = vmatpush.bf16.msra.mxu0 %v6063
        %7789 = vmatpush.bf16.msra.mxu0 %v6059
        %7790 = vmatpush.bf16.msra.mxu0 %v6055
        %7791 = vmatpush.bf16.msra.mxu0 %v6051
        %7792 = vmatpush.bf16.msra.mxu0 %v6047
        %7793 = vmatmul.bf16.gmra.mxu0 %v536
        %v7794 = vpop.f32.mrf.mxu0
        %v7795 = vadd.f32 %v7782, %v7794
        %v7796 = vpop.f32.mrf.mxu0
        %7797 = vdwg.mxu0
        %7798 = vmatpush.bf16.msra.mxu0 %v6107
        %7799 = vmatpush.bf16.msra.mxu0 %v6103
        %7800 = vmatpush.bf16.msra.mxu0 %v6099
        %7801 = vmatpush.bf16.msra.mxu0 %v6095
        %7802 = vmatpush.bf16.msra.mxu0 %v6091
        %7803 = vmatpush.bf16.msra.mxu0 %v6087
        %7804 = vmatpush.bf16.msra.mxu0 %v6083
        %7805 = vmatpush.bf16.msra.mxu0 %v6079
        %7806 = vmatmul.bf16.gmra.mxu0 %v537
        %v7807 = vpop.f32.mrf.mxu0
        %v7808 = vadd.f32 %v7795, %v7807
        %v7809 = vpop.f32.mrf.mxu0
        %7810 = vdwg.mxu0
        %7811 = vmatpush.bf16.msra.mxu0 %v6139
        %7812 = vmatpush.bf16.msra.mxu0 %v6135
        %7813 = vmatpush.bf16.msra.mxu0 %v6131
        %7814 = vmatpush.bf16.msra.mxu0 %v6127
        %7815 = vmatpush.bf16.msra.mxu0 %v6123
        %7816 = vmatpush.bf16.msra.mxu0 %v6119
        %7817 = vmatpush.bf16.msra.mxu0 %v6115
        %7818 = vmatpush.bf16.msra.mxu0 %v6111
        %7819 = vmatmul.bf16.gmra.mxu0 %v538
        %v7820 = vpop.f32.mrf.mxu0
        %v7821 = vadd.f32 %v7808, %v7820
        %v7822 = vpop.f32.mrf.mxu0
        %7823 = vdwg.mxu0
        %7824 = vmatpush.bf16.msra.mxu0 %v6171
        %7825 = vmatpush.bf16.msra.mxu0 %v6167
        %7826 = vmatpush.bf16.msra.mxu0 %v6163
        %7827 = vmatpush.bf16.msra.mxu0 %v6159
        %7828 = vmatpush.bf16.msra.mxu0 %v6155
        %7829 = vmatpush.bf16.msra.mxu0 %v6151
        %7830 = vmatpush.bf16.msra.mxu0 %v6147
        %7831 = vmatpush.bf16.msra.mxu0 %v6143
        %7832 = vmatmul.bf16.gmra.mxu0 %v539
        %v7833 = vpop.f32.mrf.mxu0
        %v7834 = vadd.f32 %v7821, %v7833
        %v7835 = vpop.f32.mrf.mxu0
        %7836 = vdwg.mxu0
        %v7841 = vrot.slane %v7002, 6
        %v7842 = vrot.slane %v7418, 4
        %v7843 = vrot.slane %v7834, 2
        %vm7844 = vcmask 1041408
        %v7845 = vsel %vm7844, %v6586, %v7841
        %vm7846 = vcmask 1045508
        %v7847 = vsel %vm7846, %v7842, %v7843
        %vm7848 = vcmask 1043456
        %v7849 = vsel %vm7848, %v7845, %v7847
        %v7851 = vadd.f32 %v6172, %v7849
        %7852 = vst [vmem:[#allocation2] sm:$0xff] %v7851
        %p7853 = scmp.eq.s32.totalorder %s27, 2
        // Predicated region
        $region81: #{discriminator_forward.1} parent=51 // pred_check
          %p7854 = pneg %p7853
        $region82: #{discriminator_forward.1} parent=51 // pred_check_branch
          %7856 = sbr.rel (%p7854) target = $region84
        $region83: #{discriminator_forward.1} parent=51 // pred_region
          %v7857 = vld [vmem:[#allocation2] sm:$0xff]
          %v7858 = vld [vmem:[#allocation6] sm:$0xf]
          %v7860 = vperm.slane %v7858, 0
          %v7861 = vperm.slane %v7858, 1
          %v7862 = vperm.slane %v7858, 2
          %v7863 = vperm.slane %v7858, 3
          %v7864 = vrot.slane %v7861, 6
          %v7865 = vrot.slane %v7862, 4
          %v7866 = vrot.slane %v7863, 2
          %v7867 = vsel %vm7844, %v7860, %v7864
          %v7868 = vsel %vm7846, %v7865, %v7866
          %v7869 = vsel %vm7848, %v7867, %v7868
          %v7871 = vmul.f32 %v7857, %v7869
          %v7872 = vld [vmem:[#allocation8] sm:$0xf]
          %v7874 = vperm.slane %v7872, 0
          %v7875 = vperm.slane %v7872, 1
          %v7876 = vperm.slane %v7872, 2
          %v7877 = vperm.slane %v7872, 3
          %v7878 = vrot.slane %v7875, 6
          %v7879 = vrot.slane %v7876, 4
          %v7880 = vrot.slane %v7877, 2
          %v7881 = vsel %vm7844, %v7874, %v7878
          %v7882 = vsel %vm7846, %v7879, %v7880
          %v7883 = vsel %vm7848, %v7881, %v7882
          %v7885 = vadd.f32 %v7871, %v7883
          %vm7886 = vcmp.gt.f32.partialorder %v7885, 0.0
          %v7887 = vmul.f32 %v7885, 0.2
          %v7888 = vsel %vm7886, %v7885, %v7887
          %7890 = vst [vmem:[#allocation1] ss:$4 sm:$0xff] %v7888
          %v7891 = vld.sshfl [vmem:[#allocation1] sm:$0xff pattern:$0x73625140]
          %v7892 = vld.sshfl [vmem:[#allocation1 + $0x8] sm:$0xff pattern:$0x73625140]
          %v7893 = vld.sshfl [vmem:[#allocation1 + $0x10] sm:$0xff pattern:$0x73625140]
          %v7894 = vld.sshfl [vmem:[#allocation1 + $0x18] sm:$0xff pattern:$0x73625140]
          %v7899 = vpack.c.bf16 %v7891, %v7891
          %v7900 = vpack.c.bf16 %v7892, %v7892
          %v7901 = vpack.c.bf16 %v7893, %v7893
          %v7902 = vpack.c.bf16 %v7894, %v7894
          %v7903 = vld [vmem:[#allocation9] sm:$0xff]
          %v7904 = vld [vmem:[#allocation9 + $0x8] sm:$0xff]
          %v7905 = vld [vmem:[#allocation9 + $0x10] sm:$0xff]
          %v7906 = vld [vmem:[#allocation9 + $0x18] sm:$0xff]
          %v7907 = vld [vmem:[#allocation9 + $0x20] sm:$0xff]
          %v7908 = vld [vmem:[#allocation9 + $0x28] sm:$0xff]
          %v7909 = vld [vmem:[#allocation9 + $0x30] sm:$0xff]
          %v7910 = vld [vmem:[#allocation9 + $0x38] sm:$0xff]
          %v7911 = vld [vmem:[#allocation9 + $0x40] sm:$0xff]
          %v7912 = vld [vmem:[#allocation9 + $0x48] sm:$0xff]
          %v7913 = vld [vmem:[#allocation9 + $0x50] sm:$0xff]
          %v7914 = vld [vmem:[#allocation9 + $0x58] sm:$0xff]
          %v7915 = vld [vmem:[#allocation9 + $0x60] sm:$0xff]
          %v7916 = vld [vmem:[#allocation9 + $0x68] sm:$0xff]
          %v7917 = vld [vmem:[#allocation9 + $0x70] sm:$0xff]
          %v7918 = vld [vmem:[#allocation9 + $0x78] sm:$0xff]
          %v7919 = vld [vmem:[#allocation9 + $0x80] sm:$0xff]
          %v7920 = vld [vmem:[#allocation9 + $0x88] sm:$0xff]
          %v7921 = vld [vmem:[#allocation9 + $0x90] sm:$0xff]
          %v7922 = vld [vmem:[#allocation9 + $0x98] sm:$0xff]
          %v7923 = vld [vmem:[#allocation9 + $0xa0] sm:$0xff]
          %v7924 = vld [vmem:[#allocation9 + $0xa8] sm:$0xff]
          %v7925 = vld [vmem:[#allocation9 + $0xb0] sm:$0xff]
          %v7926 = vld [vmem:[#allocation9 + $0xb8] sm:$0xff]
          %v7927 = vld [vmem:[#allocation9 + $0xc0] sm:$0xff]
          %v7928 = vld [vmem:[#allocation9 + $0xc8] sm:$0xff]
          %v7929 = vld [vmem:[#allocation9 + $0xd0] sm:$0xff]
          %v7930 = vld [vmem:[#allocation9 + $0xd8] sm:$0xff]
          %v7931 = vld [vmem:[#allocation9 + $0xe0] sm:$0xff]
          %v7932 = vld [vmem:[#allocation9 + $0xe8] sm:$0xff]
          %v7933 = vld [vmem:[#allocation9 + $0xf0] sm:$0xff]
          %v7934 = vld [vmem:[#allocation9 + $0xf8] sm:$0xff]
          %v7935 = vld [vmem:[#allocation9 + $0x100] sm:$0xff]
          %v7936 = vld [vmem:[#allocation9 + $0x108] sm:$0xff]
          %v7937 = vld [vmem:[#allocation9 + $0x110] sm:$0xff]
          %v7938 = vld [vmem:[#allocation9 + $0x118] sm:$0xff]
          %v7939 = vld [vmem:[#allocation9 + $0x120] sm:$0xff]
          %v7940 = vld [vmem:[#allocation9 + $0x128] sm:$0xff]
          %v7941 = vld [vmem:[#allocation9 + $0x130] sm:$0xff]
          %v7942 = vld [vmem:[#allocation9 + $0x138] sm:$0xff]
          %v7943 = vld [vmem:[#allocation9 + $0x140] sm:$0xff]
          %v7944 = vld [vmem:[#allocation9 + $0x148] sm:$0xff]
          %v7945 = vld [vmem:[#allocation9 + $0x150] sm:$0xff]
          %v7946 = vld [vmem:[#allocation9 + $0x158] sm:$0xff]
          %v7947 = vld [vmem:[#allocation9 + $0x160] sm:$0xff]
          %v7948 = vld [vmem:[#allocation9 + $0x168] sm:$0xff]
          %v7949 = vld [vmem:[#allocation9 + $0x170] sm:$0xff]
          %v7950 = vld [vmem:[#allocation9 + $0x178] sm:$0xff]
          %v7951 = vld [vmem:[#allocation9 + $0x180] sm:$0xff]
          %v7952 = vld [vmem:[#allocation9 + $0x188] sm:$0xff]
          %v7953 = vld [vmem:[#allocation9 + $0x190] sm:$0xff]
          %v7954 = vld [vmem:[#allocation9 + $0x198] sm:$0xff]
          %v7955 = vld [vmem:[#allocation9 + $0x1a0] sm:$0xff]
          %v7956 = vld [vmem:[#allocation9 + $0x1a8] sm:$0xff]
          %v7957 = vld [vmem:[#allocation9 + $0x1b0] sm:$0xff]
          %v7958 = vld [vmem:[#allocation9 + $0x1b8] sm:$0xff]
          %v7959 = vld [vmem:[#allocation9 + $0x1c0] sm:$0xff]
          %v7960 = vld [vmem:[#allocation9 + $0x1c8] sm:$0xff]
          %v7961 = vld [vmem:[#allocation9 + $0x1d0] sm:$0xff]
          %v7962 = vld [vmem:[#allocation9 + $0x1d8] sm:$0xff]
          %v7963 = vld [vmem:[#allocation9 + $0x1e0] sm:$0xff]
          %v7964 = vld [vmem:[#allocation9 + $0x1e8] sm:$0xff]
          %v7965 = vld [vmem:[#allocation9 + $0x1f0] sm:$0xff]
          %v7966 = vld [vmem:[#allocation9 + $0x1f8] sm:$0xff]
          %v7967 = vld [vmem:[#allocation11] sm:$0x3]
          %v7969 = vperm.slane %v7967, 0
          %v7970 = vperm.slane %v7967, 1
          %v8037 = vunpack.c.l.b16 %v7903
          %v8038 = vunpack.c.h.b16 %v7903
          %v8039 = vunpack.c.l.b16 %v7904
          %v8040 = vunpack.c.h.b16 %v7904
          %v8041 = vunpack.c.l.b16 %v7905
          %v8042 = vunpack.c.h.b16 %v7905
          %v8043 = vunpack.c.l.b16 %v7906
          %v8044 = vunpack.c.h.b16 %v7906
          %v8045 = vunpack.c.l.b16 %v7907
          %v8046 = vunpack.c.h.b16 %v7907
          %v8047 = vunpack.c.l.b16 %v7908
          %v8048 = vunpack.c.h.b16 %v7908
          %v8049 = vunpack.c.l.b16 %v7909
          %v8050 = vunpack.c.h.b16 %v7909
          %v8051 = vunpack.c.l.b16 %v7910
          %v8052 = vunpack.c.h.b16 %v7910
          %v8053 = vunpack.c.l.b16 %v7911
          %v8054 = vunpack.c.h.b16 %v7911
          %v8055 = vunpack.c.l.b16 %v7912
          %v8056 = vunpack.c.h.b16 %v7912
          %v8057 = vunpack.c.l.b16 %v7913
          %v8058 = vunpack.c.h.b16 %v7913
          %v8059 = vunpack.c.l.b16 %v7914
          %v8060 = vunpack.c.h.b16 %v7914
          %v8061 = vunpack.c.l.b16 %v7915
          %v8062 = vunpack.c.h.b16 %v7915
          %v8063 = vunpack.c.l.b16 %v7916
          %v8064 = vunpack.c.h.b16 %v7916
          %v8065 = vunpack.c.l.b16 %v7917
          %v8066 = vunpack.c.h.b16 %v7917
          %v8067 = vunpack.c.l.b16 %v7918
          %v8068 = vunpack.c.h.b16 %v7918
          %v8069 = vunpack.c.l.b16 %v7919
          %v8070 = vunpack.c.h.b16 %v7919
          %v8071 = vunpack.c.l.b16 %v7920
          %v8072 = vunpack.c.h.b16 %v7920
          %v8073 = vunpack.c.l.b16 %v7921
          %v8074 = vunpack.c.h.b16 %v7921
          %v8075 = vunpack.c.l.b16 %v7922
          %v8076 = vunpack.c.h.b16 %v7922
          %v8077 = vunpack.c.l.b16 %v7923
          %v8078 = vunpack.c.h.b16 %v7923
          %v8079 = vunpack.c.l.b16 %v7924
          %v8080 = vunpack.c.h.b16 %v7924
          %v8081 = vunpack.c.l.b16 %v7925
          %v8082 = vunpack.c.h.b16 %v7925
          %v8083 = vunpack.c.l.b16 %v7926
          %v8084 = vunpack.c.h.b16 %v7926
          %v8085 = vunpack.c.l.b16 %v7927
          %v8086 = vunpack.c.h.b16 %v7927
          %v8087 = vunpack.c.l.b16 %v7928
          %v8088 = vunpack.c.h.b16 %v7928
          %v8089 = vunpack.c.l.b16 %v7929
          %v8090 = vunpack.c.h.b16 %v7929
          %v8091 = vunpack.c.l.b16 %v7930
          %v8092 = vunpack.c.h.b16 %v7930
          %v8093 = vunpack.c.l.b16 %v7931
          %v8094 = vunpack.c.h.b16 %v7931
          %v8095 = vunpack.c.l.b16 %v7932
          %v8096 = vunpack.c.h.b16 %v7932
          %v8097 = vunpack.c.l.b16 %v7933
          %v8098 = vunpack.c.h.b16 %v7933
          %v8099 = vunpack.c.l.b16 %v7934
          %v8100 = vunpack.c.h.b16 %v7934
          %v8101 = vunpack.c.l.b16 %v7935
          %v8102 = vunpack.c.h.b16 %v7935
          %v8103 = vunpack.c.l.b16 %v7936
          %v8104 = vunpack.c.h.b16 %v7936
          %v8105 = vunpack.c.l.b16 %v7937
          %v8106 = vunpack.c.h.b16 %v7937
          %v8107 = vunpack.c.l.b16 %v7938
          %v8108 = vunpack.c.h.b16 %v7938
          %v8109 = vunpack.c.l.b16 %v7939
          %v8110 = vunpack.c.h.b16 %v7939
          %v8111 = vunpack.c.l.b16 %v7940
          %v8112 = vunpack.c.h.b16 %v7940
          %v8113 = vunpack.c.l.b16 %v7941
          %v8114 = vunpack.c.h.b16 %v7941
          %v8115 = vunpack.c.l.b16 %v7942
          %v8116 = vunpack.c.h.b16 %v7942
          %v8117 = vunpack.c.l.b16 %v7943
          %v8118 = vunpack.c.h.b16 %v7943
          %v8119 = vunpack.c.l.b16 %v7944
          %v8120 = vunpack.c.h.b16 %v7944
          %v8121 = vunpack.c.l.b16 %v7945
          %v8122 = vunpack.c.h.b16 %v7945
          %v8123 = vunpack.c.l.b16 %v7946
          %v8124 = vunpack.c.h.b16 %v7946
          %v8125 = vunpack.c.l.b16 %v7947
          %v8126 = vunpack.c.h.b16 %v7947
          %v8127 = vunpack.c.l.b16 %v7948
          %v8128 = vunpack.c.h.b16 %v7948
          %v8129 = vunpack.c.l.b16 %v7949
          %v8130 = vunpack.c.h.b16 %v7949
          %v8131 = vunpack.c.l.b16 %v7950
          %v8132 = vunpack.c.h.b16 %v7950
          %v8133 = vunpack.c.l.b16 %v7951
          %v8134 = vunpack.c.h.b16 %v7951
          %v8135 = vunpack.c.l.b16 %v7952
          %v8136 = vunpack.c.h.b16 %v7952
          %v8137 = vunpack.c.l.b16 %v7953
          %v8138 = vunpack.c.h.b16 %v7953
          %v8139 = vunpack.c.l.b16 %v7954
          %v8140 = vunpack.c.h.b16 %v7954
          %v8141 = vunpack.c.l.b16 %v7955
          %v8142 = vunpack.c.h.b16 %v7955
          %v8143 = vunpack.c.l.b16 %v7956
          %v8144 = vunpack.c.h.b16 %v7956
          %v8145 = vunpack.c.l.b16 %v7957
          %v8146 = vunpack.c.h.b16 %v7957
          %v8147 = vunpack.c.l.b16 %v7958
          %v8148 = vunpack.c.h.b16 %v7958
          %v8149 = vunpack.c.l.b16 %v7959
          %v8150 = vunpack.c.h.b16 %v7959
          %v8151 = vunpack.c.l.b16 %v7960
          %v8152 = vunpack.c.h.b16 %v7960
          %v8153 = vunpack.c.l.b16 %v7961
          %v8154 = vunpack.c.h.b16 %v7961
          %v8155 = vunpack.c.l.b16 %v7962
          %v8156 = vunpack.c.h.b16 %v7962
          %v8157 = vunpack.c.l.b16 %v7963
          %v8158 = vunpack.c.h.b16 %v7963
          %v8159 = vunpack.c.l.b16 %v7964
          %v8160 = vunpack.c.h.b16 %v7964
          %v8161 = vunpack.c.l.b16 %v7965
          %v8162 = vunpack.c.h.b16 %v7965
          %v8163 = vunpack.c.l.b16 %v7966
          %v8164 = vunpack.c.h.b16 %v7966
          %v8165 = vpack.c.b16 %v8039, %v8037
          %v8166 = vpack.c.b16 %v8040, %v8038
          %v8167 = vpack.c.b16 %v8043, %v8041
          %v8168 = vpack.c.b16 %v8044, %v8042
          %v8169 = vpack.c.b16 %v8047, %v8045
          %v8170 = vpack.c.b16 %v8048, %v8046
          %v8171 = vpack.c.b16 %v8051, %v8049
          %v8172 = vpack.c.b16 %v8052, %v8050
          %v8173 = vpack.c.b16 %v8055, %v8053
          %v8174 = vpack.c.b16 %v8056, %v8054
          %v8175 = vpack.c.b16 %v8059, %v8057
          %v8176 = vpack.c.b16 %v8060, %v8058
          %v8177 = vpack.c.b16 %v8063, %v8061
          %v8178 = vpack.c.b16 %v8064, %v8062
          %v8179 = vpack.c.b16 %v8067, %v8065
          %v8180 = vpack.c.b16 %v8068, %v8066
          %v8181 = vpack.c.b16 %v8071, %v8069
          %v8182 = vpack.c.b16 %v8072, %v8070
          %v8183 = vpack.c.b16 %v8075, %v8073
          %v8184 = vpack.c.b16 %v8076, %v8074
          %v8185 = vpack.c.b16 %v8079, %v8077
          %v8186 = vpack.c.b16 %v8080, %v8078
          %v8187 = vpack.c.b16 %v8083, %v8081
          %v8188 = vpack.c.b16 %v8084, %v8082
          %v8189 = vpack.c.b16 %v8087, %v8085
          %v8190 = vpack.c.b16 %v8088, %v8086
          %v8191 = vpack.c.b16 %v8091, %v8089
          %v8192 = vpack.c.b16 %v8092, %v8090
          %v8193 = vpack.c.b16 %v8095, %v8093
          %v8194 = vpack.c.b16 %v8096, %v8094
          %v8195 = vpack.c.b16 %v8099, %v8097
          %v8196 = vpack.c.b16 %v8100, %v8098
          %v8197 = vpack.c.b16 %v8103, %v8101
          %v8198 = vpack.c.b16 %v8104, %v8102
          %v8199 = vpack.c.b16 %v8107, %v8105
          %v8200 = vpack.c.b16 %v8108, %v8106
          %v8201 = vpack.c.b16 %v8111, %v8109
          %v8202 = vpack.c.b16 %v8112, %v8110
          %v8203 = vpack.c.b16 %v8115, %v8113
          %v8204 = vpack.c.b16 %v8116, %v8114
          %v8205 = vpack.c.b16 %v8119, %v8117
          %v8206 = vpack.c.b16 %v8120, %v8118
          %v8207 = vpack.c.b16 %v8123, %v8121
          %v8208 = vpack.c.b16 %v8124, %v8122
          %v8209 = vpack.c.b16 %v8127, %v8125
          %v8210 = vpack.c.b16 %v8128, %v8126
          %v8211 = vpack.c.b16 %v8131, %v8129
          %v8212 = vpack.c.b16 %v8132, %v8130
          %v8213 = vpack.c.b16 %v8135, %v8133
          %v8214 = vpack.c.b16 %v8136, %v8134
          %v8215 = vpack.c.b16 %v8139, %v8137
          %v8216 = vpack.c.b16 %v8140, %v8138
          %v8217 = vpack.c.b16 %v8143, %v8141
          %v8218 = vpack.c.b16 %v8144, %v8142
          %v8219 = vpack.c.b16 %v8147, %v8145
          %v8220 = vpack.c.b16 %v8148, %v8146
          %v8221 = vpack.c.b16 %v8151, %v8149
          %v8222 = vpack.c.b16 %v8152, %v8150
          %v8223 = vpack.c.b16 %v8155, %v8153
          %v8224 = vpack.c.b16 %v8156, %v8154
          %v8225 = vpack.c.b16 %v8159, %v8157
          %v8226 = vpack.c.b16 %v8160, %v8158
          %v8227 = vpack.c.b16 %v8163, %v8161
          %v8228 = vpack.c.b16 %v8164, %v8162
          %8293 = vmatpush.bf16.msra.mxu0 %v8179
          %8294 = vmatpush.bf16.msra.mxu0 %v8177
          %8295 = vmatpush.bf16.msra.mxu0 %v8175
          %8296 = vmatpush.bf16.msra.mxu0 %v8173
          %8297 = vmatpush.bf16.msra.mxu0 %v8171
          %8298 = vmatpush.bf16.msra.mxu0 %v8169
          %8299 = vmatpush.bf16.msra.mxu0 %v8167
          %8300 = vmatpush.bf16.msra.mxu0 %v8165
          %8301 = vmatmul.bf16.gmra.mxu0 %v7899
          %v8302 = vpop.f32.mrf.mxu0
          %v8303 = vadd.f32 %v7969, %v8302
          %v8304 = vpop.f32.mrf.mxu0
          %8305 = vdwg.mxu0
          %8306 = vmatpush.bf16.msra.mxu0 %v8195
          %8307 = vmatpush.bf16.msra.mxu0 %v8193
          %8308 = vmatpush.bf16.msra.mxu0 %v8191
          %8309 = vmatpush.bf16.msra.mxu0 %v8189
          %8310 = vmatpush.bf16.msra.mxu0 %v8187
          %8311 = vmatpush.bf16.msra.mxu0 %v8185
          %8312 = vmatpush.bf16.msra.mxu0 %v8183
          %8313 = vmatpush.bf16.msra.mxu0 %v8181
          %8314 = vmatmul.bf16.gmra.mxu0 %v7900
          %v8315 = vpop.f32.mrf.mxu0
          %v8316 = vadd.f32 %v8303, %v8315
          %v8317 = vpop.f32.mrf.mxu0
          %8318 = vdwg.mxu0
          %8319 = vmatpush.bf16.msra.mxu0 %v8211
          %8320 = vmatpush.bf16.msra.mxu0 %v8209
          %8321 = vmatpush.bf16.msra.mxu0 %v8207
          %8322 = vmatpush.bf16.msra.mxu0 %v8205
          %8323 = vmatpush.bf16.msra.mxu0 %v8203
          %8324 = vmatpush.bf16.msra.mxu0 %v8201
          %8325 = vmatpush.bf16.msra.mxu0 %v8199
          %8326 = vmatpush.bf16.msra.mxu0 %v8197
          %8327 = vmatmul.bf16.gmra.mxu0 %v7901
          %v8328 = vpop.f32.mrf.mxu0
          %v8329 = vadd.f32 %v8316, %v8328
          %v8330 = vpop.f32.mrf.mxu0
          %8331 = vdwg.mxu0
          %8332 = vmatpush.bf16.msra.mxu0 %v8227
          %8333 = vmatpush.bf16.msra.mxu0 %v8225
          %8334 = vmatpush.bf16.msra.mxu0 %v8223
          %8335 = vmatpush.bf16.msra.mxu0 %v8221
          %8336 = vmatpush.bf16.msra.mxu0 %v8219
          %8337 = vmatpush.bf16.msra.mxu0 %v8217
          %8338 = vmatpush.bf16.msra.mxu0 %v8215
          %8339 = vmatpush.bf16.msra.mxu0 %v8213
          %8340 = vmatmul.bf16.gmra.mxu0 %v7902
          %v8341 = vpop.f32.mrf.mxu0
          %v8342 = vadd.f32 %v8329, %v8341
          %v8343 = vpop.f32.mrf.mxu0
          %8344 = vdwg.mxu0
          %8345 = vmatpush.bf16.msra.mxu0 %v8180
          %8346 = vmatpush.bf16.msra.mxu0 %v8178
          %8347 = vmatpush.bf16.msra.mxu0 %v8176
          %8348 = vmatpush.bf16.msra.mxu0 %v8174
          %8349 = vmatpush.bf16.msra.mxu0 %v8172
          %8350 = vmatpush.bf16.msra.mxu0 %v8170
          %8351 = vmatpush.bf16.msra.mxu0 %v8168
          %8352 = vmatpush.bf16.msra.mxu0 %v8166
          %8353 = vmatmul.bf16.gmra.mxu0 %v7899
          %v8354 = vpop.f32.mrf.mxu0
          %v8355 = vadd.f32 %v7970, %v8354
          %v8356 = vpop.f32.mrf.mxu0
          %8357 = vdwg.mxu0
          %8358 = vmatpush.bf16.msra.mxu0 %v8196
          %8359 = vmatpush.bf16.msra.mxu0 %v8194
          %8360 = vmatpush.bf16.msra.mxu0 %v8192
          %8361 = vmatpush.bf16.msra.mxu0 %v8190
          %8362 = vmatpush.bf16.msra.mxu0 %v8188
          %8363 = vmatpush.bf16.msra.mxu0 %v8186
          %8364 = vmatpush.bf16.msra.mxu0 %v8184
          %8365 = vmatpush.bf16.msra.mxu0 %v8182
          %8366 = vmatmul.bf16.gmra.mxu0 %v7900
          %v8367 = vpop.f32.mrf.mxu0
          %v8368 = vadd.f32 %v8355, %v8367
          %v8369 = vpop.f32.mrf.mxu0
          %8370 = vdwg.mxu0
          %8371 = vmatpush.bf16.msra.mxu0 %v8212
          %8372 = vmatpush.bf16.msra.mxu0 %v8210
          %8373 = vmatpush.bf16.msra.mxu0 %v8208
          %8374 = vmatpush.bf16.msra.mxu0 %v8206
          %8375 = vmatpush.bf16.msra.mxu0 %v8204
          %8376 = vmatpush.bf16.msra.mxu0 %v8202
          %8377 = vmatpush.bf16.msra.mxu0 %v8200
          %8378 = vmatpush.bf16.msra.mxu0 %v8198
          %8379 = vmatmul.bf16.gmra.mxu0 %v7901
          %v8380 = vpop.f32.mrf.mxu0
          %v8381 = vadd.f32 %v8368, %v8380
          %v8382 = vpop.f32.mrf.mxu0
          %8383 = vdwg.mxu0
          %8384 = vmatpush.bf16.msra.mxu0 %v8228
          %8385 = vmatpush.bf16.msra.mxu0 %v8226
          %8386 = vmatpush.bf16.msra.mxu0 %v8224
          %8387 = vmatpush.bf16.msra.mxu0 %v8222
          %8388 = vmatpush.bf16.msra.mxu0 %v8220
          %8389 = vmatpush.bf16.msra.mxu0 %v8218
          %8390 = vmatpush.bf16.msra.mxu0 %v8216
          %8391 = vmatpush.bf16.msra.mxu0 %v8214
          %8392 = vmatmul.bf16.gmra.mxu0 %v7902
          %v8393 = vpop.f32.mrf.mxu0
          %v8394 = vadd.f32 %v8381, %v8393
          %v8395 = vpop.f32.mrf.mxu0
          %8396 = vdwg.mxu0
          %vm8397 = vcmp.gt.f32.partialorder %v8342, 0.0
          %vm8398 = vcmp.gt.f32.partialorder %v8394, 0.0
          %v8399 = vmul.f32 %v8342, 0.2
          %v8400 = vmul.f32 %v8394, 0.2
          %v8401 = vsel %vm8397, %v8342, %v8399
          %v8402 = vsel %vm8398, %v8394, %v8400
          %v8403 = vld [vmem:[#allocation12] sm:$0x3]
          %v8405 = vperm.slane %v8403, 0
          %v8406 = vperm.slane %v8403, 1
          %v8409 = vmul.f32 %v8401, %v8405
          %v8410 = vmul.f32 %v8402, %v8406
          %v8411 = vsel %vm7844, %v8409, 0.0
          %v8412 = vsel %vm7844, %v8410, 0.0
          %v8413 = vadd.f32 %v8411, %v8412
          %8414 = vadd.xlane.f32.xlu0 %v8413
          %v8415 = vpop.xlane.xlu0 %8414
          %v8416 = vld [vmem:[#allocation3] sm:$0x1]
          %v8418 = vperm.slane %v8416, 0
          %v8420 = vadd.f32 %v8415, %v8418
          %vm8421 = vcmask 1024
          %8422 = vst.msk [vmem:[%s8] sm:$0x3] %vm8421, %v8420
        $region84: #{discriminator_forward.1} parent=51 // pred_fallthru
          _
        // Predicated region
        $region85: #{discriminator_forward.1} parent=51 // pred_check
          %p8423 = pneg %p218
        $region86: #{discriminator_forward.1} parent=51 // pred_check_branch
          %8425 = sbr.rel (%p8423) target = $region88
        $region87: #{discriminator_forward.1} parent=51 // pred_region
          _
        $region88: #{discriminator_forward.1} parent=51 // pred_fallthru
          _
        // Predicated region
        $region89: #{discriminator_forward.1} parent=51 // pred_check
          %p8426 = pneg %p218
        $region90: #{discriminator_forward.1} parent=51 // pred_check_branch
          %8428 = sbr.rel (%p8426) target = $region92
        $region91: #{discriminator_forward.1} parent=51 // pred_region
          _
        $region92: #{discriminator_forward.1} parent=51 // pred_fallthru
          _
      $region52: #{discriminator_forward.1} parent=5 // pred_fallthru
        _
      %p8429 = scmp.le.s32.totalorder 2, %s22
      // Predicated region
      $region93: #{discriminator_forward.1} parent=5 // pred_check
        %p8430 = pneg %p8429
      $region94: #{discriminator_forward.1} parent=5 // pred_check_branch
        %8432 = sbr.rel (%p8430) target = $region96
      $region95: #{discriminator_forward.1} parent=5 // pred_region
        %s8433 = ssub.s32 %s22, 2
      $region96: #{discriminator_forward.1} parent=5 // pred_fallthru
        _
    $region6: #{discriminator_forward.1} parent=1 // loop_footer
      %s26 = sadd.s32 1, %s22
    $region7: #{discriminator_forward.1} parent=1 // loop_footer_branch
      %21 = sbr.rel target = $region3
    $region8: #{discriminator_forward.1} parent=1 // loop_exit
      _
    %8434 = vsyncpa [#allocation5], 1
    %s8435 = scalar_lea.sflag [#allocation5], 1
    %8436 = vsyncpa %s8435, 1
    %8437 = vsyncpa [#allocation7], 1
    %8438 = vsyncpa [#allocation10], 1
    %8439 = vsyncpa [#allocation13], 1

</llo_original>
